<compile_context>
chip_gen: v7x
topology: tpu7x:2x2x1
jax: 0.10.0
libtpu: 0.0.40
codegen_flags: <defaults>
</compile_context>

<pallas_src>
import functools

import jax
import jax.numpy as jnp
from jax.experimental import pallas as pl
from jax.experimental.pallas import tpu as pltpu


# ---------------------------------------------------------------------------
# Fused kernel
# ---------------------------------------------------------------------------
def _elu(y):
    # ELU(alpha=1); exp of the clamped negative branch keeps the positive side exact.
    return jnp.where(y > 0.0, y, jnp.exp(jnp.minimum(y, 0.0)) - 1.0)


def _eegnet_kernel(x1t_ref, w1_ref, b1_ref, g1_ref, be1_ref,
                   t2_ref, b2_ref, s2c_ref, s2r_ref,
                   t3_ref, b3_ref, s3c_ref, s3r_ref,
                   wfb_ref, sfc_ref, sc_ref,
                   o_ref, xp2_ref, l3_ref):
    f32 = jnp.float32
    B = o_ref.shape[0]
    T = 120

    # ---- conv1 (1,64) + bias + ELU + BN1 (batch stats, eps=0) ---------------
    # Layout: (16 channels, B*T) -> lane-dense along batch*time.
    a = jnp.dot(w1_ref[...], x1t_ref[...], preferred_element_type=f32)
    a = _elu(a + b1_ref[...])
    m1 = jnp.mean(a, axis=1, keepdims=True)
    v1 = jnp.maximum(jnp.mean(a * a, axis=1, keepdims=True) - m1 * m1, 0.0)
    a = (a - m1) * jax.lax.rsqrt(v1) * g1_ref[...] + be1_ref[...]
    # TODO(synk): F.dropout(p=0.25) is stochastic; applied as identity here.

    # ---- permute(0,3,1,2) + ZeroPad2d((16,17,0,1)) into a VMEM scratch ------
    xp2_ref[...] = jnp.zeros(xp2_ref.shape, f32)
    for b in range(B):
        xp2_ref[b, 0:16, 16:16 + T] = a[:, b * T:(b + 1) * T]

    # ---- conv2 (2,32): two Toeplitz matmuls per batch + bias + ELU ----------
    # Columns of the result are (out_channel, width) = 4*122, lane-dense.
    c2 = []
    for b in range(B):
        y = jnp.dot(xp2_ref[b, 0:16, :], t2_ref[0], preferred_element_type=f32)
        y = y + jnp.dot(xp2_ref[b, 1:17, :], t2_ref[1], preferred_element_type=f32)
        c2.append(_elu(y + b2_ref[...]))                       # (16, 488)

    # ---- BN2 + MaxPool2d(2,4) + ZeroPad2d((2,1,4,3)) scattered into L3 ------
    # L3 holds the conv3 "im2row" operand: one 128-lane-aligned slot per
    # (in_channel, kh) tap pair, rows = (batch, out_row).
    l3_ref[...] = jnp.zeros(l3_ref.shape, f32)
    inv2 = 1.0 / (B * 16 * 122)
    for co in range(4):
        blks = [c[:, co * 122:(co + 1) * 122] for c in c2]     # (16,122) per batch
        tot = sum(jnp.sum(jnp.sum(t, axis=1, keepdims=True), axis=0, keepdims=True)
                  for t in blks)
        tot2 = sum(jnp.sum(jnp.sum(t * t, axis=1, keepdims=True), axis=0, keepdims=True)
                   for t in blks)
        mean = tot * inv2
        var = jnp.maximum(tot2 * inv2 - mean * mean, 0.0)
        scale = jax.lax.rsqrt(var) * sc_ref[0 + co]            # gamma2[co]
        shift = sc_ref[4 + co] - mean * scale                  # beta2[co]
        for b in range(B):
            nb = blks[b] * scale + shift                       # (16,122)
            # MaxPool2d(kernel=2, stride=4): pairwise max + 0/1 selection matmuls.
            cp = jnp.maximum(nb[:, 0:121], nb[:, 1:122])       # width pairs
            cs = jnp.dot(cp, s2c_ref[...], preferred_element_type=f32)   # (16,31)
            rp = jnp.maximum(cs[0:15, :], cs[1:16, :])         # height pairs
            p2 = jnp.dot(s2r_ref[...], rp, preferred_element_type=f32)   # (4,31)
            # ZeroPad2d((2,1,4,3)) + conv3 height taps: place the pooled block
            # into the lane-aligned (ci, kh) slots of L3.
            for kh in range(1, 8):
                i_lo, i_hi = max(0, 4 - kh), min(4, 8 - kh)
                r_lo, r_hi = max(kh - 4, 0), min(kh, 4)
                col = 128 * (co * 8 + kh)
                l3_ref[b * 4 + i_lo:b * 4 + i_hi, col:col + 31] = p2[r_lo:r_hi, :]

    # ---- conv3 (8,4): single (4B,4096)x(4096,124) matmul + bias + ELU -------
    o3 = jnp.dot(l3_ref[...], t3_ref[...], preferred_element_type=f32)
    o3 = _elu(o3 + b3_ref[...])                                # (4B, 4*31)

    # ---- BN3 + MaxPool2d((2,4)) + fc1 + sigmoid ------------------------------
    inv3 = 1.0 / (B * 4 * 31)
    acc = jnp.zeros((2 * B, 1), f32)
    for co in range(4):
        blk = o3[:, co * 31:(co + 1) * 31]                     # (4B, 31)
        tot = jnp.sum(jnp.sum(blk, axis=1, keepdims=True), axis=0, keepdims=True)
        tot2 = jnp.sum(jnp.sum(blk * blk, axis=1, keepdims=True), axis=0, keepdims=True)
        mean = tot * inv3
        var = jnp.maximum(tot2 * inv3 - mean * mean, 0.0)
        scale = jax.lax.rsqrt(var) * sc_ref[8 + co]            # gamma3[co]
        shift = sc_ref[12 + co] - mean * scale                 # beta3[co]
        nb = blk * scale + shift                               # (4B, 31)
        # MaxPool2d(kernel=(2,4), stride=(2,4)).
        cm = jnp.maximum(jnp.maximum(nb[:, 0:28], nb[:, 1:29]),
                         jnp.maximum(nb[:, 2:30], nb[:, 3:31]))
        cs = jnp.dot(cm, s3c_ref[...], preferred_element_type=f32)       # (4B, 7)
        rp = jnp.maximum(cs[0:4 * B - 1, :], cs[1:4 * B, :])             # (4B-1, 7)
        p3 = jnp.dot(s3r_ref[...], rp, preferred_element_type=f32)       # (2B, 7)
        # fc1 partial sums (epilogue; no separate kernel / MXU launch needed).
        acc = acc + jnp.sum(p3 * wfb_ref[co * 2 * B:(co + 1) * 2 * B, :],
                            axis=1, keepdims=True)

    logit = jnp.dot(sfc_ref[...], acc, preferred_element_type=f32) + sc_ref[16]
    o_ref[...] = 1.0 / (1.0 + jnp.exp(-logit))


# ---------------------------------------------------------------------------
# pallas_call wrapper (single launch, everything VMEM-resident)
# ---------------------------------------------------------------------------
def _full_spec(a):
    shp = a.shape
    return pl.BlockSpec(shp, lambda i, n=len(shp): (0,) * n)


def eegnet_forward(x, prep):
    B = x.shape[0]
    # conv1 consumes the full 64-wide last dim; present it transposed so the
    # kernel's conv1 output is lane-dense (lanes = batch*time).
    x1t = x.reshape(B * 120, 64).T                             # (64, B*120)

    inputs = [x1t, prep["w1"], prep["b1"], prep["g1"], prep["be1"],
              prep["t2"], prep["b2"], prep["s2c"], prep["s2r"],
              prep["t3"], prep["b3"], prep["s3c"], prep["s3r"],
              prep["wfb"], prep["sfc"], prep["sc"]]

    in_specs = [_full_spec(a) for a in inputs[:-1]]
    in_specs.append(pl.BlockSpec(memory_space=pltpu.MemorySpace.SMEM))

    return pl.pallas_call(
        _eegnet_kernel,
        out_shape=jax.ShapeDtypeStruct((B, 1), jnp.float32),
        grid=(1,),
        in_specs=in_specs,
        out_specs=pl.BlockSpec((B, 1), lambda i: (0, 0)),
        scratch_shapes=[
            pltpu.VMEM((B, 17, 153), jnp.float32),             # padded conv2 input
            pltpu.VMEM((4 * B, 32 * 128), jnp.float32),        # conv3 im2row slab
        ],
        compiler_params=pltpu.CompilerParams(
            dimension_semantics=("arbitrary",)),
    )(*inputs)


# ---------------------------------------------------------------------------
# One-time parameter preparation (outside jit): flatten/transpose weights,
# build Toeplitz conv matrices and 0/1 pooling-selection matrices.
# ---------------------------------------------------------------------------
def prepare_params(params, batch):
    f32 = jnp.float32
    B = batch

    w1 = params["w1"].reshape(16, 64).astype(f32)
    b1 = params["b1"].reshape(16, 1).astype(f32)
    g1 = params["g1"].reshape(16, 1).astype(f32)
    be1 = params["be1"].reshape(16, 1).astype(f32)

    # conv2 (2,32): per-kh Toeplitz over the padded width (153 -> 122),
    # the 4 output channels laid side by side on lanes -> (2, 153, 4*122).
    w2 = params["w2"].reshape(4, 2, 32).astype(f32)            # (co, kh, kw)
    kw2 = jnp.arange(153)[:, None] - jnp.arange(122)[None, :]
    m2 = (kw2 >= 0) & (kw2 < 32)
    t2 = jnp.where(m2[None, None], w2[:, :, jnp.clip(kw2, 0, 31)], 0.0)
    t2 = jnp.transpose(t2, (1, 2, 0, 3)).reshape(2, 153, 4 * 122)
    b2 = jnp.repeat(params["b2"].reshape(4).astype(f32), 122).reshape(1, 4 * 122)

    # conv3 (8,4) over 4 input channels: one 128-row-aligned Toeplitz block per
    # (ci, kh); row u inside a block corresponds to padded width w = u + 2.
    w3 = params["w3"].astype(f32)                              # (co, ci, kh, kw)
    kw3 = jnp.arange(31)[:, None] + 2 - jnp.arange(31)[None, :]
    m3 = (kw3 >= 0) & (kw3 < 4)
    blk = jnp.where(m3[None, None, None], w3[:, :, :, jnp.clip(kw3, 0, 3)], 0.0)
    blk = jnp.transpose(blk, (1, 2, 3, 0, 4)).reshape(32, 31, 4 * 31)
    t3 = jnp.pad(blk, ((0, 0), (0, 128 - 31), (0, 0))).reshape(32 * 128, 4 * 31)
    b3 = jnp.repeat(params["b3"].reshape(4).astype(f32), 31).reshape(1, 4 * 31)

    # 0/1 selection matrices implementing the strided picks of the max-pools.
    s2c = (jnp.arange(121)[:, None] == 4 * jnp.arange(31)[None, :]).astype(f32)
    s2r = (jnp.arange(15)[None, :] == 4 * jnp.arange(4)[:, None]).astype(f32)
    s3c = (jnp.arange(28)[:, None] == 4 * jnp.arange(7)[None, :]).astype(f32)
    rows = jnp.arange(2 * B)
    s3r = (jnp.arange(4 * B - 1)[None, :] ==
           ((rows // 2) * 4 + (rows % 2) * 2)[:, None]).astype(f32)
    sfc = ((jnp.arange(2 * B)[None, :] // 2) == jnp.arange(B)[:, None]).astype(f32)

    # fc1 weights regrouped per conv3 output channel and tiled over batch.
    wf = params["wf"].reshape(4, 2, 7).astype(f32)             # (co, pi, pj)
    wfb = jnp.tile(wf[:, None], (1, B, 1, 1)).reshape(4 * 2 * B, 7)

    # Per-channel BN affine params + fc bias as SMEM scalars.
    sc = jnp.concatenate([params["g2"].reshape(4), params["be2"].reshape(4),
                          params["g3"].reshape(4), params["be3"].reshape(4),
                          params["bf"].reshape(1)]).astype(f32)

    return {"w1": w1, "b1": b1, "g1": g1, "be1": be1,
            "t2": t2, "b2": b2, "s2c": s2c, "s2r": s2r,
            "t3": t3, "b3": b3, "s3c": s3c, "s3r": s3r,
            "wfb": wfb, "sfc": sfc, "sc": sc}


# ---------------------------------------------------------------------------
# Deterministic parameter init (shapes from EEGNet.__init__)
# ---------------------------------------------------------------------------
def init_params(key):
    ks = jax.random.split(key, 8)
    s = 0.1
    return {
        "w1": s * jax.random.normal(ks[0], (16, 1, 1, 64), jnp.float32),
        "b1": s * jax.random.normal(ks[1], (16,), jnp.float32),
        "g1": jnp.ones((16,), jnp.float32), "be1": jnp.zeros((16,), jnp.float32),
        "w2": s * jax.random.normal(ks[2], (4, 1, 2, 32), jnp.float32),
        "b2": s * jax.random.normal(ks[3], (4,), jnp.float32),
        "g2": jnp.ones((4,), jnp.float32), "be2": jnp.zeros((4,), jnp.float32),
        "w3": s * jax.random.normal(ks[4], (4, 4, 8, 4), jnp.float32),
        "b3": s * jax.random.normal(ks[5], (4,), jnp.float32),
        "g3": jnp.ones((4,), jnp.float32), "be3": jnp.zeros((4,), jnp.float32),
        "wf": s * jax.random.normal(ks[6], (1, 56), jnp.float32),
        "bf": s * jax.random.normal(ks[7], (1,), jnp.float32),
    }


if __name__ == "__main__":
    key = jax.random.PRNGKey(0)
    pkey, xkey = jax.random.split(key)
    params = init_params(pkey)

    # The architecture forces the input spatial shape: W must be exactly 64
    # (conv1 (1,64) collapses it) and H=120 yields the 4*2*7 fc features.
    B = 2
    x = jax.random.normal(xkey, (B, 1, 120, 64), jnp.float32)  # NCHW

    prep = prepare_params(params, B)                           # once, outside jit
    fwd = jax.jit(eegnet_forward)
    out = jax.block_until_ready(fwd(x, prep))

    assert out.shape == (B, 1)
    assert bool(jnp.all(jnp.isfinite(out)))
    print("KERNEL_OK")
</pallas_src>

<mosaic_0001>
module attributes {stable_mosaic.version = 11 : i64} {
  func.func @_eegnet_kernel(%arg0: i32, %arg1: memref<64x240xf32, #tpu.memory_space<vmem>>, %arg2: memref<16x64xf32, #tpu.memory_space<vmem>>, %arg3: memref<16x1xf32, #tpu.memory_space<vmem>>, %arg4: memref<16x1xf32, #tpu.memory_space<vmem>>, %arg5: memref<16x1xf32, #tpu.memory_space<vmem>>, %arg6: memref<2x153x488xf32, #tpu.memory_space<vmem>>, %arg7: memref<1x488xf32, #tpu.memory_space<vmem>>, %arg8: memref<121x31xf32, #tpu.memory_space<vmem>>, %arg9: memref<4x15xf32, #tpu.memory_space<vmem>>, %arg10: memref<4096x124xf32, #tpu.memory_space<vmem>>, %arg11: memref<1x124xf32, #tpu.memory_space<vmem>>, %arg12: memref<28x7xf32, #tpu.memory_space<vmem>>, %arg13: memref<4x7xf32, #tpu.memory_space<vmem>>, %arg14: memref<16x7xf32, #tpu.memory_space<vmem>>, %arg15: memref<2x4xf32, #tpu.memory_space<vmem>>, %arg16: memref<17xf32, #tpu.memory_space<smem>>, %arg17: memref<2x1xf32, #tpu.memory_space<vmem>>, %arg18: memref<2x17x153xf32, #tpu.memory_space<vmem>>, %arg19: memref<8x4096xf32, #tpu.memory_space<vmem>>) attributes {dimension_semantics = [#tpu.dimension_semantics<arbitrary>], iteration_bounds = array<i64: 1>, scalar_prefetch = 0 : i64, scratch_operands = 2 : i64, tpu.core_type = #tpu.core_type<tc>, window_params = [{pipeline_mode = #tpu.pipeline_mode<synchronous>, transform_indices = @transform_0, window_bounds = array<i64: 64, 240>}, {pipeline_mode = #tpu.pipeline_mode<synchronous>, transform_indices = @transform_1, window_bounds = array<i64: 16, 64>}, {pipeline_mode = #tpu.pipeline_mode<synchronous>, transform_indices = @transform_2, window_bounds = array<i64: 16, 1>}, {pipeline_mode = #tpu.pipeline_mode<synchronous>, transform_indices = @transform_3, window_bounds = array<i64: 16, 1>}, {pipeline_mode = #tpu.pipeline_mode<synchronous>, transform_indices = @transform_4, window_bounds = array<i64: 16, 1>}, {pipeline_mode = #tpu.pipeline_mode<synchronous>, transform_indices = @transform_5, window_bounds = array<i64: 2, 153, 488>}, {pipeline_mode = #tpu.pipeline_mode<synchronous>, transform_indices = @transform_6, window_bounds = array<i64: 1, 488>}, {pipeline_mode = #tpu.pipeline_mode<synchronous>, transform_indices = @transform_7, window_bounds = array<i64: 121, 31>}, {pipeline_mode = #tpu.pipeline_mode<synchronous>, transform_indices = @transform_8, window_bounds = array<i64: 4, 15>}, {pipeline_mode = #tpu.pipeline_mode<synchronous>, transform_indices = @transform_9, window_bounds = array<i64: 4096, 124>}, {pipeline_mode = #tpu.pipeline_mode<synchronous>, transform_indices = @transform_10, window_bounds = array<i64: 1, 124>}, {pipeline_mode = #tpu.pipeline_mode<synchronous>, transform_indices = @transform_11, window_bounds = array<i64: 28, 7>}, {pipeline_mode = #tpu.pipeline_mode<synchronous>, transform_indices = @transform_12, window_bounds = array<i64: 4, 7>}, {pipeline_mode = #tpu.pipeline_mode<synchronous>, transform_indices = @transform_13, window_bounds = array<i64: 16, 7>}, {pipeline_mode = #tpu.pipeline_mode<synchronous>, transform_indices = @transform_14, window_bounds = array<i64: 2, 4>}, {transform_indices = @transform_15, window_bounds = array<i64: 17>}, {pipeline_mode = #tpu.pipeline_mode<synchronous>, transform_indices = @transform_16, window_bounds = array<i64: 2, 1>}]} {
    %c0 = arith.constant 0 : index
    %c0_0 = arith.constant 0 : index
    %0 = vector.load %arg2[%c0, %c0_0] : memref<16x64xf32, #tpu.memory_space<vmem>>, vector<16x64xf32>
    %c0_1 = arith.constant 0 : index
    %c0_2 = arith.constant 0 : index
    %1 = vector.load %arg1[%c0_1, %c0_2] : memref<64x240xf32, #tpu.memory_space<vmem>>, vector<64x240xf32>
    %cst = arith.constant dense<0.000000e+00> : vector<16x240xf32>
    %2 = tpu.matmul %0, %1, %cst {dimension_numbers = #tpu.dot_dimension_numbers<[1], [0], [0], [1], [0, 0, 1, 1], [], []>} : vector<16x64xf32>, vector<64x240xf32>, vector<16x240xf32> -> vector<16x240xf32>
    %c0_3 = arith.constant 0 : index
    %c0_4 = arith.constant 0 : index
    %3 = vector.load %arg3[%c0_3, %c0_4] : memref<16x1xf32, #tpu.memory_space<vmem>>, vector<16x1xf32>
    %4 = vector.broadcast %3 : vector<16x1xf32> to vector<16x240xf32>
    %5 = arith.addf %2, %4 : vector<16x240xf32>
    %cst_5 = arith.constant 0.000000e+00 : f32
    %6 = vector.broadcast %cst_5 : f32 to vector<16x240xf32>
    %7 = arith.cmpf ogt, %5, %6 : vector<16x240xf32>
    %cst_6 = arith.constant 0.000000e+00 : f32
    %8 = vector.broadcast %cst_6 : f32 to vector<16x240xf32>
    %9 = arith.minimumf %5, %8 : vector<16x240xf32>
    %10 = math.exp %9 : vector<16x240xf32>
    %cst_7 = arith.constant 1.000000e+00 : f32
    %11 = vector.broadcast %cst_7 : f32 to vector<16x240xf32>
    %12 = arith.subf %10, %11 : vector<16x240xf32>
    %13 = arith.select %7, %5, %12 : vector<16x240xi1>, vector<16x240xf32>
    %cst_8 = arith.constant dense<0.000000e+00> : vector<16xf32>
    %14 = vector.multi_reduction <add>, %13, %cst_8 [1] : vector<16x240xf32> to vector<16xf32>
    %15 = vector.shape_cast %14 : vector<16xf32> to vector<16x1xf32>
    %cst_9 = arith.constant 2.400000e+02 : f32
    %16 = vector.broadcast %cst_9 : f32 to vector<16x1xf32>
    %17 = arith.divf %15, %16 : vector<16x1xf32>
    %18 = arith.mulf %13, %13 : vector<16x240xf32>
    %cst_10 = arith.constant dense<0.000000e+00> : vector<16xf32>
    %19 = vector.multi_reduction <add>, %18, %cst_10 [1] : vector<16x240xf32> to vector<16xf32>
    %20 = vector.shape_cast %19 : vector<16xf32> to vector<16x1xf32>
    %cst_11 = arith.constant 2.400000e+02 : f32
    %21 = vector.broadcast %cst_11 : f32 to vector<16x1xf32>
    %22 = arith.divf %20, %21 : vector<16x1xf32>
    %23 = arith.mulf %17, %17 : vector<16x1xf32>
    %24 = arith.subf %22, %23 : vector<16x1xf32>
    %cst_12 = arith.constant 0.000000e+00 : f32
    %25 = vector.broadcast %cst_12 : f32 to vector<16x1xf32>
    %26 = arith.maximumf %24, %25 : vector<16x1xf32>
    %27 = vector.broadcast %17 : vector<16x1xf32> to vector<16x240xf32>
    %28 = arith.subf %13, %27 : vector<16x240xf32>
    %29 = math.rsqrt %26 : vector<16x1xf32>
    %30 = vector.broadcast %29 : vector<16x1xf32> to vector<16x240xf32>
    %31 = arith.mulf %28, %30 : vector<16x240xf32>
    %c0_13 = arith.constant 0 : index
    %c0_14 = arith.constant 0 : index
    %32 = vector.load %arg4[%c0_13, %c0_14] : memref<16x1xf32, #tpu.memory_space<vmem>>, vector<16x1xf32>
    %33 = vector.broadcast %32 : vector<16x1xf32> to vector<16x240xf32>
    %34 = arith.mulf %31, %33 : vector<16x240xf32>
    %c0_15 = arith.constant 0 : index
    %c0_16 = arith.constant 0 : index
    %35 = vector.load %arg5[%c0_15, %c0_16] : memref<16x1xf32, #tpu.memory_space<vmem>>, vector<16x1xf32>
    %36 = vector.broadcast %35 : vector<16x1xf32> to vector<16x240xf32>
    %37 = arith.addf %34, %36 : vector<16x240xf32>
    %cst_17 = arith.constant 0.000000e+00 : f32
    %38 = vector.broadcast %cst_17 : f32 to vector<2x17x153xf32>
    %c0_18 = arith.constant 0 : index
    %c0_19 = arith.constant 0 : index
    %c0_20 = arith.constant 0 : index
    %39 = vector.load %arg18[%c0_18, %c0_19, %c0_20] : memref<2x17x153xf32, #tpu.memory_space<vmem>>, vector<2x17x153xf32>
    tpu.vector_store %arg18[%c0_18, %c0_19, %c0_20], %38 {strides = array<i32>} : memref<2x17x153xf32, #tpu.memory_space<vmem>>, vector<2x17x153xf32>,
    %40 = vector.extract_strided_slice %37 {offsets = [0, 0], sizes = [16, 120], strides = [1, 1]} : vector<16x240xf32> to vector<16x120xf32>
    %c0_21 = arith.constant 0 : index
    %c0_22 = arith.constant 0 : index
    %c16 = arith.constant 16 : index
    %41 = vector.load %arg18[%c0_21, %c0_22, %c16] : memref<2x17x153xf32, #tpu.memory_space<vmem>>, vector<1x16x120xf32>
    %42 = vector.shape_cast %41 : vector<1x16x120xf32> to vector<16x120xf32>
    %43 = vector.shape_cast %40 : vector<16x120xf32> to vector<1x16x120xf32>
    tpu.vector_store %arg18[%c0_21, %c0_22, %c16], %43 {strides = array<i32>} : memref<2x17x153xf32, #tpu.memory_space<vmem>>, vector<1x16x120xf32>,
    %44 = vector.extract_strided_slice %37 {offsets = [0, 120], sizes = [16, 120], strides = [1, 1]} : vector<16x240xf32> to vector<16x120xf32>
    %c1 = arith.constant 1 : index
    %c0_23 = arith.constant 0 : index
    %c16_24 = arith.constant 16 : index
    %45 = vector.load %arg18[%c1, %c0_23, %c16_24] : memref<2x17x153xf32, #tpu.memory_space<vmem>>, vector<1x16x120xf32>
    %46 = vector.shape_cast %45 : vector<1x16x120xf32> to vector<16x120xf32>
    %47 = vector.shape_cast %44 : vector<16x120xf32> to vector<1x16x120xf32>
    tpu.vector_store %arg18[%c1, %c0_23, %c16_24], %47 {strides = array<i32>} : memref<2x17x153xf32, #tpu.memory_space<vmem>>, vector<1x16x120xf32>,
    %c0_25 = arith.constant 0 : index
    %c0_26 = arith.constant 0 : index
    %c0_27 = arith.constant 0 : index
    %48 = vector.load %arg18[%c0_25, %c0_26, %c0_27] : memref<2x17x153xf32, #tpu.memory_space<vmem>>, vector<1x16x153xf32>
    %49 = vector.shape_cast %48 : vector<1x16x153xf32> to vector<16x153xf32>
    %c0_28 = arith.constant 0 : index
    %c0_29 = arith.constant 0 : index
    %c0_30 = arith.constant 0 : index
    %50 = vector.load %arg6[%c0_28, %c0_29, %c0_30] : memref<2x153x488xf32, #tpu.memory_space<vmem>>, vector<1x153x488xf32>
    %51 = vector.shape_cast %50 : vector<1x153x488xf32> to vector<153x488xf32>
    %cst_31 = arith.constant dense<0.000000e+00> : vector<16x488xf32>
    %52 = tpu.matmul %49, %51, %cst_31 {dimension_numbers = #tpu.dot_dimension_numbers<[1], [0], [0], [1], [0, 0, 1, 1], [], []>} : vector<16x153xf32>, vector<153x488xf32>, vector<16x488xf32> -> vector<16x488xf32>
    %c0_32 = arith.constant 0 : index
    %c1_33 = arith.constant 1 : index
    %c0_34 = arith.constant 0 : index
    %53 = vector.load %arg18[%c0_32, %c1_33, %c0_34] : memref<2x17x153xf32, #tpu.memory_space<vmem>>, vector<1x16x153xf32>
    %54 = vector.shape_cast %53 : vector<1x16x153xf32> to vector<16x153xf32>
    %c1_35 = arith.constant 1 : index
    %c0_36 = arith.constant 0 : index
    %c0_37 = arith.constant 0 : index
    %55 = vector.load %arg6[%c1_35, %c0_36, %c0_37] : memref<2x153x488xf32, #tpu.memory_space<vmem>>, vector<1x153x488xf32>
    %56 = vector.shape_cast %55 : vector<1x153x488xf32> to vector<153x488xf32>
    %cst_38 = arith.constant dense<0.000000e+00> : vector<16x488xf32>
    %57 = tpu.matmul %54, %56, %cst_38 {dimension_numbers = #tpu.dot_dimension_numbers<[1], [0], [0], [1], [0, 0, 1, 1], [], []>} : vector<16x153xf32>, vector<153x488xf32>, vector<16x488xf32> -> vector<16x488xf32>
    %58 = arith.addf %52, %57 : vector<16x488xf32>
    %c0_39 = arith.constant 0 : index
    %c0_40 = arith.constant 0 : index
    %59 = vector.load %arg7[%c0_39, %c0_40] : memref<1x488xf32, #tpu.memory_space<vmem>>, vector<1x488xf32>
    %60 = vector.broadcast %59 : vector<1x488xf32> to vector<16x488xf32>
    %61 = arith.addf %58, %60 : vector<16x488xf32>
    %cst_41 = arith.constant 0.000000e+00 : f32
    %62 = vector.broadcast %cst_41 : f32 to vector<16x488xf32>
    %63 = arith.cmpf ogt, %61, %62 : vector<16x488xf32>
    %cst_42 = arith.constant 0.000000e+00 : f32
    %64 = vector.broadcast %cst_42 : f32 to vector<16x488xf32>
    %65 = arith.minimumf %61, %64 : vector<16x488xf32>
    %66 = math.exp %65 : vector<16x488xf32>
    %cst_43 = arith.constant 1.000000e+00 : f32
    %67 = vector.broadcast %cst_43 : f32 to vector<16x488xf32>
    %68 = arith.subf %66, %67 : vector<16x488xf32>
    %69 = arith.select %63, %61, %68 : vector<16x488xi1>, vector<16x488xf32>
    %c1_44 = arith.constant 1 : index
    %c0_45 = arith.constant 0 : index
    %c0_46 = arith.constant 0 : index
    %70 = vector.load %arg18[%c1_44, %c0_45, %c0_46] : memref<2x17x153xf32, #tpu.memory_space<vmem>>, vector<1x16x153xf32>
    %71 = vector.shape_cast %70 : vector<1x16x153xf32> to vector<16x153xf32>
    %c0_47 = arith.constant 0 : index
    %c0_48 = arith.constant 0 : index
    %c0_49 = arith.constant 0 : index
    %72 = vector.load %arg6[%c0_47, %c0_48, %c0_49] : memref<2x153x488xf32, #tpu.memory_space<vmem>>, vector<1x153x488xf32>
    %73 = vector.shape_cast %72 : vector<1x153x488xf32> to vector<153x488xf32>
    %cst_50 = arith.constant dense<0.000000e+00> : vector<16x488xf32>
    %74 = tpu.matmul %71, %73, %cst_50 {dimension_numbers = #tpu.dot_dimension_numbers<[1], [0], [0], [1], [0, 0, 1, 1], [], []>} : vector<16x153xf32>, vector<153x488xf32>, vector<16x488xf32> -> vector<16x488xf32>
    %c1_51 = arith.constant 1 : index
    %c1_52 = arith.constant 1 : index
    %c0_53 = arith.constant 0 : index
    %75 = vector.load %arg18[%c1_51, %c1_52, %c0_53] : memref<2x17x153xf32, #tpu.memory_space<vmem>>, vector<1x16x153xf32>
    %76 = vector.shape_cast %75 : vector<1x16x153xf32> to vector<16x153xf32>
    %c1_54 = arith.constant 1 : index
    %c0_55 = arith.constant 0 : index
    %c0_56 = arith.constant 0 : index
    %77 = vector.load %arg6[%c1_54, %c0_55, %c0_56] : memref<2x153x488xf32, #tpu.memory_space<vmem>>, vector<1x153x488xf32>
    %78 = vector.shape_cast %77 : vector<1x153x488xf32> to vector<153x488xf32>
    %cst_57 = arith.constant dense<0.000000e+00> : vector<16x488xf32>
    %79 = tpu.matmul %76, %78, %cst_57 {dimension_numbers = #tpu.dot_dimension_numbers<[1], [0], [0], [1], [0, 0, 1, 1], [], []>} : vector<16x153xf32>, vector<153x488xf32>, vector<16x488xf32> -> vector<16x488xf32>
    %80 = arith.addf %74, %79 : vector<16x488xf32>
    %c0_58 = arith.constant 0 : index
    %c0_59 = arith.constant 0 : index
    %81 = vector.load %arg7[%c0_58, %c0_59] : memref<1x488xf32, #tpu.memory_space<vmem>>, vector<1x488xf32>
    %82 = vector.broadcast %81 : vector<1x488xf32> to vector<16x488xf32>
    %83 = arith.addf %80, %82 : vector<16x488xf32>
    %cst_60 = arith.constant 0.000000e+00 : f32
    %84 = vector.broadcast %cst_60 : f32 to vector<16x488xf32>
    %85 = arith.cmpf ogt, %83, %84 : vector<16x488xf32>
    %cst_61 = arith.constant 0.000000e+00 : f32
    %86 = vector.broadcast %cst_61 : f32 to vector<16x488xf32>
    %87 = arith.minimumf %83, %86 : vector<16x488xf32>
    %88 = math.exp %87 : vector<16x488xf32>
    %cst_62 = arith.constant 1.000000e+00 : f32
    %89 = vector.broadcast %cst_62 : f32 to vector<16x488xf32>
    %90 = arith.subf %88, %89 : vector<16x488xf32>
    %91 = arith.select %85, %83, %90 : vector<16x488xi1>, vector<16x488xf32>
    %cst_63 = arith.constant 0.000000e+00 : f32
    %92 = vector.broadcast %cst_63 : f32 to vector<8x4096xf32>
    %c0_64 = arith.constant 0 : index
    %c0_65 = arith.constant 0 : index
    %93 = vector.load %arg19[%c0_64, %c0_65] : memref<8x4096xf32, #tpu.memory_space<vmem>>, vector<8x4096xf32>
    tpu.vector_store %arg19[%c0_64, %c0_65], %92 {strides = array<i32>} : memref<8x4096xf32, #tpu.memory_space<vmem>>, vector<8x4096xf32>,
    %94 = vector.extract_strided_slice %69 {offsets = [0, 0], sizes = [16, 122], strides = [1, 1]} : vector<16x488xf32> to vector<16x122xf32>
    %95 = vector.extract_strided_slice %91 {offsets = [0, 0], sizes = [16, 122], strides = [1, 1]} : vector<16x488xf32> to vector<16x122xf32>
    %cst_66 = arith.constant dense<0.000000e+00> : vector<16xf32>
    %96 = vector.multi_reduction <add>, %94, %cst_66 [1] : vector<16x122xf32> to vector<16xf32>
    %97 = vector.shape_cast %96 : vector<16xf32> to vector<16x1xf32>
    %cst_67 = arith.constant dense<0.000000e+00> : vector<1xf32>
    %98 = vector.multi_reduction <add>, %97, %cst_67 [0] : vector<16x1xf32> to vector<1xf32>
    %99 = vector.shape_cast %98 : vector<1xf32> to vector<1x1xf32>
    %cst_68 = arith.constant 0.000000e+00 : f32
    %100 = vector.broadcast %cst_68 : f32 to vector<1x1xf32>
    %101 = arith.addf %100, %99 : vector<1x1xf32>
    %cst_69 = arith.constant dense<0.000000e+00> : vector<16xf32>
    %102 = vector.multi_reduction <add>, %95, %cst_69 [1] : vector<16x122xf32> to vector<16xf32>
    %103 = vector.shape_cast %102 : vector<16xf32> to vector<16x1xf32>
    %cst_70 = arith.constant dense<0.000000e+00> : vector<1xf32>
    %104 = vector.multi_reduction <add>, %103, %cst_70 [0] : vector<16x1xf32> to vector<1xf32>
    %105 = vector.shape_cast %104 : vector<1xf32> to vector<1x1xf32>
    %106 = arith.addf %101, %105 : vector<1x1xf32>
    %107 = arith.mulf %94, %94 : vector<16x122xf32>
    %cst_71 = arith.constant dense<0.000000e+00> : vector<16xf32>
    %108 = vector.multi_reduction <add>, %107, %cst_71 [1] : vector<16x122xf32> to vector<16xf32>
    %109 = vector.shape_cast %108 : vector<16xf32> to vector<16x1xf32>
    %cst_72 = arith.constant dense<0.000000e+00> : vector<1xf32>
    %110 = vector.multi_reduction <add>, %109, %cst_72 [0] : vector<16x1xf32> to vector<1xf32>
    %111 = vector.shape_cast %110 : vector<1xf32> to vector<1x1xf32>
    %cst_73 = arith.constant 0.000000e+00 : f32
    %112 = vector.broadcast %cst_73 : f32 to vector<1x1xf32>
    %113 = arith.addf %112, %111 : vector<1x1xf32>
    %114 = arith.mulf %95, %95 : vector<16x122xf32>
    %cst_74 = arith.constant dense<0.000000e+00> : vector<16xf32>
    %115 = vector.multi_reduction <add>, %114, %cst_74 [1] : vector<16x122xf32> to vector<16xf32>
    %116 = vector.shape_cast %115 : vector<16xf32> to vector<16x1xf32>
    %cst_75 = arith.constant dense<0.000000e+00> : vector<1xf32>
    %117 = vector.multi_reduction <add>, %116, %cst_75 [0] : vector<16x1xf32> to vector<1xf32>
    %118 = vector.shape_cast %117 : vector<1xf32> to vector<1x1xf32>
    %119 = arith.addf %113, %118 : vector<1x1xf32>
    %cst_76 = arith.constant 2.56147527E-4 : f32
    %120 = vector.broadcast %cst_76 : f32 to vector<1x1xf32>
    %121 = arith.mulf %106, %120 : vector<1x1xf32>
    %cst_77 = arith.constant 2.56147527E-4 : f32
    %122 = vector.broadcast %cst_77 : f32 to vector<1x1xf32>
    %123 = arith.mulf %119, %122 : vector<1x1xf32>
    %124 = arith.mulf %121, %121 : vector<1x1xf32>
    %125 = arith.subf %123, %124 : vector<1x1xf32>
    %cst_78 = arith.constant 0.000000e+00 : f32
    %126 = vector.broadcast %cst_78 : f32 to vector<1x1xf32>
    %127 = arith.maximumf %125, %126 : vector<1x1xf32>
    %128 = math.rsqrt %127 : vector<1x1xf32>
    %c0_79 = arith.constant 0 : index
    %129 = memref.load %arg16[%c0_79] : memref<17xf32, #tpu.memory_space<smem>>
    %130 = vector.broadcast %129 : f32 to vector<1x1xf32>
    %131 = arith.mulf %128, %130 : vector<1x1xf32>
    %c4 = arith.constant 4 : index
    %132 = memref.load %arg16[%c4] : memref<17xf32, #tpu.memory_space<smem>>
    %133 = arith.mulf %121, %131 : vector<1x1xf32>
    %134 = vector.broadcast %132 : f32 to vector<1x1xf32>
    %135 = arith.subf %134, %133 : vector<1x1xf32>
    %136 = vector.broadcast %131 : vector<1x1xf32> to vector<16x122xf32>
    %137 = arith.mulf %94, %136 : vector<16x122xf32>
    %138 = vector.broadcast %135 : vector<1x1xf32> to vector<16x122xf32>
    %139 = arith.addf %137, %138 : vector<16x122xf32>
    %140 = vector.extract_strided_slice %139 {offsets = [0, 0], sizes = [16, 121], strides = [1, 1]} : vector<16x122xf32> to vector<16x121xf32>
    %141 = vector.extract_strided_slice %139 {offsets = [0, 1], sizes = [16, 121], strides = [1, 1]} : vector<16x122xf32> to vector<16x121xf32>
    %142 = arith.maximumf %140, %141 : vector<16x121xf32>
    %c0_80 = arith.constant 0 : index
    %c0_81 = arith.constant 0 : index
    %143 = vector.load %arg8[%c0_80, %c0_81] : memref<121x31xf32, #tpu.memory_space<vmem>>, vector<121x31xf32>
    %cst_82 = arith.constant dense<0.000000e+00> : vector<16x31xf32>
    %144 = tpu.matmul %142, %143, %cst_82 {dimension_numbers = #tpu.dot_dimension_numbers<[1], [0], [0], [1], [0, 0, 1, 1], [], []>} : vector<16x121xf32>, vector<121x31xf32>, vector<16x31xf32> -> vector<16x31xf32>
    %145 = vector.extract_strided_slice %144 {offsets = [0, 0], sizes = [15, 31], strides = [1, 1]} : vector<16x31xf32> to vector<15x31xf32>
    %146 = vector.extract_strided_slice %144 {offsets = [1, 0], sizes = [15, 31], strides = [1, 1]} : vector<16x31xf32> to vector<15x31xf32>
    %147 = arith.maximumf %145, %146 : vector<15x31xf32>
    %c0_83 = arith.constant 0 : index
    %c0_84 = arith.constant 0 : index
    %148 = vector.load %arg9[%c0_83, %c0_84] : memref<4x15xf32, #tpu.memory_space<vmem>>, vector<4x15xf32>
    %cst_85 = arith.constant dense<0.000000e+00> : vector<4x31xf32>
    %149 = tpu.matmul %148, %147, %cst_85 {dimension_numbers = #tpu.dot_dimension_numbers<[1], [0], [0], [1], [0, 0, 1, 1], [], []>} : vector<4x15xf32>, vector<15x31xf32>, vector<4x31xf32> -> vector<4x31xf32>
    %150 = vector.extract_strided_slice %149 {offsets = [0, 0], sizes = [1, 31], strides = [1, 1]} : vector<4x31xf32> to vector<1x31xf32>
    %c3 = arith.constant 3 : index
    %c128 = arith.constant 128 : index
    %151 = vector.load %arg19[%c3, %c128] : memref<8x4096xf32, #tpu.memory_space<vmem>>, vector<1x31xf32>
    tpu.vector_store %arg19[%c3, %c128], %150 {strides = array<i32>} : memref<8x4096xf32, #tpu.memory_space<vmem>>, vector<1x31xf32>,
    %152 = vector.extract_strided_slice %149 {offsets = [0, 0], sizes = [2, 31], strides = [1, 1]} : vector<4x31xf32> to vector<2x31xf32>
    %c2 = arith.constant 2 : index
    %c256 = arith.constant 256 : index
    %153 = vector.load %arg19[%c2, %c256] : memref<8x4096xf32, #tpu.memory_space<vmem>>, vector<2x31xf32>
    tpu.vector_store %arg19[%c2, %c256], %152 {strides = array<i32>} : memref<8x4096xf32, #tpu.memory_space<vmem>>, vector<2x31xf32>,
    %154 = vector.extract_strided_slice %149 {offsets = [0, 0], sizes = [3, 31], strides = [1, 1]} : vector<4x31xf32> to vector<3x31xf32>
    %c1_86 = arith.constant 1 : index
    %c384 = arith.constant 384 : index
    %155 = vector.load %arg19[%c1_86, %c384] : memref<8x4096xf32, #tpu.memory_space<vmem>>, vector<3x31xf32>
    tpu.vector_store %arg19[%c1_86, %c384], %154 {strides = array<i32>} : memref<8x4096xf32, #tpu.memory_space<vmem>>, vector<3x31xf32>,
    %c0_87 = arith.constant 0 : index
    %c512 = arith.constant 512 : index
    %156 = vector.load %arg19[%c0_87, %c512] : memref<8x4096xf32, #tpu.memory_space<vmem>>, vector<4x31xf32>
    tpu.vector_store %arg19[%c0_87, %c512], %149 {strides = array<i32>} : memref<8x4096xf32, #tpu.memory_space<vmem>>, vector<4x31xf32>,
    %157 = vector.extract_strided_slice %149 {offsets = [1, 0], sizes = [3, 31], strides = [1, 1]} : vector<4x31xf32> to vector<3x31xf32>
    %c0_88 = arith.constant 0 : index
    %c640 = arith.constant 640 : index
    %158 = vector.load %arg19[%c0_88, %c640] : memref<8x4096xf32, #tpu.memory_space<vmem>>, vector<3x31xf32>
    tpu.vector_store %arg19[%c0_88, %c640], %157 {strides = array<i32>} : memref<8x4096xf32, #tpu.memory_space<vmem>>, vector<3x31xf32>,
    %159 = vector.extract_strided_slice %149 {offsets = [2, 0], sizes = [2, 31], strides = [1, 1]} : vector<4x31xf32> to vector<2x31xf32>
    %c0_89 = arith.constant 0 : index
    %c768 = arith.constant 768 : index
    %160 = vector.load %arg19[%c0_89, %c768] : memref<8x4096xf32, #tpu.memory_space<vmem>>, vector<2x31xf32>
    tpu.vector_store %arg19[%c0_89, %c768], %159 {strides = array<i32>} : memref<8x4096xf32, #tpu.memory_space<vmem>>, vector<2x31xf32>,
    %161 = vector.extract_strided_slice %149 {offsets = [3, 0], sizes = [1, 31], strides = [1, 1]} : vector<4x31xf32> to vector<1x31xf32>
    %c0_90 = arith.constant 0 : index
    %c896 = arith.constant 896 : index
    %162 = vector.load %arg19[%c0_90, %c896] : memref<8x4096xf32, #tpu.memory_space<vmem>>, vector<1x31xf32>
    tpu.vector_store %arg19[%c0_90, %c896], %161 {strides = array<i32>} : memref<8x4096xf32, #tpu.memory_space<vmem>>, vector<1x31xf32>,
    %163 = vector.broadcast %131 : vector<1x1xf32> to vector<16x122xf32>
    %164 = arith.mulf %95, %163 : vector<16x122xf32>
    %165 = vector.broadcast %135 : vector<1x1xf32> to vector<16x122xf32>
    %166 = arith.addf %164, %165 : vector<16x122xf32>
    %167 = vector.extract_strided_slice %166 {offsets = [0, 0], sizes = [16, 121], strides = [1, 1]} : vector<16x122xf32> to vector<16x121xf32>
    %168 = vector.extract_strided_slice %166 {offsets = [0, 1], sizes = [16, 121], strides = [1, 1]} : vector<16x122xf32> to vector<16x121xf32>
    %169 = arith.maximumf %167, %168 : vector<16x121xf32>
    %c0_91 = arith.constant 0 : index
    %c0_92 = arith.constant 0 : index
    %170 = vector.load %arg8[%c0_91, %c0_92] : memref<121x31xf32, #tpu.memory_space<vmem>>, vector<121x31xf32>
    %cst_93 = arith.constant dense<0.000000e+00> : vector<16x31xf32>
    %171 = tpu.matmul %169, %170, %cst_93 {dimension_numbers = #tpu.dot_dimension_numbers<[1], [0], [0], [1], [0, 0, 1, 1], [], []>} : vector<16x121xf32>, vector<121x31xf32>, vector<16x31xf32> -> vector<16x31xf32>
    %172 = vector.extract_strided_slice %171 {offsets = [0, 0], sizes = [15, 31], strides = [1, 1]} : vector<16x31xf32> to vector<15x31xf32>
    %173 = vector.extract_strided_slice %171 {offsets = [1, 0], sizes = [15, 31], strides = [1, 1]} : vector<16x31xf32> to vector<15x31xf32>
    %174 = arith.maximumf %172, %173 : vector<15x31xf32>
    %c0_94 = arith.constant 0 : index
    %c0_95 = arith.constant 0 : index
    %175 = vector.load %arg9[%c0_94, %c0_95] : memref<4x15xf32, #tpu.memory_space<vmem>>, vector<4x15xf32>
    %cst_96 = arith.constant dense<0.000000e+00> : vector<4x31xf32>
    %176 = tpu.matmul %175, %174, %cst_96 {dimension_numbers = #tpu.dot_dimension_numbers<[1], [0], [0], [1], [0, 0, 1, 1], [], []>} : vector<4x15xf32>, vector<15x31xf32>, vector<4x31xf32> -> vector<4x31xf32>
    %177 = vector.extract_strided_slice %176 {offsets = [0, 0], sizes = [1, 31], strides = [1, 1]} : vector<4x31xf32> to vector<1x31xf32>
    %c7 = arith.constant 7 : index
    %c128_97 = arith.constant 128 : index
    %178 = vector.load %arg19[%c7, %c128_97] : memref<8x4096xf32, #tpu.memory_space<vmem>>, vector<1x31xf32>
    tpu.vector_store %arg19[%c7, %c128_97], %177 {strides = array<i32>} : memref<8x4096xf32, #tpu.memory_space<vmem>>, vector<1x31xf32>,
    %179 = vector.extract_strided_slice %176 {offsets = [0, 0], sizes = [2, 31], strides = [1, 1]} : vector<4x31xf32> to vector<2x31xf32>
    %c6 = arith.constant 6 : index
    %c256_98 = arith.constant 256 : index
    %180 = vector.load %arg19[%c6, %c256_98] : memref<8x4096xf32, #tpu.memory_space<vmem>>, vector<2x31xf32>
    tpu.vector_store %arg19[%c6, %c256_98], %179 {strides = array<i32>} : memref<8x4096xf32, #tpu.memory_space<vmem>>, vector<2x31xf32>,
    %181 = vector.extract_strided_slice %176 {offsets = [0, 0], sizes = [3, 31], strides = [1, 1]} : vector<4x31xf32> to vector<3x31xf32>
    %c5 = arith.constant 5 : index
    %c384_99 = arith.constant 384 : index
    %182 = vector.load %arg19[%c5, %c384_99] : memref<8x4096xf32, #tpu.memory_space<vmem>>, vector<3x31xf32>
    tpu.vector_store %arg19[%c5, %c384_99], %181 {strides = array<i32>} : memref<8x4096xf32, #tpu.memory_space<vmem>>, vector<3x31xf32>,
    %c4_100 = arith.constant 4 : index
    %c512_101 = arith.constant 512 : index
    %183 = vector.load %arg19[%c4_100, %c512_101] : memref<8x4096xf32, #tpu.memory_space<vmem>>, vector<4x31xf32>
    tpu.vector_store %arg19[%c4_100, %c512_101], %176 {strides = array<i32>} : memref<8x4096xf32, #tpu.memory_space<vmem>>, vector<4x31xf32>,
    %184 = vector.extract_strided_slice %176 {offsets = [1, 0], sizes = [3, 31], strides = [1, 1]} : vector<4x31xf32> to vector<3x31xf32>
    %c4_102 = arith.constant 4 : index
    %c640_103 = arith.constant 640 : index
    %185 = vector.load %arg19[%c4_102, %c640_103] : memref<8x4096xf32, #tpu.memory_space<vmem>>, vector<3x31xf32>
    tpu.vector_store %arg19[%c4_102, %c640_103], %184 {strides = array<i32>} : memref<8x4096xf32, #tpu.memory_space<vmem>>, vector<3x31xf32>,
    %186 = vector.extract_strided_slice %176 {offsets = [2, 0], sizes = [2, 31], strides = [1, 1]} : vector<4x31xf32> to vector<2x31xf32>
    %c4_104 = arith.constant 4 : index
    %c768_105 = arith.constant 768 : index
    %187 = vector.load %arg19[%c4_104, %c768_105] : memref<8x4096xf32, #tpu.memory_space<vmem>>, vector<2x31xf32>
    tpu.vector_store %arg19[%c4_104, %c768_105], %186 {strides = array<i32>} : memref<8x4096xf32, #tpu.memory_space<vmem>>, vector<2x31xf32>,
    %188 = vector.extract_strided_slice %176 {offsets = [3, 0], sizes = [1, 31], strides = [1, 1]} : vector<4x31xf32> to vector<1x31xf32>
    %c4_106 = arith.constant 4 : index
    %c896_107 = arith.constant 896 : index
    %189 = vector.load %arg19[%c4_106, %c896_107] : memref<8x4096xf32, #tpu.memory_space<vmem>>, vector<1x31xf32>
    tpu.vector_store %arg19[%c4_106, %c896_107], %188 {strides = array<i32>} : memref<8x4096xf32, #tpu.memory_space<vmem>>, vector<1x31xf32>,
    %190 = vector.extract_strided_slice %69 {offsets = [0, 122], sizes = [16, 122], strides = [1, 1]} : vector<16x488xf32> to vector<16x122xf32>
    %191 = vector.extract_strided_slice %91 {offsets = [0, 122], sizes = [16, 122], strides = [1, 1]} : vector<16x488xf32> to vector<16x122xf32>
    %cst_108 = arith.constant dense<0.000000e+00> : vector<16xf32>
    %192 = vector.multi_reduction <add>, %190, %cst_108 [1] : vector<16x122xf32> to vector<16xf32>
    %193 = vector.shape_cast %192 : vector<16xf32> to vector<16x1xf32>
    %cst_109 = arith.constant dense<0.000000e+00> : vector<1xf32>
    %194 = vector.multi_reduction <add>, %193, %cst_109 [0] : vector<16x1xf32> to vector<1xf32>
    %195 = vector.shape_cast %194 : vector<1xf32> to vector<1x1xf32>
    %cst_110 = arith.constant 0.000000e+00 : f32
    %196 = vector.broadcast %cst_110 : f32 to vector<1x1xf32>
    %197 = arith.addf %196, %195 : vector<1x1xf32>
    %cst_111 = arith.constant dense<0.000000e+00> : vector<16xf32>
    %198 = vector.multi_reduction <add>, %191, %cst_111 [1] : vector<16x122xf32> to vector<16xf32>
    %199 = vector.shape_cast %198 : vector<16xf32> to vector<16x1xf32>
    %cst_112 = arith.constant dense<0.000000e+00> : vector<1xf32>
    %200 = vector.multi_reduction <add>, %199, %cst_112 [0] : vector<16x1xf32> to vector<1xf32>
    %201 = vector.shape_cast %200 : vector<1xf32> to vector<1x1xf32>
    %202 = arith.addf %197, %201 : vector<1x1xf32>
    %203 = arith.mulf %190, %190 : vector<16x122xf32>
    %cst_113 = arith.constant dense<0.000000e+00> : vector<16xf32>
    %204 = vector.multi_reduction <add>, %203, %cst_113 [1] : vector<16x122xf32> to vector<16xf32>
    %205 = vector.shape_cast %204 : vector<16xf32> to vector<16x1xf32>
    %cst_114 = arith.constant dense<0.000000e+00> : vector<1xf32>
    %206 = vector.multi_reduction <add>, %205, %cst_114 [0] : vector<16x1xf32> to vector<1xf32>
    %207 = vector.shape_cast %206 : vector<1xf32> to vector<1x1xf32>
    %cst_115 = arith.constant 0.000000e+00 : f32
    %208 = vector.broadcast %cst_115 : f32 to vector<1x1xf32>
    %209 = arith.addf %208, %207 : vector<1x1xf32>
    %210 = arith.mulf %191, %191 : vector<16x122xf32>
    %cst_116 = arith.constant dense<0.000000e+00> : vector<16xf32>
    %211 = vector.multi_reduction <add>, %210, %cst_116 [1] : vector<16x122xf32> to vector<16xf32>
    %212 = vector.shape_cast %211 : vector<16xf32> to vector<16x1xf32>
    %cst_117 = arith.constant dense<0.000000e+00> : vector<1xf32>
    %213 = vector.multi_reduction <add>, %212, %cst_117 [0] : vector<16x1xf32> to vector<1xf32>
    %214 = vector.shape_cast %213 : vector<1xf32> to vector<1x1xf32>
    %215 = arith.addf %209, %214 : vector<1x1xf32>
    %cst_118 = arith.constant 2.56147527E-4 : f32
    %216 = vector.broadcast %cst_118 : f32 to vector<1x1xf32>
    %217 = arith.mulf %202, %216 : vector<1x1xf32>
    %cst_119 = arith.constant 2.56147527E-4 : f32
    %218 = vector.broadcast %cst_119 : f32 to vector<1x1xf32>
    %219 = arith.mulf %215, %218 : vector<1x1xf32>
    %220 = arith.mulf %217, %217 : vector<1x1xf32>
    %221 = arith.subf %219, %220 : vector<1x1xf32>
    %cst_120 = arith.constant 0.000000e+00 : f32
    %222 = vector.broadcast %cst_120 : f32 to vector<1x1xf32>
    %223 = arith.maximumf %221, %222 : vector<1x1xf32>
    %224 = math.rsqrt %223 : vector<1x1xf32>
    %c1_121 = arith.constant 1 : index
    %225 = memref.load %arg16[%c1_121] : memref<17xf32, #tpu.memory_space<smem>>
    %226 = vector.broadcast %225 : f32 to vector<1x1xf32>
    %227 = arith.mulf %224, %226 : vector<1x1xf32>
    %c5_122 = arith.constant 5 : index
    %228 = memref.load %arg16[%c5_122] : memref<17xf32, #tpu.memory_space<smem>>
    %229 = arith.mulf %217, %227 : vector<1x1xf32>
    %230 = vector.broadcast %228 : f32 to vector<1x1xf32>
    %231 = arith.subf %230, %229 : vector<1x1xf32>
    %232 = vector.broadcast %227 : vector<1x1xf32> to vector<16x122xf32>
    %233 = arith.mulf %190, %232 : vector<16x122xf32>
    %234 = vector.broadcast %231 : vector<1x1xf32> to vector<16x122xf32>
    %235 = arith.addf %233, %234 : vector<16x122xf32>
    %236 = vector.extract_strided_slice %235 {offsets = [0, 0], sizes = [16, 121], strides = [1, 1]} : vector<16x122xf32> to vector<16x121xf32>
    %237 = vector.extract_strided_slice %235 {offsets = [0, 1], sizes = [16, 121], strides = [1, 1]} : vector<16x122xf32> to vector<16x121xf32>
    %238 = arith.maximumf %236, %237 : vector<16x121xf32>
    %c0_123 = arith.constant 0 : index
    %c0_124 = arith.constant 0 : index
    %239 = vector.load %arg8[%c0_123, %c0_124] : memref<121x31xf32, #tpu.memory_space<vmem>>, vector<121x31xf32>
    %cst_125 = arith.constant dense<0.000000e+00> : vector<16x31xf32>
    %240 = tpu.matmul %238, %239, %cst_125 {dimension_numbers = #tpu.dot_dimension_numbers<[1], [0], [0], [1], [0, 0, 1, 1], [], []>} : vector<16x121xf32>, vector<121x31xf32>, vector<16x31xf32> -> vector<16x31xf32>
    %241 = vector.extract_strided_slice %240 {offsets = [0, 0], sizes = [15, 31], strides = [1, 1]} : vector<16x31xf32> to vector<15x31xf32>
    %242 = vector.extract_strided_slice %240 {offsets = [1, 0], sizes = [15, 31], strides = [1, 1]} : vector<16x31xf32> to vector<15x31xf32>
    %243 = arith.maximumf %241, %242 : vector<15x31xf32>
    %c0_126 = arith.constant 0 : index
    %c0_127 = arith.constant 0 : index
    %244 = vector.load %arg9[%c0_126, %c0_127] : memref<4x15xf32, #tpu.memory_space<vmem>>, vector<4x15xf32>
    %cst_128 = arith.constant dense<0.000000e+00> : vector<4x31xf32>
    %245 = tpu.matmul %244, %243, %cst_128 {dimension_numbers = #tpu.dot_dimension_numbers<[1], [0], [0], [1], [0, 0, 1, 1], [], []>} : vector<4x15xf32>, vector<15x31xf32>, vector<4x31xf32> -> vector<4x31xf32>
    %246 = vector.extract_strided_slice %245 {offsets = [0, 0], sizes = [1, 31], strides = [1, 1]} : vector<4x31xf32> to vector<1x31xf32>
    %c3_129 = arith.constant 3 : index
    %c1152 = arith.constant 1152 : index
    %247 = vector.load %arg19[%c3_129, %c1152] : memref<8x4096xf32, #tpu.memory_space<vmem>>, vector<1x31xf32>
    tpu.vector_store %arg19[%c3_129, %c1152], %246 {strides = array<i32>} : memref<8x4096xf32, #tpu.memory_space<vmem>>, vector<1x31xf32>,
    %248 = vector.extract_strided_slice %245 {offsets = [0, 0], sizes = [2, 31], strides = [1, 1]} : vector<4x31xf32> to vector<2x31xf32>
    %c2_130 = arith.constant 2 : index
    %c1280 = arith.constant 1280 : index
    %249 = vector.load %arg19[%c2_130, %c1280] : memref<8x4096xf32, #tpu.memory_space<vmem>>, vector<2x31xf32>
    tpu.vector_store %arg19[%c2_130, %c1280], %248 {strides = array<i32>} : memref<8x4096xf32, #tpu.memory_space<vmem>>, vector<2x31xf32>,
    %250 = vector.extract_strided_slice %245 {offsets = [0, 0], sizes = [3, 31], strides = [1, 1]} : vector<4x31xf32> to vector<3x31xf32>
    %c1_131 = arith.constant 1 : index
    %c1408 = arith.constant 1408 : index
    %251 = vector.load %arg19[%c1_131, %c1408] : memref<8x4096xf32, #tpu.memory_space<vmem>>, vector<3x31xf32>
    tpu.vector_store %arg19[%c1_131, %c1408], %250 {strides = array<i32>} : memref<8x4096xf32, #tpu.memory_space<vmem>>, vector<3x31xf32>,
    %c0_132 = arith.constant 0 : index
    %c1536 = arith.constant 1536 : index
    %252 = vector.load %arg19[%c0_132, %c1536] : memref<8x4096xf32, #tpu.memory_space<vmem>>, vector<4x31xf32>
    tpu.vector_store %arg19[%c0_132, %c1536], %245 {strides = array<i32>} : memref<8x4096xf32, #tpu.memory_space<vmem>>, vector<4x31xf32>,
    %253 = vector.extract_strided_slice %245 {offsets = [1, 0], sizes = [3, 31], strides = [1, 1]} : vector<4x31xf32> to vector<3x31xf32>
    %c0_133 = arith.constant 0 : index
    %c1664 = arith.constant 1664 : index
    %254 = vector.load %arg19[%c0_133, %c1664] : memref<8x4096xf32, #tpu.memory_space<vmem>>, vector<3x31xf32>
    tpu.vector_store %arg19[%c0_133, %c1664], %253 {strides = array<i32>} : memref<8x4096xf32, #tpu.memory_space<vmem>>, vector<3x31xf32>,
    %255 = vector.extract_strided_slice %245 {offsets = [2, 0], sizes = [2, 31], strides = [1, 1]} : vector<4x31xf32> to vector<2x31xf32>
    %c0_134 = arith.constant 0 : index
    %c1792 = arith.constant 1792 : index
    %256 = vector.load %arg19[%c0_134, %c1792] : memref<8x4096xf32, #tpu.memory_space<vmem>>, vector<2x31xf32>
    tpu.vector_store %arg19[%c0_134, %c1792], %255 {strides = array<i32>} : memref<8x4096xf32, #tpu.memory_space<vmem>>, vector<2x31xf32>,
    %257 = vector.extract_strided_slice %245 {offsets = [3, 0], sizes = [1, 31], strides = [1, 1]} : vector<4x31xf32> to vector<1x31xf32>
    %c0_135 = arith.constant 0 : index
    %c1920 = arith.constant 1920 : index
    %258 = vector.load %arg19[%c0_135, %c1920] : memref<8x4096xf32, #tpu.memory_space<vmem>>, vector<1x31xf32>
    tpu.vector_store %arg19[%c0_135, %c1920], %257 {strides = array<i32>} : memref<8x4096xf32, #tpu.memory_space<vmem>>, vector<1x31xf32>,
    %259 = vector.broadcast %227 : vector<1x1xf32> to vector<16x122xf32>
    %260 = arith.mulf %191, %259 : vector<16x122xf32>
    %261 = vector.broadcast %231 : vector<1x1xf32> to vector<16x122xf32>
    %262 = arith.addf %260, %261 : vector<16x122xf32>
    %263 = vector.extract_strided_slice %262 {offsets = [0, 0], sizes = [16, 121], strides = [1, 1]} : vector<16x122xf32> to vector<16x121xf32>
    %264 = vector.extract_strided_slice %262 {offsets = [0, 1], sizes = [16, 121], strides = [1, 1]} : vector<16x122xf32> to vector<16x121xf32>
    %265 = arith.maximumf %263, %264 : vector<16x121xf32>
    %c0_136 = arith.constant 0 : index
    %c0_137 = arith.constant 0 : index
    %266 = vector.load %arg8[%c0_136, %c0_137] : memref<121x31xf32, #tpu.memory_space<vmem>>, vector<121x31xf32>
    %cst_138 = arith.constant dense<0.000000e+00> : vector<16x31xf32>
    %267 = tpu.matmul %265, %266, %cst_138 {dimension_numbers = #tpu.dot_dimension_numbers<[1], [0], [0], [1], [0, 0, 1, 1], [], []>} : vector<16x121xf32>, vector<121x31xf32>, vector<16x31xf32> -> vector<16x31xf32>
    %268 = vector.extract_strided_slice %267 {offsets = [0, 0], sizes = [15, 31], strides = [1, 1]} : vector<16x31xf32> to vector<15x31xf32>
    %269 = vector.extract_strided_slice %267 {offsets = [1, 0], sizes = [15, 31], strides = [1, 1]} : vector<16x31xf32> to vector<15x31xf32>
    %270 = arith.maximumf %268, %269 : vector<15x31xf32>
    %c0_139 = arith.constant 0 : index
    %c0_140 = arith.constant 0 : index
    %271 = vector.load %arg9[%c0_139, %c0_140] : memref<4x15xf32, #tpu.memory_space<vmem>>, vector<4x15xf32>
    %cst_141 = arith.constant dense<0.000000e+00> : vector<4x31xf32>
    %272 = tpu.matmul %271, %270, %cst_141 {dimension_numbers = #tpu.dot_dimension_numbers<[1], [0], [0], [1], [0, 0, 1, 1], [], []>} : vector<4x15xf32>, vector<15x31xf32>, vector<4x31xf32> -> vector<4x31xf32>
    %273 = vector.extract_strided_slice %272 {offsets = [0, 0], sizes = [1, 31], strides = [1, 1]} : vector<4x31xf32> to vector<1x31xf32>
    %c7_142 = arith.constant 7 : index
    %c1152_143 = arith.constant 1152 : index
    %274 = vector.load %arg19[%c7_142, %c1152_143] : memref<8x4096xf32, #tpu.memory_space<vmem>>, vector<1x31xf32>
    tpu.vector_store %arg19[%c7_142, %c1152_143], %273 {strides = array<i32>} : memref<8x4096xf32, #tpu.memory_space<vmem>>, vector<1x31xf32>,
    %275 = vector.extract_strided_slice %272 {offsets = [0, 0], sizes = [2, 31], strides = [1, 1]} : vector<4x31xf32> to vector<2x31xf32>
    %c6_144 = arith.constant 6 : index
    %c1280_145 = arith.constant 1280 : index
    %276 = vector.load %arg19[%c6_144, %c1280_145] : memref<8x4096xf32, #tpu.memory_space<vmem>>, vector<2x31xf32>
    tpu.vector_store %arg19[%c6_144, %c1280_145], %275 {strides = array<i32>} : memref<8x4096xf32, #tpu.memory_space<vmem>>, vector<2x31xf32>,
    %277 = vector.extract_strided_slice %272 {offsets = [0, 0], sizes = [3, 31], strides = [1, 1]} : vector<4x31xf32> to vector<3x31xf32>
    %c5_146 = arith.constant 5 : index
    %c1408_147 = arith.constant 1408 : index
    %278 = vector.load %arg19[%c5_146, %c1408_147] : memref<8x4096xf32, #tpu.memory_space<vmem>>, vector<3x31xf32>
    tpu.vector_store %arg19[%c5_146, %c1408_147], %277 {strides = array<i32>} : memref<8x4096xf32, #tpu.memory_space<vmem>>, vector<3x31xf32>,
    %c4_148 = arith.constant 4 : index
    %c1536_149 = arith.constant 1536 : index
    %279 = vector.load %arg19[%c4_148, %c1536_149] : memref<8x4096xf32, #tpu.memory_space<vmem>>, vector<4x31xf32>
    tpu.vector_store %arg19[%c4_148, %c1536_149], %272 {strides = array<i32>} : memref<8x4096xf32, #tpu.memory_space<vmem>>, vector<4x31xf32>,
    %280 = vector.extract_strided_slice %272 {offsets = [1, 0], sizes = [3, 31], strides = [1, 1]} : vector<4x31xf32> to vector<3x31xf32>
    %c4_150 = arith.constant 4 : index
    %c1664_151 = arith.constant 1664 : index
    %281 = vector.load %arg19[%c4_150, %c1664_151] : memref<8x4096xf32, #tpu.memory_space<vmem>>, vector<3x31xf32>
    tpu.vector_store %arg19[%c4_150, %c1664_151], %280 {strides = array<i32>} : memref<8x4096xf32, #tpu.memory_space<vmem>>, vector<3x31xf32>,
    %282 = vector.extract_strided_slice %272 {offsets = [2, 0], sizes = [2, 31], strides = [1, 1]} : vector<4x31xf32> to vector<2x31xf32>
    %c4_152 = arith.constant 4 : index
    %c1792_153 = arith.constant 1792 : index
    %283 = vector.load %arg19[%c4_152, %c1792_153] : memref<8x4096xf32, #tpu.memory_space<vmem>>, vector<2x31xf32>
    tpu.vector_store %arg19[%c4_152, %c1792_153], %282 {strides = array<i32>} : memref<8x4096xf32, #tpu.memory_space<vmem>>, vector<2x31xf32>,
    %284 = vector.extract_strided_slice %272 {offsets = [3, 0], sizes = [1, 31], strides = [1, 1]} : vector<4x31xf32> to vector<1x31xf32>
    %c4_154 = arith.constant 4 : index
    %c1920_155 = arith.constant 1920 : index
    %285 = vector.load %arg19[%c4_154, %c1920_155] : memref<8x4096xf32, #tpu.memory_space<vmem>>, vector<1x31xf32>
    tpu.vector_store %arg19[%c4_154, %c1920_155], %284 {strides = array<i32>} : memref<8x4096xf32, #tpu.memory_space<vmem>>, vector<1x31xf32>,
    %286 = vector.extract_strided_slice %69 {offsets = [0, 244], sizes = [16, 122], strides = [1, 1]} : vector<16x488xf32> to vector<16x122xf32>
    %287 = vector.extract_strided_slice %91 {offsets = [0, 244], sizes = [16, 122], strides = [1, 1]} : vector<16x488xf32> to vector<16x122xf32>
    %cst_156 = arith.constant dense<0.000000e+00> : vector<16xf32>
    %288 = vector.multi_reduction <add>, %286, %cst_156 [1] : vector<16x122xf32> to vector<16xf32>
    %289 = vector.shape_cast %288 : vector<16xf32> to vector<16x1xf32>
    %cst_157 = arith.constant dense<0.000000e+00> : vector<1xf32>
    %290 = vector.multi_reduction <add>, %289, %cst_157 [0] : vector<16x1xf32> to vector<1xf32>
    %291 = vector.shape_cast %290 : vector<1xf32> to vector<1x1xf32>
    %cst_158 = arith.constant 0.000000e+00 : f32
    %292 = vector.broadcast %cst_158 : f32 to vector<1x1xf32>
    %293 = arith.addf %292, %291 : vector<1x1xf32>
    %cst_159 = arith.constant dense<0.000000e+00> : vector<16xf32>
    %294 = vector.multi_reduction <add>, %287, %cst_159 [1] : vector<16x122xf32> to vector<16xf32>
    %295 = vector.shape_cast %294 : vector<16xf32> to vector<16x1xf32>
    %cst_160 = arith.constant dense<0.000000e+00> : vector<1xf32>
    %296 = vector.multi_reduction <add>, %295, %cst_160 [0] : vector<16x1xf32> to vector<1xf32>
    %297 = vector.shape_cast %296 : vector<1xf32> to vector<1x1xf32>
    %298 = arith.addf %293, %297 : vector<1x1xf32>
    %299 = arith.mulf %286, %286 : vector<16x122xf32>
    %cst_161 = arith.constant dense<0.000000e+00> : vector<16xf32>
    %300 = vector.multi_reduction <add>, %299, %cst_161 [1] : vector<16x122xf32> to vector<16xf32>
    %301 = vector.shape_cast %300 : vector<16xf32> to vector<16x1xf32>
    %cst_162 = arith.constant dense<0.000000e+00> : vector<1xf32>
    %302 = vector.multi_reduction <add>, %301, %cst_162 [0] : vector<16x1xf32> to vector<1xf32>
    %303 = vector.shape_cast %302 : vector<1xf32> to vector<1x1xf32>
    %cst_163 = arith.constant 0.000000e+00 : f32
    %304 = vector.broadcast %cst_163 : f32 to vector<1x1xf32>
    %305 = arith.addf %304, %303 : vector<1x1xf32>
    %306 = arith.mulf %287, %287 : vector<16x122xf32>
    %cst_164 = arith.constant dense<0.000000e+00> : vector<16xf32>
    %307 = vector.multi_reduction <add>, %306, %cst_164 [1] : vector<16x122xf32> to vector<16xf32>
    %308 = vector.shape_cast %307 : vector<16xf32> to vector<16x1xf32>
    %cst_165 = arith.constant dense<0.000000e+00> : vector<1xf32>
    %309 = vector.multi_reduction <add>, %308, %cst_165 [0] : vector<16x1xf32> to vector<1xf32>
    %310 = vector.shape_cast %309 : vector<1xf32> to vector<1x1xf32>
    %311 = arith.addf %305, %310 : vector<1x1xf32>
    %cst_166 = arith.constant 2.56147527E-4 : f32
    %312 = vector.broadcast %cst_166 : f32 to vector<1x1xf32>
    %313 = arith.mulf %298, %312 : vector<1x1xf32>
    %cst_167 = arith.constant 2.56147527E-4 : f32
    %314 = vector.broadcast %cst_167 : f32 to vector<1x1xf32>
    %315 = arith.mulf %311, %314 : vector<1x1xf32>
    %316 = arith.mulf %313, %313 : vector<1x1xf32>
    %317 = arith.subf %315, %316 : vector<1x1xf32>
    %cst_168 = arith.constant 0.000000e+00 : f32
    %318 = vector.broadcast %cst_168 : f32 to vector<1x1xf32>
    %319 = arith.maximumf %317, %318 : vector<1x1xf32>
    %320 = math.rsqrt %319 : vector<1x1xf32>
    %c2_169 = arith.constant 2 : index
    %321 = memref.load %arg16[%c2_169] : memref<17xf32, #tpu.memory_space<smem>>
    %322 = vector.broadcast %321 : f32 to vector<1x1xf32>
    %323 = arith.mulf %320, %322 : vector<1x1xf32>
    %c6_170 = arith.constant 6 : index
    %324 = memref.load %arg16[%c6_170] : memref<17xf32, #tpu.memory_space<smem>>
    %325 = arith.mulf %313, %323 : vector<1x1xf32>
    %326 = vector.broadcast %324 : f32 to vector<1x1xf32>
    %327 = arith.subf %326, %325 : vector<1x1xf32>
    %328 = vector.broadcast %323 : vector<1x1xf32> to vector<16x122xf32>
    %329 = arith.mulf %286, %328 : vector<16x122xf32>
    %330 = vector.broadcast %327 : vector<1x1xf32> to vector<16x122xf32>
    %331 = arith.addf %329, %330 : vector<16x122xf32>
    %332 = vector.extract_strided_slice %331 {offsets = [0, 0], sizes = [16, 121], strides = [1, 1]} : vector<16x122xf32> to vector<16x121xf32>
    %333 = vector.extract_strided_slice %331 {offsets = [0, 1], sizes = [16, 121], strides = [1, 1]} : vector<16x122xf32> to vector<16x121xf32>
    %334 = arith.maximumf %332, %333 : vector<16x121xf32>
    %c0_171 = arith.constant 0 : index
    %c0_172 = arith.constant 0 : index
    %335 = vector.load %arg8[%c0_171, %c0_172] : memref<121x31xf32, #tpu.memory_space<vmem>>, vector<121x31xf32>
    %cst_173 = arith.constant dense<0.000000e+00> : vector<16x31xf32>
    %336 = tpu.matmul %334, %335, %cst_173 {dimension_numbers = #tpu.dot_dimension_numbers<[1], [0], [0], [1], [0, 0, 1, 1], [], []>} : vector<16x121xf32>, vector<121x31xf32>, vector<16x31xf32> -> vector<16x31xf32>
    %337 = vector.extract_strided_slice %336 {offsets = [0, 0], sizes = [15, 31], strides = [1, 1]} : vector<16x31xf32> to vector<15x31xf32>
    %338 = vector.extract_strided_slice %336 {offsets = [1, 0], sizes = [15, 31], strides = [1, 1]} : vector<16x31xf32> to vector<15x31xf32>
    %339 = arith.maximumf %337, %338 : vector<15x31xf32>
    %c0_174 = arith.constant 0 : index
    %c0_175 = arith.constant 0 : index
    %340 = vector.load %arg9[%c0_174, %c0_175] : memref<4x15xf32, #tpu.memory_space<vmem>>, vector<4x15xf32>
    %cst_176 = arith.constant dense<0.000000e+00> : vector<4x31xf32>
    %341 = tpu.matmul %340, %339, %cst_176 {dimension_numbers = #tpu.dot_dimension_numbers<[1], [0], [0], [1], [0, 0, 1, 1], [], []>} : vector<4x15xf32>, vector<15x31xf32>, vector<4x31xf32> -> vector<4x31xf32>
    %342 = vector.extract_strided_slice %341 {offsets = [0, 0], sizes = [1, 31], strides = [1, 1]} : vector<4x31xf32> to vector<1x31xf32>
    %c3_177 = arith.constant 3 : index
    %c2176 = arith.constant 2176 : index
    %343 = vector.load %arg19[%c3_177, %c2176] : memref<8x4096xf32, #tpu.memory_space<vmem>>, vector<1x31xf32>
    tpu.vector_store %arg19[%c3_177, %c2176], %342 {strides = array<i32>} : memref<8x4096xf32, #tpu.memory_space<vmem>>, vector<1x31xf32>,
    %344 = vector.extract_strided_slice %341 {offsets = [0, 0], sizes = [2, 31], strides = [1, 1]} : vector<4x31xf32> to vector<2x31xf32>
    %c2_178 = arith.constant 2 : index
    %c2304 = arith.constant 2304 : index
    %345 = vector.load %arg19[%c2_178, %c2304] : memref<8x4096xf32, #tpu.memory_space<vmem>>, vector<2x31xf32>
    tpu.vector_store %arg19[%c2_178, %c2304], %344 {strides = array<i32>} : memref<8x4096xf32, #tpu.memory_space<vmem>>, vector<2x31xf32>,
    %346 = vector.extract_strided_slice %341 {offsets = [0, 0], sizes = [3, 31], strides = [1, 1]} : vector<4x31xf32> to vector<3x31xf32>
    %c1_179 = arith.constant 1 : index
    %c2432 = arith.constant 2432 : index
    %347 = vector.load %arg19[%c1_179, %c2432] : memref<8x4096xf32, #tpu.memory_space<vmem>>, vector<3x31xf32>
    tpu.vector_store %arg19[%c1_179, %c2432], %346 {strides = array<i32>} : memref<8x4096xf32, #tpu.memory_space<vmem>>, vector<3x31xf32>,
    %c0_180 = arith.constant 0 : index
    %c2560 = arith.constant 2560 : index
    %348 = vector.load %arg19[%c0_180, %c2560] : memref<8x4096xf32, #tpu.memory_space<vmem>>, vector<4x31xf32>
    tpu.vector_store %arg19[%c0_180, %c2560], %341 {strides = array<i32>} : memref<8x4096xf32, #tpu.memory_space<vmem>>, vector<4x31xf32>,
    %349 = vector.extract_strided_slice %341 {offsets = [1, 0], sizes = [3, 31], strides = [1, 1]} : vector<4x31xf32> to vector<3x31xf32>
    %c0_181 = arith.constant 0 : index
    %c2688 = arith.constant 2688 : index
    %350 = vector.load %arg19[%c0_181, %c2688] : memref<8x4096xf32, #tpu.memory_space<vmem>>, vector<3x31xf32>
    tpu.vector_store %arg19[%c0_181, %c2688], %349 {strides = array<i32>} : memref<8x4096xf32, #tpu.memory_space<vmem>>, vector<3x31xf32>,
    %351 = vector.extract_strided_slice %341 {offsets = [2, 0], sizes = [2, 31], strides = [1, 1]} : vector<4x31xf32> to vector<2x31xf32>
    %c0_182 = arith.constant 0 : index
    %c2816 = arith.constant 2816 : index
    %352 = vector.load %arg19[%c0_182, %c2816] : memref<8x4096xf32, #tpu.memory_space<vmem>>, vector<2x31xf32>
    tpu.vector_store %arg19[%c0_182, %c2816], %351 {strides = array<i32>} : memref<8x4096xf32, #tpu.memory_space<vmem>>, vector<2x31xf32>,
    %353 = vector.extract_strided_slice %341 {offsets = [3, 0], sizes = [1, 31], strides = [1, 1]} : vector<4x31xf32> to vector<1x31xf32>
    %c0_183 = arith.constant 0 : index
    %c2944 = arith.constant 2944 : index
    %354 = vector.load %arg19[%c0_183, %c2944] : memref<8x4096xf32, #tpu.memory_space<vmem>>, vector<1x31xf32>
    tpu.vector_store %arg19[%c0_183, %c2944], %353 {strides = array<i32>} : memref<8x4096xf32, #tpu.memory_space<vmem>>, vector<1x31xf32>,
    %355 = vector.broadcast %323 : vector<1x1xf32> to vector<16x122xf32>
    %356 = arith.mulf %287, %355 : vector<16x122xf32>
    %357 = vector.broadcast %327 : vector<1x1xf32> to vector<16x122xf32>
    %358 = arith.addf %356, %357 : vector<16x122xf32>
    %359 = vector.extract_strided_slice %358 {offsets = [0, 0], sizes = [16, 121], strides = [1, 1]} : vector<16x122xf32> to vector<16x121xf32>
    %360 = vector.extract_strided_slice %358 {offsets = [0, 1], sizes = [16, 121], strides = [1, 1]} : vector<16x122xf32> to vector<16x121xf32>
    %361 = arith.maximumf %359, %360 : vector<16x121xf32>
    %c0_184 = arith.constant 0 : index
    %c0_185 = arith.constant 0 : index
    %362 = vector.load %arg8[%c0_184, %c0_185] : memref<121x31xf32, #tpu.memory_space<vmem>>, vector<121x31xf32>
    %cst_186 = arith.constant dense<0.000000e+00> : vector<16x31xf32>
    %363 = tpu.matmul %361, %362, %cst_186 {dimension_numbers = #tpu.dot_dimension_numbers<[1], [0], [0], [1], [0, 0, 1, 1], [], []>} : vector<16x121xf32>, vector<121x31xf32>, vector<16x31xf32> -> vector<16x31xf32>
    %364 = vector.extract_strided_slice %363 {offsets = [0, 0], sizes = [15, 31], strides = [1, 1]} : vector<16x31xf32> to vector<15x31xf32>
    %365 = vector.extract_strided_slice %363 {offsets = [1, 0], sizes = [15, 31], strides = [1, 1]} : vector<16x31xf32> to vector<15x31xf32>
    %366 = arith.maximumf %364, %365 : vector<15x31xf32>
    %c0_187 = arith.constant 0 : index
    %c0_188 = arith.constant 0 : index
    %367 = vector.load %arg9[%c0_187, %c0_188] : memref<4x15xf32, #tpu.memory_space<vmem>>, vector<4x15xf32>
    %cst_189 = arith.constant dense<0.000000e+00> : vector<4x31xf32>
    %368 = tpu.matmul %367, %366, %cst_189 {dimension_numbers = #tpu.dot_dimension_numbers<[1], [0], [0], [1], [0, 0, 1, 1], [], []>} : vector<4x15xf32>, vector<15x31xf32>, vector<4x31xf32> -> vector<4x31xf32>
    %369 = vector.extract_strided_slice %368 {offsets = [0, 0], sizes = [1, 31], strides = [1, 1]} : vector<4x31xf32> to vector<1x31xf32>
    %c7_190 = arith.constant 7 : index
    %c2176_191 = arith.constant 2176 : index
    %370 = vector.load %arg19[%c7_190, %c2176_191] : memref<8x4096xf32, #tpu.memory_space<vmem>>, vector<1x31xf32>
    tpu.vector_store %arg19[%c7_190, %c2176_191], %369 {strides = array<i32>} : memref<8x4096xf32, #tpu.memory_space<vmem>>, vector<1x31xf32>,
    %371 = vector.extract_strided_slice %368 {offsets = [0, 0], sizes = [2, 31], strides = [1, 1]} : vector<4x31xf32> to vector<2x31xf32>
    %c6_192 = arith.constant 6 : index
    %c2304_193 = arith.constant 2304 : index
    %372 = vector.load %arg19[%c6_192, %c2304_193] : memref<8x4096xf32, #tpu.memory_space<vmem>>, vector<2x31xf32>
    tpu.vector_store %arg19[%c6_192, %c2304_193], %371 {strides = array<i32>} : memref<8x4096xf32, #tpu.memory_space<vmem>>, vector<2x31xf32>,
    %373 = vector.extract_strided_slice %368 {offsets = [0, 0], sizes = [3, 31], strides = [1, 1]} : vector<4x31xf32> to vector<3x31xf32>
    %c5_194 = arith.constant 5 : index
    %c2432_195 = arith.constant 2432 : index
    %374 = vector.load %arg19[%c5_194, %c2432_195] : memref<8x4096xf32, #tpu.memory_space<vmem>>, vector<3x31xf32>
    tpu.vector_store %arg19[%c5_194, %c2432_195], %373 {strides = array<i32>} : memref<8x4096xf32, #tpu.memory_space<vmem>>, vector<3x31xf32>,
    %c4_196 = arith.constant 4 : index
    %c2560_197 = arith.constant 2560 : index
    %375 = vector.load %arg19[%c4_196, %c2560_197] : memref<8x4096xf32, #tpu.memory_space<vmem>>, vector<4x31xf32>
    tpu.vector_store %arg19[%c4_196, %c2560_197], %368 {strides = array<i32>} : memref<8x4096xf32, #tpu.memory_space<vmem>>, vector<4x31xf32>,
    %376 = vector.extract_strided_slice %368 {offsets = [1, 0], sizes = [3, 31], strides = [1, 1]} : vector<4x31xf32> to vector<3x31xf32>
    %c4_198 = arith.constant 4 : index
    %c2688_199 = arith.constant 2688 : index
    %377 = vector.load %arg19[%c4_198, %c2688_199] : memref<8x4096xf32, #tpu.memory_space<vmem>>, vector<3x31xf32>
    tpu.vector_store %arg19[%c4_198, %c2688_199], %376 {strides = array<i32>} : memref<8x4096xf32, #tpu.memory_space<vmem>>, vector<3x31xf32>,
    %378 = vector.extract_strided_slice %368 {offsets = [2, 0], sizes = [2, 31], strides = [1, 1]} : vector<4x31xf32> to vector<2x31xf32>
    %c4_200 = arith.constant 4 : index
    %c2816_201 = arith.constant 2816 : index
    %379 = vector.load %arg19[%c4_200, %c2816_201] : memref<8x4096xf32, #tpu.memory_space<vmem>>, vector<2x31xf32>
    tpu.vector_store %arg19[%c4_200, %c2816_201], %378 {strides = array<i32>} : memref<8x4096xf32, #tpu.memory_space<vmem>>, vector<2x31xf32>,
    %380 = vector.extract_strided_slice %368 {offsets = [3, 0], sizes = [1, 31], strides = [1, 1]} : vector<4x31xf32> to vector<1x31xf32>
    %c4_202 = arith.constant 4 : index
    %c2944_203 = arith.constant 2944 : index
    %381 = vector.load %arg19[%c4_202, %c2944_203] : memref<8x4096xf32, #tpu.memory_space<vmem>>, vector<1x31xf32>
    tpu.vector_store %arg19[%c4_202, %c2944_203], %380 {strides = array<i32>} : memref<8x4096xf32, #tpu.memory_space<vmem>>, vector<1x31xf32>,
    %382 = vector.extract_strided_slice %69 {offsets = [0, 366], sizes = [16, 122], strides = [1, 1]} : vector<16x488xf32> to vector<16x122xf32>
    %383 = vector.extract_strided_slice %91 {offsets = [0, 366], sizes = [16, 122], strides = [1, 1]} : vector<16x488xf32> to vector<16x122xf32>
    %cst_204 = arith.constant dense<0.000000e+00> : vector<16xf32>
    %384 = vector.multi_reduction <add>, %382, %cst_204 [1] : vector<16x122xf32> to vector<16xf32>
    %385 = vector.shape_cast %384 : vector<16xf32> to vector<16x1xf32>
    %cst_205 = arith.constant dense<0.000000e+00> : vector<1xf32>
    %386 = vector.multi_reduction <add>, %385, %cst_205 [0] : vector<16x1xf32> to vector<1xf32>
    %387 = vector.shape_cast %386 : vector<1xf32> to vector<1x1xf32>
    %cst_206 = arith.constant 0.000000e+00 : f32
    %388 = vector.broadcast %cst_206 : f32 to vector<1x1xf32>
    %389 = arith.addf %388, %387 : vector<1x1xf32>
    %cst_207 = arith.constant dense<0.000000e+00> : vector<16xf32>
    %390 = vector.multi_reduction <add>, %383, %cst_207 [1] : vector<16x122xf32> to vector<16xf32>
    %391 = vector.shape_cast %390 : vector<16xf32> to vector<16x1xf32>
    %cst_208 = arith.constant dense<0.000000e+00> : vector<1xf32>
    %392 = vector.multi_reduction <add>, %391, %cst_208 [0] : vector<16x1xf32> to vector<1xf32>
    %393 = vector.shape_cast %392 : vector<1xf32> to vector<1x1xf32>
    %394 = arith.addf %389, %393 : vector<1x1xf32>
    %395 = arith.mulf %382, %382 : vector<16x122xf32>
    %cst_209 = arith.constant dense<0.000000e+00> : vector<16xf32>
    %396 = vector.multi_reduction <add>, %395, %cst_209 [1] : vector<16x122xf32> to vector<16xf32>
    %397 = vector.shape_cast %396 : vector<16xf32> to vector<16x1xf32>
    %cst_210 = arith.constant dense<0.000000e+00> : vector<1xf32>
    %398 = vector.multi_reduction <add>, %397, %cst_210 [0] : vector<16x1xf32> to vector<1xf32>
    %399 = vector.shape_cast %398 : vector<1xf32> to vector<1x1xf32>
    %cst_211 = arith.constant 0.000000e+00 : f32
    %400 = vector.broadcast %cst_211 : f32 to vector<1x1xf32>
    %401 = arith.addf %400, %399 : vector<1x1xf32>
    %402 = arith.mulf %383, %383 : vector<16x122xf32>
    %cst_212 = arith.constant dense<0.000000e+00> : vector<16xf32>
    %403 = vector.multi_reduction <add>, %402, %cst_212 [1] : vector<16x122xf32> to vector<16xf32>
    %404 = vector.shape_cast %403 : vector<16xf32> to vector<16x1xf32>
    %cst_213 = arith.constant dense<0.000000e+00> : vector<1xf32>
    %405 = vector.multi_reduction <add>, %404, %cst_213 [0] : vector<16x1xf32> to vector<1xf32>
    %406 = vector.shape_cast %405 : vector<1xf32> to vector<1x1xf32>
    %407 = arith.addf %401, %406 : vector<1x1xf32>
    %cst_214 = arith.constant 2.56147527E-4 : f32
    %408 = vector.broadcast %cst_214 : f32 to vector<1x1xf32>
    %409 = arith.mulf %394, %408 : vector<1x1xf32>
    %cst_215 = arith.constant 2.56147527E-4 : f32
    %410 = vector.broadcast %cst_215 : f32 to vector<1x1xf32>
    %411 = arith.mulf %407, %410 : vector<1x1xf32>
    %412 = arith.mulf %409, %409 : vector<1x1xf32>
    %413 = arith.subf %411, %412 : vector<1x1xf32>
    %cst_216 = arith.constant 0.000000e+00 : f32
    %414 = vector.broadcast %cst_216 : f32 to vector<1x1xf32>
    %415 = arith.maximumf %413, %414 : vector<1x1xf32>
    %416 = math.rsqrt %415 : vector<1x1xf32>
    %c3_217 = arith.constant 3 : index
    %417 = memref.load %arg16[%c3_217] : memref<17xf32, #tpu.memory_space<smem>>
    %418 = vector.broadcast %417 : f32 to vector<1x1xf32>
    %419 = arith.mulf %416, %418 : vector<1x1xf32>
    %c7_218 = arith.constant 7 : index
    %420 = memref.load %arg16[%c7_218] : memref<17xf32, #tpu.memory_space<smem>>
    %421 = arith.mulf %409, %419 : vector<1x1xf32>
    %422 = vector.broadcast %420 : f32 to vector<1x1xf32>
    %423 = arith.subf %422, %421 : vector<1x1xf32>
    %424 = vector.broadcast %419 : vector<1x1xf32> to vector<16x122xf32>
    %425 = arith.mulf %382, %424 : vector<16x122xf32>
    %426 = vector.broadcast %423 : vector<1x1xf32> to vector<16x122xf32>
    %427 = arith.addf %425, %426 : vector<16x122xf32>
    %428 = vector.extract_strided_slice %427 {offsets = [0, 0], sizes = [16, 121], strides = [1, 1]} : vector<16x122xf32> to vector<16x121xf32>
    %429 = vector.extract_strided_slice %427 {offsets = [0, 1], sizes = [16, 121], strides = [1, 1]} : vector<16x122xf32> to vector<16x121xf32>
    %430 = arith.maximumf %428, %429 : vector<16x121xf32>
    %c0_219 = arith.constant 0 : index
    %c0_220 = arith.constant 0 : index
    %431 = vector.load %arg8[%c0_219, %c0_220] : memref<121x31xf32, #tpu.memory_space<vmem>>, vector<121x31xf32>
    %cst_221 = arith.constant dense<0.000000e+00> : vector<16x31xf32>
    %432 = tpu.matmul %430, %431, %cst_221 {dimension_numbers = #tpu.dot_dimension_numbers<[1], [0], [0], [1], [0, 0, 1, 1], [], []>} : vector<16x121xf32>, vector<121x31xf32>, vector<16x31xf32> -> vector<16x31xf32>
    %433 = vector.extract_strided_slice %432 {offsets = [0, 0], sizes = [15, 31], strides = [1, 1]} : vector<16x31xf32> to vector<15x31xf32>
    %434 = vector.extract_strided_slice %432 {offsets = [1, 0], sizes = [15, 31], strides = [1, 1]} : vector<16x31xf32> to vector<15x31xf32>
    %435 = arith.maximumf %433, %434 : vector<15x31xf32>
    %c0_222 = arith.constant 0 : index
    %c0_223 = arith.constant 0 : index
    %436 = vector.load %arg9[%c0_222, %c0_223] : memref<4x15xf32, #tpu.memory_space<vmem>>, vector<4x15xf32>
    %cst_224 = arith.constant dense<0.000000e+00> : vector<4x31xf32>
    %437 = tpu.matmul %436, %435, %cst_224 {dimension_numbers = #tpu.dot_dimension_numbers<[1], [0], [0], [1], [0, 0, 1, 1], [], []>} : vector<4x15xf32>, vector<15x31xf32>, vector<4x31xf32> -> vector<4x31xf32>
    %438 = vector.extract_strided_slice %437 {offsets = [0, 0], sizes = [1, 31], strides = [1, 1]} : vector<4x31xf32> to vector<1x31xf32>
    %c3_225 = arith.constant 3 : index
    %c3200 = arith.constant 3200 : index
    %439 = vector.load %arg19[%c3_225, %c3200] : memref<8x4096xf32, #tpu.memory_space<vmem>>, vector<1x31xf32>
    tpu.vector_store %arg19[%c3_225, %c3200], %438 {strides = array<i32>} : memref<8x4096xf32, #tpu.memory_space<vmem>>, vector<1x31xf32>,
    %440 = vector.extract_strided_slice %437 {offsets = [0, 0], sizes = [2, 31], strides = [1, 1]} : vector<4x31xf32> to vector<2x31xf32>
    %c2_226 = arith.constant 2 : index
    %c3328 = arith.constant 3328 : index
    %441 = vector.load %arg19[%c2_226, %c3328] : memref<8x4096xf32, #tpu.memory_space<vmem>>, vector<2x31xf32>
    tpu.vector_store %arg19[%c2_226, %c3328], %440 {strides = array<i32>} : memref<8x4096xf32, #tpu.memory_space<vmem>>, vector<2x31xf32>,
    %442 = vector.extract_strided_slice %437 {offsets = [0, 0], sizes = [3, 31], strides = [1, 1]} : vector<4x31xf32> to vector<3x31xf32>
    %c1_227 = arith.constant 1 : index
    %c3456 = arith.constant 3456 : index
    %443 = vector.load %arg19[%c1_227, %c3456] : memref<8x4096xf32, #tpu.memory_space<vmem>>, vector<3x31xf32>
    tpu.vector_store %arg19[%c1_227, %c3456], %442 {strides = array<i32>} : memref<8x4096xf32, #tpu.memory_space<vmem>>, vector<3x31xf32>,
    %c0_228 = arith.constant 0 : index
    %c3584 = arith.constant 3584 : index
    %444 = vector.load %arg19[%c0_228, %c3584] : memref<8x4096xf32, #tpu.memory_space<vmem>>, vector<4x31xf32>
    tpu.vector_store %arg19[%c0_228, %c3584], %437 {strides = array<i32>} : memref<8x4096xf32, #tpu.memory_space<vmem>>, vector<4x31xf32>,
    %445 = vector.extract_strided_slice %437 {offsets = [1, 0], sizes = [3, 31], strides = [1, 1]} : vector<4x31xf32> to vector<3x31xf32>
    %c0_229 = arith.constant 0 : index
    %c3712 = arith.constant 3712 : index
    %446 = vector.load %arg19[%c0_229, %c3712] : memref<8x4096xf32, #tpu.memory_space<vmem>>, vector<3x31xf32>
    tpu.vector_store %arg19[%c0_229, %c3712], %445 {strides = array<i32>} : memref<8x4096xf32, #tpu.memory_space<vmem>>, vector<3x31xf32>,
    %447 = vector.extract_strided_slice %437 {offsets = [2, 0], sizes = [2, 31], strides = [1, 1]} : vector<4x31xf32> to vector<2x31xf32>
    %c0_230 = arith.constant 0 : index
    %c3840 = arith.constant 3840 : index
    %448 = vector.load %arg19[%c0_230, %c3840] : memref<8x4096xf32, #tpu.memory_space<vmem>>, vector<2x31xf32>
    tpu.vector_store %arg19[%c0_230, %c3840], %447 {strides = array<i32>} : memref<8x4096xf32, #tpu.memory_space<vmem>>, vector<2x31xf32>,
    %449 = vector.extract_strided_slice %437 {offsets = [3, 0], sizes = [1, 31], strides = [1, 1]} : vector<4x31xf32> to vector<1x31xf32>
    %c0_231 = arith.constant 0 : index
    %c3968 = arith.constant 3968 : index
    %450 = vector.load %arg19[%c0_231, %c3968] : memref<8x4096xf32, #tpu.memory_space<vmem>>, vector<1x31xf32>
    tpu.vector_store %arg19[%c0_231, %c3968], %449 {strides = array<i32>} : memref<8x4096xf32, #tpu.memory_space<vmem>>, vector<1x31xf32>,
    %451 = vector.broadcast %419 : vector<1x1xf32> to vector<16x122xf32>
    %452 = arith.mulf %383, %451 : vector<16x122xf32>
    %453 = vector.broadcast %423 : vector<1x1xf32> to vector<16x122xf32>
    %454 = arith.addf %452, %453 : vector<16x122xf32>
    %455 = vector.extract_strided_slice %454 {offsets = [0, 0], sizes = [16, 121], strides = [1, 1]} : vector<16x122xf32> to vector<16x121xf32>
    %456 = vector.extract_strided_slice %454 {offsets = [0, 1], sizes = [16, 121], strides = [1, 1]} : vector<16x122xf32> to vector<16x121xf32>
    %457 = arith.maximumf %455, %456 : vector<16x121xf32>
    %c0_232 = arith.constant 0 : index
    %c0_233 = arith.constant 0 : index
    %458 = vector.load %arg8[%c0_232, %c0_233] : memref<121x31xf32, #tpu.memory_space<vmem>>, vector<121x31xf32>
    %cst_234 = arith.constant dense<0.000000e+00> : vector<16x31xf32>
    %459 = tpu.matmul %457, %458, %cst_234 {dimension_numbers = #tpu.dot_dimension_numbers<[1], [0], [0], [1], [0, 0, 1, 1], [], []>} : vector<16x121xf32>, vector<121x31xf32>, vector<16x31xf32> -> vector<16x31xf32>
    %460 = vector.extract_strided_slice %459 {offsets = [0, 0], sizes = [15, 31], strides = [1, 1]} : vector<16x31xf32> to vector<15x31xf32>
    %461 = vector.extract_strided_slice %459 {offsets = [1, 0], sizes = [15, 31], strides = [1, 1]} : vector<16x31xf32> to vector<15x31xf32>
    %462 = arith.maximumf %460, %461 : vector<15x31xf32>
    %c0_235 = arith.constant 0 : index
    %c0_236 = arith.constant 0 : index
    %463 = vector.load %arg9[%c0_235, %c0_236] : memref<4x15xf32, #tpu.memory_space<vmem>>, vector<4x15xf32>
    %cst_237 = arith.constant dense<0.000000e+00> : vector<4x31xf32>
    %464 = tpu.matmul %463, %462, %cst_237 {dimension_numbers = #tpu.dot_dimension_numbers<[1], [0], [0], [1], [0, 0, 1, 1], [], []>} : vector<4x15xf32>, vector<15x31xf32>, vector<4x31xf32> -> vector<4x31xf32>
    %465 = vector.extract_strided_slice %464 {offsets = [0, 0], sizes = [1, 31], strides = [1, 1]} : vector<4x31xf32> to vector<1x31xf32>
    %c7_238 = arith.constant 7 : index
    %c3200_239 = arith.constant 3200 : index
    %466 = vector.load %arg19[%c7_238, %c3200_239] : memref<8x4096xf32, #tpu.memory_space<vmem>>, vector<1x31xf32>
    tpu.vector_store %arg19[%c7_238, %c3200_239], %465 {strides = array<i32>} : memref<8x4096xf32, #tpu.memory_space<vmem>>, vector<1x31xf32>,
    %467 = vector.extract_strided_slice %464 {offsets = [0, 0], sizes = [2, 31], strides = [1, 1]} : vector<4x31xf32> to vector<2x31xf32>
    %c6_240 = arith.constant 6 : index
    %c3328_241 = arith.constant 3328 : index
    %468 = vector.load %arg19[%c6_240, %c3328_241] : memref<8x4096xf32, #tpu.memory_space<vmem>>, vector<2x31xf32>
    tpu.vector_store %arg19[%c6_240, %c3328_241], %467 {strides = array<i32>} : memref<8x4096xf32, #tpu.memory_space<vmem>>, vector<2x31xf32>,
    %469 = vector.extract_strided_slice %464 {offsets = [0, 0], sizes = [3, 31], strides = [1, 1]} : vector<4x31xf32> to vector<3x31xf32>
    %c5_242 = arith.constant 5 : index
    %c3456_243 = arith.constant 3456 : index
    %470 = vector.load %arg19[%c5_242, %c3456_243] : memref<8x4096xf32, #tpu.memory_space<vmem>>, vector<3x31xf32>
    tpu.vector_store %arg19[%c5_242, %c3456_243], %469 {strides = array<i32>} : memref<8x4096xf32, #tpu.memory_space<vmem>>, vector<3x31xf32>,
    %c4_244 = arith.constant 4 : index
    %c3584_245 = arith.constant 3584 : index
    %471 = vector.load %arg19[%c4_244, %c3584_245] : memref<8x4096xf32, #tpu.memory_space<vmem>>, vector<4x31xf32>
    tpu.vector_store %arg19[%c4_244, %c3584_245], %464 {strides = array<i32>} : memref<8x4096xf32, #tpu.memory_space<vmem>>, vector<4x31xf32>,
    %472 = vector.extract_strided_slice %464 {offsets = [1, 0], sizes = [3, 31], strides = [1, 1]} : vector<4x31xf32> to vector<3x31xf32>
    %c4_246 = arith.constant 4 : index
    %c3712_247 = arith.constant 3712 : index
    %473 = vector.load %arg19[%c4_246, %c3712_247] : memref<8x4096xf32, #tpu.memory_space<vmem>>, vector<3x31xf32>
    tpu.vector_store %arg19[%c4_246, %c3712_247], %472 {strides = array<i32>} : memref<8x4096xf32, #tpu.memory_space<vmem>>, vector<3x31xf32>,
    %474 = vector.extract_strided_slice %464 {offsets = [2, 0], sizes = [2, 31], strides = [1, 1]} : vector<4x31xf32> to vector<2x31xf32>
    %c4_248 = arith.constant 4 : index
    %c3840_249 = arith.constant 3840 : index
    %475 = vector.load %arg19[%c4_248, %c3840_249] : memref<8x4096xf32, #tpu.memory_space<vmem>>, vector<2x31xf32>
    tpu.vector_store %arg19[%c4_248, %c3840_249], %474 {strides = array<i32>} : memref<8x4096xf32, #tpu.memory_space<vmem>>, vector<2x31xf32>,
    %476 = vector.extract_strided_slice %464 {offsets = [3, 0], sizes = [1, 31], strides = [1, 1]} : vector<4x31xf32> to vector<1x31xf32>
    %c4_250 = arith.constant 4 : index
    %c3968_251 = arith.constant 3968 : index
    %477 = vector.load %arg19[%c4_250, %c3968_251] : memref<8x4096xf32, #tpu.memory_space<vmem>>, vector<1x31xf32>
    tpu.vector_store %arg19[%c4_250, %c3968_251], %476 {strides = array<i32>} : memref<8x4096xf32, #tpu.memory_space<vmem>>, vector<1x31xf32>,
    %c0_252 = arith.constant 0 : index
    %c0_253 = arith.constant 0 : index
    %478 = vector.load %arg19[%c0_252, %c0_253] : memref<8x4096xf32, #tpu.memory_space<vmem>>, vector<8x4096xf32>
    %c0_254 = arith.constant 0 : index
    %c0_255 = arith.constant 0 : index
    %479 = vector.load %arg10[%c0_254, %c0_255] : memref<4096x124xf32, #tpu.memory_space<vmem>>, vector<4096x124xf32>
    %cst_256 = arith.constant dense<0.000000e+00> : vector<8x124xf32>
    %480 = tpu.matmul %478, %479, %cst_256 {dimension_numbers = #tpu.dot_dimension_numbers<[1], [0], [0], [1], [0, 0, 1, 1], [], []>} : vector<8x4096xf32>, vector<4096x124xf32>, vector<8x124xf32> -> vector<8x124xf32>
    %c0_257 = arith.constant 0 : index
    %c0_258 = arith.constant 0 : index
    %481 = vector.load %arg11[%c0_257, %c0_258] : memref<1x124xf32, #tpu.memory_space<vmem>>, vector<1x124xf32>
    %482 = vector.broadcast %481 : vector<1x124xf32> to vector<8x124xf32>
    %483 = arith.addf %480, %482 : vector<8x124xf32>
    %cst_259 = arith.constant 0.000000e+00 : f32
    %484 = vector.broadcast %cst_259 : f32 to vector<8x124xf32>
    %485 = arith.cmpf ogt, %483, %484 : vector<8x124xf32>
    %cst_260 = arith.constant 0.000000e+00 : f32
    %486 = vector.broadcast %cst_260 : f32 to vector<8x124xf32>
    %487 = arith.minimumf %483, %486 : vector<8x124xf32>
    %488 = math.exp %487 : vector<8x124xf32>
    %cst_261 = arith.constant 1.000000e+00 : f32
    %489 = vector.broadcast %cst_261 : f32 to vector<8x124xf32>
    %490 = arith.subf %488, %489 : vector<8x124xf32>
    %491 = arith.select %485, %483, %490 : vector<8x124xi1>, vector<8x124xf32>
    %cst_262 = arith.constant 0.000000e+00 : f32
    %492 = vector.broadcast %cst_262 : f32 to vector<4x1xf32>
    %493 = vector.extract_strided_slice %491 {offsets = [0, 0], sizes = [8, 31], strides = [1, 1]} : vector<8x124xf32> to vector<8x31xf32>
    %cst_263 = arith.constant dense<0.000000e+00> : vector<8xf32>
    %494 = vector.multi_reduction <add>, %493, %cst_263 [1] : vector<8x31xf32> to vector<8xf32>
    %495 = vector.shape_cast %494 : vector<8xf32> to vector<8x1xf32>
    %cst_264 = arith.constant dense<0.000000e+00> : vector<1xf32>
    %496 = vector.multi_reduction <add>, %495, %cst_264 [0] : vector<8x1xf32> to vector<1xf32>
    %497 = vector.shape_cast %496 : vector<1xf32> to vector<1x1xf32>
    %498 = arith.mulf %493, %493 : vector<8x31xf32>
    %cst_265 = arith.constant dense<0.000000e+00> : vector<8xf32>
    %499 = vector.multi_reduction <add>, %498, %cst_265 [1] : vector<8x31xf32> to vector<8xf32>
    %500 = vector.shape_cast %499 : vector<8xf32> to vector<8x1xf32>
    %cst_266 = arith.constant dense<0.000000e+00> : vector<1xf32>
    %501 = vector.multi_reduction <add>, %500, %cst_266 [0] : vector<8x1xf32> to vector<1xf32>
    %502 = vector.shape_cast %501 : vector<1xf32> to vector<1x1xf32>
    %cst_267 = arith.constant 0.00403225794 : f32
    %503 = vector.broadcast %cst_267 : f32 to vector<1x1xf32>
    %504 = arith.mulf %497, %503 : vector<1x1xf32>
    %cst_268 = arith.constant 0.00403225794 : f32
    %505 = vector.broadcast %cst_268 : f32 to vector<1x1xf32>
    %506 = arith.mulf %502, %505 : vector<1x1xf32>
    %507 = arith.mulf %504, %504 : vector<1x1xf32>
    %508 = arith.subf %506, %507 : vector<1x1xf32>
    %cst_269 = arith.constant 0.000000e+00 : f32
    %509 = vector.broadcast %cst_269 : f32 to vector<1x1xf32>
    %510 = arith.maximumf %508, %509 : vector<1x1xf32>
    %511 = math.rsqrt %510 : vector<1x1xf32>
    %c8 = arith.constant 8 : index
    %512 = memref.load %arg16[%c8] : memref<17xf32, #tpu.memory_space<smem>>
    %513 = vector.broadcast %512 : f32 to vector<1x1xf32>
    %514 = arith.mulf %511, %513 : vector<1x1xf32>
    %c12 = arith.constant 12 : index
    %515 = memref.load %arg16[%c12] : memref<17xf32, #tpu.memory_space<smem>>
    %516 = arith.mulf %504, %514 : vector<1x1xf32>
    %517 = vector.broadcast %515 : f32 to vector<1x1xf32>
    %518 = arith.subf %517, %516 : vector<1x1xf32>
    %519 = vector.broadcast %514 : vector<1x1xf32> to vector<8x31xf32>
    %520 = arith.mulf %493, %519 : vector<8x31xf32>
    %521 = vector.broadcast %518 : vector<1x1xf32> to vector<8x31xf32>
    %522 = arith.addf %520, %521 : vector<8x31xf32>
    %523 = vector.extract_strided_slice %522 {offsets = [0, 0], sizes = [8, 28], strides = [1, 1]} : vector<8x31xf32> to vector<8x28xf32>
    %524 = vector.extract_strided_slice %522 {offsets = [0, 1], sizes = [8, 28], strides = [1, 1]} : vector<8x31xf32> to vector<8x28xf32>
    %525 = arith.maximumf %523, %524 : vector<8x28xf32>
    %526 = vector.extract_strided_slice %522 {offsets = [0, 2], sizes = [8, 28], strides = [1, 1]} : vector<8x31xf32> to vector<8x28xf32>
    %527 = vector.extract_strided_slice %522 {offsets = [0, 3], sizes = [8, 28], strides = [1, 1]} : vector<8x31xf32> to vector<8x28xf32>
    %528 = arith.maximumf %526, %527 : vector<8x28xf32>
    %529 = arith.maximumf %525, %528 : vector<8x28xf32>
    %c0_270 = arith.constant 0 : index
    %c0_271 = arith.constant 0 : index
    %530 = vector.load %arg12[%c0_270, %c0_271] : memref<28x7xf32, #tpu.memory_space<vmem>>, vector<28x7xf32>
    %cst_272 = arith.constant dense<0.000000e+00> : vector<8x7xf32>
    %531 = tpu.matmul %529, %530, %cst_272 {dimension_numbers = #tpu.dot_dimension_numbers<[1], [0], [0], [1], [0, 0, 1, 1], [], []>} : vector<8x28xf32>, vector<28x7xf32>, vector<8x7xf32> -> vector<8x7xf32>
    %532 = vector.extract_strided_slice %531 {offsets = [0, 0], sizes = [7, 7], strides = [1, 1]} : vector<8x7xf32> to vector<7x7xf32>
    %533 = vector.extract_strided_slice %531 {offsets = [1, 0], sizes = [7, 7], strides = [1, 1]} : vector<8x7xf32> to vector<7x7xf32>
    %534 = arith.maximumf %532, %533 : vector<7x7xf32>
    %c0_273 = arith.constant 0 : index
    %c0_274 = arith.constant 0 : index
    %535 = vector.load %arg13[%c0_273, %c0_274] : memref<4x7xf32, #tpu.memory_space<vmem>>, vector<4x7xf32>
    %cst_275 = arith.constant dense<0.000000e+00> : vector<4x7xf32>
    %536 = tpu.matmul %535, %534, %cst_275 {dimension_numbers = #tpu.dot_dimension_numbers<[1], [0], [0], [1], [0, 0, 1, 1], [], []>} : vector<4x7xf32>, vector<7x7xf32>, vector<4x7xf32> -> vector<4x7xf32>
    %c0_276 = arith.constant 0 : index
    %c0_277 = arith.constant 0 : index
    %537 = vector.load %arg14[%c0_276, %c0_277] : memref<16x7xf32, #tpu.memory_space<vmem>>, vector<4x7xf32>
    %538 = arith.mulf %536, %537 : vector<4x7xf32>
    %cst_278 = arith.constant dense<0.000000e+00> : vector<4xf32>
    %539 = vector.multi_reduction <add>, %538, %cst_278 [1] : vector<4x7xf32> to vector<4xf32>
    %540 = vector.shape_cast %539 : vector<4xf32> to vector<4x1xf32>
    %541 = arith.addf %492, %540 : vector<4x1xf32>
    %542 = vector.extract_strided_slice %491 {offsets = [0, 31], sizes = [8, 31], strides = [1, 1]} : vector<8x124xf32> to vector<8x31xf32>
    %cst_279 = arith.constant dense<0.000000e+00> : vector<8xf32>
    %543 = vector.multi_reduction <add>, %542, %cst_279 [1] : vector<8x31xf32> to vector<8xf32>
    %544 = vector.shape_cast %543 : vector<8xf32> to vector<8x1xf32>
    %cst_280 = arith.constant dense<0.000000e+00> : vector<1xf32>
    %545 = vector.multi_reduction <add>, %544, %cst_280 [0] : vector<8x1xf32> to vector<1xf32>
    %546 = vector.shape_cast %545 : vector<1xf32> to vector<1x1xf32>
    %547 = arith.mulf %542, %542 : vector<8x31xf32>
    %cst_281 = arith.constant dense<0.000000e+00> : vector<8xf32>
    %548 = vector.multi_reduction <add>, %547, %cst_281 [1] : vector<8x31xf32> to vector<8xf32>
    %549 = vector.shape_cast %548 : vector<8xf32> to vector<8x1xf32>
    %cst_282 = arith.constant dense<0.000000e+00> : vector<1xf32>
    %550 = vector.multi_reduction <add>, %549, %cst_282 [0] : vector<8x1xf32> to vector<1xf32>
    %551 = vector.shape_cast %550 : vector<1xf32> to vector<1x1xf32>
    %cst_283 = arith.constant 0.00403225794 : f32
    %552 = vector.broadcast %cst_283 : f32 to vector<1x1xf32>
    %553 = arith.mulf %546, %552 : vector<1x1xf32>
    %cst_284 = arith.constant 0.00403225794 : f32
    %554 = vector.broadcast %cst_284 : f32 to vector<1x1xf32>
    %555 = arith.mulf %551, %554 : vector<1x1xf32>
    %556 = arith.mulf %553, %553 : vector<1x1xf32>
    %557 = arith.subf %555, %556 : vector<1x1xf32>
    %cst_285 = arith.constant 0.000000e+00 : f32
    %558 = vector.broadcast %cst_285 : f32 to vector<1x1xf32>
    %559 = arith.maximumf %557, %558 : vector<1x1xf32>
    %560 = math.rsqrt %559 : vector<1x1xf32>
    %c9 = arith.constant 9 : index
    %561 = memref.load %arg16[%c9] : memref<17xf32, #tpu.memory_space<smem>>
    %562 = vector.broadcast %561 : f32 to vector<1x1xf32>
    %563 = arith.mulf %560, %562 : vector<1x1xf32>
    %c13 = arith.constant 13 : index
    %564 = memref.load %arg16[%c13] : memref<17xf32, #tpu.memory_space<smem>>
    %565 = arith.mulf %553, %563 : vector<1x1xf32>
    %566 = vector.broadcast %564 : f32 to vector<1x1xf32>
    %567 = arith.subf %566, %565 : vector<1x1xf32>
    %568 = vector.broadcast %563 : vector<1x1xf32> to vector<8x31xf32>
    %569 = arith.mulf %542, %568 : vector<8x31xf32>
    %570 = vector.broadcast %567 : vector<1x1xf32> to vector<8x31xf32>
    %571 = arith.addf %569, %570 : vector<8x31xf32>
    %572 = vector.extract_strided_slice %571 {offsets = [0, 0], sizes = [8, 28], strides = [1, 1]} : vector<8x31xf32> to vector<8x28xf32>
    %573 = vector.extract_strided_slice %571 {offsets = [0, 1], sizes = [8, 28], strides = [1, 1]} : vector<8x31xf32> to vector<8x28xf32>
    %574 = arith.maximumf %572, %573 : vector<8x28xf32>
    %575 = vector.extract_strided_slice %571 {offsets = [0, 2], sizes = [8, 28], strides = [1, 1]} : vector<8x31xf32> to vector<8x28xf32>
    %576 = vector.extract_strided_slice %571 {offsets = [0, 3], sizes = [8, 28], strides = [1, 1]} : vector<8x31xf32> to vector<8x28xf32>
    %577 = arith.maximumf %575, %576 : vector<8x28xf32>
    %578 = arith.maximumf %574, %577 : vector<8x28xf32>
    %c0_286 = arith.constant 0 : index
    %c0_287 = arith.constant 0 : index
    %579 = vector.load %arg12[%c0_286, %c0_287] : memref<28x7xf32, #tpu.memory_space<vmem>>, vector<28x7xf32>
    %cst_288 = arith.constant dense<0.000000e+00> : vector<8x7xf32>
    %580 = tpu.matmul %578, %579, %cst_288 {dimension_numbers = #tpu.dot_dimension_numbers<[1], [0], [0], [1], [0, 0, 1, 1], [], []>} : vector<8x28xf32>, vector<28x7xf32>, vector<8x7xf32> -> vector<8x7xf32>
    %581 = vector.extract_strided_slice %580 {offsets = [0, 0], sizes = [7, 7], strides = [1, 1]} : vector<8x7xf32> to vector<7x7xf32>
    %582 = vector.extract_strided_slice %580 {offsets = [1, 0], sizes = [7, 7], strides = [1, 1]} : vector<8x7xf32> to vector<7x7xf32>
    %583 = arith.maximumf %581, %582 : vector<7x7xf32>
    %c0_289 = arith.constant 0 : index
    %c0_290 = arith.constant 0 : index
    %584 = vector.load %arg13[%c0_289, %c0_290] : memref<4x7xf32, #tpu.memory_space<vmem>>, vector<4x7xf32>
    %cst_291 = arith.constant dense<0.000000e+00> : vector<4x7xf32>
    %585 = tpu.matmul %584, %583, %cst_291 {dimension_numbers = #tpu.dot_dimension_numbers<[1], [0], [0], [1], [0, 0, 1, 1], [], []>} : vector<4x7xf32>, vector<7x7xf32>, vector<4x7xf32> -> vector<4x7xf32>
    %c4_292 = arith.constant 4 : index
    %c0_293 = arith.constant 0 : index
    %586 = vector.load %arg14[%c4_292, %c0_293] : memref<16x7xf32, #tpu.memory_space<vmem>>, vector<4x7xf32>
    %587 = arith.mulf %585, %586 : vector<4x7xf32>
    %cst_294 = arith.constant dense<0.000000e+00> : vector<4xf32>
    %588 = vector.multi_reduction <add>, %587, %cst_294 [1] : vector<4x7xf32> to vector<4xf32>
    %589 = vector.shape_cast %588 : vector<4xf32> to vector<4x1xf32>
    %590 = arith.addf %541, %589 : vector<4x1xf32>
    %591 = vector.extract_strided_slice %491 {offsets = [0, 62], sizes = [8, 31], strides = [1, 1]} : vector<8x124xf32> to vector<8x31xf32>
    %cst_295 = arith.constant dense<0.000000e+00> : vector<8xf32>
    %592 = vector.multi_reduction <add>, %591, %cst_295 [1] : vector<8x31xf32> to vector<8xf32>
    %593 = vector.shape_cast %592 : vector<8xf32> to vector<8x1xf32>
    %cst_296 = arith.constant dense<0.000000e+00> : vector<1xf32>
    %594 = vector.multi_reduction <add>, %593, %cst_296 [0] : vector<8x1xf32> to vector<1xf32>
    %595 = vector.shape_cast %594 : vector<1xf32> to vector<1x1xf32>
    %596 = arith.mulf %591, %591 : vector<8x31xf32>
    %cst_297 = arith.constant dense<0.000000e+00> : vector<8xf32>
    %597 = vector.multi_reduction <add>, %596, %cst_297 [1] : vector<8x31xf32> to vector<8xf32>
    %598 = vector.shape_cast %597 : vector<8xf32> to vector<8x1xf32>
    %cst_298 = arith.constant dense<0.000000e+00> : vector<1xf32>
    %599 = vector.multi_reduction <add>, %598, %cst_298 [0] : vector<8x1xf32> to vector<1xf32>
    %600 = vector.shape_cast %599 : vector<1xf32> to vector<1x1xf32>
    %cst_299 = arith.constant 0.00403225794 : f32
    %601 = vector.broadcast %cst_299 : f32 to vector<1x1xf32>
    %602 = arith.mulf %595, %601 : vector<1x1xf32>
    %cst_300 = arith.constant 0.00403225794 : f32
    %603 = vector.broadcast %cst_300 : f32 to vector<1x1xf32>
    %604 = arith.mulf %600, %603 : vector<1x1xf32>
    %605 = arith.mulf %602, %602 : vector<1x1xf32>
    %606 = arith.subf %604, %605 : vector<1x1xf32>
    %cst_301 = arith.constant 0.000000e+00 : f32
    %607 = vector.broadcast %cst_301 : f32 to vector<1x1xf32>
    %608 = arith.maximumf %606, %607 : vector<1x1xf32>
    %609 = math.rsqrt %608 : vector<1x1xf32>
    %c10 = arith.constant 10 : index
    %610 = memref.load %arg16[%c10] : memref<17xf32, #tpu.memory_space<smem>>
    %611 = vector.broadcast %610 : f32 to vector<1x1xf32>
    %612 = arith.mulf %609, %611 : vector<1x1xf32>
    %c14 = arith.constant 14 : index
    %613 = memref.load %arg16[%c14] : memref<17xf32, #tpu.memory_space<smem>>
    %614 = arith.mulf %602, %612 : vector<1x1xf32>
    %615 = vector.broadcast %613 : f32 to vector<1x1xf32>
    %616 = arith.subf %615, %614 : vector<1x1xf32>
    %617 = vector.broadcast %612 : vector<1x1xf32> to vector<8x31xf32>
    %618 = arith.mulf %591, %617 : vector<8x31xf32>
    %619 = vector.broadcast %616 : vector<1x1xf32> to vector<8x31xf32>
    %620 = arith.addf %618, %619 : vector<8x31xf32>
    %621 = vector.extract_strided_slice %620 {offsets = [0, 0], sizes = [8, 28], strides = [1, 1]} : vector<8x31xf32> to vector<8x28xf32>
    %622 = vector.extract_strided_slice %620 {offsets = [0, 1], sizes = [8, 28], strides = [1, 1]} : vector<8x31xf32> to vector<8x28xf32>
    %623 = arith.maximumf %621, %622 : vector<8x28xf32>
    %624 = vector.extract_strided_slice %620 {offsets = [0, 2], sizes = [8, 28], strides = [1, 1]} : vector<8x31xf32> to vector<8x28xf32>
    %625 = vector.extract_strided_slice %620 {offsets = [0, 3], sizes = [8, 28], strides = [1, 1]} : vector<8x31xf32> to vector<8x28xf32>
    %626 = arith.maximumf %624, %625 : vector<8x28xf32>
    %627 = arith.maximumf %623, %626 : vector<8x28xf32>
    %c0_302 = arith.constant 0 : index
    %c0_303 = arith.constant 0 : index
    %628 = vector.load %arg12[%c0_302, %c0_303] : memref<28x7xf32, #tpu.memory_space<vmem>>, vector<28x7xf32>
    %cst_304 = arith.constant dense<0.000000e+00> : vector<8x7xf32>
    %629 = tpu.matmul %627, %628, %cst_304 {dimension_numbers = #tpu.dot_dimension_numbers<[1], [0], [0], [1], [0, 0, 1, 1], [], []>} : vector<8x28xf32>, vector<28x7xf32>, vector<8x7xf32> -> vector<8x7xf32>
    %630 = vector.extract_strided_slice %629 {offsets = [0, 0], sizes = [7, 7], strides = [1, 1]} : vector<8x7xf32> to vector<7x7xf32>
    %631 = vector.extract_strided_slice %629 {offsets = [1, 0], sizes = [7, 7], strides = [1, 1]} : vector<8x7xf32> to vector<7x7xf32>
    %632 = arith.maximumf %630, %631 : vector<7x7xf32>
    %c0_305 = arith.constant 0 : index
    %c0_306 = arith.constant 0 : index
    %633 = vector.load %arg13[%c0_305, %c0_306] : memref<4x7xf32, #tpu.memory_space<vmem>>, vector<4x7xf32>
    %cst_307 = arith.constant dense<0.000000e+00> : vector<4x7xf32>
    %634 = tpu.matmul %633, %632, %cst_307 {dimension_numbers = #tpu.dot_dimension_numbers<[1], [0], [0], [1], [0, 0, 1, 1], [], []>} : vector<4x7xf32>, vector<7x7xf32>, vector<4x7xf32> -> vector<4x7xf32>
    %c8_308 = arith.constant 8 : index
    %c0_309 = arith.constant 0 : index
    %635 = vector.load %arg14[%c8_308, %c0_309] : memref<16x7xf32, #tpu.memory_space<vmem>>, vector<4x7xf32>
    %636 = arith.mulf %634, %635 : vector<4x7xf32>
    %cst_310 = arith.constant dense<0.000000e+00> : vector<4xf32>
    %637 = vector.multi_reduction <add>, %636, %cst_310 [1] : vector<4x7xf32> to vector<4xf32>
    %638 = vector.shape_cast %637 : vector<4xf32> to vector<4x1xf32>
    %639 = arith.addf %590, %638 : vector<4x1xf32>
    %640 = vector.extract_strided_slice %491 {offsets = [0, 93], sizes = [8, 31], strides = [1, 1]} : vector<8x124xf32> to vector<8x31xf32>
    %cst_311 = arith.constant dense<0.000000e+00> : vector<8xf32>
    %641 = vector.multi_reduction <add>, %640, %cst_311 [1] : vector<8x31xf32> to vector<8xf32>
    %642 = vector.shape_cast %641 : vector<8xf32> to vector<8x1xf32>
    %cst_312 = arith.constant dense<0.000000e+00> : vector<1xf32>
    %643 = vector.multi_reduction <add>, %642, %cst_312 [0] : vector<8x1xf32> to vector<1xf32>
    %644 = vector.shape_cast %643 : vector<1xf32> to vector<1x1xf32>
    %645 = arith.mulf %640, %640 : vector<8x31xf32>
    %cst_313 = arith.constant dense<0.000000e+00> : vector<8xf32>
    %646 = vector.multi_reduction <add>, %645, %cst_313 [1] : vector<8x31xf32> to vector<8xf32>
    %647 = vector.shape_cast %646 : vector<8xf32> to vector<8x1xf32>
    %cst_314 = arith.constant dense<0.000000e+00> : vector<1xf32>
    %648 = vector.multi_reduction <add>, %647, %cst_314 [0] : vector<8x1xf32> to vector<1xf32>
    %649 = vector.shape_cast %648 : vector<1xf32> to vector<1x1xf32>
    %cst_315 = arith.constant 0.00403225794 : f32
    %650 = vector.broadcast %cst_315 : f32 to vector<1x1xf32>
    %651 = arith.mulf %644, %650 : vector<1x1xf32>
    %cst_316 = arith.constant 0.00403225794 : f32
    %652 = vector.broadcast %cst_316 : f32 to vector<1x1xf32>
    %653 = arith.mulf %649, %652 : vector<1x1xf32>
    %654 = arith.mulf %651, %651 : vector<1x1xf32>
    %655 = arith.subf %653, %654 : vector<1x1xf32>
    %cst_317 = arith.constant 0.000000e+00 : f32
    %656 = vector.broadcast %cst_317 : f32 to vector<1x1xf32>
    %657 = arith.maximumf %655, %656 : vector<1x1xf32>
    %658 = math.rsqrt %657 : vector<1x1xf32>
    %c11 = arith.constant 11 : index
    %659 = memref.load %arg16[%c11] : memref<17xf32, #tpu.memory_space<smem>>
    %660 = vector.broadcast %659 : f32 to vector<1x1xf32>
    %661 = arith.mulf %658, %660 : vector<1x1xf32>
    %c15 = arith.constant 15 : index
    %662 = memref.load %arg16[%c15] : memref<17xf32, #tpu.memory_space<smem>>
    %663 = arith.mulf %651, %661 : vector<1x1xf32>
    %664 = vector.broadcast %662 : f32 to vector<1x1xf32>
    %665 = arith.subf %664, %663 : vector<1x1xf32>
    %666 = vector.broadcast %661 : vector<1x1xf32> to vector<8x31xf32>
    %667 = arith.mulf %640, %666 : vector<8x31xf32>
    %668 = vector.broadcast %665 : vector<1x1xf32> to vector<8x31xf32>
    %669 = arith.addf %667, %668 : vector<8x31xf32>
    %670 = vector.extract_strided_slice %669 {offsets = [0, 0], sizes = [8, 28], strides = [1, 1]} : vector<8x31xf32> to vector<8x28xf32>
    %671 = vector.extract_strided_slice %669 {offsets = [0, 1], sizes = [8, 28], strides = [1, 1]} : vector<8x31xf32> to vector<8x28xf32>
    %672 = arith.maximumf %670, %671 : vector<8x28xf32>
    %673 = vector.extract_strided_slice %669 {offsets = [0, 2], sizes = [8, 28], strides = [1, 1]} : vector<8x31xf32> to vector<8x28xf32>
    %674 = vector.extract_strided_slice %669 {offsets = [0, 3], sizes = [8, 28], strides = [1, 1]} : vector<8x31xf32> to vector<8x28xf32>
    %675 = arith.maximumf %673, %674 : vector<8x28xf32>
    %676 = arith.maximumf %672, %675 : vector<8x28xf32>
    %c0_318 = arith.constant 0 : index
    %c0_319 = arith.constant 0 : index
    %677 = vector.load %arg12[%c0_318, %c0_319] : memref<28x7xf32, #tpu.memory_space<vmem>>, vector<28x7xf32>
    %cst_320 = arith.constant dense<0.000000e+00> : vector<8x7xf32>
    %678 = tpu.matmul %676, %677, %cst_320 {dimension_numbers = #tpu.dot_dimension_numbers<[1], [0], [0], [1], [0, 0, 1, 1], [], []>} : vector<8x28xf32>, vector<28x7xf32>, vector<8x7xf32> -> vector<8x7xf32>
    %679 = vector.extract_strided_slice %678 {offsets = [0, 0], sizes = [7, 7], strides = [1, 1]} : vector<8x7xf32> to vector<7x7xf32>
    %680 = vector.extract_strided_slice %678 {offsets = [1, 0], sizes = [7, 7], strides = [1, 1]} : vector<8x7xf32> to vector<7x7xf32>
    %681 = arith.maximumf %679, %680 : vector<7x7xf32>
    %c0_321 = arith.constant 0 : index
    %c0_322 = arith.constant 0 : index
    %682 = vector.load %arg13[%c0_321, %c0_322] : memref<4x7xf32, #tpu.memory_space<vmem>>, vector<4x7xf32>
    %cst_323 = arith.constant dense<0.000000e+00> : vector<4x7xf32>
    %683 = tpu.matmul %682, %681, %cst_323 {dimension_numbers = #tpu.dot_dimension_numbers<[1], [0], [0], [1], [0, 0, 1, 1], [], []>} : vector<4x7xf32>, vector<7x7xf32>, vector<4x7xf32> -> vector<4x7xf32>
    %c12_324 = arith.constant 12 : index
    %c0_325 = arith.constant 0 : index
    %684 = vector.load %arg14[%c12_324, %c0_325] : memref<16x7xf32, #tpu.memory_space<vmem>>, vector<4x7xf32>
    %685 = arith.mulf %683, %684 : vector<4x7xf32>
    %cst_326 = arith.constant dense<0.000000e+00> : vector<4xf32>
    %686 = vector.multi_reduction <add>, %685, %cst_326 [1] : vector<4x7xf32> to vector<4xf32>
    %687 = vector.shape_cast %686 : vector<4xf32> to vector<4x1xf32>
    %688 = arith.addf %639, %687 : vector<4x1xf32>
    %c0_327 = arith.constant 0 : index
    %c0_328 = arith.constant 0 : index
    %689 = vector.load %arg15[%c0_327, %c0_328] : memref<2x4xf32, #tpu.memory_space<vmem>>, vector<2x4xf32>
    %cst_329 = arith.constant dense<0.000000e+00> : vector<2x1xf32>
    %690 = tpu.matmul %689, %688, %cst_329 {dimension_numbers = #tpu.dot_dimension_numbers<[1], [0], [0], [1], [0, 0, 1, 1], [], []>} : vector<2x4xf32>, vector<4x1xf32>, vector<2x1xf32> -> vector<2x1xf32>
    %c16_330 = arith.constant 16 : index
    %691 = memref.load %arg16[%c16_330] : memref<17xf32, #tpu.memory_space<smem>>
    %692 = vector.broadcast %691 : f32 to vector<2x1xf32>
    %693 = arith.addf %690, %692 : vector<2x1xf32>
    %cst_331 = arith.constant 0.000000e+00 : f32
    %694 = vector.broadcast %cst_331 : f32 to vector<2x1xf32>
    %695 = arith.subf %694, %693 : vector<2x1xf32>
    %696 = math.exp %695 : vector<2x1xf32>
    %cst_332 = arith.constant 1.000000e+00 : f32
    %697 = vector.broadcast %cst_332 : f32 to vector<2x1xf32>
    %698 = arith.addf %697, %696 : vector<2x1xf32>
    %cst_333 = arith.constant 1.000000e+00 : f32
    %699 = vector.broadcast %cst_333 : f32 to vector<2x1xf32>
    %700 = arith.divf %699, %698 : vector<2x1xf32>
    %c0_334 = arith.constant 0 : index
    %c0_335 = arith.constant 0 : index
    %701 = vector.load %arg17[%c0_334, %c0_335] : memref<2x1xf32, #tpu.memory_space<vmem>>, vector<2x1xf32>
    tpu.vector_store %arg17[%c0_334, %c0_335], %700 {strides = array<i32>} : memref<2x1xf32, #tpu.memory_space<vmem>>, vector<2x1xf32>,
    return
  }
  func.func @transform_0(%arg0: i32) -> (i32, i32) {
    %c0_i32 = arith.constant 0 : i32
    %c0_i32_0 = arith.constant 0 : i32
    %c0_i32_1 = arith.constant 0 : i32
    return %c0_i32, %c0_i32_0 : i32, i32
  }
  func.func @transform_1(%arg0: i32) -> (i32, i32) {
    %c0_i32 = arith.constant 0 : i32
    %c0_i32_0 = arith.constant 0 : i32
    %c0_i32_1 = arith.constant 0 : i32
    return %c0_i32, %c0_i32_0 : i32, i32
  }
  func.func @transform_2(%arg0: i32) -> (i32, i32) {
    %c0_i32 = arith.constant 0 : i32
    %c0_i32_0 = arith.constant 0 : i32
    %c0_i32_1 = arith.constant 0 : i32
    return %c0_i32, %c0_i32_0 : i32, i32
  }
  func.func @transform_3(%arg0: i32) -> (i32, i32) {
    %c0_i32 = arith.constant 0 : i32
    %c0_i32_0 = arith.constant 0 : i32
    %c0_i32_1 = arith.constant 0 : i32
    return %c0_i32, %c0_i32_0 : i32, i32
  }
  func.func @transform_4(%arg0: i32) -> (i32, i32) {
    %c0_i32 = arith.constant 0 : i32
    %c0_i32_0 = arith.constant 0 : i32
    %c0_i32_1 = arith.constant 0 : i32
    return %c0_i32, %c0_i32_0 : i32, i32
  }
  func.func @transform_5(%arg0: i32) -> (i32, i32, i32) {
    %c0_i32 = arith.constant 0 : i32
    %c0_i32_0 = arith.constant 0 : i32
    %c0_i32_1 = arith.constant 0 : i32
    %c0_i32_2 = arith.constant 0 : i32
    return %c0_i32, %c0_i32_0, %c0_i32_1 : i32, i32, i32
  }
  func.func @transform_6(%arg0: i32) -> (i32, i32) {
    %c0_i32 = arith.constant 0 : i32
    %c0_i32_0 = arith.constant 0 : i32
    %c0_i32_1 = arith.constant 0 : i32
    return %c0_i32, %c0_i32_0 : i32, i32
  }
  func.func @transform_7(%arg0: i32) -> (i32, i32) {
    %c0_i32 = arith.constant 0 : i32
    %c0_i32_0 = arith.constant 0 : i32
    %c0_i32_1 = arith.constant 0 : i32
    return %c0_i32, %c0_i32_0 : i32, i32
  }
  func.func @transform_8(%arg0: i32) -> (i32, i32) {
    %c0_i32 = arith.constant 0 : i32
    %c0_i32_0 = arith.constant 0 : i32
    %c0_i32_1 = arith.constant 0 : i32
    return %c0_i32, %c0_i32_0 : i32, i32
  }
  func.func @transform_9(%arg0: i32) -> (i32, i32) {
    %c0_i32 = arith.constant 0 : i32
    %c0_i32_0 = arith.constant 0 : i32
    %c0_i32_1 = arith.constant 0 : i32
    return %c0_i32, %c0_i32_0 : i32, i32
  }
  func.func @transform_10(%arg0: i32) -> (i32, i32) {
    %c0_i32 = arith.constant 0 : i32
    %c0_i32_0 = arith.constant 0 : i32
    %c0_i32_1 = arith.constant 0 : i32
    return %c0_i32, %c0_i32_0 : i32, i32
  }
  func.func @transform_11(%arg0: i32) -> (i32, i32) {
    %c0_i32 = arith.constant 0 : i32
    %c0_i32_0 = arith.constant 0 : i32
    %c0_i32_1 = arith.constant 0 : i32
    return %c0_i32, %c0_i32_0 : i32, i32
  }
  func.func @transform_12(%arg0: i32) -> (i32, i32) {
    %c0_i32 = arith.constant 0 : i32
    %c0_i32_0 = arith.constant 0 : i32
    %c0_i32_1 = arith.constant 0 : i32
    return %c0_i32, %c0_i32_0 : i32, i32
  }
  func.func @transform_13(%arg0: i32) -> (i32, i32) {
    %c0_i32 = arith.constant 0 : i32
    %c0_i32_0 = arith.constant 0 : i32
    %c0_i32_1 = arith.constant 0 : i32
    return %c0_i32, %c0_i32_0 : i32, i32
  }
  func.func @transform_14(%arg0: i32) -> (i32, i32) {
    %c0_i32 = arith.constant 0 : i32
    %c0_i32_0 = arith.constant 0 : i32
    %c0_i32_1 = arith.constant 0 : i32
    return %c0_i32, %c0_i32_0 : i32, i32
  }
  func.func @transform_15(%arg0: i32) -> i32 {
    %c0_i32 = arith.constant 0 : i32
    %c0_i32_0 = arith.constant 0 : i32
    return %c0_i32 : i32
  }
  func.func @transform_16(%arg0: i32) -> (i32, i32) {
    %c0_i32 = arith.constant 0 : i32
    %c0_i32_0 = arith.constant 0 : i32
    %c0_i32_1 = arith.constant 0 : i32
    return %c0_i32, %c0_i32_0 : i32, i32
  }
}

</mosaic_0001>

<llo_original>
// kernel: eegnet_forward.1
$region0: #{eegnet_forward.1}
  #allocation0 [shape = 'u32[]', space=smem, size = 0x4, offset = 0x4, fixed_abs, tag = 'smem constant byte address 0x4 - core index']
  #allocation1 [shape = 'u32[144,128]{1,0:T(1,128)}', space=vmem, size = 0x12000, scoped, tag = 'internal scratch']
  #allocation2 [shape = 'f32[2,17,153]{2,1,0:T(8,128)}', space=vmem, size = 0xc000, scoped, tag = 'scratch operand']
  #allocation3 [shape = 'f32[8,4096]{1,0:T(8,128)}', space=vmem, size = 0x20000, scoped, tag = 'scratch operand']
  %s0 = inlined_call_operand.vmem [shape: f32[64,240], index: 0, kind: input, shape index: {}]
  %s1 = inlined_call_operand.hbm [shape: f32[16,64], index: 1, kind: input, shape index: {}]
  %s2 = inlined_call_operand.vmem [shape: f32[16,1], index: 2, kind: input, shape index: {}]
  %s3 = inlined_call_operand.vmem [shape: f32[16,1], index: 3, kind: input, shape index: {}]
  %s4 = inlined_call_operand.vmem [shape: f32[16,1], index: 4, kind: input, shape index: {}]
  %s5 = inlined_call_operand.vmem [shape: f32[2,153,488], index: 5, kind: input, shape index: {}]
  %s6 = inlined_call_operand.hbm [shape: f32[1,488], index: 6, kind: input, shape index: {}]
  %s7 = inlined_call_operand.vmem [shape: f32[121,31], index: 7, kind: input, shape index: {}]
  %s8 = inlined_call_operand.hbm [shape: f32[4,15], index: 8, kind: input, shape index: {}]
  %s9 = inlined_call_operand.hbm [shape: f32[4096,124], index: 9, kind: input, shape index: {}]
  %s10 = inlined_call_operand.hbm [shape: f32[1,124], index: 10, kind: input, shape index: {}]
  %s11 = inlined_call_operand.vmem [shape: f32[28,7], index: 11, kind: input, shape index: {}]
  %s12 = inlined_call_operand.hbm [shape: f32[4,7], index: 12, kind: input, shape index: {}]
  %s13 = inlined_call_operand.vmem [shape: f32[16,7], index: 13, kind: input, shape index: {}]
  %s14 = inlined_call_operand.hbm [shape: f32[2,4], index: 14, kind: input, shape index: {}]
  %s15 = inlined_call_operand.hbm [shape: f32[17], index: 15, kind: input, shape index: {}]
  %s16 = inlined_call_operand.vmem [shape: f32[2,1], index: 16, kind: output, shape index: {}]
  %s17 = sld [smem:[#allocation0]]
  $region106: #{eegnet_forward.1} parent=0
    _
  %s19 = ssub.s32 1, %s17
  %s20 = scalar_select 0, %s19, %s17
  $region1: #{eegnet_forward.1} parent=0
    #allocation4 [shape = 'u8[8192]{0}', space=vmem, size = 0x2000, scoped, tag = 'input window, operand 1, single buffered']
    #allocation5 [shape = 's32[1]{0}', space=sflag, size = 0x4, scoped, tag = 'scoped memory for eegnet_forward.1']
    #allocation6 [shape = 's32[1]{0}', space=sflag, size = 0x4, scoped, tag = 'scoped memory for eegnet_forward.1']
    #allocation7 [shape = 'u8[2048]{0}', space=vmem, size = 0x800, scoped, tag = 'input window, operand 6, single buffered']
    #allocation8 [shape = 's32[1]{0}', space=sflag, size = 0x4, scoped, tag = 'scoped memory for eegnet_forward.1']
    #allocation9 [shape = 'u8[2048]{0}', space=vmem, size = 0x800, scoped, tag = 'input window, operand 8, single buffered']
    #allocation10 [shape = 'u8[2097152]{0}', space=vmem, size = 0x200000, scoped, tag = 'input window, operand 9, single buffered']
    #allocation11 [shape = 's32[1]{0}', space=sflag, size = 0x4, scoped, tag = 'scoped memory for eegnet_forward.1']
    #allocation12 [shape = 'u8[512]{0}', space=vmem, size = 0x400, scoped, tag = 'input window, operand 10, single buffered']
    #allocation13 [shape = 'u8[2048]{0}', space=vmem, size = 0x800, scoped, tag = 'input window, operand 12, single buffered']
    #allocation14 [shape = 's32[1]{0}', space=sflag, size = 0x4, scoped, tag = 'scoped memory for eegnet_forward.1']
    #allocation15 [shape = 'u8[1024]{0}', space=vmem, size = 0x400, scoped, tag = 'input window, operand 14, single buffered']
    #allocation16 [shape = 'u8[512]{0}', space=smem, size = 0x200, scoped, tag = 'input window, operand 15, single buffered']
    %21 = vsyncpa [#allocation5], 0
    %22 = vsyncpa [#allocation8], 0
    %23 = vsyncpa [#allocation11], 0
    %24 = vsyncpa [#allocation14], 0
    %25 = vsyncpa [#allocation6], 0
    // Predicated region
    $region2: #{eegnet_forward.1} parent=1 // pred_check
      _
    $region3: #{eegnet_forward.1} parent=1 // pred_check_branch
      %27 = sbr.rel (0) target = $region5
    $region4: #{eegnet_forward.1} parent=1 // pred_region
      _
    $region5: #{eegnet_forward.1} parent=1 // pred_fallthru
      _
    // Predicated region
    $region6: #{eegnet_forward.1} parent=1 // pred_check
      _
    $region7: #{eegnet_forward.1} parent=1 // pred_check_branch
      %29 = sbr.rel (0) target = $region9
    $region8: #{eegnet_forward.1} parent=1 // pred_region
      %s31 = ssub.s32 256, 256
      %32 = vsyncadd [#allocation5], %s31
      %s33 = sshll.u32 [#allocation4], 4
      %s34 = int_to_ptr.vmem [resolvable:$true] %s33
      %39 = dma.hbm_to_vmem [thread:$0]  %s1, 256, %s34, [#allocation5], 128, 128, 8
    $region9: #{eegnet_forward.1} parent=1 // pred_fallthru
      _
    // Predicated region
    $region10: #{eegnet_forward.1} parent=1 // pred_check
      _
    $region11: #{eegnet_forward.1} parent=1 // pred_check_branch
      %41 = sbr.rel (0) target = $region13
    $region12: #{eegnet_forward.1} parent=1 // pred_region
      _
    $region13: #{eegnet_forward.1} parent=1 // pred_fallthru
      _
    // Predicated region
    $region14: #{eegnet_forward.1} parent=1 // pred_check
      _
    $region15: #{eegnet_forward.1} parent=1 // pred_check_branch
      %43 = sbr.rel (0) target = $region17
    $region16: #{eegnet_forward.1} parent=1 // pred_region
      _
    $region17: #{eegnet_forward.1} parent=1 // pred_fallthru
      _
    // Predicated region
    $region18: #{eegnet_forward.1} parent=1 // pred_check
      _
    $region19: #{eegnet_forward.1} parent=1 // pred_check_branch
      %45 = sbr.rel (0) target = $region21
    $region20: #{eegnet_forward.1} parent=1 // pred_region
      _
    $region21: #{eegnet_forward.1} parent=1 // pred_fallthru
      _
    // Predicated region
    $region22: #{eegnet_forward.1} parent=1 // pred_check
      _
    $region23: #{eegnet_forward.1} parent=1 // pred_check_branch
      %47 = sbr.rel (0) target = $region25
    $region24: #{eegnet_forward.1} parent=1 // pred_region
      _
    $region25: #{eegnet_forward.1} parent=1 // pred_fallthru
      _
    // Predicated region
    $region26: #{eegnet_forward.1} parent=1 // pred_check
      _
    $region27: #{eegnet_forward.1} parent=1 // pred_check_branch
      %49 = sbr.rel (0) target = $region29
    $region28: #{eegnet_forward.1} parent=1 // pred_region
      %s51 = ssub.s32 64, 64
      %52 = vsyncadd [#allocation8], %s51
      %s54 = sshll.u32 [#allocation7], 4
      %s55 = int_to_ptr.vmem [resolvable:$true] %s54
      %57 = dma.hbm_to_vmem [thread:$0]  %s6, 64, %s55, [#allocation8]
    $region29: #{eegnet_forward.1} parent=1 // pred_fallthru
      _
    // Predicated region
    $region30: #{eegnet_forward.1} parent=1 // pred_check
      _
    $region31: #{eegnet_forward.1} parent=1 // pred_check_branch
      %59 = sbr.rel (0) target = $region33
    $region32: #{eegnet_forward.1} parent=1 // pred_region
      _
    $region33: #{eegnet_forward.1} parent=1 // pred_fallthru
      _
    // Predicated region
    $region34: #{eegnet_forward.1} parent=1 // pred_check
      _
    $region35: #{eegnet_forward.1} parent=1 // pred_check_branch
      %61 = sbr.rel (0) target = $region37
    $region36: #{eegnet_forward.1} parent=1 // pred_region
      %s63 = ssub.s32 64, 64
      %64 = vsyncadd [#allocation8], %s63
      %s66 = sshll.u32 [#allocation9], 4
      %s67 = int_to_ptr.vmem [resolvable:$true] %s66
      %69 = dma.hbm_to_vmem [thread:$0]  %s8, 64, %s67, [#allocation8]
    $region37: #{eegnet_forward.1} parent=1 // pred_fallthru
      _
    // Predicated region
    $region38: #{eegnet_forward.1} parent=1 // pred_check
      _
    $region39: #{eegnet_forward.1} parent=1 // pred_check_branch
      %71 = sbr.rel (0) target = $region41
    $region40: #{eegnet_forward.1} parent=1 // pred_region
      %s73 = ssub.s32 65536, 65536
      %74 = vsyncadd [#allocation11], %s73
      %s75 = sshll.u32 [#allocation10], 4
      %s76 = int_to_ptr.vmem [resolvable:$true] %s75
      %81 = dma.hbm_to_vmem [thread:$0]  %s9, 65536, %s76, [#allocation11], 128, 128, 8
    $region41: #{eegnet_forward.1} parent=1 // pred_fallthru
      _
    // Predicated region
    $region42: #{eegnet_forward.1} parent=1 // pred_check
      _
    $region43: #{eegnet_forward.1} parent=1 // pred_check_branch
      %83 = sbr.rel (0) target = $region45
    $region44: #{eegnet_forward.1} parent=1 // pred_region
      %s85 = ssub.s32 16, 16
      %86 = vsyncadd [#allocation11], %s85
      %s88 = sshll.u32 [#allocation12], 4
      %s89 = int_to_ptr.vmem [resolvable:$true] %s88
      %91 = dma.hbm_to_vmem [thread:$0]  %s10, 16, %s89, [#allocation11]
    $region45: #{eegnet_forward.1} parent=1 // pred_fallthru
      _
    // Predicated region
    $region46: #{eegnet_forward.1} parent=1 // pred_check
      _
    $region47: #{eegnet_forward.1} parent=1 // pred_check_branch
      %93 = sbr.rel (0) target = $region49
    $region48: #{eegnet_forward.1} parent=1 // pred_region
      _
    $region49: #{eegnet_forward.1} parent=1 // pred_fallthru
      _
    // Predicated region
    $region50: #{eegnet_forward.1} parent=1 // pred_check
      _
    $region51: #{eegnet_forward.1} parent=1 // pred_check_branch
      %95 = sbr.rel (0) target = $region53
    $region52: #{eegnet_forward.1} parent=1 // pred_region
      %s97 = ssub.s32 64, 64
      %98 = vsyncadd [#allocation14], %s97
      %s100 = sshll.u32 [#allocation13], 4
      %s101 = int_to_ptr.vmem [resolvable:$true] %s100
      %103 = dma.hbm_to_vmem [thread:$0]  %s12, 64, %s101, [#allocation14]
    $region53: #{eegnet_forward.1} parent=1 // pred_fallthru
      _
    // Predicated region
    $region54: #{eegnet_forward.1} parent=1 // pred_check
      _
    $region55: #{eegnet_forward.1} parent=1 // pred_check_branch
      %105 = sbr.rel (0) target = $region57
    $region56: #{eegnet_forward.1} parent=1 // pred_region
      _
    $region57: #{eegnet_forward.1} parent=1 // pred_fallthru
      _
    // Predicated region
    $region58: #{eegnet_forward.1} parent=1 // pred_check
      _
    $region59: #{eegnet_forward.1} parent=1 // pred_check_branch
      %107 = sbr.rel (0) target = $region61
    $region60: #{eegnet_forward.1} parent=1 // pred_region
      %s109 = ssub.s32 32, 32
      %110 = vsyncadd [#allocation14], %s109
      %s112 = sshll.u32 [#allocation15], 4
      %s113 = int_to_ptr.vmem [resolvable:$true] %s112
      %115 = dma.hbm_to_vmem [thread:$0]  %s14, 32, %s113, [#allocation14]
    $region61: #{eegnet_forward.1} parent=1 // pred_fallthru
      _
    // Predicated region
    $region62: #{eegnet_forward.1} parent=1 // pred_check
      _
    $region63: #{eegnet_forward.1} parent=1 // pred_check_branch
      %117 = sbr.rel (0) target = $region65
    $region64: #{eegnet_forward.1} parent=1 // pred_region
      %s119 = ssub.s32 16, 16
      %120 = vsyncadd [#allocation6], %s119
      %123 = dma.hbm_to_smem %s15, 16, [#allocation16], [#allocation6]
    $region65: #{eegnet_forward.1} parent=1 // pred_fallthru
      _
    // Predicated region
    $region66: #{eegnet_forward.1} parent=1 // pred_check
      _
    $region67: #{eegnet_forward.1} parent=1 // pred_check_branch
      %125 = sbr.rel (0) target = $region69
    $region68: #{eegnet_forward.1} parent=1 // pred_region
      %126 = dma.done [#allocation5], 256
    $region69: #{eegnet_forward.1} parent=1 // pred_fallthru
      _
    // Predicated region
    $region70: #{eegnet_forward.1} parent=1 // pred_check
      _
    $region71: #{eegnet_forward.1} parent=1 // pred_check_branch
      %128 = sbr.rel (0) target = $region73
    $region72: #{eegnet_forward.1} parent=1 // pred_region
      %129 = dma.done [#allocation8], 64
    $region73: #{eegnet_forward.1} parent=1 // pred_fallthru
      _
    // Predicated region
    $region74: #{eegnet_forward.1} parent=1 // pred_check
      _
    $region75: #{eegnet_forward.1} parent=1 // pred_check_branch
      %131 = sbr.rel (0) target = $region77
    $region76: #{eegnet_forward.1} parent=1 // pred_region
      %132 = dma.done [#allocation8], 64
    $region77: #{eegnet_forward.1} parent=1 // pred_fallthru
      _
    // Predicated region
    $region78: #{eegnet_forward.1} parent=1 // pred_check
      _
    $region79: #{eegnet_forward.1} parent=1 // pred_check_branch
      %134 = sbr.rel (0) target = $region81
    $region80: #{eegnet_forward.1} parent=1 // pred_region
      %135 = dma.done [#allocation11], 65536
    $region81: #{eegnet_forward.1} parent=1 // pred_fallthru
      _
    // Predicated region
    $region82: #{eegnet_forward.1} parent=1 // pred_check
      _
    $region83: #{eegnet_forward.1} parent=1 // pred_check_branch
      %137 = sbr.rel (0) target = $region85
    $region84: #{eegnet_forward.1} parent=1 // pred_region
      %138 = dma.done [#allocation11], 16
    $region85: #{eegnet_forward.1} parent=1 // pred_fallthru
      _
    // Predicated region
    $region86: #{eegnet_forward.1} parent=1 // pred_check
      _
    $region87: #{eegnet_forward.1} parent=1 // pred_check_branch
      %140 = sbr.rel (0) target = $region89
    $region88: #{eegnet_forward.1} parent=1 // pred_region
      %141 = dma.done [#allocation14], 64
    $region89: #{eegnet_forward.1} parent=1 // pred_fallthru
      _
    // Predicated region
    $region90: #{eegnet_forward.1} parent=1 // pred_check
      _
    $region91: #{eegnet_forward.1} parent=1 // pred_check_branch
      %143 = sbr.rel (0) target = $region93
    $region92: #{eegnet_forward.1} parent=1 // pred_region
      %144 = dma.done [#allocation14], 32
    $region93: #{eegnet_forward.1} parent=1 // pred_fallthru
      _
    // Predicated region
    $region94: #{eegnet_forward.1} parent=1 // pred_check
      _
    $region95: #{eegnet_forward.1} parent=1 // pred_check_branch
      %146 = sbr.rel (0) target = $region97
    $region96: #{eegnet_forward.1} parent=1 // pred_region
      %147 = dma.done [#allocation6], 16
    $region97: #{eegnet_forward.1} parent=1 // pred_fallthru
      _
    %148 = sfence
    %v149 = vld [vmem:[#allocation4] sm:$0xff]
    %v150 = vld [vmem:[#allocation4 + $0x8] sm:$0xff]
    %v151 = vld [vmem:[%s0] sm:$0xff]
    %v152 = vld [vmem:[%s0 + $0x8] sm:$0xff]
    %v153 = vld [vmem:[%s0 + $0x10] sm:$0xff]
    %v154 = vld [vmem:[%s0 + $0x18] sm:$0xff]
    %v155 = vld [vmem:[%s0 + $0x20] sm:$0xff]
    %v156 = vld [vmem:[%s0 + $0x28] sm:$0xff]
    %v157 = vld [vmem:[%s0 + $0x30] sm:$0xff]
    %v158 = vld [vmem:[%s0 + $0x38] sm:$0xff]
    %v159 = vld [vmem:[%s0 + $0x40] sm:$0xff]
    %v160 = vld [vmem:[%s0 + $0x48] sm:$0xff]
    %v161 = vld [vmem:[%s0 + $0x50] sm:$0xff]
    %v162 = vld [vmem:[%s0 + $0x58] sm:$0xff]
    %v163 = vld [vmem:[%s0 + $0x60] sm:$0xff]
    %v164 = vld [vmem:[%s0 + $0x68] sm:$0xff]
    %v165 = vld [vmem:[%s0 + $0x70] sm:$0xff]
    %v166 = vld [vmem:[%s0 + $0x78] sm:$0xff]
    %v167 = vld [vmem:[%s2] sm:$0xff]
    %v168 = vld [vmem:[%s2 + $0x8] sm:$0xff]
    %170 = vset.pattern.permute.xlu0 0
    %171 = vperm.xlu0 %170, %v167
    %v172 = vpop.permute.xlu0 %171
    %175 = vset.pattern.permute.xlu0 0
    %176 = vperm.xlu0 %175, %v168
    %v177 = vpop.permute.xlu0 %176
    %vm179 = vcmask 523264
    %v181 = vsel %vm179, %v149, 0
    %v184 = vsel %vm179, %v150, 0
    %186 = vmatprep.subr.mxu0 %v152
    %187 = vmatpush1.msra.mxu0 %v151
    %188 = vmatprep.subr.mxu0 %v154
    %189 = vmatpush1.msra.mxu0 %v153
    %190 = vmatprep.subr.mxu0 %v156
    %191 = vmatpush1.msra.mxu0 %v155
    %192 = vmatprep.subr.mxu0 %v158
    %193 = vmatpush1.msra.mxu0 %v157
    %194 = vmatprep.subr.mxu0 %v160
    %195 = vmatpush1.msra.mxu0 %v159
    %196 = vmatprep.subr.mxu0 %v162
    %197 = vmatpush1.msra.mxu0 %v161
    %198 = vmatprep.subr.mxu0 %v164
    %199 = vmatpush1.msra.mxu0 %v163
    %200 = vmatprep.subr.mxu0 %v166
    %201 = vmatpush1.msra.mxu0 %v165
    %202 = vmatprep.subr.mxu0 0.0
    %203 = vmatpush1.msra.mxu0 0.0
    %204 = vmatprep.subr.mxu0 0.0
    %205 = vmatpush1.msra.mxu0 0.0
    %206 = vmatprep.subr.mxu0 0.0
    %207 = vmatpush1.msra.mxu0 0.0
    %208 = vmatprep.subr.mxu0 0.0
    %209 = vmatpush1.msra.mxu0 0.0
    %210 = vmatprep.subr.mxu0 0.0
    %211 = vmatpush1.msra.mxu0 0.0
    %212 = vmatprep.subr.mxu0 0.0
    %213 = vmatpush1.msra.mxu0 0.0
    %214 = vmatprep.subr.mxu0 0.0
    %215 = vmatpush1.msra.mxu0 0.0
    %216 = vmatprep.subr.mxu0 0.0
    %217 = vmatpush1.msra.mxu0 0.0
    %218 = vmatprep.subr.mxu0 0.0
    %219 = vmatpush1.msra.mxu0 0.0
    %220 = vmatprep.subr.mxu0 0.0
    %221 = vmatpush1.msra.mxu0 0.0
    %222 = vmatprep.subr.mxu0 0.0
    %223 = vmatpush1.msra.mxu0 0.0
    %224 = vmatprep.subr.mxu0 0.0
    %225 = vmatpush1.msra.mxu0 0.0
    %226 = vmatprep.subr.mxu0 0.0
    %227 = vmatpush1.msra.mxu0 0.0
    %228 = vmatprep.subr.mxu0 0.0
    %229 = vmatpush1.msra.mxu0 0.0
    %230 = vmatprep.subr.mxu0 0.0
    %231 = vmatpush1.msra.mxu0 0.0
    %232 = vmatprep.subr.mxu0 0.0
    %233 = vmatpush1.msra.mxu0 0.0
    %234 = vmatprep.subr.mxu0 0.0
    %235 = vmatpush1.msra.mxu0 0.0
    %236 = vmatprep.subr.mxu0 0.0
    %237 = vmatpush1.msra.mxu0 0.0
    %238 = vmatprep.subr.mxu0 0.0
    %239 = vmatpush1.msra.mxu0 0.0
    %240 = vmatprep.subr.mxu0 0.0
    %241 = vmatpush1.msra.mxu0 0.0
    %242 = vmatprep.subr.mxu0 0.0
    %243 = vmatpush1.msra.mxu0 0.0
    %244 = vmatprep.subr.mxu0 0.0
    %245 = vmatpush1.msra.mxu0 0.0
    %246 = vmatprep.subr.mxu0 0.0
    %247 = vmatpush1.msra.mxu0 0.0
    %248 = vmatprep.subr.mxu0 0.0
    %249 = vmatpush1.msra.mxu0 0.0
    %250 = vmatprep.mubr.f32.mxu0 0.0
    %251 = vmatmul.mubr.f32.gmra.mrb[0].mxu0 %v181
    %v252 = vpop.f32.mrb[0].mxu0
    %v253 = vadd.f32 %v172, %v252
    %v254 = vpop.f32.mrb[0].mxu0
    %v255 = vadd.f32 %v172, %v254
    %256 = vmatprep.mubr.f32.mxu0 0.0
    %257 = vmatmul.mubr.f32.gmra.mrb[0].mxu0 %v184
    %v258 = vpop.f32.mrb[0].mxu0
    %v259 = vadd.f32 %v177, %v258
    %v260 = vpop.f32.mrb[0].mxu0
    %v261 = vadd.f32 %v177, %v260
    %262 = vdwg.mxu0
    %vm263 = vcmp.gt.f32.partialorder %v253, 0.0
    %vm264 = vcmp.gt.f32.partialorder %v255, 0.0
    %vm265 = vcmp.gt.f32.partialorder %v259, 0.0
    %vm266 = vcmp.gt.f32.partialorder %v261, 0.0
    %v267 = vmin.f32 %v253, 0.0
    %v268 = vmin.f32 %v255, 0.0
    %v269 = vmin.f32 %v259, 0.0
    %v270 = vmin.f32 %v261, 0.0
    %v271 = vmul.f32 %v267, 1.442695
    %v272 = vpow.pop %v271
    %v273 = vmul.f32 %v268, 1.442695
    %v274 = vpow.pop %v273
    %v275 = vmul.f32 %v269, 1.442695
    %v276 = vpow.pop %v275
    %v277 = vmul.f32 %v270, 1.442695
    %v278 = vpow.pop %v277
    %v279 = vsub.f32 %v272, 1.0
    %v280 = vsub.f32 %v274, 1.0
    %v281 = vsub.f32 %v276, 1.0
    %v282 = vsub.f32 %v278, 1.0
    %v283 = vsel %vm263, %v253, %v279
    %v284 = vsel %vm264, %v255, %v280
    %v285 = vsel %vm265, %v259, %v281
    %v286 = vsel %vm266, %v261, %v282
    %vm287 = vcmask 916480
    %v288 = vsel %vm287, %v284, 0.0
    %v289 = vadd.f32 %v283, %v288
    %290 = vadd.xlane.f32.xlu0 %v289
    %v291 = vpop.xlane.xlu0 %290
    %v292 = vsel %vm287, %v286, 0.0
    %v293 = vadd.f32 %v285, %v292
    %294 = vadd.xlane.f32.xlu0 %v293
    %v295 = vpop.xlane.xlu0 %294
    %v296 = vrcp.pop 240.0
    %v297 = vmul.f32 %v291, %v296
    %v298 = vmul.f32 %v295, %v296
    %v299 = vmul.f32 %v283, %v283
    %v300 = vmul.f32 %v284, %v284
    %v301 = vmul.f32 %v285, %v285
    %v302 = vmul.f32 %v286, %v286
    %v303 = vsel %vm287, %v300, 0.0
    %v304 = vadd.f32 %v299, %v303
    %305 = vadd.xlane.f32.xlu0 %v304
    %v306 = vpop.xlane.xlu0 %305
    %v307 = vsel %vm287, %v302, 0.0
    %v308 = vadd.f32 %v301, %v307
    %309 = vadd.xlane.f32.xlu0 %v308
    %v310 = vpop.xlane.xlu0 %309
    %v311 = vmul.f32 %v306, %v296
    %v312 = vmul.f32 %v310, %v296
    %v313 = vmul.f32 %v297, %v297
    %v314 = vmul.f32 %v298, %v298
    %v315 = vsub.f32 %v311, %v313
    %v316 = vsub.f32 %v312, %v314
    %v317 = vmax.f32 %v315, 0.0
    %v318 = vmax.f32 %v316, 0.0
    %v319 = vsub.f32 %v283, %v297
    %v320 = vsub.f32 %v284, %v297
    %v321 = vsub.f32 %v285, %v298
    %v322 = vsub.f32 %v286, %v298
    %v323 = vrsqrt.pop %v317
    %v324 = vrsqrt.pop %v318
    %v325 = vmul.f32 %v319, %v323
    %v326 = vmul.f32 %v320, %v323
    %v327 = vmul.f32 %v321, %v324
    %v328 = vmul.f32 %v322, %v324
    %v329 = vld [vmem:[%s3] sm:$0xff]
    %v330 = vld [vmem:[%s3 + $0x8] sm:$0xff]
    %332 = vset.pattern.permute.xlu0 0
    %333 = vperm.xlu0 %332, %v329
    %v334 = vpop.permute.xlu0 %333
    %337 = vset.pattern.permute.xlu0 0
    %338 = vperm.xlu0 %337, %v330
    %v339 = vpop.permute.xlu0 %338
    %v341 = vmul.f32 %v325, %v334
    %v342 = vmul.f32 %v326, %v334
    %v343 = vmul.f32 %v327, %v339
    %v344 = vmul.f32 %v328, %v339
    %v345 = vld [vmem:[%s4] sm:$0xff]
    %v346 = vld [vmem:[%s4 + $0x8] sm:$0xff]
    %348 = vset.pattern.permute.xlu0 0
    %349 = vperm.xlu0 %348, %v345
    %v350 = vpop.permute.xlu0 %349
    %353 = vset.pattern.permute.xlu0 0
    %354 = vperm.xlu0 %353, %v346
    %v355 = vpop.permute.xlu0 %354
    %v357 = vadd.f32 %v341, %v350
    %v358 = vadd.f32 %v342, %v350
    %v359 = vadd.f32 %v343, %v355
    %v360 = vadd.f32 %v344, %v355
    %361 = vst [vmem:[#allocation2] sm:$0xff] 0.0
    %vm362 = vcmask 203776
    %363 = vst.msk [vmem:[#allocation2 + $0x8] sm:$0xff] %vm362, 0.0
    %364 = vst [vmem:[#allocation2 + $0x10] sm:$0xff] 0.0
    %365 = vst.msk [vmem:[#allocation2 + $0x18] sm:$0xff] %vm362, 0.0
    %366 = vst [vmem:[#allocation2 + $0x20] sm:$0x1] 0.0
    %vm367 = vcmask 196608
    %368 = vst.msk [vmem:[#allocation2 + $0x28] sm:$0x1] %vm367, 0.0
    %369 = vst [vmem:[#allocation2 + $0x30] sm:$0xff] 0.0
    %370 = vst.msk [vmem:[#allocation2 + $0x38] sm:$0xff] %vm362, 0.0
    %371 = vst [vmem:[#allocation2 + $0x40] sm:$0xff] 0.0
    %372 = vst.msk [vmem:[#allocation2 + $0x48] sm:$0xff] %vm362, 0.0
    %373 = vst [vmem:[#allocation2 + $0x50] sm:$0x1] 0.0
    %374 = vst.msk [vmem:[#allocation2 + $0x58] sm:$0x1] %vm367, 0.0
    %377 = vrot.lane.b32.xlu0 %v357, 16
    %v378 = vpop.permute.xlu0 %377
    %379 = vrot.lane.b32.xlu0 %v359, 16
    %v380 = vpop.permute.xlu0 %379
    %vm383 = vcmask 1047680
    %384 = vst.msk [vmem:[#allocation2] sm:$0xff] %vm383, %v378
    %vm385 = vcmask 64512
    %386 = vst.msk [vmem:[#allocation2 + $0x8] sm:$0xff] %vm385, %v378
    %387 = vst.msk [vmem:[#allocation2 + $0x10] sm:$0xff] %vm383, %v380
    %388 = vst.msk [vmem:[#allocation2 + $0x18] sm:$0xff] %vm385, %v380
    %391 = vrot.lane.b32.xlu0 %v357, 24
    %v392 = vpop.permute.xlu0 %391
    %393 = vrot.lane.b32.xlu0 %v358, 24
    %v394 = vpop.permute.xlu0 %393
    %395 = vrot.lane.b32.xlu0 %v359, 24
    %v396 = vpop.permute.xlu0 %395
    %397 = vrot.lane.b32.xlu0 %v360, 24
    %v398 = vpop.permute.xlu0 %397
    %vm399 = vcmask 195584
    %v400 = vsel %vm399, %v392, %v394
    %v401 = vsel %vm399, %v396, %v398
    %s406 = scalar_lea.vmem [#allocation2], 48
    %407 = vst.msk [vmem:[%s406] sm:$0xff] %vm383, %v400
    %408 = vst.msk [vmem:[%s406 + $0x8] sm:$0xff] %vm385, %v394
    %409 = vst.msk [vmem:[%s406 + $0x10] sm:$0xff] %vm383, %v401
    %410 = vst.msk [vmem:[%s406 + $0x18] sm:$0xff] %vm385, %v398
    %v411 = vld [vmem:[#allocation2] sm:$0xff]
    %v412 = vld [vmem:[#allocation2 + $0x8] sm:$0xff]
    %v413 = vld [vmem:[#allocation2 + $0x10] sm:$0xff]
    %v414 = vld [vmem:[#allocation2 + $0x18] sm:$0xff]
    %v415 = vld [vmem:[%s5] sm:$0xff]
    %v416 = vld [vmem:[%s5 + $0x8] sm:$0xff]
    %v417 = vld [vmem:[%s5 + $0x10] sm:$0xff]
    %v418 = vld [vmem:[%s5 + $0x18] sm:$0xff]
    %v419 = vld [vmem:[%s5 + $0x20] sm:$0xff]
    %v420 = vld [vmem:[%s5 + $0x28] sm:$0xff]
    %v421 = vld [vmem:[%s5 + $0x30] sm:$0xff]
    %v422 = vld [vmem:[%s5 + $0x38] sm:$0xff]
    %v423 = vld [vmem:[%s5 + $0x40] sm:$0xff]
    %v424 = vld [vmem:[%s5 + $0x48] sm:$0xff]
    %v425 = vld [vmem:[%s5 + $0x50] sm:$0xff]
    %v426 = vld [vmem:[%s5 + $0x58] sm:$0xff]
    %v427 = vld [vmem:[%s5 + $0x60] sm:$0xff]
    %v428 = vld [vmem:[%s5 + $0x68] sm:$0xff]
    %v429 = vld [vmem:[%s5 + $0x70] sm:$0xff]
    %v430 = vld [vmem:[%s5 + $0x78] sm:$0xff]
    %v431 = vld [vmem:[%s5 + $0x80] sm:$0xff]
    %v432 = vld [vmem:[%s5 + $0x88] sm:$0xff]
    %v433 = vld [vmem:[%s5 + $0x90] sm:$0xff]
    %v434 = vld [vmem:[%s5 + $0x98] sm:$0xff]
    %v435 = vld [vmem:[%s5 + $0xa0] sm:$0xff]
    %v436 = vld [vmem:[%s5 + $0xa8] sm:$0xff]
    %v437 = vld [vmem:[%s5 + $0xb0] sm:$0xff]
    %v438 = vld [vmem:[%s5 + $0xb8] sm:$0xff]
    %v439 = vld [vmem:[%s5 + $0xc0] sm:$0xff]
    %v440 = vld [vmem:[%s5 + $0xc8] sm:$0xff]
    %v441 = vld [vmem:[%s5 + $0xd0] sm:$0xff]
    %v442 = vld [vmem:[%s5 + $0xd8] sm:$0xff]
    %v443 = vld [vmem:[%s5 + $0xe0] sm:$0xff]
    %v444 = vld [vmem:[%s5 + $0xe8] sm:$0xff]
    %v445 = vld [vmem:[%s5 + $0xf0] sm:$0xff]
    %v446 = vld [vmem:[%s5 + $0xf8] sm:$0xff]
    %v447 = vld [vmem:[%s5 + $0x100] sm:$0xff]
    %v448 = vld [vmem:[%s5 + $0x108] sm:$0xff]
    %v449 = vld [vmem:[%s5 + $0x110] sm:$0xff]
    %v450 = vld [vmem:[%s5 + $0x118] sm:$0xff]
    %v451 = vld [vmem:[%s5 + $0x120] sm:$0xff]
    %v452 = vld [vmem:[%s5 + $0x128] sm:$0xff]
    %v453 = vld [vmem:[%s5 + $0x130] sm:$0xff]
    %v454 = vld [vmem:[%s5 + $0x138] sm:$0xff]
    %v455 = vld [vmem:[%s5 + $0x140] sm:$0xff]
    %v456 = vld [vmem:[%s5 + $0x148] sm:$0xff]
    %v457 = vld [vmem:[%s5 + $0x150] sm:$0xff]
    %v458 = vld [vmem:[%s5 + $0x158] sm:$0xff]
    %v459 = vld [vmem:[%s5 + $0x160] sm:$0xff]
    %v460 = vld [vmem:[%s5 + $0x168] sm:$0xff]
    %v461 = vld [vmem:[%s5 + $0x170] sm:$0xff]
    %v462 = vld [vmem:[%s5 + $0x178] sm:$0xff]
    %v463 = vld [vmem:[%s5 + $0x180] sm:$0xff]
    %v464 = vld [vmem:[%s5 + $0x188] sm:$0xff]
    %v465 = vld [vmem:[%s5 + $0x190] sm:$0xff]
    %v466 = vld [vmem:[%s5 + $0x198] sm:$0xff]
    %v467 = vld [vmem:[%s5 + $0x1a0] sm:$0xff]
    %v468 = vld [vmem:[%s5 + $0x1a8] sm:$0xff]
    %v469 = vld [vmem:[%s5 + $0x1b0] sm:$0xff]
    %v470 = vld [vmem:[%s5 + $0x1b8] sm:$0xff]
    %v471 = vld [vmem:[%s5 + $0x1c0] sm:$0xff]
    %v472 = vld [vmem:[%s5 + $0x1c8] sm:$0xff]
    %v473 = vld [vmem:[%s5 + $0x1d0] sm:$0xff]
    %v474 = vld [vmem:[%s5 + $0x1d8] sm:$0xff]
    %v475 = vld [vmem:[%s5 + $0x1e0] sm:$0xff]
    %v476 = vld [vmem:[%s5 + $0x1e8] sm:$0xff]
    %v477 = vld [vmem:[%s5 + $0x1f0] sm:$0xff]
    %v478 = vld [vmem:[%s5 + $0x1f8] sm:$0xff]
    %v479 = vld [vmem:[%s5 + $0x200] sm:$0xff]
    %v480 = vld [vmem:[%s5 + $0x208] sm:$0xff]
    %v481 = vld [vmem:[%s5 + $0x210] sm:$0xff]
    %v482 = vld [vmem:[%s5 + $0x218] sm:$0xff]
    %v483 = vld [vmem:[%s5 + $0x220] sm:$0xff]
    %v484 = vld [vmem:[%s5 + $0x228] sm:$0xff]
    %v485 = vld [vmem:[%s5 + $0x230] sm:$0xff]
    %v486 = vld [vmem:[%s5 + $0x238] sm:$0xff]
    %v487 = vld [vmem:[%s5 + $0x240] sm:$0xff]
    %v488 = vld [vmem:[%s5 + $0x248] sm:$0xff]
    %v489 = vld [vmem:[%s5 + $0x250] sm:$0xff]
    %v490 = vld [vmem:[%s5 + $0x258] sm:$0xff]
    %v491 = vld [vmem:[%s5 + $0x260] sm:$0x1]
    %v492 = vld [vmem:[%s5 + $0x268] sm:$0x1]
    %v493 = vld [vmem:[%s5 + $0x270] sm:$0x1]
    %v494 = vld [vmem:[%s5 + $0x278] sm:$0x1]
    %v495 = vld [vmem:[#allocation2] sm:$0xfe]
    %v496 = vld [vmem:[#allocation2 + $0x8] sm:$0xfe]
    %v497 = vld [vmem:[#allocation2 + $0x20] sm:$0x1]
    %v498 = vld [vmem:[#allocation2 + $0x28] sm:$0x1]
    %s499 = scalar_lea.vmem %s5, 640
    %v500 = vld [vmem:[%s499] sm:$0xff]
    %v501 = vld [vmem:[%s499 + $0x8] sm:$0xff]
    %v502 = vld [vmem:[%s499 + $0x10] sm:$0xff]
    %v503 = vld [vmem:[%s499 + $0x18] sm:$0xff]
    %v504 = vld [vmem:[%s499 + $0x20] sm:$0xff]
    %v505 = vld [vmem:[%s499 + $0x28] sm:$0xff]
    %v506 = vld [vmem:[%s499 + $0x30] sm:$0xff]
    %v507 = vld [vmem:[%s499 + $0x38] sm:$0xff]
    %v508 = vld [vmem:[%s499 + $0x40] sm:$0xff]
    %v509 = vld [vmem:[%s499 + $0x48] sm:$0xff]
    %v510 = vld [vmem:[%s499 + $0x50] sm:$0xff]
    %v511 = vld [vmem:[%s499 + $0x58] sm:$0xff]
    %v512 = vld [vmem:[%s499 + $0x60] sm:$0xff]
    %v513 = vld [vmem:[%s499 + $0x68] sm:$0xff]
    %v514 = vld [vmem:[%s499 + $0x70] sm:$0xff]
    %v515 = vld [vmem:[%s499 + $0x78] sm:$0xff]
    %v516 = vld [vmem:[%s499 + $0x80] sm:$0xff]
    %v517 = vld [vmem:[%s499 + $0x88] sm:$0xff]
    %v518 = vld [vmem:[%s499 + $0x90] sm:$0xff]
    %v519 = vld [vmem:[%s499 + $0x98] sm:$0xff]
    %v520 = vld [vmem:[%s499 + $0xa0] sm:$0xff]
    %v521 = vld [vmem:[%s499 + $0xa8] sm:$0xff]
    %v522 = vld [vmem:[%s499 + $0xb0] sm:$0xff]
    %v523 = vld [vmem:[%s499 + $0xb8] sm:$0xff]
    %v524 = vld [vmem:[%s499 + $0xc0] sm:$0xff]
    %v525 = vld [vmem:[%s499 + $0xc8] sm:$0xff]
    %v526 = vld [vmem:[%s499 + $0xd0] sm:$0xff]
    %v527 = vld [vmem:[%s499 + $0xd8] sm:$0xff]
    %v528 = vld [vmem:[%s499 + $0xe0] sm:$0xff]
    %v529 = vld [vmem:[%s499 + $0xe8] sm:$0xff]
    %v530 = vld [vmem:[%s499 + $0xf0] sm:$0xff]
    %v531 = vld [vmem:[%s499 + $0xf8] sm:$0xff]
    %v532 = vld [vmem:[%s499 + $0x100] sm:$0xff]
    %v533 = vld [vmem:[%s499 + $0x108] sm:$0xff]
    %v534 = vld [vmem:[%s499 + $0x110] sm:$0xff]
    %v535 = vld [vmem:[%s499 + $0x118] sm:$0xff]
    %v536 = vld [vmem:[%s499 + $0x120] sm:$0xff]
    %v537 = vld [vmem:[%s499 + $0x128] sm:$0xff]
    %v538 = vld [vmem:[%s499 + $0x130] sm:$0xff]
    %v539 = vld [vmem:[%s499 + $0x138] sm:$0xff]
    %v540 = vld [vmem:[%s499 + $0x140] sm:$0xff]
    %v541 = vld [vmem:[%s499 + $0x148] sm:$0xff]
    %v542 = vld [vmem:[%s499 + $0x150] sm:$0xff]
    %v543 = vld [vmem:[%s499 + $0x158] sm:$0xff]
    %v544 = vld [vmem:[%s499 + $0x160] sm:$0xff]
    %v545 = vld [vmem:[%s499 + $0x168] sm:$0xff]
    %v546 = vld [vmem:[%s499 + $0x170] sm:$0xff]
    %v547 = vld [vmem:[%s499 + $0x178] sm:$0xff]
    %v548 = vld [vmem:[%s499 + $0x180] sm:$0xff]
    %v549 = vld [vmem:[%s499 + $0x188] sm:$0xff]
    %v550 = vld [vmem:[%s499 + $0x190] sm:$0xff]
    %v551 = vld [vmem:[%s499 + $0x198] sm:$0xff]
    %v552 = vld [vmem:[%s499 + $0x1a0] sm:$0xff]
    %v553 = vld [vmem:[%s499 + $0x1a8] sm:$0xff]
    %v554 = vld [vmem:[%s499 + $0x1b0] sm:$0xff]
    %v555 = vld [vmem:[%s499 + $0x1b8] sm:$0xff]
    %v556 = vld [vmem:[%s499 + $0x1c0] sm:$0xff]
    %v557 = vld [vmem:[%s499 + $0x1c8] sm:$0xff]
    %v558 = vld [vmem:[%s499 + $0x1d0] sm:$0xff]
    %v559 = vld [vmem:[%s499 + $0x1d8] sm:$0xff]
    %v560 = vld [vmem:[%s499 + $0x1e0] sm:$0xff]
    %v561 = vld [vmem:[%s499 + $0x1e8] sm:$0xff]
    %v562 = vld [vmem:[%s499 + $0x1f0] sm:$0xff]
    %v563 = vld [vmem:[%s499 + $0x1f8] sm:$0xff]
    %v564 = vld [vmem:[%s499 + $0x200] sm:$0xff]
    %v565 = vld [vmem:[%s499 + $0x208] sm:$0xff]
    %v566 = vld [vmem:[%s499 + $0x210] sm:$0xff]
    %v567 = vld [vmem:[%s499 + $0x218] sm:$0xff]
    %v568 = vld [vmem:[%s499 + $0x220] sm:$0xff]
    %v569 = vld [vmem:[%s499 + $0x228] sm:$0xff]
    %v570 = vld [vmem:[%s499 + $0x230] sm:$0xff]
    %v571 = vld [vmem:[%s499 + $0x238] sm:$0xff]
    %v572 = vld [vmem:[%s499 + $0x240] sm:$0xff]
    %v573 = vld [vmem:[%s499 + $0x248] sm:$0xff]
    %v574 = vld [vmem:[%s499 + $0x250] sm:$0xff]
    %v575 = vld [vmem:[%s499 + $0x258] sm:$0xff]
    %v576 = vld [vmem:[%s499 + $0x260] sm:$0x1]
    %v577 = vld [vmem:[%s499 + $0x268] sm:$0x1]
    %v578 = vld [vmem:[%s499 + $0x270] sm:$0x1]
    %v579 = vld [vmem:[%s499 + $0x278] sm:$0x1]
    %vm586 = vcmask 1046528
    %v587 = vrot.slane %v495, 1
    %v588 = vrot.slane %v413, 1
    %v589 = vsel %vm586, %v587, %v588
    %v590 = vrot.slane %v496, 1
    %v591 = vrot.slane %v414, 1
    %v592 = vsel %vm586, %v590, %v591
    %v593 = vrot.slane %v497, 1
    %v594 = vsel %vm586, %v588, %v593
    %v595 = vrot.slane %v498, 1
    %v596 = vsel %vm586, %v591, %v595
    %v599 = vsel %vm362, %v592, 0
    %v601 = vsel %vm362, %v596, 0
    %vm603 = vcmask 1040384
    %v605 = vsel %vm603, %v576, 0
    %v608 = vsel %vm603, %v577, 0
    %v611 = vsel %vm603, %v578, 0
    %v614 = vsel %vm603, %v579, 0
    %616 = vmatprep.subr.mxu0 %v501
    %617 = vmatpush1.msra.mxu0 %v500
    %618 = vmatprep.subr.mxu0 %v505
    %619 = vmatpush1.msra.mxu0 %v504
    %620 = vmatprep.subr.mxu0 %v509
    %621 = vmatpush1.msra.mxu0 %v508
    %622 = vmatprep.subr.mxu0 %v513
    %623 = vmatpush1.msra.mxu0 %v512
    %624 = vmatprep.subr.mxu0 %v517
    %625 = vmatpush1.msra.mxu0 %v516
    %626 = vmatprep.subr.mxu0 %v521
    %627 = vmatpush1.msra.mxu0 %v520
    %628 = vmatprep.subr.mxu0 %v525
    %629 = vmatpush1.msra.mxu0 %v524
    %630 = vmatprep.subr.mxu0 %v529
    %631 = vmatpush1.msra.mxu0 %v528
    %632 = vmatprep.subr.mxu0 %v533
    %633 = vmatpush1.msra.mxu0 %v532
    %634 = vmatprep.subr.mxu0 %v537
    %635 = vmatpush1.msra.mxu0 %v536
    %636 = vmatprep.subr.mxu0 %v541
    %637 = vmatpush1.msra.mxu0 %v540
    %638 = vmatprep.subr.mxu0 %v545
    %639 = vmatpush1.msra.mxu0 %v544
    %640 = vmatprep.subr.mxu0 %v549
    %641 = vmatpush1.msra.mxu0 %v548
    %642 = vmatprep.subr.mxu0 %v553
    %643 = vmatpush1.msra.mxu0 %v552
    %644 = vmatprep.subr.mxu0 %v557
    %645 = vmatpush1.msra.mxu0 %v556
    %646 = vmatprep.subr.mxu0 %v561
    %647 = vmatpush1.msra.mxu0 %v560
    %648 = vmatprep.subr.mxu0 %v565
    %649 = vmatpush1.msra.mxu0 %v564
    %650 = vmatprep.subr.mxu0 %v569
    %651 = vmatpush1.msra.mxu0 %v568
    %652 = vmatprep.subr.mxu0 %v573
    %653 = vmatpush1.msra.mxu0 %v572
    %654 = vmatprep.subr.mxu0 %v608
    %655 = vmatpush1.msra.mxu0 %v605
    %656 = vmatprep.subr.mxu0 0.0
    %657 = vmatpush1.msra.mxu0 0.0
    %658 = vmatprep.subr.mxu0 0.0
    %659 = vmatpush1.msra.mxu0 0.0
    %660 = vmatprep.subr.mxu0 0.0
    %661 = vmatpush1.msra.mxu0 0.0
    %662 = vmatprep.subr.mxu0 0.0
    %663 = vmatpush1.msra.mxu0 0.0
    %664 = vmatprep.subr.mxu0 0.0
    %665 = vmatpush1.msra.mxu0 0.0
    %666 = vmatprep.subr.mxu0 0.0
    %667 = vmatpush1.msra.mxu0 0.0
    %668 = vmatprep.subr.mxu0 0.0
    %669 = vmatpush1.msra.mxu0 0.0
    %670 = vmatprep.subr.mxu0 0.0
    %671 = vmatpush1.msra.mxu0 0.0
    %672 = vmatprep.subr.mxu0 0.0
    %673 = vmatpush1.msra.mxu0 0.0
    %674 = vmatprep.subr.mxu0 0.0
    %675 = vmatpush1.msra.mxu0 0.0
    %676 = vmatprep.subr.mxu0 0.0
    %677 = vmatpush1.msra.mxu0 0.0
    %678 = vmatprep.subr.mxu0 0.0
    %679 = vmatpush1.msra.mxu0 0.0
    %680 = vmatprep.mubr.f32.mxu0 %v599
    %681 = vmatmul.mubr.f32.gmra.mrb[0].mxu0 %v589
    %v682 = vpop.f32.mrb[0].mxu0
    %v683 = vadd.f32 0.0, %v682
    %v684 = vpop.f32.mrb[0].mxu0
    %v685 = vadd.f32 0.0, %v684
    %686 = vmatprep.mubr.f32.mxu0 %v601
    %687 = vmatmul.mubr.f32.gmra.mrb[0].mxu0 %v594
    %v688 = vpop.f32.mrb[0].mxu0
    %v689 = vadd.f32 0.0, %v688
    %v690 = vpop.f32.mrb[0].mxu0
    %v691 = vadd.f32 0.0, %v690
    %692 = vdwg.mxu0
    %693 = vmatprep.subr.mxu0 %v503
    %694 = vmatpush1.msra.mxu0 %v502
    %695 = vmatprep.subr.mxu0 %v507
    %696 = vmatpush1.msra.mxu0 %v506
    %697 = vmatprep.subr.mxu0 %v511
    %698 = vmatpush1.msra.mxu0 %v510
    %699 = vmatprep.subr.mxu0 %v515
    %700 = vmatpush1.msra.mxu0 %v514
    %701 = vmatprep.subr.mxu0 %v519
    %702 = vmatpush1.msra.mxu0 %v518
    %703 = vmatprep.subr.mxu0 %v523
    %704 = vmatpush1.msra.mxu0 %v522
    %705 = vmatprep.subr.mxu0 %v527
    %706 = vmatpush1.msra.mxu0 %v526
    %707 = vmatprep.subr.mxu0 %v531
    %708 = vmatpush1.msra.mxu0 %v530
    %709 = vmatprep.subr.mxu0 %v535
    %710 = vmatpush1.msra.mxu0 %v534
    %711 = vmatprep.subr.mxu0 %v539
    %712 = vmatpush1.msra.mxu0 %v538
    %713 = vmatprep.subr.mxu0 %v543
    %714 = vmatpush1.msra.mxu0 %v542
    %715 = vmatprep.subr.mxu0 %v547
    %716 = vmatpush1.msra.mxu0 %v546
    %717 = vmatprep.subr.mxu0 %v551
    %718 = vmatpush1.msra.mxu0 %v550
    %719 = vmatprep.subr.mxu0 %v555
    %720 = vmatpush1.msra.mxu0 %v554
    %721 = vmatprep.subr.mxu0 %v559
    %722 = vmatpush1.msra.mxu0 %v558
    %723 = vmatprep.subr.mxu0 %v563
    %724 = vmatpush1.msra.mxu0 %v562
    %725 = vmatprep.subr.mxu0 %v567
    %726 = vmatpush1.msra.mxu0 %v566
    %727 = vmatprep.subr.mxu0 %v571
    %728 = vmatpush1.msra.mxu0 %v570
    %729 = vmatprep.subr.mxu0 %v575
    %730 = vmatpush1.msra.mxu0 %v574
    %731 = vmatprep.subr.mxu0 %v614
    %732 = vmatpush1.msra.mxu0 %v611
    %733 = vmatprep.subr.mxu0 0.0
    %734 = vmatpush1.msra.mxu0 0.0
    %735 = vmatprep.subr.mxu0 0.0
    %736 = vmatpush1.msra.mxu0 0.0
    %737 = vmatprep.subr.mxu0 0.0
    %738 = vmatpush1.msra.mxu0 0.0
    %739 = vmatprep.subr.mxu0 0.0
    %740 = vmatpush1.msra.mxu0 0.0
    %741 = vmatprep.subr.mxu0 0.0
    %742 = vmatpush1.msra.mxu0 0.0
    %743 = vmatprep.subr.mxu0 0.0
    %744 = vmatpush1.msra.mxu0 0.0
    %745 = vmatprep.subr.mxu0 0.0
    %746 = vmatpush1.msra.mxu0 0.0
    %747 = vmatprep.subr.mxu0 0.0
    %748 = vmatpush1.msra.mxu0 0.0
    %749 = vmatprep.subr.mxu0 0.0
    %750 = vmatpush1.msra.mxu0 0.0
    %751 = vmatprep.subr.mxu0 0.0
    %752 = vmatpush1.msra.mxu0 0.0
    %753 = vmatprep.subr.mxu0 0.0
    %754 = vmatpush1.msra.mxu0 0.0
    %755 = vmatprep.subr.mxu0 0.0
    %756 = vmatpush1.msra.mxu0 0.0
    %757 = vmatprep.mubr.f32.mxu0 %v599
    %758 = vmatmul.mubr.f32.gmra.mrb[0].mxu0 %v589
    %v759 = vpop.f32.mrb[0].mxu0
    %v760 = vadd.f32 0.0, %v759
    %v761 = vpop.f32.mrb[0].mxu0
    %v762 = vadd.f32 0.0, %v761
    %763 = vmatprep.mubr.f32.mxu0 %v601
    %764 = vmatmul.mubr.f32.gmra.mrb[0].mxu0 %v594
    %v765 = vpop.f32.mrb[0].mxu0
    %v766 = vadd.f32 0.0, %v765
    %v767 = vpop.f32.mrb[0].mxu0
    %v768 = vadd.f32 0.0, %v767
    %769 = vdwg.mxu0
    %v771 = vsel %vm362, %v412, 0
    %v773 = vsel %vm362, %v414, 0
    %v776 = vsel %vm603, %v491, 0
    %v779 = vsel %vm603, %v492, 0
    %v782 = vsel %vm603, %v493, 0
    %v785 = vsel %vm603, %v494, 0
    %787 = vmatprep.subr.mxu0 %v416
    %788 = vmatpush1.msra.mxu0 %v415
    %789 = vmatprep.subr.mxu0 %v420
    %790 = vmatpush1.msra.mxu0 %v419
    %791 = vmatprep.subr.mxu0 %v424
    %792 = vmatpush1.msra.mxu0 %v423
    %793 = vmatprep.subr.mxu0 %v428
    %794 = vmatpush1.msra.mxu0 %v427
    %795 = vmatprep.subr.mxu0 %v432
    %796 = vmatpush1.msra.mxu0 %v431
    %797 = vmatprep.subr.mxu0 %v436
    %798 = vmatpush1.msra.mxu0 %v435
    %799 = vmatprep.subr.mxu0 %v440
    %800 = vmatpush1.msra.mxu0 %v439
    %801 = vmatprep.subr.mxu0 %v444
    %802 = vmatpush1.msra.mxu0 %v443
    %803 = vmatprep.subr.mxu0 %v448
    %804 = vmatpush1.msra.mxu0 %v447
    %805 = vmatprep.subr.mxu0 %v452
    %806 = vmatpush1.msra.mxu0 %v451
    %807 = vmatprep.subr.mxu0 %v456
    %808 = vmatpush1.msra.mxu0 %v455
    %809 = vmatprep.subr.mxu0 %v460
    %810 = vmatpush1.msra.mxu0 %v459
    %811 = vmatprep.subr.mxu0 %v464
    %812 = vmatpush1.msra.mxu0 %v463
    %813 = vmatprep.subr.mxu0 %v468
    %814 = vmatpush1.msra.mxu0 %v467
    %815 = vmatprep.subr.mxu0 %v472
    %816 = vmatpush1.msra.mxu0 %v471
    %817 = vmatprep.subr.mxu0 %v476
    %818 = vmatpush1.msra.mxu0 %v475
    %819 = vmatprep.subr.mxu0 %v480
    %820 = vmatpush1.msra.mxu0 %v479
    %821 = vmatprep.subr.mxu0 %v484
    %822 = vmatpush1.msra.mxu0 %v483
    %823 = vmatprep.subr.mxu0 %v488
    %824 = vmatpush1.msra.mxu0 %v487
    %825 = vmatprep.subr.mxu0 %v779
    %826 = vmatpush1.msra.mxu0 %v776
    %827 = vmatprep.subr.mxu0 0.0
    %828 = vmatpush1.msra.mxu0 0.0
    %829 = vmatprep.subr.mxu0 0.0
    %830 = vmatpush1.msra.mxu0 0.0
    %831 = vmatprep.subr.mxu0 0.0
    %832 = vmatpush1.msra.mxu0 0.0
    %833 = vmatprep.subr.mxu0 0.0
    %834 = vmatpush1.msra.mxu0 0.0
    %835 = vmatprep.subr.mxu0 0.0
    %836 = vmatpush1.msra.mxu0 0.0
    %837 = vmatprep.subr.mxu0 0.0
    %838 = vmatpush1.msra.mxu0 0.0
    %839 = vmatprep.subr.mxu0 0.0
    %840 = vmatpush1.msra.mxu0 0.0
    %841 = vmatprep.subr.mxu0 0.0
    %842 = vmatpush1.msra.mxu0 0.0
    %843 = vmatprep.subr.mxu0 0.0
    %844 = vmatpush1.msra.mxu0 0.0
    %845 = vmatprep.subr.mxu0 0.0
    %846 = vmatpush1.msra.mxu0 0.0
    %847 = vmatprep.subr.mxu0 0.0
    %848 = vmatpush1.msra.mxu0 0.0
    %849 = vmatprep.subr.mxu0 0.0
    %850 = vmatpush1.msra.mxu0 0.0
    %851 = vmatprep.mubr.f32.mxu0 %v771
    %852 = vmatmul.mubr.f32.gmra.mrb[0].mxu0 %v411
    %v853 = vpop.f32.mrb[0].mxu0
    %v854 = vadd.f32 %v683, %v853
    %v855 = vpop.f32.mrb[0].mxu0
    %v856 = vadd.f32 %v685, %v855
    %857 = vmatprep.mubr.f32.mxu0 %v773
    %858 = vmatmul.mubr.f32.gmra.mrb[0].mxu0 %v413
    %v859 = vpop.f32.mrb[0].mxu0
    %v860 = vadd.f32 %v689, %v859
    %v861 = vpop.f32.mrb[0].mxu0
    %v862 = vadd.f32 %v691, %v861
    %863 = vdwg.mxu0
    %864 = vmatprep.subr.mxu0 %v418
    %865 = vmatpush1.msra.mxu0 %v417
    %866 = vmatprep.subr.mxu0 %v422
    %867 = vmatpush1.msra.mxu0 %v421
    %868 = vmatprep.subr.mxu0 %v426
    %869 = vmatpush1.msra.mxu0 %v425
    %870 = vmatprep.subr.mxu0 %v430
    %871 = vmatpush1.msra.mxu0 %v429
    %872 = vmatprep.subr.mxu0 %v434
    %873 = vmatpush1.msra.mxu0 %v433
    %874 = vmatprep.subr.mxu0 %v438
    %875 = vmatpush1.msra.mxu0 %v437
    %876 = vmatprep.subr.mxu0 %v442
    %877 = vmatpush1.msra.mxu0 %v441
    %878 = vmatprep.subr.mxu0 %v446
    %879 = vmatpush1.msra.mxu0 %v445
    %880 = vmatprep.subr.mxu0 %v450
    %881 = vmatpush1.msra.mxu0 %v449
    %882 = vmatprep.subr.mxu0 %v454
    %883 = vmatpush1.msra.mxu0 %v453
    %884 = vmatprep.subr.mxu0 %v458
    %885 = vmatpush1.msra.mxu0 %v457
    %886 = vmatprep.subr.mxu0 %v462
    %887 = vmatpush1.msra.mxu0 %v461
    %888 = vmatprep.subr.mxu0 %v466
    %889 = vmatpush1.msra.mxu0 %v465
    %890 = vmatprep.subr.mxu0 %v470
    %891 = vmatpush1.msra.mxu0 %v469
    %892 = vmatprep.subr.mxu0 %v474
    %893 = vmatpush1.msra.mxu0 %v473
    %894 = vmatprep.subr.mxu0 %v478
    %895 = vmatpush1.msra.mxu0 %v477
    %896 = vmatprep.subr.mxu0 %v482
    %897 = vmatpush1.msra.mxu0 %v481
    %898 = vmatprep.subr.mxu0 %v486
    %899 = vmatpush1.msra.mxu0 %v485
    %900 = vmatprep.subr.mxu0 %v490
    %901 = vmatpush1.msra.mxu0 %v489
    %902 = vmatprep.subr.mxu0 %v785
    %903 = vmatpush1.msra.mxu0 %v782
    %904 = vmatprep.subr.mxu0 0.0
    %905 = vmatpush1.msra.mxu0 0.0
    %906 = vmatprep.subr.mxu0 0.0
    %907 = vmatpush1.msra.mxu0 0.0
    %908 = vmatprep.subr.mxu0 0.0
    %909 = vmatpush1.msra.mxu0 0.0
    %910 = vmatprep.subr.mxu0 0.0
    %911 = vmatpush1.msra.mxu0 0.0
    %912 = vmatprep.subr.mxu0 0.0
    %913 = vmatpush1.msra.mxu0 0.0
    %914 = vmatprep.subr.mxu0 0.0
    %915 = vmatpush1.msra.mxu0 0.0
    %916 = vmatprep.subr.mxu0 0.0
    %917 = vmatpush1.msra.mxu0 0.0
    %918 = vmatprep.subr.mxu0 0.0
    %919 = vmatpush1.msra.mxu0 0.0
    %920 = vmatprep.subr.mxu0 0.0
    %921 = vmatpush1.msra.mxu0 0.0
    %922 = vmatprep.subr.mxu0 0.0
    %923 = vmatpush1.msra.mxu0 0.0
    %924 = vmatprep.subr.mxu0 0.0
    %925 = vmatpush1.msra.mxu0 0.0
    %926 = vmatprep.subr.mxu0 0.0
    %927 = vmatpush1.msra.mxu0 0.0
    %928 = vmatprep.mubr.f32.mxu0 %v771
    %929 = vmatmul.mubr.f32.gmra.mrb[0].mxu0 %v411
    %v930 = vpop.f32.mrb[0].mxu0
    %v931 = vadd.f32 %v760, %v930
    %v932 = vpop.f32.mrb[0].mxu0
    %v933 = vadd.f32 %v762, %v932
    %934 = vmatprep.mubr.f32.mxu0 %v773
    %935 = vmatmul.mubr.f32.gmra.mrb[0].mxu0 %v413
    %v936 = vpop.f32.mrb[0].mxu0
    %v937 = vadd.f32 %v766, %v936
    %v938 = vpop.f32.mrb[0].mxu0
    %v939 = vadd.f32 %v768, %v938
    %940 = vdwg.mxu0
    %v941 = vld [vmem:[#allocation7] sm:$0xf]
    %v943 = vlaneseq
    %v944 = vshrl.u32 %v943, 7
    %v945 = vsub.s32 0, %v944
    %v946 = vrot.slane %v941, %v945
    %v947 = vlaneseq
    %v948 = vshrl.u32 %v947, 7
    %v949 = vsub.s32 1, %v948
    %v950 = vrot.slane %v941, %v949
    %v951 = vlaneseq
    %v952 = vshrl.u32 %v951, 7
    %v953 = vsub.s32 2, %v952
    %v954 = vrot.slane %v941, %v953
    %v955 = vlaneseq
    %v956 = vshrl.u32 %v955, 7
    %v957 = vsub.s32 3, %v956
    %v958 = vrot.slane %v941, %v957
    %v963 = vadd.f32 %v854, %v946
    %v964 = vadd.f32 %v856, %v950
    %v965 = vadd.f32 %v931, %v954
    %v966 = vadd.f32 %v933, %v958
    %v967 = vadd.f32 %v860, %v946
    %v968 = vadd.f32 %v862, %v950
    %v969 = vadd.f32 %v937, %v954
    %v970 = vadd.f32 %v939, %v958
    %vm971 = vcmp.gt.f32.partialorder %v963, 0.0
    %vm972 = vcmp.gt.f32.partialorder %v964, 0.0
    %vm973 = vcmp.gt.f32.partialorder %v965, 0.0
    %vm974 = vcmp.gt.f32.partialorder %v966, 0.0
    %vm975 = vcmp.gt.f32.partialorder %v967, 0.0
    %vm976 = vcmp.gt.f32.partialorder %v968, 0.0
    %vm977 = vcmp.gt.f32.partialorder %v969, 0.0
    %vm978 = vcmp.gt.f32.partialorder %v970, 0.0
    %v979 = vmin.f32 %v963, 0.0
    %v980 = vmin.f32 %v964, 0.0
    %v981 = vmin.f32 %v965, 0.0
    %v982 = vmin.f32 %v966, 0.0
    %v983 = vmin.f32 %v967, 0.0
    %v984 = vmin.f32 %v968, 0.0
    %v985 = vmin.f32 %v969, 0.0
    %v986 = vmin.f32 %v970, 0.0
    %v987 = vmul.f32 %v979, 1.442695
    %v988 = vpow.pop %v987
    %v989 = vmul.f32 %v980, 1.442695
    %v990 = vpow.pop %v989
    %v991 = vmul.f32 %v981, 1.442695
    %v992 = vpow.pop %v991
    %v993 = vmul.f32 %v982, 1.442695
    %v994 = vpow.pop %v993
    %v995 = vmul.f32 %v983, 1.442695
    %v996 = vpow.pop %v995
    %v997 = vmul.f32 %v984, 1.442695
    %v998 = vpow.pop %v997
    %v999 = vmul.f32 %v985, 1.442695
    %v1000 = vpow.pop %v999
    %v1001 = vmul.f32 %v986, 1.442695
    %v1002 = vpow.pop %v1001
    %v1003 = vsub.f32 %v988, 1.0
    %v1004 = vsub.f32 %v990, 1.0
    %v1005 = vsub.f32 %v992, 1.0
    %v1006 = vsub.f32 %v994, 1.0
    %v1007 = vsub.f32 %v996, 1.0
    %v1008 = vsub.f32 %v998, 1.0
    %v1009 = vsub.f32 %v1000, 1.0
    %v1010 = vsub.f32 %v1002, 1.0
    %v1011 = vsel %vm971, %v963, %v1003
    %v1012 = vsel %vm972, %v964, %v1004
    %v1013 = vsel %vm973, %v965, %v1005
    %v1014 = vsel %vm974, %v966, %v1006
    %v1015 = vsel %vm975, %v967, %v1007
    %v1016 = vsel %vm976, %v968, %v1008
    %v1017 = vsel %vm977, %v969, %v1009
    %v1018 = vsel %vm978, %v970, %v1010
    %v1019 = vld [vmem:[%s406] sm:$0xff]
    %v1020 = vld [vmem:[%s406 + $0x8] sm:$0xff]
    %v1021 = vld [vmem:[%s406 + $0x10] sm:$0xff]
    %v1022 = vld [vmem:[%s406 + $0x18] sm:$0xff]
    %v1023 = vld [vmem:[%s406] sm:$0xfe]
    %v1024 = vld [vmem:[%s406 + $0x8] sm:$0xfe]
    %v1025 = vld [vmem:[%s406 + $0x20] sm:$0x1]
    %v1026 = vld [vmem:[%s406 + $0x28] sm:$0x1]
    %v1033 = vrot.slane %v1023, 1
    %v1034 = vrot.slane %v1021, 1
    %v1035 = vsel %vm586, %v1033, %v1034
    %v1036 = vrot.slane %v1024, 1
    %v1037 = vrot.slane %v1022, 1
    %v1038 = vsel %vm586, %v1036, %v1037
    %v1039 = vrot.slane %v1025, 1
    %v1040 = vsel %vm586, %v1034, %v1039
    %v1041 = vrot.slane %v1026, 1
    %v1042 = vsel %vm586, %v1037, %v1041
    %v1045 = vsel %vm362, %v1038, 0
    %v1047 = vsel %vm362, %v1042, 0
    %1049 = vmatprep.subr.mxu0 %v501
    %1050 = vmatpush1.msra.mxu0 %v500
    %1051 = vmatprep.subr.mxu0 %v505
    %1052 = vmatpush1.msra.mxu0 %v504
    %1053 = vmatprep.subr.mxu0 %v509
    %1054 = vmatpush1.msra.mxu0 %v508
    %1055 = vmatprep.subr.mxu0 %v513
    %1056 = vmatpush1.msra.mxu0 %v512
    %1057 = vmatprep.subr.mxu0 %v517
    %1058 = vmatpush1.msra.mxu0 %v516
    %1059 = vmatprep.subr.mxu0 %v521
    %1060 = vmatpush1.msra.mxu0 %v520
    %1061 = vmatprep.subr.mxu0 %v525
    %1062 = vmatpush1.msra.mxu0 %v524
    %1063 = vmatprep.subr.mxu0 %v529
    %1064 = vmatpush1.msra.mxu0 %v528
    %1065 = vmatprep.subr.mxu0 %v533
    %1066 = vmatpush1.msra.mxu0 %v532
    %1067 = vmatprep.subr.mxu0 %v537
    %1068 = vmatpush1.msra.mxu0 %v536
    %1069 = vmatprep.subr.mxu0 %v541
    %1070 = vmatpush1.msra.mxu0 %v540
    %1071 = vmatprep.subr.mxu0 %v545
    %1072 = vmatpush1.msra.mxu0 %v544
    %1073 = vmatprep.subr.mxu0 %v549
    %1074 = vmatpush1.msra.mxu0 %v548
    %1075 = vmatprep.subr.mxu0 %v553
    %1076 = vmatpush1.msra.mxu0 %v552
    %1077 = vmatprep.subr.mxu0 %v557
    %1078 = vmatpush1.msra.mxu0 %v556
    %1079 = vmatprep.subr.mxu0 %v561
    %1080 = vmatpush1.msra.mxu0 %v560
    %1081 = vmatprep.subr.mxu0 %v565
    %1082 = vmatpush1.msra.mxu0 %v564
    %1083 = vmatprep.subr.mxu0 %v569
    %1084 = vmatpush1.msra.mxu0 %v568
    %1085 = vmatprep.subr.mxu0 %v573
    %1086 = vmatpush1.msra.mxu0 %v572
    %1087 = vmatprep.subr.mxu0 %v608
    %1088 = vmatpush1.msra.mxu0 %v605
    %1089 = vmatprep.subr.mxu0 0.0
    %1090 = vmatpush1.msra.mxu0 0.0
    %1091 = vmatprep.subr.mxu0 0.0
    %1092 = vmatpush1.msra.mxu0 0.0
    %1093 = vmatprep.subr.mxu0 0.0
    %1094 = vmatpush1.msra.mxu0 0.0
    %1095 = vmatprep.subr.mxu0 0.0
    %1096 = vmatpush1.msra.mxu0 0.0
    %1097 = vmatprep.subr.mxu0 0.0
    %1098 = vmatpush1.msra.mxu0 0.0
    %1099 = vmatprep.subr.mxu0 0.0
    %1100 = vmatpush1.msra.mxu0 0.0
    %1101 = vmatprep.subr.mxu0 0.0
    %1102 = vmatpush1.msra.mxu0 0.0
    %1103 = vmatprep.subr.mxu0 0.0
    %1104 = vmatpush1.msra.mxu0 0.0
    %1105 = vmatprep.subr.mxu0 0.0
    %1106 = vmatpush1.msra.mxu0 0.0
    %1107 = vmatprep.subr.mxu0 0.0
    %1108 = vmatpush1.msra.mxu0 0.0
    %1109 = vmatprep.subr.mxu0 0.0
    %1110 = vmatpush1.msra.mxu0 0.0
    %1111 = vmatprep.subr.mxu0 0.0
    %1112 = vmatpush1.msra.mxu0 0.0
    %1113 = vmatprep.mubr.f32.mxu0 %v1045
    %1114 = vmatmul.mubr.f32.gmra.mrb[0].mxu0 %v1035
    %v1115 = vpop.f32.mrb[0].mxu0
    %v1116 = vadd.f32 0.0, %v1115
    %v1117 = vpop.f32.mrb[0].mxu0
    %v1118 = vadd.f32 0.0, %v1117
    %1119 = vmatprep.mubr.f32.mxu0 %v1047
    %1120 = vmatmul.mubr.f32.gmra.mrb[0].mxu0 %v1040
    %v1121 = vpop.f32.mrb[0].mxu0
    %v1122 = vadd.f32 0.0, %v1121
    %v1123 = vpop.f32.mrb[0].mxu0
    %v1124 = vadd.f32 0.0, %v1123
    %1125 = vdwg.mxu0
    %1126 = vmatprep.subr.mxu0 %v503
    %1127 = vmatpush1.msra.mxu0 %v502
    %1128 = vmatprep.subr.mxu0 %v507
    %1129 = vmatpush1.msra.mxu0 %v506
    %1130 = vmatprep.subr.mxu0 %v511
    %1131 = vmatpush1.msra.mxu0 %v510
    %1132 = vmatprep.subr.mxu0 %v515
    %1133 = vmatpush1.msra.mxu0 %v514
    %1134 = vmatprep.subr.mxu0 %v519
    %1135 = vmatpush1.msra.mxu0 %v518
    %1136 = vmatprep.subr.mxu0 %v523
    %1137 = vmatpush1.msra.mxu0 %v522
    %1138 = vmatprep.subr.mxu0 %v527
    %1139 = vmatpush1.msra.mxu0 %v526
    %1140 = vmatprep.subr.mxu0 %v531
    %1141 = vmatpush1.msra.mxu0 %v530
    %1142 = vmatprep.subr.mxu0 %v535
    %1143 = vmatpush1.msra.mxu0 %v534
    %1144 = vmatprep.subr.mxu0 %v539
    %1145 = vmatpush1.msra.mxu0 %v538
    %1146 = vmatprep.subr.mxu0 %v543
    %1147 = vmatpush1.msra.mxu0 %v542
    %1148 = vmatprep.subr.mxu0 %v547
    %1149 = vmatpush1.msra.mxu0 %v546
    %1150 = vmatprep.subr.mxu0 %v551
    %1151 = vmatpush1.msra.mxu0 %v550
    %1152 = vmatprep.subr.mxu0 %v555
    %1153 = vmatpush1.msra.mxu0 %v554
    %1154 = vmatprep.subr.mxu0 %v559
    %1155 = vmatpush1.msra.mxu0 %v558
    %1156 = vmatprep.subr.mxu0 %v563
    %1157 = vmatpush1.msra.mxu0 %v562
    %1158 = vmatprep.subr.mxu0 %v567
    %1159 = vmatpush1.msra.mxu0 %v566
    %1160 = vmatprep.subr.mxu0 %v571
    %1161 = vmatpush1.msra.mxu0 %v570
    %1162 = vmatprep.subr.mxu0 %v575
    %1163 = vmatpush1.msra.mxu0 %v574
    %1164 = vmatprep.subr.mxu0 %v614
    %1165 = vmatpush1.msra.mxu0 %v611
    %1166 = vmatprep.subr.mxu0 0.0
    %1167 = vmatpush1.msra.mxu0 0.0
    %1168 = vmatprep.subr.mxu0 0.0
    %1169 = vmatpush1.msra.mxu0 0.0
    %1170 = vmatprep.subr.mxu0 0.0
    %1171 = vmatpush1.msra.mxu0 0.0
    %1172 = vmatprep.subr.mxu0 0.0
    %1173 = vmatpush1.msra.mxu0 0.0
    %1174 = vmatprep.subr.mxu0 0.0
    %1175 = vmatpush1.msra.mxu0 0.0
    %1176 = vmatprep.subr.mxu0 0.0
    %1177 = vmatpush1.msra.mxu0 0.0
    %1178 = vmatprep.subr.mxu0 0.0
    %1179 = vmatpush1.msra.mxu0 0.0
    %1180 = vmatprep.subr.mxu0 0.0
    %1181 = vmatpush1.msra.mxu0 0.0
    %1182 = vmatprep.subr.mxu0 0.0
    %1183 = vmatpush1.msra.mxu0 0.0
    %1184 = vmatprep.subr.mxu0 0.0
    %1185 = vmatpush1.msra.mxu0 0.0
    %1186 = vmatprep.subr.mxu0 0.0
    %1187 = vmatpush1.msra.mxu0 0.0
    %1188 = vmatprep.subr.mxu0 0.0
    %1189 = vmatpush1.msra.mxu0 0.0
    %1190 = vmatprep.mubr.f32.mxu0 %v1045
    %1191 = vmatmul.mubr.f32.gmra.mrb[0].mxu0 %v1035
    %v1192 = vpop.f32.mrb[0].mxu0
    %v1193 = vadd.f32 0.0, %v1192
    %v1194 = vpop.f32.mrb[0].mxu0
    %v1195 = vadd.f32 0.0, %v1194
    %1196 = vmatprep.mubr.f32.mxu0 %v1047
    %1197 = vmatmul.mubr.f32.gmra.mrb[0].mxu0 %v1040
    %v1198 = vpop.f32.mrb[0].mxu0
    %v1199 = vadd.f32 0.0, %v1198
    %v1200 = vpop.f32.mrb[0].mxu0
    %v1201 = vadd.f32 0.0, %v1200
    %1202 = vdwg.mxu0
    %v1204 = vsel %vm362, %v1020, 0
    %v1206 = vsel %vm362, %v1022, 0
    %1208 = vmatprep.subr.mxu0 %v416
    %1209 = vmatpush1.msra.mxu0 %v415
    %1210 = vmatprep.subr.mxu0 %v420
    %1211 = vmatpush1.msra.mxu0 %v419
    %1212 = vmatprep.subr.mxu0 %v424
    %1213 = vmatpush1.msra.mxu0 %v423
    %1214 = vmatprep.subr.mxu0 %v428
    %1215 = vmatpush1.msra.mxu0 %v427
    %1216 = vmatprep.subr.mxu0 %v432
    %1217 = vmatpush1.msra.mxu0 %v431
    %1218 = vmatprep.subr.mxu0 %v436
    %1219 = vmatpush1.msra.mxu0 %v435
    %1220 = vmatprep.subr.mxu0 %v440
    %1221 = vmatpush1.msra.mxu0 %v439
    %1222 = vmatprep.subr.mxu0 %v444
    %1223 = vmatpush1.msra.mxu0 %v443
    %1224 = vmatprep.subr.mxu0 %v448
    %1225 = vmatpush1.msra.mxu0 %v447
    %1226 = vmatprep.subr.mxu0 %v452
    %1227 = vmatpush1.msra.mxu0 %v451
    %1228 = vmatprep.subr.mxu0 %v456
    %1229 = vmatpush1.msra.mxu0 %v455
    %1230 = vmatprep.subr.mxu0 %v460
    %1231 = vmatpush1.msra.mxu0 %v459
    %1232 = vmatprep.subr.mxu0 %v464
    %1233 = vmatpush1.msra.mxu0 %v463
    %1234 = vmatprep.subr.mxu0 %v468
    %1235 = vmatpush1.msra.mxu0 %v467
    %1236 = vmatprep.subr.mxu0 %v472
    %1237 = vmatpush1.msra.mxu0 %v471
    %1238 = vmatprep.subr.mxu0 %v476
    %1239 = vmatpush1.msra.mxu0 %v475
    %1240 = vmatprep.subr.mxu0 %v480
    %1241 = vmatpush1.msra.mxu0 %v479
    %1242 = vmatprep.subr.mxu0 %v484
    %1243 = vmatpush1.msra.mxu0 %v483
    %1244 = vmatprep.subr.mxu0 %v488
    %1245 = vmatpush1.msra.mxu0 %v487
    %1246 = vmatprep.subr.mxu0 %v779
    %1247 = vmatpush1.msra.mxu0 %v776
    %1248 = vmatprep.subr.mxu0 0.0
    %1249 = vmatpush1.msra.mxu0 0.0
    %1250 = vmatprep.subr.mxu0 0.0
    %1251 = vmatpush1.msra.mxu0 0.0
    %1252 = vmatprep.subr.mxu0 0.0
    %1253 = vmatpush1.msra.mxu0 0.0
    %1254 = vmatprep.subr.mxu0 0.0
    %1255 = vmatpush1.msra.mxu0 0.0
    %1256 = vmatprep.subr.mxu0 0.0
    %1257 = vmatpush1.msra.mxu0 0.0
    %1258 = vmatprep.subr.mxu0 0.0
    %1259 = vmatpush1.msra.mxu0 0.0
    %1260 = vmatprep.subr.mxu0 0.0
    %1261 = vmatpush1.msra.mxu0 0.0
    %1262 = vmatprep.subr.mxu0 0.0
    %1263 = vmatpush1.msra.mxu0 0.0
    %1264 = vmatprep.subr.mxu0 0.0
    %1265 = vmatpush1.msra.mxu0 0.0
    %1266 = vmatprep.subr.mxu0 0.0
    %1267 = vmatpush1.msra.mxu0 0.0
    %1268 = vmatprep.subr.mxu0 0.0
    %1269 = vmatpush1.msra.mxu0 0.0
    %1270 = vmatprep.subr.mxu0 0.0
    %1271 = vmatpush1.msra.mxu0 0.0
    %1272 = vmatprep.mubr.f32.mxu0 %v1204
    %1273 = vmatmul.mubr.f32.gmra.mrb[0].mxu0 %v1019
    %v1274 = vpop.f32.mrb[0].mxu0
    %v1275 = vadd.f32 %v1116, %v1274
    %v1276 = vpop.f32.mrb[0].mxu0
    %v1277 = vadd.f32 %v1118, %v1276
    %1278 = vmatprep.mubr.f32.mxu0 %v1206
    %1279 = vmatmul.mubr.f32.gmra.mrb[0].mxu0 %v1021
    %v1280 = vpop.f32.mrb[0].mxu0
    %v1281 = vadd.f32 %v1122, %v1280
    %v1282 = vpop.f32.mrb[0].mxu0
    %v1283 = vadd.f32 %v1124, %v1282
    %1284 = vdwg.mxu0
    %1285 = vmatprep.subr.mxu0 %v418
    %1286 = vmatpush1.msra.mxu0 %v417
    %1287 = vmatprep.subr.mxu0 %v422
    %1288 = vmatpush1.msra.mxu0 %v421
    %1289 = vmatprep.subr.mxu0 %v426
    %1290 = vmatpush1.msra.mxu0 %v425
    %1291 = vmatprep.subr.mxu0 %v430
    %1292 = vmatpush1.msra.mxu0 %v429
    %1293 = vmatprep.subr.mxu0 %v434
    %1294 = vmatpush1.msra.mxu0 %v433
    %1295 = vmatprep.subr.mxu0 %v438
    %1296 = vmatpush1.msra.mxu0 %v437
    %1297 = vmatprep.subr.mxu0 %v442
    %1298 = vmatpush1.msra.mxu0 %v441
    %1299 = vmatprep.subr.mxu0 %v446
    %1300 = vmatpush1.msra.mxu0 %v445
    %1301 = vmatprep.subr.mxu0 %v450
    %1302 = vmatpush1.msra.mxu0 %v449
    %1303 = vmatprep.subr.mxu0 %v454
    %1304 = vmatpush1.msra.mxu0 %v453
    %1305 = vmatprep.subr.mxu0 %v458
    %1306 = vmatpush1.msra.mxu0 %v457
    %1307 = vmatprep.subr.mxu0 %v462
    %1308 = vmatpush1.msra.mxu0 %v461
    %1309 = vmatprep.subr.mxu0 %v466
    %1310 = vmatpush1.msra.mxu0 %v465
    %1311 = vmatprep.subr.mxu0 %v470
    %1312 = vmatpush1.msra.mxu0 %v469
    %1313 = vmatprep.subr.mxu0 %v474
    %1314 = vmatpush1.msra.mxu0 %v473
    %1315 = vmatprep.subr.mxu0 %v478
    %1316 = vmatpush1.msra.mxu0 %v477
    %1317 = vmatprep.subr.mxu0 %v482
    %1318 = vmatpush1.msra.mxu0 %v481
    %1319 = vmatprep.subr.mxu0 %v486
    %1320 = vmatpush1.msra.mxu0 %v485
    %1321 = vmatprep.subr.mxu0 %v490
    %1322 = vmatpush1.msra.mxu0 %v489
    %1323 = vmatprep.subr.mxu0 %v785
    %1324 = vmatpush1.msra.mxu0 %v782
    %1325 = vmatprep.subr.mxu0 0.0
    %1326 = vmatpush1.msra.mxu0 0.0
    %1327 = vmatprep.subr.mxu0 0.0
    %1328 = vmatpush1.msra.mxu0 0.0
    %1329 = vmatprep.subr.mxu0 0.0
    %1330 = vmatpush1.msra.mxu0 0.0
    %1331 = vmatprep.subr.mxu0 0.0
    %1332 = vmatpush1.msra.mxu0 0.0
    %1333 = vmatprep.subr.mxu0 0.0
    %1334 = vmatpush1.msra.mxu0 0.0
    %1335 = vmatprep.subr.mxu0 0.0
    %1336 = vmatpush1.msra.mxu0 0.0
    %1337 = vmatprep.subr.mxu0 0.0
    %1338 = vmatpush1.msra.mxu0 0.0
    %1339 = vmatprep.subr.mxu0 0.0
    %1340 = vmatpush1.msra.mxu0 0.0
    %1341 = vmatprep.subr.mxu0 0.0
    %1342 = vmatpush1.msra.mxu0 0.0
    %1343 = vmatprep.subr.mxu0 0.0
    %1344 = vmatpush1.msra.mxu0 0.0
    %1345 = vmatprep.subr.mxu0 0.0
    %1346 = vmatpush1.msra.mxu0 0.0
    %1347 = vmatprep.subr.mxu0 0.0
    %1348 = vmatpush1.msra.mxu0 0.0
    %1349 = vmatprep.mubr.f32.mxu0 %v1204
    %1350 = vmatmul.mubr.f32.gmra.mrb[0].mxu0 %v1019
    %v1351 = vpop.f32.mrb[0].mxu0
    %v1352 = vadd.f32 %v1193, %v1351
    %v1353 = vpop.f32.mrb[0].mxu0
    %v1354 = vadd.f32 %v1195, %v1353
    %1355 = vmatprep.mubr.f32.mxu0 %v1206
    %1356 = vmatmul.mubr.f32.gmra.mrb[0].mxu0 %v1021
    %v1357 = vpop.f32.mrb[0].mxu0
    %v1358 = vadd.f32 %v1199, %v1357
    %v1359 = vpop.f32.mrb[0].mxu0
    %v1360 = vadd.f32 %v1201, %v1359
    %1361 = vdwg.mxu0
    %v1362 = vadd.f32 %v1275, %v946
    %v1363 = vadd.f32 %v1277, %v950
    %v1364 = vadd.f32 %v1352, %v954
    %v1365 = vadd.f32 %v1354, %v958
    %v1366 = vadd.f32 %v1281, %v946
    %v1367 = vadd.f32 %v1283, %v950
    %v1368 = vadd.f32 %v1358, %v954
    %v1369 = vadd.f32 %v1360, %v958
    %vm1370 = vcmp.gt.f32.partialorder %v1362, 0.0
    %vm1371 = vcmp.gt.f32.partialorder %v1363, 0.0
    %vm1372 = vcmp.gt.f32.partialorder %v1364, 0.0
    %vm1373 = vcmp.gt.f32.partialorder %v1365, 0.0
    %vm1374 = vcmp.gt.f32.partialorder %v1366, 0.0
    %vm1375 = vcmp.gt.f32.partialorder %v1367, 0.0
    %vm1376 = vcmp.gt.f32.partialorder %v1368, 0.0
    %vm1377 = vcmp.gt.f32.partialorder %v1369, 0.0
    %v1378 = vmin.f32 %v1362, 0.0
    %v1379 = vmin.f32 %v1363, 0.0
    %v1380 = vmin.f32 %v1364, 0.0
    %v1381 = vmin.f32 %v1365, 0.0
    %v1382 = vmin.f32 %v1366, 0.0
    %v1383 = vmin.f32 %v1367, 0.0
    %v1384 = vmin.f32 %v1368, 0.0
    %v1385 = vmin.f32 %v1369, 0.0
    %v1386 = vmul.f32 %v1378, 1.442695
    %v1387 = vpow.pop %v1386
    %v1388 = vmul.f32 %v1379, 1.442695
    %v1389 = vpow.pop %v1388
    %v1390 = vmul.f32 %v1380, 1.442695
    %v1391 = vpow.pop %v1390
    %v1392 = vmul.f32 %v1381, 1.442695
    %v1393 = vpow.pop %v1392
    %v1394 = vmul.f32 %v1382, 1.442695
    %v1395 = vpow.pop %v1394
    %v1396 = vmul.f32 %v1383, 1.442695
    %v1397 = vpow.pop %v1396
    %v1398 = vmul.f32 %v1384, 1.442695
    %v1399 = vpow.pop %v1398
    %v1400 = vmul.f32 %v1385, 1.442695
    %v1401 = vpow.pop %v1400
    %v1402 = vsub.f32 %v1387, 1.0
    %v1403 = vsub.f32 %v1389, 1.0
    %v1404 = vsub.f32 %v1391, 1.0
    %v1405 = vsub.f32 %v1393, 1.0
    %v1406 = vsub.f32 %v1395, 1.0
    %v1407 = vsub.f32 %v1397, 1.0
    %v1408 = vsub.f32 %v1399, 1.0
    %v1409 = vsub.f32 %v1401, 1.0
    %v1410 = vsel %vm1370, %v1362, %v1402
    %v1411 = vsel %vm1371, %v1363, %v1403
    %v1412 = vsel %vm1372, %v1364, %v1404
    %v1413 = vsel %vm1373, %v1365, %v1405
    %v1414 = vsel %vm1374, %v1366, %v1406
    %v1415 = vsel %vm1375, %v1367, %v1407
    %v1416 = vsel %vm1376, %v1368, %v1408
    %v1417 = vsel %vm1377, %v1369, %v1409
    %1418 = vst [vmem:[#allocation3] sm:$0xff] 0.0
    %1419 = vst [vmem:[#allocation3 + $0x8] sm:$0xff] 0.0
    %1420 = vst [vmem:[#allocation3 + $0x10] sm:$0xff] 0.0
    %1421 = vst [vmem:[#allocation3 + $0x18] sm:$0xff] 0.0
    %1422 = vst [vmem:[#allocation3 + $0x20] sm:$0xff] 0.0
    %1423 = vst [vmem:[#allocation3 + $0x28] sm:$0xff] 0.0
    %1424 = vst [vmem:[#allocation3 + $0x30] sm:$0xff] 0.0
    %1425 = vst [vmem:[#allocation3 + $0x38] sm:$0xff] 0.0
    %1426 = vst [vmem:[#allocation3 + $0x40] sm:$0xff] 0.0
    %1427 = vst [vmem:[#allocation3 + $0x48] sm:$0xff] 0.0
    %1428 = vst [vmem:[#allocation3 + $0x50] sm:$0xff] 0.0
    %1429 = vst [vmem:[#allocation3 + $0x58] sm:$0xff] 0.0
    %1430 = vst [vmem:[#allocation3 + $0x60] sm:$0xff] 0.0
    %1431 = vst [vmem:[#allocation3 + $0x68] sm:$0xff] 0.0
    %1432 = vst [vmem:[#allocation3 + $0x70] sm:$0xff] 0.0
    %1433 = vst [vmem:[#allocation3 + $0x78] sm:$0xff] 0.0
    %1434 = vst [vmem:[#allocation3 + $0x80] sm:$0xff] 0.0
    %1435 = vst [vmem:[#allocation3 + $0x88] sm:$0xff] 0.0
    %1436 = vst [vmem:[#allocation3 + $0x90] sm:$0xff] 0.0
    %1437 = vst [vmem:[#allocation3 + $0x98] sm:$0xff] 0.0
    %1438 = vst [vmem:[#allocation3 + $0xa0] sm:$0xff] 0.0
    %1439 = vst [vmem:[#allocation3 + $0xa8] sm:$0xff] 0.0
    %1440 = vst [vmem:[#allocation3 + $0xb0] sm:$0xff] 0.0
    %1441 = vst [vmem:[#allocation3 + $0xb8] sm:$0xff] 0.0
    %1442 = vst [vmem:[#allocation3 + $0xc0] sm:$0xff] 0.0
    %1443 = vst [vmem:[#allocation3 + $0xc8] sm:$0xff] 0.0
    %1444 = vst [vmem:[#allocation3 + $0xd0] sm:$0xff] 0.0
    %1445 = vst [vmem:[#allocation3 + $0xd8] sm:$0xff] 0.0
    %1446 = vst [vmem:[#allocation3 + $0xe0] sm:$0xff] 0.0
    %1447 = vst [vmem:[#allocation3 + $0xe8] sm:$0xff] 0.0
    %1448 = vst [vmem:[#allocation3 + $0xf0] sm:$0xff] 0.0
    %1449 = vst [vmem:[#allocation3 + $0xf8] sm:$0xff] 0.0
    %vm1450 = vcmask 998400
    %v1451 = vsel %vm1450, %v1011, 0.0
    %1452 = vadd.xlane.f32.xlu0 %v1451
    %v1453 = vpop.xlane.xlu0 %1452
    %v1454 = vsel %vm1450, %v1015, 0.0
    %1455 = vadd.xlane.f32.xlu0 %v1454
    %v1456 = vpop.xlane.xlu0 %1455
    %v1457 = vadd.f32 %v1453, %v1456
    %v1458 = vrot.slane %v1457, 4
    %v1459 = vadd.f32 %v1457, %v1458
    %v1460 = vrot.slane %v1459, 2
    %v1461 = vadd.f32 %v1459, %v1460
    %v1462 = vrot.slane %v1461, 1
    %v1463 = vadd.f32 %v1461, %v1462
    %v1464 = vadd.f32 %v1463, 0.0
    %v1465 = vsel %vm1450, %v1410, 0.0
    %1466 = vadd.xlane.f32.xlu0 %v1465
    %v1467 = vpop.xlane.xlu0 %1466
    %v1468 = vsel %vm1450, %v1414, 0.0
    %1469 = vadd.xlane.f32.xlu0 %v1468
    %v1470 = vpop.xlane.xlu0 %1469
    %v1471 = vadd.f32 %v1467, %v1470
    %v1472 = vrot.slane %v1471, 4
    %v1473 = vadd.f32 %v1471, %v1472
    %v1474 = vrot.slane %v1473, 2
    %v1475 = vadd.f32 %v1473, %v1474
    %v1476 = vrot.slane %v1475, 1
    %v1477 = vadd.f32 %v1475, %v1476
    %v1478 = vadd.f32 %v1464, %v1477
    %v1479 = vmul.f32 %v1011, %v1011
    %v1480 = vmul.f32 %v1015, %v1015
    %v1481 = vsel %vm1450, %v1479, 0.0
    %1482 = vadd.xlane.f32.xlu0 %v1481
    %v1483 = vpop.xlane.xlu0 %1482
    %v1484 = vsel %vm1450, %v1480, 0.0
    %1485 = vadd.xlane.f32.xlu0 %v1484
    %v1486 = vpop.xlane.xlu0 %1485
    %v1487 = vadd.f32 %v1483, %v1486
    %v1488 = vrot.slane %v1487, 4
    %v1489 = vadd.f32 %v1487, %v1488
    %v1490 = vrot.slane %v1489, 2
    %v1491 = vadd.f32 %v1489, %v1490
    %v1492 = vrot.slane %v1491, 1
    %v1493 = vadd.f32 %v1491, %v1492
    %v1494 = vadd.f32 %v1493, 0.0
    %v1495 = vmul.f32 %v1410, %v1410
    %v1496 = vmul.f32 %v1414, %v1414
    %v1497 = vsel %vm1450, %v1495, 0.0
    %1498 = vadd.xlane.f32.xlu0 %v1497
    %v1499 = vpop.xlane.xlu0 %1498
    %v1500 = vsel %vm1450, %v1496, 0.0
    %1501 = vadd.xlane.f32.xlu0 %v1500
    %v1502 = vpop.xlane.xlu0 %1501
    %v1503 = vadd.f32 %v1499, %v1502
    %v1504 = vrot.slane %v1503, 4
    %v1505 = vadd.f32 %v1503, %v1504
    %v1506 = vrot.slane %v1505, 2
    %v1507 = vadd.f32 %v1505, %v1506
    %v1508 = vrot.slane %v1507, 1
    %v1509 = vadd.f32 %v1507, %v1508
    %v1510 = vadd.f32 %v1494, %v1509
    %v1511 = vmul.f32 %v1478, 0.00025614753
    %v1512 = vmul.f32 %v1510, 0.00025614753
    %v1513 = vmul.f32 %v1511, %v1511
    %v1514 = vsub.f32 %v1512, %v1513
    %v1515 = vmax.f32 %v1514, 0.0
    %v1516 = vrsqrt.pop %v1515
    %s1517 = sld [smem:[#allocation16]]
    %v1518 = vstv %s1517
    %v1519 = vmul.f32 %v1516, %v1518
    %s1520 = sld [smem:[#allocation16 + $0x4]]
    %v1521 = vmul.f32 %v1511, %v1519
    %v1522 = vstv %s1520
    %v1523 = vsub.f32 %v1522, %v1521
    %v1524 = vmul.f32 %v1011, %v1519
    %v1525 = vmul.f32 %v1015, %v1519
    %v1526 = vadd.f32 %v1524, %v1523
    %v1527 = vadd.f32 %v1525, %v1523
    %1530 = vrot.lane.b32.xlu0 %v1526, 127
    %v1531 = vpop.permute.xlu0 %1530
    %1532 = vrot.lane.b32.xlu0 %v1527, 127
    %v1533 = vpop.permute.xlu0 %1532
    %v1536 = vmax.f32 %v1526, %v1531
    %v1537 = vmax.f32 %v1527, %v1533
    %v1538 = vld [vmem:[%s7] sm:$0xff]
    %v1539 = vld [vmem:[%s7 + $0x8] sm:$0xff]
    %v1540 = vld [vmem:[%s7 + $0x10] sm:$0xff]
    %v1541 = vld [vmem:[%s7 + $0x18] sm:$0xff]
    %v1542 = vld [vmem:[%s7 + $0x20] sm:$0xff]
    %v1543 = vld [vmem:[%s7 + $0x28] sm:$0xff]
    %v1544 = vld [vmem:[%s7 + $0x30] sm:$0xff]
    %v1545 = vld [vmem:[%s7 + $0x38] sm:$0xff]
    %v1546 = vld [vmem:[%s7 + $0x40] sm:$0xff]
    %v1547 = vld [vmem:[%s7 + $0x48] sm:$0xff]
    %v1548 = vld [vmem:[%s7 + $0x50] sm:$0xff]
    %v1549 = vld [vmem:[%s7 + $0x58] sm:$0xff]
    %v1550 = vld [vmem:[%s7 + $0x60] sm:$0xff]
    %v1551 = vld [vmem:[%s7 + $0x68] sm:$0xff]
    %v1552 = vld [vmem:[%s7 + $0x70] sm:$0xff]
    %v1553 = vld [vmem:[%s7 + $0x78] sm:$0x1]
    %vm1554 = vcmask 990208
    %v1556 = vsel %vm1554, %v1536, 0
    %v1559 = vsel %vm1554, %v1537, 0
    %v1562 = vsel %vm603, %v1553, 0
    %1564 = vmatprep.subr.mxu0 0.0
    %1565 = vmatpush1.msra.mxu0 %v1538
    %1566 = vmatprep.subr.mxu0 0.0
    %1567 = vmatpush1.msra.mxu0 %v1539
    %1568 = vmatprep.subr.mxu0 0.0
    %1569 = vmatpush1.msra.mxu0 %v1540
    %1570 = vmatprep.subr.mxu0 0.0
    %1571 = vmatpush1.msra.mxu0 %v1541
    %1572 = vmatprep.subr.mxu0 0.0
    %1573 = vmatpush1.msra.mxu0 %v1542
    %1574 = vmatprep.subr.mxu0 0.0
    %1575 = vmatpush1.msra.mxu0 %v1543
    %1576 = vmatprep.subr.mxu0 0.0
    %1577 = vmatpush1.msra.mxu0 %v1544
    %1578 = vmatprep.subr.mxu0 0.0
    %1579 = vmatpush1.msra.mxu0 %v1545
    %1580 = vmatprep.subr.mxu0 0.0
    %1581 = vmatpush1.msra.mxu0 %v1546
    %1582 = vmatprep.subr.mxu0 0.0
    %1583 = vmatpush1.msra.mxu0 %v1547
    %1584 = vmatprep.subr.mxu0 0.0
    %1585 = vmatpush1.msra.mxu0 %v1548
    %1586 = vmatprep.subr.mxu0 0.0
    %1587 = vmatpush1.msra.mxu0 %v1549
    %1588 = vmatprep.subr.mxu0 0.0
    %1589 = vmatpush1.msra.mxu0 %v1550
    %1590 = vmatprep.subr.mxu0 0.0
    %1591 = vmatpush1.msra.mxu0 %v1551
    %1592 = vmatprep.subr.mxu0 0.0
    %1593 = vmatpush1.msra.mxu0 %v1552
    %1594 = vmatprep.subr.mxu0 0.0
    %1595 = vmatpush1.msra.mxu0 %v1562
    %1596 = vmatprep.subr.mxu0 0.0
    %1597 = vmatpush1.msra.mxu0 0.0
    %1598 = vmatprep.subr.mxu0 0.0
    %1599 = vmatpush1.msra.mxu0 0.0
    %1600 = vmatprep.subr.mxu0 0.0
    %1601 = vmatpush1.msra.mxu0 0.0
    %1602 = vmatprep.subr.mxu0 0.0
    %1603 = vmatpush1.msra.mxu0 0.0
    %1604 = vmatprep.subr.mxu0 0.0
    %1605 = vmatpush1.msra.mxu0 0.0
    %1606 = vmatprep.subr.mxu0 0.0
    %1607 = vmatpush1.msra.mxu0 0.0
    %1608 = vmatprep.subr.mxu0 0.0
    %1609 = vmatpush1.msra.mxu0 0.0
    %1610 = vmatprep.subr.mxu0 0.0
    %1611 = vmatpush1.msra.mxu0 0.0
    %1612 = vmatprep.subr.mxu0 0.0
    %1613 = vmatpush1.msra.mxu0 0.0
    %1614 = vmatprep.subr.mxu0 0.0
    %1615 = vmatpush1.msra.mxu0 0.0
    %1616 = vmatprep.subr.mxu0 0.0
    %1617 = vmatpush1.msra.mxu0 0.0
    %1618 = vmatprep.subr.mxu0 0.0
    %1619 = vmatpush1.msra.mxu0 0.0
    %1620 = vmatprep.subr.mxu0 0.0
    %1621 = vmatpush1.msra.mxu0 0.0
    %1622 = vmatprep.subr.mxu0 0.0
    %1623 = vmatpush1.msra.mxu0 0.0
    %1624 = vmatprep.subr.mxu0 0.0
    %1625 = vmatpush1.msra.mxu0 0.0
    %1626 = vmatprep.subr.mxu0 0.0
    %1627 = vmatpush1.msra.mxu0 0.0
    %1628 = vmatprep.mubr.f32.mxu0 0.0
    %1629 = vmatmul.mubr.f32.gmra.mrb[0].mxu0 %v1556
    %v1630 = vpop.f32.mrb[0].mxu0
    %v1631 = vadd.f32 0.0, %v1630
    %v1632 = vpop.f32.mrb[0].mxu0
    %1633 = vmatprep.mubr.f32.mxu0 0.0
    %1634 = vmatmul.mubr.f32.gmra.mrb[0].mxu0 %v1559
    %v1635 = vpop.f32.mrb[0].mxu0
    %v1636 = vadd.f32 0.0, %v1635
    %v1637 = vpop.f32.mrb[0].mxu0
    %1638 = vdwg.mxu0
    %v1641 = vrot.slane %v1631, 1
    %v1642 = vrot.slane %v1636, 1
    %v1643 = vsel %vm586, %v1641, %v1642
    %v1646 = vmax.f32 %v1631, %v1643
    %v1647 = vmax.f32 %v1636, %v1642
    %v1648 = vld [vmem:[#allocation9] sm:$0xf]
    %vm1649 = vcmask 121856
    %v1651 = vsel %vm1649, %v1648, 0
    %v1654 = vsel %vm586, %v1647, 0
    %1656 = vmatprep.subr.mxu0 0.0
    %1657 = vmatpush1.msra.mxu0 %v1646
    %1658 = vmatprep.subr.mxu0 0.0
    %1659 = vmatpush1.msra.mxu0 %v1654
    %1660 = vmatprep.subr.mxu0 0.0
    %1661 = vmatpush1.msra.mxu0 0.0
    %1662 = vmatprep.subr.mxu0 0.0
    %1663 = vmatpush1.msra.mxu0 0.0
    %1664 = vmatprep.subr.mxu0 0.0
    %1665 = vmatpush1.msra.mxu0 0.0
    %1666 = vmatprep.subr.mxu0 0.0
    %1667 = vmatpush1.msra.mxu0 0.0
    %1668 = vmatprep.subr.mxu0 0.0
    %1669 = vmatpush1.msra.mxu0 0.0
    %1670 = vmatprep.subr.mxu0 0.0
    %1671 = vmatpush1.msra.mxu0 0.0
    %1672 = vmatprep.subr.mxu0 0.0
    %1673 = vmatpush1.msra.mxu0 0.0
    %1674 = vmatprep.subr.mxu0 0.0
    %1675 = vmatpush1.msra.mxu0 0.0
    %1676 = vmatprep.subr.mxu0 0.0
    %1677 = vmatpush1.msra.mxu0 0.0
    %1678 = vmatprep.subr.mxu0 0.0
    %1679 = vmatpush1.msra.mxu0 0.0
    %1680 = vmatprep.subr.mxu0 0.0
    %1681 = vmatpush1.msra.mxu0 0.0
    %1682 = vmatprep.subr.mxu0 0.0
    %1683 = vmatpush1.msra.mxu0 0.0
    %1684 = vmatprep.subr.mxu0 0.0
    %1685 = vmatpush1.msra.mxu0 0.0
    %1686 = vmatprep.subr.mxu0 0.0
    %1687 = vmatpush1.msra.mxu0 0.0
    %1688 = vmatprep.subr.mxu0 0.0
    %1689 = vmatpush1.msra.mxu0 0.0
    %1690 = vmatprep.subr.mxu0 0.0
    %1691 = vmatpush1.msra.mxu0 0.0
    %1692 = vmatprep.subr.mxu0 0.0
    %1693 = vmatpush1.msra.mxu0 0.0
    %1694 = vmatprep.subr.mxu0 0.0
    %1695 = vmatpush1.msra.mxu0 0.0
    %1696 = vmatprep.subr.mxu0 0.0
    %1697 = vmatpush1.msra.mxu0 0.0
    %1698 = vmatprep.subr.mxu0 0.0
    %1699 = vmatpush1.msra.mxu0 0.0
    %1700 = vmatprep.subr.mxu0 0.0
    %1701 = vmatpush1.msra.mxu0 0.0
    %1702 = vmatprep.subr.mxu0 0.0
    %1703 = vmatpush1.msra.mxu0 0.0
    %1704 = vmatprep.subr.mxu0 0.0
    %1705 = vmatpush1.msra.mxu0 0.0
    %1706 = vmatprep.subr.mxu0 0.0
    %1707 = vmatpush1.msra.mxu0 0.0
    %1708 = vmatprep.subr.mxu0 0.0
    %1709 = vmatpush1.msra.mxu0 0.0
    %1710 = vmatprep.subr.mxu0 0.0
    %1711 = vmatpush1.msra.mxu0 0.0
    %1712 = vmatprep.subr.mxu0 0.0
    %1713 = vmatpush1.msra.mxu0 0.0
    %1714 = vmatprep.subr.mxu0 0.0
    %1715 = vmatpush1.msra.mxu0 0.0
    %1716 = vmatprep.subr.mxu0 0.0
    %1717 = vmatpush1.msra.mxu0 0.0
    %1718 = vmatprep.subr.mxu0 0.0
    %1719 = vmatpush1.msra.mxu0 0.0
    %1720 = vmatprep.mubr.f32.mxu0 0.0
    %1721 = vmatmul.mubr.f32.gmra.mrb[0].mxu0 %v1651
    %v1722 = vpop.f32.mrb[0].mxu0
    %v1723 = vadd.f32 0.0, %v1722
    %v1724 = vpop.f32.mrb[0].mxu0
    %1725 = vdwg.mxu0
    %vm1726 = vcmask 245760
    %1727 = vst.msk [vmem:[#allocation3 + $0xb] sm:$0x1] %vm1726, %v1723
    %v1729 = vrot.slane %v1723, 6
    %vm1731 = vcmask 248834
    %1732 = vst.msk [vmem:[#allocation3 + $0x10] sm:$0xc] %vm1731, %v1729
    %v1733 = vrot.slane %v1723, 7
    %vm1735 = vcmask 248833
    %1736 = vst.msk [vmem:[#allocation3 + $0x18] sm:$0xe] %vm1735, %v1733
    %vm1737 = vcmask 248832
    %1738 = vst.msk [vmem:[#allocation3 + $0x20] sm:$0xf] %vm1737, %v1723
    %v1739 = vrot.slane %v1723, 1
    %vm1741 = vcmask 247808
    %1742 = vst.msk [vmem:[#allocation3 + $0x28] sm:$0x7] %vm1741, %v1739
    %v1743 = vrot.slane %v1723, 2
    %vm1745 = vcmask 246784
    %1746 = vst.msk [vmem:[#allocation3 + $0x30] sm:$0x3] %vm1745, %v1743
    %v1747 = vrot.slane %v1723, 3
    %1749 = vst.msk [vmem:[#allocation3 + $0x38] sm:$0x1] %vm1726, %v1747
    %v1750 = vmul.f32 %v1410, %v1519
    %v1751 = vmul.f32 %v1414, %v1519
    %v1752 = vadd.f32 %v1750, %v1523
    %v1753 = vadd.f32 %v1751, %v1523
    %1756 = vrot.lane.b32.xlu0 %v1752, 127
    %v1757 = vpop.permute.xlu0 %1756
    %1758 = vrot.lane.b32.xlu0 %v1753, 127
    %v1759 = vpop.permute.xlu0 %1758
    %v1762 = vmax.f32 %v1752, %v1757
    %v1763 = vmax.f32 %v1753, %v1759
    %v1764 = vld [vmem:[%s7] sm:$0xff]
    %v1765 = vld [vmem:[%s7 + $0x8] sm:$0xff]
    %v1766 = vld [vmem:[%s7 + $0x10] sm:$0xff]
    %v1767 = vld [vmem:[%s7 + $0x18] sm:$0xff]
    %v1768 = vld [vmem:[%s7 + $0x20] sm:$0xff]
    %v1769 = vld [vmem:[%s7 + $0x28] sm:$0xff]
    %v1770 = vld [vmem:[%s7 + $0x30] sm:$0xff]
    %v1771 = vld [vmem:[%s7 + $0x38] sm:$0xff]
    %v1772 = vld [vmem:[%s7 + $0x40] sm:$0xff]
    %v1773 = vld [vmem:[%s7 + $0x48] sm:$0xff]
    %v1774 = vld [vmem:[%s7 + $0x50] sm:$0xff]
    %v1775 = vld [vmem:[%s7 + $0x58] sm:$0xff]
    %v1776 = vld [vmem:[%s7 + $0x60] sm:$0xff]
    %v1777 = vld [vmem:[%s7 + $0x68] sm:$0xff]
    %v1778 = vld [vmem:[%s7 + $0x70] sm:$0xff]
    %v1779 = vld [vmem:[%s7 + $0x78] sm:$0x1]
    %v1781 = vsel %vm1554, %v1762, 0
    %v1784 = vsel %vm1554, %v1763, 0
    %v1787 = vsel %vm603, %v1779, 0
    %1789 = vmatprep.subr.mxu0 0.0
    %1790 = vmatpush1.msra.mxu0 %v1764
    %1791 = vmatprep.subr.mxu0 0.0
    %1792 = vmatpush1.msra.mxu0 %v1765
    %1793 = vmatprep.subr.mxu0 0.0
    %1794 = vmatpush1.msra.mxu0 %v1766
    %1795 = vmatprep.subr.mxu0 0.0
    %1796 = vmatpush1.msra.mxu0 %v1767
    %1797 = vmatprep.subr.mxu0 0.0
    %1798 = vmatpush1.msra.mxu0 %v1768
    %1799 = vmatprep.subr.mxu0 0.0
    %1800 = vmatpush1.msra.mxu0 %v1769
    %1801 = vmatprep.subr.mxu0 0.0
    %1802 = vmatpush1.msra.mxu0 %v1770
    %1803 = vmatprep.subr.mxu0 0.0
    %1804 = vmatpush1.msra.mxu0 %v1771
    %1805 = vmatprep.subr.mxu0 0.0
    %1806 = vmatpush1.msra.mxu0 %v1772
    %1807 = vmatprep.subr.mxu0 0.0
    %1808 = vmatpush1.msra.mxu0 %v1773
    %1809 = vmatprep.subr.mxu0 0.0
    %1810 = vmatpush1.msra.mxu0 %v1774
    %1811 = vmatprep.subr.mxu0 0.0
    %1812 = vmatpush1.msra.mxu0 %v1775
    %1813 = vmatprep.subr.mxu0 0.0
    %1814 = vmatpush1.msra.mxu0 %v1776
    %1815 = vmatprep.subr.mxu0 0.0
    %1816 = vmatpush1.msra.mxu0 %v1777
    %1817 = vmatprep.subr.mxu0 0.0
    %1818 = vmatpush1.msra.mxu0 %v1778
    %1819 = vmatprep.subr.mxu0 0.0
    %1820 = vmatpush1.msra.mxu0 %v1787
    %1821 = vmatprep.subr.mxu0 0.0
    %1822 = vmatpush1.msra.mxu0 0.0
    %1823 = vmatprep.subr.mxu0 0.0
    %1824 = vmatpush1.msra.mxu0 0.0
    %1825 = vmatprep.subr.mxu0 0.0
    %1826 = vmatpush1.msra.mxu0 0.0
    %1827 = vmatprep.subr.mxu0 0.0
    %1828 = vmatpush1.msra.mxu0 0.0
    %1829 = vmatprep.subr.mxu0 0.0
    %1830 = vmatpush1.msra.mxu0 0.0
    %1831 = vmatprep.subr.mxu0 0.0
    %1832 = vmatpush1.msra.mxu0 0.0
    %1833 = vmatprep.subr.mxu0 0.0
    %1834 = vmatpush1.msra.mxu0 0.0
    %1835 = vmatprep.subr.mxu0 0.0
    %1836 = vmatpush1.msra.mxu0 0.0
    %1837 = vmatprep.subr.mxu0 0.0
    %1838 = vmatpush1.msra.mxu0 0.0
    %1839 = vmatprep.subr.mxu0 0.0
    %1840 = vmatpush1.msra.mxu0 0.0
    %1841 = vmatprep.subr.mxu0 0.0
    %1842 = vmatpush1.msra.mxu0 0.0
    %1843 = vmatprep.subr.mxu0 0.0
    %1844 = vmatpush1.msra.mxu0 0.0
    %1845 = vmatprep.subr.mxu0 0.0
    %1846 = vmatpush1.msra.mxu0 0.0
    %1847 = vmatprep.subr.mxu0 0.0
    %1848 = vmatpush1.msra.mxu0 0.0
    %1849 = vmatprep.subr.mxu0 0.0
    %1850 = vmatpush1.msra.mxu0 0.0
    %1851 = vmatprep.subr.mxu0 0.0
    %1852 = vmatpush1.msra.mxu0 0.0
    %1853 = vmatprep.mubr.f32.mxu0 0.0
    %1854 = vmatmul.mubr.f32.gmra.mrb[0].mxu0 %v1781
    %v1855 = vpop.f32.mrb[0].mxu0
    %v1856 = vadd.f32 0.0, %v1855
    %v1857 = vpop.f32.mrb[0].mxu0
    %1858 = vmatprep.mubr.f32.mxu0 0.0
    %1859 = vmatmul.mubr.f32.gmra.mrb[0].mxu0 %v1784
    %v1860 = vpop.f32.mrb[0].mxu0
    %v1861 = vadd.f32 0.0, %v1860
    %v1862 = vpop.f32.mrb[0].mxu0
    %1863 = vdwg.mxu0
    %v1866 = vrot.slane %v1856, 1
    %v1867 = vrot.slane %v1861, 1
    %v1868 = vsel %vm586, %v1866, %v1867
    %v1871 = vmax.f32 %v1856, %v1868
    %v1872 = vmax.f32 %v1861, %v1867
    %v1873 = vld [vmem:[#allocation9] sm:$0xf]
    %v1875 = vsel %vm1649, %v1873, 0
    %v1878 = vsel %vm586, %v1872, 0
    %1880 = vmatprep.subr.mxu0 0.0
    %1881 = vmatpush1.msra.mxu0 %v1871
    %1882 = vmatprep.subr.mxu0 0.0
    %1883 = vmatpush1.msra.mxu0 %v1878
    %1884 = vmatprep.subr.mxu0 0.0
    %1885 = vmatpush1.msra.mxu0 0.0
    %1886 = vmatprep.subr.mxu0 0.0
    %1887 = vmatpush1.msra.mxu0 0.0
    %1888 = vmatprep.subr.mxu0 0.0
    %1889 = vmatpush1.msra.mxu0 0.0
    %1890 = vmatprep.subr.mxu0 0.0
    %1891 = vmatpush1.msra.mxu0 0.0
    %1892 = vmatprep.subr.mxu0 0.0
    %1893 = vmatpush1.msra.mxu0 0.0
    %1894 = vmatprep.subr.mxu0 0.0
    %1895 = vmatpush1.msra.mxu0 0.0
    %1896 = vmatprep.subr.mxu0 0.0
    %1897 = vmatpush1.msra.mxu0 0.0
    %1898 = vmatprep.subr.mxu0 0.0
    %1899 = vmatpush1.msra.mxu0 0.0
    %1900 = vmatprep.subr.mxu0 0.0
    %1901 = vmatpush1.msra.mxu0 0.0
    %1902 = vmatprep.subr.mxu0 0.0
    %1903 = vmatpush1.msra.mxu0 0.0
    %1904 = vmatprep.subr.mxu0 0.0
    %1905 = vmatpush1.msra.mxu0 0.0
    %1906 = vmatprep.subr.mxu0 0.0
    %1907 = vmatpush1.msra.mxu0 0.0
    %1908 = vmatprep.subr.mxu0 0.0
    %1909 = vmatpush1.msra.mxu0 0.0
    %1910 = vmatprep.subr.mxu0 0.0
    %1911 = vmatpush1.msra.mxu0 0.0
    %1912 = vmatprep.subr.mxu0 0.0
    %1913 = vmatpush1.msra.mxu0 0.0
    %1914 = vmatprep.subr.mxu0 0.0
    %1915 = vmatpush1.msra.mxu0 0.0
    %1916 = vmatprep.subr.mxu0 0.0
    %1917 = vmatpush1.msra.mxu0 0.0
    %1918 = vmatprep.subr.mxu0 0.0
    %1919 = vmatpush1.msra.mxu0 0.0
    %1920 = vmatprep.subr.mxu0 0.0
    %1921 = vmatpush1.msra.mxu0 0.0
    %1922 = vmatprep.subr.mxu0 0.0
    %1923 = vmatpush1.msra.mxu0 0.0
    %1924 = vmatprep.subr.mxu0 0.0
    %1925 = vmatpush1.msra.mxu0 0.0
    %1926 = vmatprep.subr.mxu0 0.0
    %1927 = vmatpush1.msra.mxu0 0.0
    %1928 = vmatprep.subr.mxu0 0.0
    %1929 = vmatpush1.msra.mxu0 0.0
    %1930 = vmatprep.subr.mxu0 0.0
    %1931 = vmatpush1.msra.mxu0 0.0
    %1932 = vmatprep.subr.mxu0 0.0
    %1933 = vmatpush1.msra.mxu0 0.0
    %1934 = vmatprep.subr.mxu0 0.0
    %1935 = vmatpush1.msra.mxu0 0.0
    %1936 = vmatprep.subr.mxu0 0.0
    %1937 = vmatpush1.msra.mxu0 0.0
    %1938 = vmatprep.subr.mxu0 0.0
    %1939 = vmatpush1.msra.mxu0 0.0
    %1940 = vmatprep.subr.mxu0 0.0
    %1941 = vmatpush1.msra.mxu0 0.0
    %1942 = vmatprep.subr.mxu0 0.0
    %1943 = vmatpush1.msra.mxu0 0.0
    %1944 = vmatprep.mubr.f32.mxu0 0.0
    %1945 = vmatmul.mubr.f32.gmra.mrb[0].mxu0 %v1875
    %v1946 = vpop.f32.mrb[0].mxu0
    %v1947 = vadd.f32 0.0, %v1946
    %v1948 = vpop.f32.mrb[0].mxu0
    %1949 = vdwg.mxu0
    %1950 = vst.msk [vmem:[#allocation3 + $0xf] sm:$0x1] %vm1726, %v1947
    %v1952 = vrot.slane %v1947, 2
    %vm1954 = vcmask 252934
    %1955 = vst.msk [vmem:[#allocation3 + $0x10] sm:$0xc0] %vm1954, %v1952
    %v1956 = vrot.slane %v1947, 3
    %vm1958 = vcmask 252933
    %1959 = vst.msk [vmem:[#allocation3 + $0x18] sm:$0xe0] %vm1958, %v1956
    %v1960 = vrot.slane %v1947, 4
    %vm1962 = vcmask 252932
    %1963 = vst.msk [vmem:[#allocation3 + $0x20] sm:$0xf0] %vm1962, %v1960
    %v1964 = vrot.slane %v1947, 5
    %vm1966 = vcmask 251908
    %1967 = vst.msk [vmem:[#allocation3 + $0x28] sm:$0x70] %vm1966, %v1964
    %v1968 = vrot.slane %v1947, 6
    %vm1970 = vcmask 250884
    %1971 = vst.msk [vmem:[#allocation3 + $0x30] sm:$0x30] %vm1970, %v1968
    %1972 = vst.msk [vmem:[#allocation3 + $0x3c] sm:$0x1] %vm1726, %v1956
    %1977 = vrot.lane.b32.xlu0 %v1011, 6
    %v1978 = vpop.permute.xlu0 %1977
    %1979 = vrot.lane.b32.xlu0 %v1012, 6
    %v1980 = vpop.permute.xlu0 %1979
    %1981 = vrot.lane.b32.xlu0 %v1015, 6
    %v1982 = vpop.permute.xlu0 %1981
    %1983 = vrot.lane.b32.xlu0 %v1016, 6
    %v1984 = vpop.permute.xlu0 %1983
    %vm1985 = vcmask 48128
    %v1986 = vsel %vm1985, %v1978, %v1980
    %v1987 = vsel %vm1985, %v1982, %v1984
    %v1990 = vsel %vm1450, %v1986, 0.0
    %1991 = vadd.xlane.f32.xlu0 %v1990
    %v1992 = vpop.xlane.xlu0 %1991
    %v1993 = vsel %vm1450, %v1987, 0.0
    %1994 = vadd.xlane.f32.xlu0 %v1993
    %v1995 = vpop.xlane.xlu0 %1994
    %v1996 = vadd.f32 %v1992, %v1995
    %v1997 = vrot.slane %v1996, 4
    %v1998 = vadd.f32 %v1996, %v1997
    %v1999 = vrot.slane %v1998, 2
    %v2000 = vadd.f32 %v1998, %v1999
    %v2001 = vrot.slane %v2000, 1
    %v2002 = vadd.f32 %v2000, %v2001
    %v2003 = vadd.f32 %v2002, 0.0
    %2008 = vrot.lane.b32.xlu0 %v1410, 6
    %v2009 = vpop.permute.xlu0 %2008
    %2010 = vrot.lane.b32.xlu0 %v1411, 6
    %v2011 = vpop.permute.xlu0 %2010
    %2012 = vrot.lane.b32.xlu0 %v1414, 6
    %v2013 = vpop.permute.xlu0 %2012
    %2014 = vrot.lane.b32.xlu0 %v1415, 6
    %v2015 = vpop.permute.xlu0 %2014
    %v2016 = vsel %vm1985, %v2009, %v2011
    %v2017 = vsel %vm1985, %v2013, %v2015
    %v2020 = vsel %vm1450, %v2016, 0.0
    %2021 = vadd.xlane.f32.xlu0 %v2020
    %v2022 = vpop.xlane.xlu0 %2021
    %v2023 = vsel %vm1450, %v2017, 0.0
    %2024 = vadd.xlane.f32.xlu0 %v2023
    %v2025 = vpop.xlane.xlu0 %2024
    %v2026 = vadd.f32 %v2022, %v2025
    %v2027 = vrot.slane %v2026, 4
    %v2028 = vadd.f32 %v2026, %v2027
    %v2029 = vrot.slane %v2028, 2
    %v2030 = vadd.f32 %v2028, %v2029
    %v2031 = vrot.slane %v2030, 1
    %v2032 = vadd.f32 %v2030, %v2031
    %v2033 = vadd.f32 %v2003, %v2032
    %v2034 = vmul.f32 %v1012, %v1012
    %v2035 = vmul.f32 %v1016, %v1016
    %2040 = vrot.lane.b32.xlu0 %v1479, 6
    %v2041 = vpop.permute.xlu0 %2040
    %2042 = vrot.lane.b32.xlu0 %v2034, 6
    %v2043 = vpop.permute.xlu0 %2042
    %2044 = vrot.lane.b32.xlu0 %v1480, 6
    %v2045 = vpop.permute.xlu0 %2044
    %2046 = vrot.lane.b32.xlu0 %v2035, 6
    %v2047 = vpop.permute.xlu0 %2046
    %v2048 = vsel %vm1985, %v2041, %v2043
    %v2049 = vsel %vm1985, %v2045, %v2047
    %v2052 = vsel %vm1450, %v2048, 0.0
    %2053 = vadd.xlane.f32.xlu0 %v2052
    %v2054 = vpop.xlane.xlu0 %2053
    %v2055 = vsel %vm1450, %v2049, 0.0
    %2056 = vadd.xlane.f32.xlu0 %v2055
    %v2057 = vpop.xlane.xlu0 %2056
    %v2058 = vadd.f32 %v2054, %v2057
    %v2059 = vrot.slane %v2058, 4
    %v2060 = vadd.f32 %v2058, %v2059
    %v2061 = vrot.slane %v2060, 2
    %v2062 = vadd.f32 %v2060, %v2061
    %v2063 = vrot.slane %v2062, 1
    %v2064 = vadd.f32 %v2062, %v2063
    %v2065 = vadd.f32 %v2064, 0.0
    %v2066 = vmul.f32 %v1411, %v1411
    %v2067 = vmul.f32 %v1415, %v1415
    %2072 = vrot.lane.b32.xlu0 %v1495, 6
    %v2073 = vpop.permute.xlu0 %2072
    %2074 = vrot.lane.b32.xlu0 %v2066, 6
    %v2075 = vpop.permute.xlu0 %2074
    %2076 = vrot.lane.b32.xlu0 %v1496, 6
    %v2077 = vpop.permute.xlu0 %2076
    %2078 = vrot.lane.b32.xlu0 %v2067, 6
    %v2079 = vpop.permute.xlu0 %2078
    %v2080 = vsel %vm1985, %v2073, %v2075
    %v2081 = vsel %vm1985, %v2077, %v2079
    %v2084 = vsel %vm1450, %v2080, 0.0
    %2085 = vadd.xlane.f32.xlu0 %v2084
    %v2086 = vpop.xlane.xlu0 %2085
    %v2087 = vsel %vm1450, %v2081, 0.0
    %2088 = vadd.xlane.f32.xlu0 %v2087
    %v2089 = vpop.xlane.xlu0 %2088
    %v2090 = vadd.f32 %v2086, %v2089
    %v2091 = vrot.slane %v2090, 4
    %v2092 = vadd.f32 %v2090, %v2091
    %v2093 = vrot.slane %v2092, 2
    %v2094 = vadd.f32 %v2092, %v2093
    %v2095 = vrot.slane %v2094, 1
    %v2096 = vadd.f32 %v2094, %v2095
    %v2097 = vadd.f32 %v2065, %v2096
    %v2098 = vmul.f32 %v2033, 0.00025614753
    %v2099 = vmul.f32 %v2097, 0.00025614753
    %v2100 = vmul.f32 %v2098, %v2098
    %v2101 = vsub.f32 %v2099, %v2100
    %v2102 = vmax.f32 %v2101, 0.0
    %v2103 = vrsqrt.pop %v2102
    %s2104 = sld [smem:[#allocation16 + $0x1]]
    %v2105 = vstv %s2104
    %v2106 = vmul.f32 %v2103, %v2105
    %s2107 = sld [smem:[#allocation16 + $0x5]]
    %v2108 = vmul.f32 %v2098, %v2106
    %v2109 = vstv %s2107
    %v2110 = vsub.f32 %v2109, %v2108
    %v2111 = vmul.f32 %v1011, %v2106
    %v2112 = vmul.f32 %v1012, %v2106
    %v2113 = vmul.f32 %v1015, %v2106
    %v2114 = vmul.f32 %v1016, %v2106
    %v2115 = vadd.f32 %v2111, %v2110
    %v2116 = vadd.f32 %v2112, %v2110
    %v2117 = vadd.f32 %v2113, %v2110
    %v2118 = vadd.f32 %v2114, %v2110
    %2123 = vrot.lane.b32.xlu0 %v2115, 127
    %v2124 = vpop.permute.xlu0 %2123
    %2125 = vrot.lane.b32.xlu0 %v2116, 127
    %v2126 = vpop.permute.xlu0 %2125
    %2127 = vrot.lane.b32.xlu0 %v2117, 127
    %v2128 = vpop.permute.xlu0 %2127
    %2129 = vrot.lane.b32.xlu0 %v2118, 127
    %v2130 = vpop.permute.xlu0 %2129
    %vm2131 = vcmask 1039360
    %v2132 = vsel %vm2131, %v2124, %v2126
    %v2133 = vsel %vm2131, %v2128, %v2130
    %v2138 = vmax.f32 %v2115, %v2132
    %v2139 = vmax.f32 %v2116, %v2126
    %v2140 = vmax.f32 %v2117, %v2133
    %v2141 = vmax.f32 %v2118, %v2130
    %v2142 = vld [vmem:[%s7] sm:$0xff]
    %v2143 = vld [vmem:[%s7 + $0x8] sm:$0xff]
    %v2144 = vld [vmem:[%s7 + $0x10] sm:$0xff]
    %v2145 = vld [vmem:[%s7 + $0x18] sm:$0xff]
    %v2146 = vld [vmem:[%s7 + $0x20] sm:$0xff]
    %v2147 = vld [vmem:[%s7 + $0x28] sm:$0xff]
    %v2148 = vld [vmem:[%s7 + $0x30] sm:$0xff]
    %v2149 = vld [vmem:[%s7 + $0x38] sm:$0xff]
    %v2150 = vld [vmem:[%s7 + $0x40] sm:$0xff]
    %v2151 = vld [vmem:[%s7 + $0x48] sm:$0xff]
    %v2152 = vld [vmem:[%s7 + $0x50] sm:$0xff]
    %v2153 = vld [vmem:[%s7 + $0x58] sm:$0xff]
    %v2154 = vld [vmem:[%s7 + $0x60] sm:$0xff]
    %v2155 = vld [vmem:[%s7 + $0x68] sm:$0xff]
    %v2156 = vld [vmem:[%s7 + $0x70] sm:$0xff]
    %v2157 = vld [vmem:[%s7 + $0x78] sm:$0x1]
    %2162 = vrot.lane.b32.xlu0 %v2138, 6
    %v2163 = vpop.permute.xlu0 %2162
    %2164 = vrot.lane.b32.xlu0 %v2139, 6
    %v2165 = vpop.permute.xlu0 %2164
    %2166 = vrot.lane.b32.xlu0 %v2140, 6
    %v2167 = vpop.permute.xlu0 %2166
    %2168 = vrot.lane.b32.xlu0 %v2141, 6
    %v2169 = vpop.permute.xlu0 %2168
    %v2170 = vsel %vm1985, %v2163, %v2165
    %v2171 = vsel %vm1985, %v2167, %v2169
    %v2172 = vsel %vm1554, %v2170, 0
    %v2174 = vsel %vm1554, %v2171, 0
    %v2177 = vsel %vm603, %v2157, 0
    %2179 = vmatprep.subr.mxu0 0.0
    %2180 = vmatpush1.msra.mxu0 %v2142
    %2181 = vmatprep.subr.mxu0 0.0
    %2182 = vmatpush1.msra.mxu0 %v2143
    %2183 = vmatprep.subr.mxu0 0.0
    %2184 = vmatpush1.msra.mxu0 %v2144
    %2185 = vmatprep.subr.mxu0 0.0
    %2186 = vmatpush1.msra.mxu0 %v2145
    %2187 = vmatprep.subr.mxu0 0.0
    %2188 = vmatpush1.msra.mxu0 %v2146
    %2189 = vmatprep.subr.mxu0 0.0
    %2190 = vmatpush1.msra.mxu0 %v2147
    %2191 = vmatprep.subr.mxu0 0.0
    %2192 = vmatpush1.msra.mxu0 %v2148
    %2193 = vmatprep.subr.mxu0 0.0
    %2194 = vmatpush1.msra.mxu0 %v2149
    %2195 = vmatprep.subr.mxu0 0.0
    %2196 = vmatpush1.msra.mxu0 %v2150
    %2197 = vmatprep.subr.mxu0 0.0
    %2198 = vmatpush1.msra.mxu0 %v2151
    %2199 = vmatprep.subr.mxu0 0.0
    %2200 = vmatpush1.msra.mxu0 %v2152
    %2201 = vmatprep.subr.mxu0 0.0
    %2202 = vmatpush1.msra.mxu0 %v2153
    %2203 = vmatprep.subr.mxu0 0.0
    %2204 = vmatpush1.msra.mxu0 %v2154
    %2205 = vmatprep.subr.mxu0 0.0
    %2206 = vmatpush1.msra.mxu0 %v2155
    %2207 = vmatprep.subr.mxu0 0.0
    %2208 = vmatpush1.msra.mxu0 %v2156
    %2209 = vmatprep.subr.mxu0 0.0
    %2210 = vmatpush1.msra.mxu0 %v2177
    %2211 = vmatprep.subr.mxu0 0.0
    %2212 = vmatpush1.msra.mxu0 0.0
    %2213 = vmatprep.subr.mxu0 0.0
    %2214 = vmatpush1.msra.mxu0 0.0
    %2215 = vmatprep.subr.mxu0 0.0
    %2216 = vmatpush1.msra.mxu0 0.0
    %2217 = vmatprep.subr.mxu0 0.0
    %2218 = vmatpush1.msra.mxu0 0.0
    %2219 = vmatprep.subr.mxu0 0.0
    %2220 = vmatpush1.msra.mxu0 0.0
    %2221 = vmatprep.subr.mxu0 0.0
    %2222 = vmatpush1.msra.mxu0 0.0
    %2223 = vmatprep.subr.mxu0 0.0
    %2224 = vmatpush1.msra.mxu0 0.0
    %2225 = vmatprep.subr.mxu0 0.0
    %2226 = vmatpush1.msra.mxu0 0.0
    %2227 = vmatprep.subr.mxu0 0.0
    %2228 = vmatpush1.msra.mxu0 0.0
    %2229 = vmatprep.subr.mxu0 0.0
    %2230 = vmatpush1.msra.mxu0 0.0
    %2231 = vmatprep.subr.mxu0 0.0
    %2232 = vmatpush1.msra.mxu0 0.0
    %2233 = vmatprep.subr.mxu0 0.0
    %2234 = vmatpush1.msra.mxu0 0.0
    %2235 = vmatprep.subr.mxu0 0.0
    %2236 = vmatpush1.msra.mxu0 0.0
    %2237 = vmatprep.subr.mxu0 0.0
    %2238 = vmatpush1.msra.mxu0 0.0
    %2239 = vmatprep.subr.mxu0 0.0
    %2240 = vmatpush1.msra.mxu0 0.0
    %2241 = vmatprep.subr.mxu0 0.0
    %2242 = vmatpush1.msra.mxu0 0.0
    %2243 = vmatprep.mubr.f32.mxu0 0.0
    %2244 = vmatmul.mubr.f32.gmra.mrb[0].mxu0 %v2172
    %v2245 = vpop.f32.mrb[0].mxu0
    %v2246 = vadd.f32 0.0, %v2245
    %v2247 = vpop.f32.mrb[0].mxu0
    %2248 = vmatprep.mubr.f32.mxu0 0.0
    %2249 = vmatmul.mubr.f32.gmra.mrb[0].mxu0 %v2174
    %v2250 = vpop.f32.mrb[0].mxu0
    %v2251 = vadd.f32 0.0, %v2250
    %v2252 = vpop.f32.mrb[0].mxu0
    %2253 = vdwg.mxu0
    %v2256 = vrot.slane %v2246, 1
    %v2257 = vrot.slane %v2251, 1
    %v2258 = vsel %vm586, %v2256, %v2257
    %v2261 = vmax.f32 %v2246, %v2258
    %v2262 = vmax.f32 %v2251, %v2257
    %v2263 = vld [vmem:[#allocation9] sm:$0xf]
    %v2265 = vsel %vm1649, %v2263, 0
    %v2268 = vsel %vm586, %v2262, 0
    %2270 = vmatprep.subr.mxu0 0.0
    %2271 = vmatpush1.msra.mxu0 %v2261
    %2272 = vmatprep.subr.mxu0 0.0
    %2273 = vmatpush1.msra.mxu0 %v2268
    %2274 = vmatprep.subr.mxu0 0.0
    %2275 = vmatpush1.msra.mxu0 0.0
    %2276 = vmatprep.subr.mxu0 0.0
    %2277 = vmatpush1.msra.mxu0 0.0
    %2278 = vmatprep.subr.mxu0 0.0
    %2279 = vmatpush1.msra.mxu0 0.0
    %2280 = vmatprep.subr.mxu0 0.0
    %2281 = vmatpush1.msra.mxu0 0.0
    %2282 = vmatprep.subr.mxu0 0.0
    %2283 = vmatpush1.msra.mxu0 0.0
    %2284 = vmatprep.subr.mxu0 0.0
    %2285 = vmatpush1.msra.mxu0 0.0
    %2286 = vmatprep.subr.mxu0 0.0
    %2287 = vmatpush1.msra.mxu0 0.0
    %2288 = vmatprep.subr.mxu0 0.0
    %2289 = vmatpush1.msra.mxu0 0.0
    %2290 = vmatprep.subr.mxu0 0.0
    %2291 = vmatpush1.msra.mxu0 0.0
    %2292 = vmatprep.subr.mxu0 0.0
    %2293 = vmatpush1.msra.mxu0 0.0
    %2294 = vmatprep.subr.mxu0 0.0
    %2295 = vmatpush1.msra.mxu0 0.0
    %2296 = vmatprep.subr.mxu0 0.0
    %2297 = vmatpush1.msra.mxu0 0.0
    %2298 = vmatprep.subr.mxu0 0.0
    %2299 = vmatpush1.msra.mxu0 0.0
    %2300 = vmatprep.subr.mxu0 0.0
    %2301 = vmatpush1.msra.mxu0 0.0
    %2302 = vmatprep.subr.mxu0 0.0
    %2303 = vmatpush1.msra.mxu0 0.0
    %2304 = vmatprep.subr.mxu0 0.0
    %2305 = vmatpush1.msra.mxu0 0.0
    %2306 = vmatprep.subr.mxu0 0.0
    %2307 = vmatpush1.msra.mxu0 0.0
    %2308 = vmatprep.subr.mxu0 0.0
    %2309 = vmatpush1.msra.mxu0 0.0
    %2310 = vmatprep.subr.mxu0 0.0
    %2311 = vmatpush1.msra.mxu0 0.0
    %2312 = vmatprep.subr.mxu0 0.0
    %2313 = vmatpush1.msra.mxu0 0.0
    %2314 = vmatprep.subr.mxu0 0.0
    %2315 = vmatpush1.msra.mxu0 0.0
    %2316 = vmatprep.subr.mxu0 0.0
    %2317 = vmatpush1.msra.mxu0 0.0
    %2318 = vmatprep.subr.mxu0 0.0
    %2319 = vmatpush1.msra.mxu0 0.0
    %2320 = vmatprep.subr.mxu0 0.0
    %2321 = vmatpush1.msra.mxu0 0.0
    %2322 = vmatprep.subr.mxu0 0.0
    %2323 = vmatpush1.msra.mxu0 0.0
    %2324 = vmatprep.subr.mxu0 0.0
    %2325 = vmatpush1.msra.mxu0 0.0
    %2326 = vmatprep.subr.mxu0 0.0
    %2327 = vmatpush1.msra.mxu0 0.0
    %2328 = vmatprep.subr.mxu0 0.0
    %2329 = vmatpush1.msra.mxu0 0.0
    %2330 = vmatprep.subr.mxu0 0.0
    %2331 = vmatpush1.msra.mxu0 0.0
    %2332 = vmatprep.subr.mxu0 0.0
    %2333 = vmatpush1.msra.mxu0 0.0
    %2334 = vmatprep.mubr.f32.mxu0 0.0
    %2335 = vmatmul.mubr.f32.gmra.mrb[0].mxu0 %v2265
    %v2336 = vpop.f32.mrb[0].mxu0
    %v2337 = vadd.f32 0.0, %v2336
    %v2338 = vpop.f32.mrb[0].mxu0
    %2339 = vdwg.mxu0
    %2340 = vst.msk [vmem:[#allocation3 + $0x4b] sm:$0x1] %vm1726, %v2337
    %v2342 = vrot.slane %v2337, 6
    %2344 = vst.msk [vmem:[#allocation3 + $0x50] sm:$0xc] %vm1731, %v2342
    %v2345 = vrot.slane %v2337, 7
    %2347 = vst.msk [vmem:[#allocation3 + $0x58] sm:$0xe] %vm1735, %v2345
    %2348 = vst.msk [vmem:[#allocation3 + $0x60] sm:$0xf] %vm1737, %v2337
    %v2349 = vrot.slane %v2337, 1
    %2351 = vst.msk [vmem:[#allocation3 + $0x68] sm:$0x7] %vm1741, %v2349
    %v2352 = vrot.slane %v2337, 2
    %2354 = vst.msk [vmem:[#allocation3 + $0x70] sm:$0x3] %vm1745, %v2352
    %v2355 = vrot.slane %v2337, 3
    %2357 = vst.msk [vmem:[#allocation3 + $0x78] sm:$0x1] %vm1726, %v2355
    %v2358 = vmul.f32 %v1410, %v2106
    %v2359 = vmul.f32 %v1411, %v2106
    %v2360 = vmul.f32 %v1414, %v2106
    %v2361 = vmul.f32 %v1415, %v2106
    %v2362 = vadd.f32 %v2358, %v2110
    %v2363 = vadd.f32 %v2359, %v2110
    %v2364 = vadd.f32 %v2360, %v2110
    %v2365 = vadd.f32 %v2361, %v2110
    %2370 = vrot.lane.b32.xlu0 %v2362, 127
    %v2371 = vpop.permute.xlu0 %2370
    %2372 = vrot.lane.b32.xlu0 %v2363, 127
    %v2373 = vpop.permute.xlu0 %2372
    %2374 = vrot.lane.b32.xlu0 %v2364, 127
    %v2375 = vpop.permute.xlu0 %2374
    %2376 = vrot.lane.b32.xlu0 %v2365, 127
    %v2377 = vpop.permute.xlu0 %2376
    %v2378 = vsel %vm2131, %v2371, %v2373
    %v2379 = vsel %vm2131, %v2375, %v2377
    %v2384 = vmax.f32 %v2362, %v2378
    %v2385 = vmax.f32 %v2363, %v2373
    %v2386 = vmax.f32 %v2364, %v2379
    %v2387 = vmax.f32 %v2365, %v2377
    %v2388 = vld [vmem:[%s7] sm:$0xff]
    %v2389 = vld [vmem:[%s7 + $0x8] sm:$0xff]
    %v2390 = vld [vmem:[%s7 + $0x10] sm:$0xff]
    %v2391 = vld [vmem:[%s7 + $0x18] sm:$0xff]
    %v2392 = vld [vmem:[%s7 + $0x20] sm:$0xff]
    %v2393 = vld [vmem:[%s7 + $0x28] sm:$0xff]
    %v2394 = vld [vmem:[%s7 + $0x30] sm:$0xff]
    %v2395 = vld [vmem:[%s7 + $0x38] sm:$0xff]
    %v2396 = vld [vmem:[%s7 + $0x40] sm:$0xff]
    %v2397 = vld [vmem:[%s7 + $0x48] sm:$0xff]
    %v2398 = vld [vmem:[%s7 + $0x50] sm:$0xff]
    %v2399 = vld [vmem:[%s7 + $0x58] sm:$0xff]
    %v2400 = vld [vmem:[%s7 + $0x60] sm:$0xff]
    %v2401 = vld [vmem:[%s7 + $0x68] sm:$0xff]
    %v2402 = vld [vmem:[%s7 + $0x70] sm:$0xff]
    %v2403 = vld [vmem:[%s7 + $0x78] sm:$0x1]
    %2408 = vrot.lane.b32.xlu0 %v2384, 6
    %v2409 = vpop.permute.xlu0 %2408
    %2410 = vrot.lane.b32.xlu0 %v2385, 6
    %v2411 = vpop.permute.xlu0 %2410
    %2412 = vrot.lane.b32.xlu0 %v2386, 6
    %v2413 = vpop.permute.xlu0 %2412
    %2414 = vrot.lane.b32.xlu0 %v2387, 6
    %v2415 = vpop.permute.xlu0 %2414
    %v2416 = vsel %vm1985, %v2409, %v2411
    %v2417 = vsel %vm1985, %v2413, %v2415
    %v2418 = vsel %vm1554, %v2416, 0
    %v2420 = vsel %vm1554, %v2417, 0
    %v2423 = vsel %vm603, %v2403, 0
    %2425 = vmatprep.subr.mxu0 0.0
    %2426 = vmatpush1.msra.mxu0 %v2388
    %2427 = vmatprep.subr.mxu0 0.0
    %2428 = vmatpush1.msra.mxu0 %v2389
    %2429 = vmatprep.subr.mxu0 0.0
    %2430 = vmatpush1.msra.mxu0 %v2390
    %2431 = vmatprep.subr.mxu0 0.0
    %2432 = vmatpush1.msra.mxu0 %v2391
    %2433 = vmatprep.subr.mxu0 0.0
    %2434 = vmatpush1.msra.mxu0 %v2392
    %2435 = vmatprep.subr.mxu0 0.0
    %2436 = vmatpush1.msra.mxu0 %v2393
    %2437 = vmatprep.subr.mxu0 0.0
    %2438 = vmatpush1.msra.mxu0 %v2394
    %2439 = vmatprep.subr.mxu0 0.0
    %2440 = vmatpush1.msra.mxu0 %v2395
    %2441 = vmatprep.subr.mxu0 0.0
    %2442 = vmatpush1.msra.mxu0 %v2396
    %2443 = vmatprep.subr.mxu0 0.0
    %2444 = vmatpush1.msra.mxu0 %v2397
    %2445 = vmatprep.subr.mxu0 0.0
    %2446 = vmatpush1.msra.mxu0 %v2398
    %2447 = vmatprep.subr.mxu0 0.0
    %2448 = vmatpush1.msra.mxu0 %v2399
    %2449 = vmatprep.subr.mxu0 0.0
    %2450 = vmatpush1.msra.mxu0 %v2400
    %2451 = vmatprep.subr.mxu0 0.0
    %2452 = vmatpush1.msra.mxu0 %v2401
    %2453 = vmatprep.subr.mxu0 0.0
    %2454 = vmatpush1.msra.mxu0 %v2402
    %2455 = vmatprep.subr.mxu0 0.0
    %2456 = vmatpush1.msra.mxu0 %v2423
    %2457 = vmatprep.subr.mxu0 0.0
    %2458 = vmatpush1.msra.mxu0 0.0
    %2459 = vmatprep.subr.mxu0 0.0
    %2460 = vmatpush1.msra.mxu0 0.0
    %2461 = vmatprep.subr.mxu0 0.0
    %2462 = vmatpush1.msra.mxu0 0.0
    %2463 = vmatprep.subr.mxu0 0.0
    %2464 = vmatpush1.msra.mxu0 0.0
    %2465 = vmatprep.subr.mxu0 0.0
    %2466 = vmatpush1.msra.mxu0 0.0
    %2467 = vmatprep.subr.mxu0 0.0
    %2468 = vmatpush1.msra.mxu0 0.0
    %2469 = vmatprep.subr.mxu0 0.0
    %2470 = vmatpush1.msra.mxu0 0.0
    %2471 = vmatprep.subr.mxu0 0.0
    %2472 = vmatpush1.msra.mxu0 0.0
    %2473 = vmatprep.subr.mxu0 0.0
    %2474 = vmatpush1.msra.mxu0 0.0
    %2475 = vmatprep.subr.mxu0 0.0
    %2476 = vmatpush1.msra.mxu0 0.0
    %2477 = vmatprep.subr.mxu0 0.0
    %2478 = vmatpush1.msra.mxu0 0.0
    %2479 = vmatprep.subr.mxu0 0.0
    %2480 = vmatpush1.msra.mxu0 0.0
    %2481 = vmatprep.subr.mxu0 0.0
    %2482 = vmatpush1.msra.mxu0 0.0
    %2483 = vmatprep.subr.mxu0 0.0
    %2484 = vmatpush1.msra.mxu0 0.0
    %2485 = vmatprep.subr.mxu0 0.0
    %2486 = vmatpush1.msra.mxu0 0.0
    %2487 = vmatprep.subr.mxu0 0.0
    %2488 = vmatpush1.msra.mxu0 0.0
    %2489 = vmatprep.mubr.f32.mxu0 0.0
    %2490 = vmatmul.mubr.f32.gmra.mrb[0].mxu0 %v2418
    %v2491 = vpop.f32.mrb[0].mxu0
    %v2492 = vadd.f32 0.0, %v2491
    %v2493 = vpop.f32.mrb[0].mxu0
    %2494 = vmatprep.mubr.f32.mxu0 0.0
    %2495 = vmatmul.mubr.f32.gmra.mrb[0].mxu0 %v2420
    %v2496 = vpop.f32.mrb[0].mxu0
    %v2497 = vadd.f32 0.0, %v2496
    %v2498 = vpop.f32.mrb[0].mxu0
    %2499 = vdwg.mxu0
    %v2502 = vrot.slane %v2492, 1
    %v2503 = vrot.slane %v2497, 1
    %v2504 = vsel %vm586, %v2502, %v2503
    %v2507 = vmax.f32 %v2492, %v2504
    %v2508 = vmax.f32 %v2497, %v2503
    %v2509 = vld [vmem:[#allocation9] sm:$0xf]
    %v2511 = vsel %vm1649, %v2509, 0
    %v2514 = vsel %vm586, %v2508, 0
    %2516 = vmatprep.subr.mxu0 0.0
    %2517 = vmatpush1.msra.mxu0 %v2507
    %2518 = vmatprep.subr.mxu0 0.0
    %2519 = vmatpush1.msra.mxu0 %v2514
    %2520 = vmatprep.subr.mxu0 0.0
    %2521 = vmatpush1.msra.mxu0 0.0
    %2522 = vmatprep.subr.mxu0 0.0
    %2523 = vmatpush1.msra.mxu0 0.0
    %2524 = vmatprep.subr.mxu0 0.0
    %2525 = vmatpush1.msra.mxu0 0.0
    %2526 = vmatprep.subr.mxu0 0.0
    %2527 = vmatpush1.msra.mxu0 0.0
    %2528 = vmatprep.subr.mxu0 0.0
    %2529 = vmatpush1.msra.mxu0 0.0
    %2530 = vmatprep.subr.mxu0 0.0
    %2531 = vmatpush1.msra.mxu0 0.0
    %2532 = vmatprep.subr.mxu0 0.0
    %2533 = vmatpush1.msra.mxu0 0.0
    %2534 = vmatprep.subr.mxu0 0.0
    %2535 = vmatpush1.msra.mxu0 0.0
    %2536 = vmatprep.subr.mxu0 0.0
    %2537 = vmatpush1.msra.mxu0 0.0
    %2538 = vmatprep.subr.mxu0 0.0
    %2539 = vmatpush1.msra.mxu0 0.0
    %2540 = vmatprep.subr.mxu0 0.0
    %2541 = vmatpush1.msra.mxu0 0.0
    %2542 = vmatprep.subr.mxu0 0.0
    %2543 = vmatpush1.msra.mxu0 0.0
    %2544 = vmatprep.subr.mxu0 0.0
    %2545 = vmatpush1.msra.mxu0 0.0
    %2546 = vmatprep.subr.mxu0 0.0
    %2547 = vmatpush1.msra.mxu0 0.0
    %2548 = vmatprep.subr.mxu0 0.0
    %2549 = vmatpush1.msra.mxu0 0.0
    %2550 = vmatprep.subr.mxu0 0.0
    %2551 = vmatpush1.msra.mxu0 0.0
    %2552 = vmatprep.subr.mxu0 0.0
    %2553 = vmatpush1.msra.mxu0 0.0
    %2554 = vmatprep.subr.mxu0 0.0
    %2555 = vmatpush1.msra.mxu0 0.0
    %2556 = vmatprep.subr.mxu0 0.0
    %2557 = vmatpush1.msra.mxu0 0.0
    %2558 = vmatprep.subr.mxu0 0.0
    %2559 = vmatpush1.msra.mxu0 0.0
    %2560 = vmatprep.subr.mxu0 0.0
    %2561 = vmatpush1.msra.mxu0 0.0
    %2562 = vmatprep.subr.mxu0 0.0
    %2563 = vmatpush1.msra.mxu0 0.0
    %2564 = vmatprep.subr.mxu0 0.0
    %2565 = vmatpush1.msra.mxu0 0.0
    %2566 = vmatprep.subr.mxu0 0.0
    %2567 = vmatpush1.msra.mxu0 0.0
    %2568 = vmatprep.subr.mxu0 0.0
    %2569 = vmatpush1.msra.mxu0 0.0
    %2570 = vmatprep.subr.mxu0 0.0
    %2571 = vmatpush1.msra.mxu0 0.0
    %2572 = vmatprep.subr.mxu0 0.0
    %2573 = vmatpush1.msra.mxu0 0.0
    %2574 = vmatprep.subr.mxu0 0.0
    %2575 = vmatpush1.msra.mxu0 0.0
    %2576 = vmatprep.subr.mxu0 0.0
    %2577 = vmatpush1.msra.mxu0 0.0
    %2578 = vmatprep.subr.mxu0 0.0
    %2579 = vmatpush1.msra.mxu0 0.0
    %2580 = vmatprep.mubr.f32.mxu0 0.0
    %2581 = vmatmul.mubr.f32.gmra.mrb[0].mxu0 %v2511
    %v2582 = vpop.f32.mrb[0].mxu0
    %v2583 = vadd.f32 0.0, %v2582
    %v2584 = vpop.f32.mrb[0].mxu0
    %2585 = vdwg.mxu0
    %2586 = vst.msk [vmem:[#allocation3 + $0x4f] sm:$0x1] %vm1726, %v2583
    %v2588 = vrot.slane %v2583, 2
    %2590 = vst.msk [vmem:[#allocation3 + $0x50] sm:$0xc0] %vm1954, %v2588
    %v2591 = vrot.slane %v2583, 3
    %2593 = vst.msk [vmem:[#allocation3 + $0x58] sm:$0xe0] %vm1958, %v2591
    %v2594 = vrot.slane %v2583, 4
    %2596 = vst.msk [vmem:[#allocation3 + $0x60] sm:$0xf0] %vm1962, %v2594
    %v2597 = vrot.slane %v2583, 5
    %2599 = vst.msk [vmem:[#allocation3 + $0x68] sm:$0x70] %vm1966, %v2597
    %v2600 = vrot.slane %v2583, 6
    %2602 = vst.msk [vmem:[#allocation3 + $0x70] sm:$0x30] %vm1970, %v2600
    %2603 = vst.msk [vmem:[#allocation3 + $0x7c] sm:$0x1] %vm1726, %v2591
    %2606 = vrot.lane.b32.xlu0 %v1012, 12
    %v2607 = vpop.permute.xlu0 %2606
    %2608 = vrot.lane.b32.xlu0 %v1013, 12
    %v2609 = vpop.permute.xlu0 %2608
    %2610 = vrot.lane.b32.xlu0 %v1016, 12
    %v2611 = vpop.permute.xlu0 %2610
    %2612 = vrot.lane.b32.xlu0 %v1017, 12
    %v2613 = vpop.permute.xlu0 %2612
    %vm2614 = vcmask 97280
    %v2615 = vsel %vm2614, %v2607, %v2609
    %v2616 = vsel %vm2614, %v2611, %v2613
    %v2619 = vsel %vm1450, %v2615, 0.0
    %2620 = vadd.xlane.f32.xlu0 %v2619
    %v2621 = vpop.xlane.xlu0 %2620
    %v2622 = vsel %vm1450, %v2616, 0.0
    %2623 = vadd.xlane.f32.xlu0 %v2622
    %v2624 = vpop.xlane.xlu0 %2623
    %v2625 = vadd.f32 %v2621, %v2624
    %v2626 = vrot.slane %v2625, 4
    %v2627 = vadd.f32 %v2625, %v2626
    %v2628 = vrot.slane %v2627, 2
    %v2629 = vadd.f32 %v2627, %v2628
    %v2630 = vrot.slane %v2629, 1
    %v2631 = vadd.f32 %v2629, %v2630
    %v2632 = vadd.f32 %v2631, 0.0
    %2635 = vrot.lane.b32.xlu0 %v1411, 12
    %v2636 = vpop.permute.xlu0 %2635
    %2637 = vrot.lane.b32.xlu0 %v1412, 12
    %v2638 = vpop.permute.xlu0 %2637
    %2639 = vrot.lane.b32.xlu0 %v1415, 12
    %v2640 = vpop.permute.xlu0 %2639
    %2641 = vrot.lane.b32.xlu0 %v1416, 12
    %v2642 = vpop.permute.xlu0 %2641
    %v2643 = vsel %vm2614, %v2636, %v2638
    %v2644 = vsel %vm2614, %v2640, %v2642
    %v2647 = vsel %vm1450, %v2643, 0.0
    %2648 = vadd.xlane.f32.xlu0 %v2647
    %v2649 = vpop.xlane.xlu0 %2648
    %v2650 = vsel %vm1450, %v2644, 0.0
    %2651 = vadd.xlane.f32.xlu0 %v2650
    %v2652 = vpop.xlane.xlu0 %2651
    %v2653 = vadd.f32 %v2649, %v2652
    %v2654 = vrot.slane %v2653, 4
    %v2655 = vadd.f32 %v2653, %v2654
    %v2656 = vrot.slane %v2655, 2
    %v2657 = vadd.f32 %v2655, %v2656
    %v2658 = vrot.slane %v2657, 1
    %v2659 = vadd.f32 %v2657, %v2658
    %v2660 = vadd.f32 %v2632, %v2659
    %v2661 = vmul.f32 %v1013, %v1013
    %v2662 = vmul.f32 %v1017, %v1017
    %2665 = vrot.lane.b32.xlu0 %v2034, 12
    %v2666 = vpop.permute.xlu0 %2665
    %2667 = vrot.lane.b32.xlu0 %v2661, 12
    %v2668 = vpop.permute.xlu0 %2667
    %2669 = vrot.lane.b32.xlu0 %v2035, 12
    %v2670 = vpop.permute.xlu0 %2669
    %2671 = vrot.lane.b32.xlu0 %v2662, 12
    %v2672 = vpop.permute.xlu0 %2671
    %v2673 = vsel %vm2614, %v2666, %v2668
    %v2674 = vsel %vm2614, %v2670, %v2672
    %v2677 = vsel %vm1450, %v2673, 0.0
    %2678 = vadd.xlane.f32.xlu0 %v2677
    %v2679 = vpop.xlane.xlu0 %2678
    %v2680 = vsel %vm1450, %v2674, 0.0
    %2681 = vadd.xlane.f32.xlu0 %v2680
    %v2682 = vpop.xlane.xlu0 %2681
    %v2683 = vadd.f32 %v2679, %v2682
    %v2684 = vrot.slane %v2683, 4
    %v2685 = vadd.f32 %v2683, %v2684
    %v2686 = vrot.slane %v2685, 2
    %v2687 = vadd.f32 %v2685, %v2686
    %v2688 = vrot.slane %v2687, 1
    %v2689 = vadd.f32 %v2687, %v2688
    %v2690 = vadd.f32 %v2689, 0.0
    %v2691 = vmul.f32 %v1412, %v1412
    %v2692 = vmul.f32 %v1416, %v1416
    %2695 = vrot.lane.b32.xlu0 %v2066, 12
    %v2696 = vpop.permute.xlu0 %2695
    %2697 = vrot.lane.b32.xlu0 %v2691, 12
    %v2698 = vpop.permute.xlu0 %2697
    %2699 = vrot.lane.b32.xlu0 %v2067, 12
    %v2700 = vpop.permute.xlu0 %2699
    %2701 = vrot.lane.b32.xlu0 %v2692, 12
    %v2702 = vpop.permute.xlu0 %2701
    %v2703 = vsel %vm2614, %v2696, %v2698
    %v2704 = vsel %vm2614, %v2700, %v2702
    %v2707 = vsel %vm1450, %v2703, 0.0
    %2708 = vadd.xlane.f32.xlu0 %v2707
    %v2709 = vpop.xlane.xlu0 %2708
    %v2710 = vsel %vm1450, %v2704, 0.0
    %2711 = vadd.xlane.f32.xlu0 %v2710
    %v2712 = vpop.xlane.xlu0 %2711
    %v2713 = vadd.f32 %v2709, %v2712
    %v2714 = vrot.slane %v2713, 4
    %v2715 = vadd.f32 %v2713, %v2714
    %v2716 = vrot.slane %v2715, 2
    %v2717 = vadd.f32 %v2715, %v2716
    %v2718 = vrot.slane %v2717, 1
    %v2719 = vadd.f32 %v2717, %v2718
    %v2720 = vadd.f32 %v2690, %v2719
    %v2721 = vmul.f32 %v2660, 0.00025614753
    %v2722 = vmul.f32 %v2720, 0.00025614753
    %v2723 = vmul.f32 %v2721, %v2721
    %v2724 = vsub.f32 %v2722, %v2723
    %v2725 = vmax.f32 %v2724, 0.0
    %v2726 = vrsqrt.pop %v2725
    %s2727 = sld [smem:[#allocation16 + $0x2]]
    %v2728 = vstv %s2727
    %v2729 = vmul.f32 %v2726, %v2728
    %s2730 = sld [smem:[#allocation16 + $0x6]]
    %v2731 = vmul.f32 %v2721, %v2729
    %v2732 = vstv %s2730
    %v2733 = vsub.f32 %v2732, %v2731
    %v2734 = vmul.f32 %v1012, %v2729
    %v2735 = vmul.f32 %v1013, %v2729
    %v2736 = vmul.f32 %v1016, %v2729
    %v2737 = vmul.f32 %v1017, %v2729
    %v2738 = vadd.f32 %v2734, %v2733
    %v2739 = vadd.f32 %v2735, %v2733
    %v2740 = vadd.f32 %v2736, %v2733
    %v2741 = vadd.f32 %v2737, %v2733
    %2746 = vrot.lane.b32.xlu0 %v2738, 127
    %v2747 = vpop.permute.xlu0 %2746
    %2748 = vrot.lane.b32.xlu0 %v2739, 127
    %v2749 = vpop.permute.xlu0 %2748
    %2750 = vrot.lane.b32.xlu0 %v2740, 127
    %v2751 = vpop.permute.xlu0 %2750
    %2752 = vrot.lane.b32.xlu0 %v2741, 127
    %v2753 = vpop.permute.xlu0 %2752
    %v2754 = vsel %vm2131, %v2747, %v2749
    %v2755 = vsel %vm2131, %v2751, %v2753
    %v2760 = vmax.f32 %v2738, %v2754
    %v2761 = vmax.f32 %v2739, %v2749
    %v2762 = vmax.f32 %v2740, %v2755
    %v2763 = vmax.f32 %v2741, %v2753
    %v2764 = vld [vmem:[%s7] sm:$0xff]
    %v2765 = vld [vmem:[%s7 + $0x8] sm:$0xff]
    %v2766 = vld [vmem:[%s7 + $0x10] sm:$0xff]
    %v2767 = vld [vmem:[%s7 + $0x18] sm:$0xff]
    %v2768 = vld [vmem:[%s7 + $0x20] sm:$0xff]
    %v2769 = vld [vmem:[%s7 + $0x28] sm:$0xff]
    %v2770 = vld [vmem:[%s7 + $0x30] sm:$0xff]
    %v2771 = vld [vmem:[%s7 + $0x38] sm:$0xff]
    %v2772 = vld [vmem:[%s7 + $0x40] sm:$0xff]
    %v2773 = vld [vmem:[%s7 + $0x48] sm:$0xff]
    %v2774 = vld [vmem:[%s7 + $0x50] sm:$0xff]
    %v2775 = vld [vmem:[%s7 + $0x58] sm:$0xff]
    %v2776 = vld [vmem:[%s7 + $0x60] sm:$0xff]
    %v2777 = vld [vmem:[%s7 + $0x68] sm:$0xff]
    %v2778 = vld [vmem:[%s7 + $0x70] sm:$0xff]
    %v2779 = vld [vmem:[%s7 + $0x78] sm:$0x1]
    %2784 = vrot.lane.b32.xlu0 %v2760, 12
    %v2785 = vpop.permute.xlu0 %2784
    %2786 = vrot.lane.b32.xlu0 %v2761, 12
    %v2787 = vpop.permute.xlu0 %2786
    %2788 = vrot.lane.b32.xlu0 %v2762, 12
    %v2789 = vpop.permute.xlu0 %2788
    %2790 = vrot.lane.b32.xlu0 %v2763, 12
    %v2791 = vpop.permute.xlu0 %2790
    %v2792 = vsel %vm2614, %v2785, %v2787
    %v2793 = vsel %vm2614, %v2789, %v2791
    %v2794 = vsel %vm1554, %v2792, 0
    %v2796 = vsel %vm1554, %v2793, 0
    %v2799 = vsel %vm603, %v2779, 0
    %2801 = vmatprep.subr.mxu0 0.0
    %2802 = vmatpush1.msra.mxu0 %v2764
    %2803 = vmatprep.subr.mxu0 0.0
    %2804 = vmatpush1.msra.mxu0 %v2765
    %2805 = vmatprep.subr.mxu0 0.0
    %2806 = vmatpush1.msra.mxu0 %v2766
    %2807 = vmatprep.subr.mxu0 0.0
    %2808 = vmatpush1.msra.mxu0 %v2767
    %2809 = vmatprep.subr.mxu0 0.0
    %2810 = vmatpush1.msra.mxu0 %v2768
    %2811 = vmatprep.subr.mxu0 0.0
    %2812 = vmatpush1.msra.mxu0 %v2769
    %2813 = vmatprep.subr.mxu0 0.0
    %2814 = vmatpush1.msra.mxu0 %v2770
    %2815 = vmatprep.subr.mxu0 0.0
    %2816 = vmatpush1.msra.mxu0 %v2771
    %2817 = vmatprep.subr.mxu0 0.0
    %2818 = vmatpush1.msra.mxu0 %v2772
    %2819 = vmatprep.subr.mxu0 0.0
    %2820 = vmatpush1.msra.mxu0 %v2773
    %2821 = vmatprep.subr.mxu0 0.0
    %2822 = vmatpush1.msra.mxu0 %v2774
    %2823 = vmatprep.subr.mxu0 0.0
    %2824 = vmatpush1.msra.mxu0 %v2775
    %2825 = vmatprep.subr.mxu0 0.0
    %2826 = vmatpush1.msra.mxu0 %v2776
    %2827 = vmatprep.subr.mxu0 0.0
    %2828 = vmatpush1.msra.mxu0 %v2777
    %2829 = vmatprep.subr.mxu0 0.0
    %2830 = vmatpush1.msra.mxu0 %v2778
    %2831 = vmatprep.subr.mxu0 0.0
    %2832 = vmatpush1.msra.mxu0 %v2799
    %2833 = vmatprep.subr.mxu0 0.0
    %2834 = vmatpush1.msra.mxu0 0.0
    %2835 = vmatprep.subr.mxu0 0.0
    %2836 = vmatpush1.msra.mxu0 0.0
    %2837 = vmatprep.subr.mxu0 0.0
    %2838 = vmatpush1.msra.mxu0 0.0
    %2839 = vmatprep.subr.mxu0 0.0
    %2840 = vmatpush1.msra.mxu0 0.0
    %2841 = vmatprep.subr.mxu0 0.0
    %2842 = vmatpush1.msra.mxu0 0.0
    %2843 = vmatprep.subr.mxu0 0.0
    %2844 = vmatpush1.msra.mxu0 0.0
    %2845 = vmatprep.subr.mxu0 0.0
    %2846 = vmatpush1.msra.mxu0 0.0
    %2847 = vmatprep.subr.mxu0 0.0
    %2848 = vmatpush1.msra.mxu0 0.0
    %2849 = vmatprep.subr.mxu0 0.0
    %2850 = vmatpush1.msra.mxu0 0.0
    %2851 = vmatprep.subr.mxu0 0.0
    %2852 = vmatpush1.msra.mxu0 0.0
    %2853 = vmatprep.subr.mxu0 0.0
    %2854 = vmatpush1.msra.mxu0 0.0
    %2855 = vmatprep.subr.mxu0 0.0
    %2856 = vmatpush1.msra.mxu0 0.0
    %2857 = vmatprep.subr.mxu0 0.0
    %2858 = vmatpush1.msra.mxu0 0.0
    %2859 = vmatprep.subr.mxu0 0.0
    %2860 = vmatpush1.msra.mxu0 0.0
    %2861 = vmatprep.subr.mxu0 0.0
    %2862 = vmatpush1.msra.mxu0 0.0
    %2863 = vmatprep.subr.mxu0 0.0
    %2864 = vmatpush1.msra.mxu0 0.0
    %2865 = vmatprep.mubr.f32.mxu0 0.0
    %2866 = vmatmul.mubr.f32.gmra.mrb[0].mxu0 %v2794
    %v2867 = vpop.f32.mrb[0].mxu0
    %v2868 = vadd.f32 0.0, %v2867
    %v2869 = vpop.f32.mrb[0].mxu0
    %2870 = vmatprep.mubr.f32.mxu0 0.0
    %2871 = vmatmul.mubr.f32.gmra.mrb[0].mxu0 %v2796
    %v2872 = vpop.f32.mrb[0].mxu0
    %v2873 = vadd.f32 0.0, %v2872
    %v2874 = vpop.f32.mrb[0].mxu0
    %2875 = vdwg.mxu0
    %v2878 = vrot.slane %v2868, 1
    %v2879 = vrot.slane %v2873, 1
    %v2880 = vsel %vm586, %v2878, %v2879
    %v2883 = vmax.f32 %v2868, %v2880
    %v2884 = vmax.f32 %v2873, %v2879
    %v2885 = vld [vmem:[#allocation9] sm:$0xf]
    %v2887 = vsel %vm1649, %v2885, 0
    %v2890 = vsel %vm586, %v2884, 0
    %2892 = vmatprep.subr.mxu0 0.0
    %2893 = vmatpush1.msra.mxu0 %v2883
    %2894 = vmatprep.subr.mxu0 0.0
    %2895 = vmatpush1.msra.mxu0 %v2890
    %2896 = vmatprep.subr.mxu0 0.0
    %2897 = vmatpush1.msra.mxu0 0.0
    %2898 = vmatprep.subr.mxu0 0.0
    %2899 = vmatpush1.msra.mxu0 0.0
    %2900 = vmatprep.subr.mxu0 0.0
    %2901 = vmatpush1.msra.mxu0 0.0
    %2902 = vmatprep.subr.mxu0 0.0
    %2903 = vmatpush1.msra.mxu0 0.0
    %2904 = vmatprep.subr.mxu0 0.0
    %2905 = vmatpush1.msra.mxu0 0.0
    %2906 = vmatprep.subr.mxu0 0.0
    %2907 = vmatpush1.msra.mxu0 0.0
    %2908 = vmatprep.subr.mxu0 0.0
    %2909 = vmatpush1.msra.mxu0 0.0
    %2910 = vmatprep.subr.mxu0 0.0
    %2911 = vmatpush1.msra.mxu0 0.0
    %2912 = vmatprep.subr.mxu0 0.0
    %2913 = vmatpush1.msra.mxu0 0.0
    %2914 = vmatprep.subr.mxu0 0.0
    %2915 = vmatpush1.msra.mxu0 0.0
    %2916 = vmatprep.subr.mxu0 0.0
    %2917 = vmatpush1.msra.mxu0 0.0
    %2918 = vmatprep.subr.mxu0 0.0
    %2919 = vmatpush1.msra.mxu0 0.0
    %2920 = vmatprep.subr.mxu0 0.0
    %2921 = vmatpush1.msra.mxu0 0.0
    %2922 = vmatprep.subr.mxu0 0.0
    %2923 = vmatpush1.msra.mxu0 0.0
    %2924 = vmatprep.subr.mxu0 0.0
    %2925 = vmatpush1.msra.mxu0 0.0
    %2926 = vmatprep.subr.mxu0 0.0
    %2927 = vmatpush1.msra.mxu0 0.0
    %2928 = vmatprep.subr.mxu0 0.0
    %2929 = vmatpush1.msra.mxu0 0.0
    %2930 = vmatprep.subr.mxu0 0.0
    %2931 = vmatpush1.msra.mxu0 0.0
    %2932 = vmatprep.subr.mxu0 0.0
    %2933 = vmatpush1.msra.mxu0 0.0
    %2934 = vmatprep.subr.mxu0 0.0
    %2935 = vmatpush1.msra.mxu0 0.0
    %2936 = vmatprep.subr.mxu0 0.0
    %2937 = vmatpush1.msra.mxu0 0.0
    %2938 = vmatprep.subr.mxu0 0.0
    %2939 = vmatpush1.msra.mxu0 0.0
    %2940 = vmatprep.subr.mxu0 0.0
    %2941 = vmatpush1.msra.mxu0 0.0
    %2942 = vmatprep.subr.mxu0 0.0
    %2943 = vmatpush1.msra.mxu0 0.0
    %2944 = vmatprep.subr.mxu0 0.0
    %2945 = vmatpush1.msra.mxu0 0.0
    %2946 = vmatprep.subr.mxu0 0.0
    %2947 = vmatpush1.msra.mxu0 0.0
    %2948 = vmatprep.subr.mxu0 0.0
    %2949 = vmatpush1.msra.mxu0 0.0
    %2950 = vmatprep.subr.mxu0 0.0
    %2951 = vmatpush1.msra.mxu0 0.0
    %2952 = vmatprep.subr.mxu0 0.0
    %2953 = vmatpush1.msra.mxu0 0.0
    %2954 = vmatprep.subr.mxu0 0.0
    %2955 = vmatpush1.msra.mxu0 0.0
    %2956 = vmatprep.mubr.f32.mxu0 0.0
    %2957 = vmatmul.mubr.f32.gmra.mrb[0].mxu0 %v2887
    %v2958 = vpop.f32.mrb[0].mxu0
    %v2959 = vadd.f32 0.0, %v2958
    %v2960 = vpop.f32.mrb[0].mxu0
    %2961 = vdwg.mxu0
    %2962 = vst.msk [vmem:[#allocation3 + $0x8b] sm:$0x1] %vm1726, %v2959
    %v2964 = vrot.slane %v2959, 6
    %2966 = vst.msk [vmem:[#allocation3 + $0x90] sm:$0xc] %vm1731, %v2964
    %v2967 = vrot.slane %v2959, 7
    %2969 = vst.msk [vmem:[#allocation3 + $0x98] sm:$0xe] %vm1735, %v2967
    %2970 = vst.msk [vmem:[#allocation3 + $0xa0] sm:$0xf] %vm1737, %v2959
    %v2971 = vrot.slane %v2959, 1
    %2973 = vst.msk [vmem:[#allocation3 + $0xa8] sm:$0x7] %vm1741, %v2971
    %v2974 = vrot.slane %v2959, 2
    %2976 = vst.msk [vmem:[#allocation3 + $0xb0] sm:$0x3] %vm1745, %v2974
    %v2977 = vrot.slane %v2959, 3
    %2979 = vst.msk [vmem:[#allocation3 + $0xb8] sm:$0x1] %vm1726, %v2977
    %v2980 = vmul.f32 %v1411, %v2729
    %v2981 = vmul.f32 %v1412, %v2729
    %v2982 = vmul.f32 %v1415, %v2729
    %v2983 = vmul.f32 %v1416, %v2729
    %v2984 = vadd.f32 %v2980, %v2733
    %v2985 = vadd.f32 %v2981, %v2733
    %v2986 = vadd.f32 %v2982, %v2733
    %v2987 = vadd.f32 %v2983, %v2733
    %2992 = vrot.lane.b32.xlu0 %v2984, 127
    %v2993 = vpop.permute.xlu0 %2992
    %2994 = vrot.lane.b32.xlu0 %v2985, 127
    %v2995 = vpop.permute.xlu0 %2994
    %2996 = vrot.lane.b32.xlu0 %v2986, 127
    %v2997 = vpop.permute.xlu0 %2996
    %2998 = vrot.lane.b32.xlu0 %v2987, 127
    %v2999 = vpop.permute.xlu0 %2998
    %v3000 = vsel %vm2131, %v2993, %v2995
    %v3001 = vsel %vm2131, %v2997, %v2999
    %v3006 = vmax.f32 %v2984, %v3000
    %v3007 = vmax.f32 %v2985, %v2995
    %v3008 = vmax.f32 %v2986, %v3001
    %v3009 = vmax.f32 %v2987, %v2999
    %v3010 = vld [vmem:[%s7] sm:$0xff]
    %v3011 = vld [vmem:[%s7 + $0x8] sm:$0xff]
    %v3012 = vld [vmem:[%s7 + $0x10] sm:$0xff]
    %v3013 = vld [vmem:[%s7 + $0x18] sm:$0xff]
    %v3014 = vld [vmem:[%s7 + $0x20] sm:$0xff]
    %v3015 = vld [vmem:[%s7 + $0x28] sm:$0xff]
    %v3016 = vld [vmem:[%s7 + $0x30] sm:$0xff]
    %v3017 = vld [vmem:[%s7 + $0x38] sm:$0xff]
    %v3018 = vld [vmem:[%s7 + $0x40] sm:$0xff]
    %v3019 = vld [vmem:[%s7 + $0x48] sm:$0xff]
    %v3020 = vld [vmem:[%s7 + $0x50] sm:$0xff]
    %v3021 = vld [vmem:[%s7 + $0x58] sm:$0xff]
    %v3022 = vld [vmem:[%s7 + $0x60] sm:$0xff]
    %v3023 = vld [vmem:[%s7 + $0x68] sm:$0xff]
    %v3024 = vld [vmem:[%s7 + $0x70] sm:$0xff]
    %v3025 = vld [vmem:[%s7 + $0x78] sm:$0x1]
    %3030 = vrot.lane.b32.xlu0 %v3006, 12
    %v3031 = vpop.permute.xlu0 %3030
    %3032 = vrot.lane.b32.xlu0 %v3007, 12
    %v3033 = vpop.permute.xlu0 %3032
    %3034 = vrot.lane.b32.xlu0 %v3008, 12
    %v3035 = vpop.permute.xlu0 %3034
    %3036 = vrot.lane.b32.xlu0 %v3009, 12
    %v3037 = vpop.permute.xlu0 %3036
    %v3038 = vsel %vm2614, %v3031, %v3033
    %v3039 = vsel %vm2614, %v3035, %v3037
    %v3040 = vsel %vm1554, %v3038, 0
    %v3042 = vsel %vm1554, %v3039, 0
    %v3045 = vsel %vm603, %v3025, 0
    %3047 = vmatprep.subr.mxu0 0.0
    %3048 = vmatpush1.msra.mxu0 %v3010
    %3049 = vmatprep.subr.mxu0 0.0
    %3050 = vmatpush1.msra.mxu0 %v3011
    %3051 = vmatprep.subr.mxu0 0.0
    %3052 = vmatpush1.msra.mxu0 %v3012
    %3053 = vmatprep.subr.mxu0 0.0
    %3054 = vmatpush1.msra.mxu0 %v3013
    %3055 = vmatprep.subr.mxu0 0.0
    %3056 = vmatpush1.msra.mxu0 %v3014
    %3057 = vmatprep.subr.mxu0 0.0
    %3058 = vmatpush1.msra.mxu0 %v3015
    %3059 = vmatprep.subr.mxu0 0.0
    %3060 = vmatpush1.msra.mxu0 %v3016
    %3061 = vmatprep.subr.mxu0 0.0
    %3062 = vmatpush1.msra.mxu0 %v3017
    %3063 = vmatprep.subr.mxu0 0.0
    %3064 = vmatpush1.msra.mxu0 %v3018
    %3065 = vmatprep.subr.mxu0 0.0
    %3066 = vmatpush1.msra.mxu0 %v3019
    %3067 = vmatprep.subr.mxu0 0.0
    %3068 = vmatpush1.msra.mxu0 %v3020
    %3069 = vmatprep.subr.mxu0 0.0
    %3070 = vmatpush1.msra.mxu0 %v3021
    %3071 = vmatprep.subr.mxu0 0.0
    %3072 = vmatpush1.msra.mxu0 %v3022
    %3073 = vmatprep.subr.mxu0 0.0
    %3074 = vmatpush1.msra.mxu0 %v3023
    %3075 = vmatprep.subr.mxu0 0.0
    %3076 = vmatpush1.msra.mxu0 %v3024
    %3077 = vmatprep.subr.mxu0 0.0
    %3078 = vmatpush1.msra.mxu0 %v3045
    %3079 = vmatprep.subr.mxu0 0.0
    %3080 = vmatpush1.msra.mxu0 0.0
    %3081 = vmatprep.subr.mxu0 0.0
    %3082 = vmatpush1.msra.mxu0 0.0
    %3083 = vmatprep.subr.mxu0 0.0
    %3084 = vmatpush1.msra.mxu0 0.0
    %3085 = vmatprep.subr.mxu0 0.0
    %3086 = vmatpush1.msra.mxu0 0.0
    %3087 = vmatprep.subr.mxu0 0.0
    %3088 = vmatpush1.msra.mxu0 0.0
    %3089 = vmatprep.subr.mxu0 0.0
    %3090 = vmatpush1.msra.mxu0 0.0
    %3091 = vmatprep.subr.mxu0 0.0
    %3092 = vmatpush1.msra.mxu0 0.0
    %3093 = vmatprep.subr.mxu0 0.0
    %3094 = vmatpush1.msra.mxu0 0.0
    %3095 = vmatprep.subr.mxu0 0.0
    %3096 = vmatpush1.msra.mxu0 0.0
    %3097 = vmatprep.subr.mxu0 0.0
    %3098 = vmatpush1.msra.mxu0 0.0
    %3099 = vmatprep.subr.mxu0 0.0
    %3100 = vmatpush1.msra.mxu0 0.0
    %3101 = vmatprep.subr.mxu0 0.0
    %3102 = vmatpush1.msra.mxu0 0.0
    %3103 = vmatprep.subr.mxu0 0.0
    %3104 = vmatpush1.msra.mxu0 0.0
    %3105 = vmatprep.subr.mxu0 0.0
    %3106 = vmatpush1.msra.mxu0 0.0
    %3107 = vmatprep.subr.mxu0 0.0
    %3108 = vmatpush1.msra.mxu0 0.0
    %3109 = vmatprep.subr.mxu0 0.0
    %3110 = vmatpush1.msra.mxu0 0.0
    %3111 = vmatprep.mubr.f32.mxu0 0.0
    %3112 = vmatmul.mubr.f32.gmra.mrb[0].mxu0 %v3040
    %v3113 = vpop.f32.mrb[0].mxu0
    %v3114 = vadd.f32 0.0, %v3113
    %v3115 = vpop.f32.mrb[0].mxu0
    %3116 = vmatprep.mubr.f32.mxu0 0.0
    %3117 = vmatmul.mubr.f32.gmra.mrb[0].mxu0 %v3042
    %v3118 = vpop.f32.mrb[0].mxu0
    %v3119 = vadd.f32 0.0, %v3118
    %v3120 = vpop.f32.mrb[0].mxu0
    %3121 = vdwg.mxu0
    %v3124 = vrot.slane %v3114, 1
    %v3125 = vrot.slane %v3119, 1
    %v3126 = vsel %vm586, %v3124, %v3125
    %v3129 = vmax.f32 %v3114, %v3126
    %v3130 = vmax.f32 %v3119, %v3125
    %v3131 = vld [vmem:[#allocation9] sm:$0xf]
    %v3133 = vsel %vm1649, %v3131, 0
    %v3136 = vsel %vm586, %v3130, 0
    %3138 = vmatprep.subr.mxu0 0.0
    %3139 = vmatpush1.msra.mxu0 %v3129
    %3140 = vmatprep.subr.mxu0 0.0
    %3141 = vmatpush1.msra.mxu0 %v3136
    %3142 = vmatprep.subr.mxu0 0.0
    %3143 = vmatpush1.msra.mxu0 0.0
    %3144 = vmatprep.subr.mxu0 0.0
    %3145 = vmatpush1.msra.mxu0 0.0
    %3146 = vmatprep.subr.mxu0 0.0
    %3147 = vmatpush1.msra.mxu0 0.0
    %3148 = vmatprep.subr.mxu0 0.0
    %3149 = vmatpush1.msra.mxu0 0.0
    %3150 = vmatprep.subr.mxu0 0.0
    %3151 = vmatpush1.msra.mxu0 0.0
    %3152 = vmatprep.subr.mxu0 0.0
    %3153 = vmatpush1.msra.mxu0 0.0
    %3154 = vmatprep.subr.mxu0 0.0
    %3155 = vmatpush1.msra.mxu0 0.0
    %3156 = vmatprep.subr.mxu0 0.0
    %3157 = vmatpush1.msra.mxu0 0.0
    %3158 = vmatprep.subr.mxu0 0.0
    %3159 = vmatpush1.msra.mxu0 0.0
    %3160 = vmatprep.subr.mxu0 0.0
    %3161 = vmatpush1.msra.mxu0 0.0
    %3162 = vmatprep.subr.mxu0 0.0
    %3163 = vmatpush1.msra.mxu0 0.0
    %3164 = vmatprep.subr.mxu0 0.0
    %3165 = vmatpush1.msra.mxu0 0.0
    %3166 = vmatprep.subr.mxu0 0.0
    %3167 = vmatpush1.msra.mxu0 0.0
    %3168 = vmatprep.subr.mxu0 0.0
    %3169 = vmatpush1.msra.mxu0 0.0
    %3170 = vmatprep.subr.mxu0 0.0
    %3171 = vmatpush1.msra.mxu0 0.0
    %3172 = vmatprep.subr.mxu0 0.0
    %3173 = vmatpush1.msra.mxu0 0.0
    %3174 = vmatprep.subr.mxu0 0.0
    %3175 = vmatpush1.msra.mxu0 0.0
    %3176 = vmatprep.subr.mxu0 0.0
    %3177 = vmatpush1.msra.mxu0 0.0
    %3178 = vmatprep.subr.mxu0 0.0
    %3179 = vmatpush1.msra.mxu0 0.0
    %3180 = vmatprep.subr.mxu0 0.0
    %3181 = vmatpush1.msra.mxu0 0.0
    %3182 = vmatprep.subr.mxu0 0.0
    %3183 = vmatpush1.msra.mxu0 0.0
    %3184 = vmatprep.subr.mxu0 0.0
    %3185 = vmatpush1.msra.mxu0 0.0
    %3186 = vmatprep.subr.mxu0 0.0
    %3187 = vmatpush1.msra.mxu0 0.0
    %3188 = vmatprep.subr.mxu0 0.0
    %3189 = vmatpush1.msra.mxu0 0.0
    %3190 = vmatprep.subr.mxu0 0.0
    %3191 = vmatpush1.msra.mxu0 0.0
    %3192 = vmatprep.subr.mxu0 0.0
    %3193 = vmatpush1.msra.mxu0 0.0
    %3194 = vmatprep.subr.mxu0 0.0
    %3195 = vmatpush1.msra.mxu0 0.0
    %3196 = vmatprep.subr.mxu0 0.0
    %3197 = vmatpush1.msra.mxu0 0.0
    %3198 = vmatprep.subr.mxu0 0.0
    %3199 = vmatpush1.msra.mxu0 0.0
    %3200 = vmatprep.subr.mxu0 0.0
    %3201 = vmatpush1.msra.mxu0 0.0
    %3202 = vmatprep.mubr.f32.mxu0 0.0
    %3203 = vmatmul.mubr.f32.gmra.mrb[0].mxu0 %v3133
    %v3204 = vpop.f32.mrb[0].mxu0
    %v3205 = vadd.f32 0.0, %v3204
    %v3206 = vpop.f32.mrb[0].mxu0
    %3207 = vdwg.mxu0
    %3208 = vst.msk [vmem:[#allocation3 + $0x8f] sm:$0x1] %vm1726, %v3205
    %v3210 = vrot.slane %v3205, 2
    %3212 = vst.msk [vmem:[#allocation3 + $0x90] sm:$0xc0] %vm1954, %v3210
    %v3213 = vrot.slane %v3205, 3
    %3215 = vst.msk [vmem:[#allocation3 + $0x98] sm:$0xe0] %vm1958, %v3213
    %v3216 = vrot.slane %v3205, 4
    %3218 = vst.msk [vmem:[#allocation3 + $0xa0] sm:$0xf0] %vm1962, %v3216
    %v3219 = vrot.slane %v3205, 5
    %3221 = vst.msk [vmem:[#allocation3 + $0xa8] sm:$0x70] %vm1966, %v3219
    %v3222 = vrot.slane %v3205, 6
    %3224 = vst.msk [vmem:[#allocation3 + $0xb0] sm:$0x30] %vm1970, %v3222
    %3225 = vst.msk [vmem:[#allocation3 + $0xbc] sm:$0x1] %vm1726, %v3213
    %3228 = vrot.lane.b32.xlu0 %v1013, 18
    %v3229 = vpop.permute.xlu0 %3228
    %3230 = vrot.lane.b32.xlu0 %v1014, 18
    %v3231 = vpop.permute.xlu0 %3230
    %3232 = vrot.lane.b32.xlu0 %v1017, 18
    %v3233 = vpop.permute.xlu0 %3232
    %3234 = vrot.lane.b32.xlu0 %v1018, 18
    %v3235 = vpop.permute.xlu0 %3234
    %vm3236 = vcmask 146432
    %v3237 = vsel %vm3236, %v3229, %v3231
    %v3238 = vsel %vm3236, %v3233, %v3235
    %v3241 = vsel %vm1450, %v3237, 0.0
    %3242 = vadd.xlane.f32.xlu0 %v3241
    %v3243 = vpop.xlane.xlu0 %3242
    %v3244 = vsel %vm1450, %v3238, 0.0
    %3245 = vadd.xlane.f32.xlu0 %v3244
    %v3246 = vpop.xlane.xlu0 %3245
    %v3247 = vadd.f32 %v3243, %v3246
    %v3248 = vrot.slane %v3247, 4
    %v3249 = vadd.f32 %v3247, %v3248
    %v3250 = vrot.slane %v3249, 2
    %v3251 = vadd.f32 %v3249, %v3250
    %v3252 = vrot.slane %v3251, 1
    %v3253 = vadd.f32 %v3251, %v3252
    %v3254 = vadd.f32 %v3253, 0.0
    %3257 = vrot.lane.b32.xlu0 %v1412, 18
    %v3258 = vpop.permute.xlu0 %3257
    %3259 = vrot.lane.b32.xlu0 %v1413, 18
    %v3260 = vpop.permute.xlu0 %3259
    %3261 = vrot.lane.b32.xlu0 %v1416, 18
    %v3262 = vpop.permute.xlu0 %3261
    %3263 = vrot.lane.b32.xlu0 %v1417, 18
    %v3264 = vpop.permute.xlu0 %3263
    %v3265 = vsel %vm3236, %v3258, %v3260
    %v3266 = vsel %vm3236, %v3262, %v3264
    %v3269 = vsel %vm1450, %v3265, 0.0
    %3270 = vadd.xlane.f32.xlu0 %v3269
    %v3271 = vpop.xlane.xlu0 %3270
    %v3272 = vsel %vm1450, %v3266, 0.0
    %3273 = vadd.xlane.f32.xlu0 %v3272
    %v3274 = vpop.xlane.xlu0 %3273
    %v3275 = vadd.f32 %v3271, %v3274
    %v3276 = vrot.slane %v3275, 4
    %v3277 = vadd.f32 %v3275, %v3276
    %v3278 = vrot.slane %v3277, 2
    %v3279 = vadd.f32 %v3277, %v3278
    %v3280 = vrot.slane %v3279, 1
    %v3281 = vadd.f32 %v3279, %v3280
    %v3282 = vadd.f32 %v3254, %v3281
    %v3283 = vmul.f32 %v1014, %v1014
    %v3284 = vmul.f32 %v1018, %v1018
    %3287 = vrot.lane.b32.xlu0 %v2661, 18
    %v3288 = vpop.permute.xlu0 %3287
    %3289 = vrot.lane.b32.xlu0 %v3283, 18
    %v3290 = vpop.permute.xlu0 %3289
    %3291 = vrot.lane.b32.xlu0 %v2662, 18
    %v3292 = vpop.permute.xlu0 %3291
    %3293 = vrot.lane.b32.xlu0 %v3284, 18
    %v3294 = vpop.permute.xlu0 %3293
    %v3295 = vsel %vm3236, %v3288, %v3290
    %v3296 = vsel %vm3236, %v3292, %v3294
    %v3299 = vsel %vm1450, %v3295, 0.0
    %3300 = vadd.xlane.f32.xlu0 %v3299
    %v3301 = vpop.xlane.xlu0 %3300
    %v3302 = vsel %vm1450, %v3296, 0.0
    %3303 = vadd.xlane.f32.xlu0 %v3302
    %v3304 = vpop.xlane.xlu0 %3303
    %v3305 = vadd.f32 %v3301, %v3304
    %v3306 = vrot.slane %v3305, 4
    %v3307 = vadd.f32 %v3305, %v3306
    %v3308 = vrot.slane %v3307, 2
    %v3309 = vadd.f32 %v3307, %v3308
    %v3310 = vrot.slane %v3309, 1
    %v3311 = vadd.f32 %v3309, %v3310
    %v3312 = vadd.f32 %v3311, 0.0
    %v3313 = vmul.f32 %v1413, %v1413
    %v3314 = vmul.f32 %v1417, %v1417
    %3317 = vrot.lane.b32.xlu0 %v2691, 18
    %v3318 = vpop.permute.xlu0 %3317
    %3319 = vrot.lane.b32.xlu0 %v3313, 18
    %v3320 = vpop.permute.xlu0 %3319
    %3321 = vrot.lane.b32.xlu0 %v2692, 18
    %v3322 = vpop.permute.xlu0 %3321
    %3323 = vrot.lane.b32.xlu0 %v3314, 18
    %v3324 = vpop.permute.xlu0 %3323
    %v3325 = vsel %vm3236, %v3318, %v3320
    %v3326 = vsel %vm3236, %v3322, %v3324
    %v3329 = vsel %vm1450, %v3325, 0.0
    %3330 = vadd.xlane.f32.xlu0 %v3329
    %v3331 = vpop.xlane.xlu0 %3330
    %v3332 = vsel %vm1450, %v3326, 0.0
    %3333 = vadd.xlane.f32.xlu0 %v3332
    %v3334 = vpop.xlane.xlu0 %3333
    %v3335 = vadd.f32 %v3331, %v3334
    %v3336 = vrot.slane %v3335, 4
    %v3337 = vadd.f32 %v3335, %v3336
    %v3338 = vrot.slane %v3337, 2
    %v3339 = vadd.f32 %v3337, %v3338
    %v3340 = vrot.slane %v3339, 1
    %v3341 = vadd.f32 %v3339, %v3340
    %v3342 = vadd.f32 %v3312, %v3341
    %v3343 = vmul.f32 %v3282, 0.00025614753
    %v3344 = vmul.f32 %v3342, 0.00025614753
    %v3345 = vmul.f32 %v3343, %v3343
    %v3346 = vsub.f32 %v3344, %v3345
    %v3347 = vmax.f32 %v3346, 0.0
    %v3348 = vrsqrt.pop %v3347
    %s3349 = sld [smem:[#allocation16 + $0x3]]
    %v3350 = vstv %s3349
    %v3351 = vmul.f32 %v3348, %v3350
    %s3352 = sld [smem:[#allocation16 + $0x7]]
    %v3353 = vmul.f32 %v3343, %v3351
    %v3354 = vstv %s3352
    %v3355 = vsub.f32 %v3354, %v3353
    %v3356 = vmul.f32 %v1013, %v3351
    %v3357 = vmul.f32 %v1014, %v3351
    %v3358 = vmul.f32 %v1017, %v3351
    %v3359 = vmul.f32 %v1018, %v3351
    %v3360 = vadd.f32 %v3356, %v3355
    %v3361 = vadd.f32 %v3357, %v3355
    %v3362 = vadd.f32 %v3358, %v3355
    %v3363 = vadd.f32 %v3359, %v3355
    %3368 = vrot.lane.b32.xlu0 %v3360, 127
    %v3369 = vpop.permute.xlu0 %3368
    %3370 = vrot.lane.b32.xlu0 %v3361, 127
    %v3371 = vpop.permute.xlu0 %3370
    %3372 = vrot.lane.b32.xlu0 %v3362, 127
    %v3373 = vpop.permute.xlu0 %3372
    %3374 = vrot.lane.b32.xlu0 %v3363, 127
    %v3375 = vpop.permute.xlu0 %3374
    %v3376 = vsel %vm2131, %v3369, %v3371
    %v3377 = vsel %vm2131, %v3373, %v3375
    %v3382 = vmax.f32 %v3360, %v3376
    %v3383 = vmax.f32 %v3361, %v3371
    %v3384 = vmax.f32 %v3362, %v3377
    %v3385 = vmax.f32 %v3363, %v3375
    %v3386 = vld [vmem:[%s7] sm:$0xff]
    %v3387 = vld [vmem:[%s7 + $0x8] sm:$0xff]
    %v3388 = vld [vmem:[%s7 + $0x10] sm:$0xff]
    %v3389 = vld [vmem:[%s7 + $0x18] sm:$0xff]
    %v3390 = vld [vmem:[%s7 + $0x20] sm:$0xff]
    %v3391 = vld [vmem:[%s7 + $0x28] sm:$0xff]
    %v3392 = vld [vmem:[%s7 + $0x30] sm:$0xff]
    %v3393 = vld [vmem:[%s7 + $0x38] sm:$0xff]
    %v3394 = vld [vmem:[%s7 + $0x40] sm:$0xff]
    %v3395 = vld [vmem:[%s7 + $0x48] sm:$0xff]
    %v3396 = vld [vmem:[%s7 + $0x50] sm:$0xff]
    %v3397 = vld [vmem:[%s7 + $0x58] sm:$0xff]
    %v3398 = vld [vmem:[%s7 + $0x60] sm:$0xff]
    %v3399 = vld [vmem:[%s7 + $0x68] sm:$0xff]
    %v3400 = vld [vmem:[%s7 + $0x70] sm:$0xff]
    %v3401 = vld [vmem:[%s7 + $0x78] sm:$0x1]
    %3406 = vrot.lane.b32.xlu0 %v3382, 18
    %v3407 = vpop.permute.xlu0 %3406
    %3408 = vrot.lane.b32.xlu0 %v3383, 18
    %v3409 = vpop.permute.xlu0 %3408
    %3410 = vrot.lane.b32.xlu0 %v3384, 18
    %v3411 = vpop.permute.xlu0 %3410
    %3412 = vrot.lane.b32.xlu0 %v3385, 18
    %v3413 = vpop.permute.xlu0 %3412
    %v3414 = vsel %vm3236, %v3407, %v3409
    %v3415 = vsel %vm3236, %v3411, %v3413
    %v3416 = vsel %vm1554, %v3414, 0
    %v3418 = vsel %vm1554, %v3415, 0
    %v3421 = vsel %vm603, %v3401, 0
    %3423 = vmatprep.subr.mxu0 0.0
    %3424 = vmatpush1.msra.mxu0 %v3386
    %3425 = vmatprep.subr.mxu0 0.0
    %3426 = vmatpush1.msra.mxu0 %v3387
    %3427 = vmatprep.subr.mxu0 0.0
    %3428 = vmatpush1.msra.mxu0 %v3388
    %3429 = vmatprep.subr.mxu0 0.0
    %3430 = vmatpush1.msra.mxu0 %v3389
    %3431 = vmatprep.subr.mxu0 0.0
    %3432 = vmatpush1.msra.mxu0 %v3390
    %3433 = vmatprep.subr.mxu0 0.0
    %3434 = vmatpush1.msra.mxu0 %v3391
    %3435 = vmatprep.subr.mxu0 0.0
    %3436 = vmatpush1.msra.mxu0 %v3392
    %3437 = vmatprep.subr.mxu0 0.0
    %3438 = vmatpush1.msra.mxu0 %v3393
    %3439 = vmatprep.subr.mxu0 0.0
    %3440 = vmatpush1.msra.mxu0 %v3394
    %3441 = vmatprep.subr.mxu0 0.0
    %3442 = vmatpush1.msra.mxu0 %v3395
    %3443 = vmatprep.subr.mxu0 0.0
    %3444 = vmatpush1.msra.mxu0 %v3396
    %3445 = vmatprep.subr.mxu0 0.0
    %3446 = vmatpush1.msra.mxu0 %v3397
    %3447 = vmatprep.subr.mxu0 0.0
    %3448 = vmatpush1.msra.mxu0 %v3398
    %3449 = vmatprep.subr.mxu0 0.0
    %3450 = vmatpush1.msra.mxu0 %v3399
    %3451 = vmatprep.subr.mxu0 0.0
    %3452 = vmatpush1.msra.mxu0 %v3400
    %3453 = vmatprep.subr.mxu0 0.0
    %3454 = vmatpush1.msra.mxu0 %v3421
    %3455 = vmatprep.subr.mxu0 0.0
    %3456 = vmatpush1.msra.mxu0 0.0
    %3457 = vmatprep.subr.mxu0 0.0
    %3458 = vmatpush1.msra.mxu0 0.0
    %3459 = vmatprep.subr.mxu0 0.0
    %3460 = vmatpush1.msra.mxu0 0.0
    %3461 = vmatprep.subr.mxu0 0.0
    %3462 = vmatpush1.msra.mxu0 0.0
    %3463 = vmatprep.subr.mxu0 0.0
    %3464 = vmatpush1.msra.mxu0 0.0
    %3465 = vmatprep.subr.mxu0 0.0
    %3466 = vmatpush1.msra.mxu0 0.0
    %3467 = vmatprep.subr.mxu0 0.0
    %3468 = vmatpush1.msra.mxu0 0.0
    %3469 = vmatprep.subr.mxu0 0.0
    %3470 = vmatpush1.msra.mxu0 0.0
    %3471 = vmatprep.subr.mxu0 0.0
    %3472 = vmatpush1.msra.mxu0 0.0
    %3473 = vmatprep.subr.mxu0 0.0
    %3474 = vmatpush1.msra.mxu0 0.0
    %3475 = vmatprep.subr.mxu0 0.0
    %3476 = vmatpush1.msra.mxu0 0.0
    %3477 = vmatprep.subr.mxu0 0.0
    %3478 = vmatpush1.msra.mxu0 0.0
    %3479 = vmatprep.subr.mxu0 0.0
    %3480 = vmatpush1.msra.mxu0 0.0
    %3481 = vmatprep.subr.mxu0 0.0
    %3482 = vmatpush1.msra.mxu0 0.0
    %3483 = vmatprep.subr.mxu0 0.0
    %3484 = vmatpush1.msra.mxu0 0.0
    %3485 = vmatprep.subr.mxu0 0.0
    %3486 = vmatpush1.msra.mxu0 0.0
    %3487 = vmatprep.mubr.f32.mxu0 0.0
    %3488 = vmatmul.mubr.f32.gmra.mrb[0].mxu0 %v3416
    %v3489 = vpop.f32.mrb[0].mxu0
    %v3490 = vadd.f32 0.0, %v3489
    %v3491 = vpop.f32.mrb[0].mxu0
    %3492 = vmatprep.mubr.f32.mxu0 0.0
    %3493 = vmatmul.mubr.f32.gmra.mrb[0].mxu0 %v3418
    %v3494 = vpop.f32.mrb[0].mxu0
    %v3495 = vadd.f32 0.0, %v3494
    %v3496 = vpop.f32.mrb[0].mxu0
    %3497 = vdwg.mxu0
    %v3500 = vrot.slane %v3490, 1
    %v3501 = vrot.slane %v3495, 1
    %v3502 = vsel %vm586, %v3500, %v3501
    %v3505 = vmax.f32 %v3490, %v3502
    %v3506 = vmax.f32 %v3495, %v3501
    %v3507 = vld [vmem:[#allocation9] sm:$0xf]
    %v3509 = vsel %vm1649, %v3507, 0
    %v3512 = vsel %vm586, %v3506, 0
    %3514 = vmatprep.subr.mxu0 0.0
    %3515 = vmatpush1.msra.mxu0 %v3505
    %3516 = vmatprep.subr.mxu0 0.0
    %3517 = vmatpush1.msra.mxu0 %v3512
    %3518 = vmatprep.subr.mxu0 0.0
    %3519 = vmatpush1.msra.mxu0 0.0
    %3520 = vmatprep.subr.mxu0 0.0
    %3521 = vmatpush1.msra.mxu0 0.0
    %3522 = vmatprep.subr.mxu0 0.0
    %3523 = vmatpush1.msra.mxu0 0.0
    %3524 = vmatprep.subr.mxu0 0.0
    %3525 = vmatpush1.msra.mxu0 0.0
    %3526 = vmatprep.subr.mxu0 0.0
    %3527 = vmatpush1.msra.mxu0 0.0
    %3528 = vmatprep.subr.mxu0 0.0
    %3529 = vmatpush1.msra.mxu0 0.0
    %3530 = vmatprep.subr.mxu0 0.0
    %3531 = vmatpush1.msra.mxu0 0.0
    %3532 = vmatprep.subr.mxu0 0.0
    %3533 = vmatpush1.msra.mxu0 0.0
    %3534 = vmatprep.subr.mxu0 0.0
    %3535 = vmatpush1.msra.mxu0 0.0
    %3536 = vmatprep.subr.mxu0 0.0
    %3537 = vmatpush1.msra.mxu0 0.0
    %3538 = vmatprep.subr.mxu0 0.0
    %3539 = vmatpush1.msra.mxu0 0.0
    %3540 = vmatprep.subr.mxu0 0.0
    %3541 = vmatpush1.msra.mxu0 0.0
    %3542 = vmatprep.subr.mxu0 0.0
    %3543 = vmatpush1.msra.mxu0 0.0
    %3544 = vmatprep.subr.mxu0 0.0
    %3545 = vmatpush1.msra.mxu0 0.0
    %3546 = vmatprep.subr.mxu0 0.0
    %3547 = vmatpush1.msra.mxu0 0.0
    %3548 = vmatprep.subr.mxu0 0.0
    %3549 = vmatpush1.msra.mxu0 0.0
    %3550 = vmatprep.subr.mxu0 0.0
    %3551 = vmatpush1.msra.mxu0 0.0
    %3552 = vmatprep.subr.mxu0 0.0
    %3553 = vmatpush1.msra.mxu0 0.0
    %3554 = vmatprep.subr.mxu0 0.0
    %3555 = vmatpush1.msra.mxu0 0.0
    %3556 = vmatprep.subr.mxu0 0.0
    %3557 = vmatpush1.msra.mxu0 0.0
    %3558 = vmatprep.subr.mxu0 0.0
    %3559 = vmatpush1.msra.mxu0 0.0
    %3560 = vmatprep.subr.mxu0 0.0
    %3561 = vmatpush1.msra.mxu0 0.0
    %3562 = vmatprep.subr.mxu0 0.0
    %3563 = vmatpush1.msra.mxu0 0.0
    %3564 = vmatprep.subr.mxu0 0.0
    %3565 = vmatpush1.msra.mxu0 0.0
    %3566 = vmatprep.subr.mxu0 0.0
    %3567 = vmatpush1.msra.mxu0 0.0
    %3568 = vmatprep.subr.mxu0 0.0
    %3569 = vmatpush1.msra.mxu0 0.0
    %3570 = vmatprep.subr.mxu0 0.0
    %3571 = vmatpush1.msra.mxu0 0.0
    %3572 = vmatprep.subr.mxu0 0.0
    %3573 = vmatpush1.msra.mxu0 0.0
    %3574 = vmatprep.subr.mxu0 0.0
    %3575 = vmatpush1.msra.mxu0 0.0
    %3576 = vmatprep.subr.mxu0 0.0
    %3577 = vmatpush1.msra.mxu0 0.0
    %3578 = vmatprep.mubr.f32.mxu0 0.0
    %3579 = vmatmul.mubr.f32.gmra.mrb[0].mxu0 %v3509
    %v3580 = vpop.f32.mrb[0].mxu0
    %v3581 = vadd.f32 0.0, %v3580
    %v3582 = vpop.f32.mrb[0].mxu0
    %3583 = vdwg.mxu0
    %3584 = vst.msk [vmem:[#allocation3 + $0xcb] sm:$0x1] %vm1726, %v3581
    %v3586 = vrot.slane %v3581, 6
    %3588 = vst.msk [vmem:[#allocation3 + $0xd0] sm:$0xc] %vm1731, %v3586
    %v3589 = vrot.slane %v3581, 7
    %3591 = vst.msk [vmem:[#allocation3 + $0xd8] sm:$0xe] %vm1735, %v3589
    %3592 = vst.msk [vmem:[#allocation3 + $0xe0] sm:$0xf] %vm1737, %v3581
    %v3593 = vrot.slane %v3581, 1
    %3595 = vst.msk [vmem:[#allocation3 + $0xe8] sm:$0x7] %vm1741, %v3593
    %v3596 = vrot.slane %v3581, 2
    %3598 = vst.msk [vmem:[#allocation3 + $0xf0] sm:$0x3] %vm1745, %v3596
    %v3599 = vrot.slane %v3581, 3
    %3601 = vst.msk [vmem:[#allocation3 + $0xf8] sm:$0x1] %vm1726, %v3599
    %v3602 = vmul.f32 %v1412, %v3351
    %v3603 = vmul.f32 %v1413, %v3351
    %v3604 = vmul.f32 %v1416, %v3351
    %v3605 = vmul.f32 %v1417, %v3351
    %v3606 = vadd.f32 %v3602, %v3355
    %v3607 = vadd.f32 %v3603, %v3355
    %v3608 = vadd.f32 %v3604, %v3355
    %v3609 = vadd.f32 %v3605, %v3355
    %3614 = vrot.lane.b32.xlu0 %v3606, 127
    %v3615 = vpop.permute.xlu0 %3614
    %3616 = vrot.lane.b32.xlu0 %v3607, 127
    %v3617 = vpop.permute.xlu0 %3616
    %3618 = vrot.lane.b32.xlu0 %v3608, 127
    %v3619 = vpop.permute.xlu0 %3618
    %3620 = vrot.lane.b32.xlu0 %v3609, 127
    %v3621 = vpop.permute.xlu0 %3620
    %v3622 = vsel %vm2131, %v3615, %v3617
    %v3623 = vsel %vm2131, %v3619, %v3621
    %v3628 = vmax.f32 %v3606, %v3622
    %v3629 = vmax.f32 %v3607, %v3617
    %v3630 = vmax.f32 %v3608, %v3623
    %v3631 = vmax.f32 %v3609, %v3621
    %v3632 = vld [vmem:[%s7] sm:$0xff]
    %v3633 = vld [vmem:[%s7 + $0x8] sm:$0xff]
    %v3634 = vld [vmem:[%s7 + $0x10] sm:$0xff]
    %v3635 = vld [vmem:[%s7 + $0x18] sm:$0xff]
    %v3636 = vld [vmem:[%s7 + $0x20] sm:$0xff]
    %v3637 = vld [vmem:[%s7 + $0x28] sm:$0xff]
    %v3638 = vld [vmem:[%s7 + $0x30] sm:$0xff]
    %v3639 = vld [vmem:[%s7 + $0x38] sm:$0xff]
    %v3640 = vld [vmem:[%s7 + $0x40] sm:$0xff]
    %v3641 = vld [vmem:[%s7 + $0x48] sm:$0xff]
    %v3642 = vld [vmem:[%s7 + $0x50] sm:$0xff]
    %v3643 = vld [vmem:[%s7 + $0x58] sm:$0xff]
    %v3644 = vld [vmem:[%s7 + $0x60] sm:$0xff]
    %v3645 = vld [vmem:[%s7 + $0x68] sm:$0xff]
    %v3646 = vld [vmem:[%s7 + $0x70] sm:$0xff]
    %v3647 = vld [vmem:[%s7 + $0x78] sm:$0x1]
    %3652 = vrot.lane.b32.xlu0 %v3628, 18
    %v3653 = vpop.permute.xlu0 %3652
    %3654 = vrot.lane.b32.xlu0 %v3629, 18
    %v3655 = vpop.permute.xlu0 %3654
    %3656 = vrot.lane.b32.xlu0 %v3630, 18
    %v3657 = vpop.permute.xlu0 %3656
    %3658 = vrot.lane.b32.xlu0 %v3631, 18
    %v3659 = vpop.permute.xlu0 %3658
    %v3660 = vsel %vm3236, %v3653, %v3655
    %v3661 = vsel %vm3236, %v3657, %v3659
    %v3662 = vsel %vm1554, %v3660, 0
    %v3664 = vsel %vm1554, %v3661, 0
    %v3667 = vsel %vm603, %v3647, 0
    %3669 = vmatprep.subr.mxu0 0.0
    %3670 = vmatpush1.msra.mxu0 %v3632
    %3671 = vmatprep.subr.mxu0 0.0
    %3672 = vmatpush1.msra.mxu0 %v3633
    %3673 = vmatprep.subr.mxu0 0.0
    %3674 = vmatpush1.msra.mxu0 %v3634
    %3675 = vmatprep.subr.mxu0 0.0
    %3676 = vmatpush1.msra.mxu0 %v3635
    %3677 = vmatprep.subr.mxu0 0.0
    %3678 = vmatpush1.msra.mxu0 %v3636
    %3679 = vmatprep.subr.mxu0 0.0
    %3680 = vmatpush1.msra.mxu0 %v3637
    %3681 = vmatprep.subr.mxu0 0.0
    %3682 = vmatpush1.msra.mxu0 %v3638
    %3683 = vmatprep.subr.mxu0 0.0
    %3684 = vmatpush1.msra.mxu0 %v3639
    %3685 = vmatprep.subr.mxu0 0.0
    %3686 = vmatpush1.msra.mxu0 %v3640
    %3687 = vmatprep.subr.mxu0 0.0
    %3688 = vmatpush1.msra.mxu0 %v3641
    %3689 = vmatprep.subr.mxu0 0.0
    %3690 = vmatpush1.msra.mxu0 %v3642
    %3691 = vmatprep.subr.mxu0 0.0
    %3692 = vmatpush1.msra.mxu0 %v3643
    %3693 = vmatprep.subr.mxu0 0.0
    %3694 = vmatpush1.msra.mxu0 %v3644
    %3695 = vmatprep.subr.mxu0 0.0
    %3696 = vmatpush1.msra.mxu0 %v3645
    %3697 = vmatprep.subr.mxu0 0.0
    %3698 = vmatpush1.msra.mxu0 %v3646
    %3699 = vmatprep.subr.mxu0 0.0
    %3700 = vmatpush1.msra.mxu0 %v3667
    %3701 = vmatprep.subr.mxu0 0.0
    %3702 = vmatpush1.msra.mxu0 0.0
    %3703 = vmatprep.subr.mxu0 0.0
    %3704 = vmatpush1.msra.mxu0 0.0
    %3705 = vmatprep.subr.mxu0 0.0
    %3706 = vmatpush1.msra.mxu0 0.0
    %3707 = vmatprep.subr.mxu0 0.0
    %3708 = vmatpush1.msra.mxu0 0.0
    %3709 = vmatprep.subr.mxu0 0.0
    %3710 = vmatpush1.msra.mxu0 0.0
    %3711 = vmatprep.subr.mxu0 0.0
    %3712 = vmatpush1.msra.mxu0 0.0
    %3713 = vmatprep.subr.mxu0 0.0
    %3714 = vmatpush1.msra.mxu0 0.0
    %3715 = vmatprep.subr.mxu0 0.0
    %3716 = vmatpush1.msra.mxu0 0.0
    %3717 = vmatprep.subr.mxu0 0.0
    %3718 = vmatpush1.msra.mxu0 0.0
    %3719 = vmatprep.subr.mxu0 0.0
    %3720 = vmatpush1.msra.mxu0 0.0
    %3721 = vmatprep.subr.mxu0 0.0
    %3722 = vmatpush1.msra.mxu0 0.0
    %3723 = vmatprep.subr.mxu0 0.0
    %3724 = vmatpush1.msra.mxu0 0.0
    %3725 = vmatprep.subr.mxu0 0.0
    %3726 = vmatpush1.msra.mxu0 0.0
    %3727 = vmatprep.subr.mxu0 0.0
    %3728 = vmatpush1.msra.mxu0 0.0
    %3729 = vmatprep.subr.mxu0 0.0
    %3730 = vmatpush1.msra.mxu0 0.0
    %3731 = vmatprep.subr.mxu0 0.0
    %3732 = vmatpush1.msra.mxu0 0.0
    %3733 = vmatprep.mubr.f32.mxu0 0.0
    %3734 = vmatmul.mubr.f32.gmra.mrb[0].mxu0 %v3662
    %v3735 = vpop.f32.mrb[0].mxu0
    %v3736 = vadd.f32 0.0, %v3735
    %v3737 = vpop.f32.mrb[0].mxu0
    %3738 = vmatprep.mubr.f32.mxu0 0.0
    %3739 = vmatmul.mubr.f32.gmra.mrb[0].mxu0 %v3664
    %v3740 = vpop.f32.mrb[0].mxu0
    %v3741 = vadd.f32 0.0, %v3740
    %v3742 = vpop.f32.mrb[0].mxu0
    %3743 = vdwg.mxu0
    %v3746 = vrot.slane %v3736, 1
    %v3747 = vrot.slane %v3741, 1
    %v3748 = vsel %vm586, %v3746, %v3747
    %v3751 = vmax.f32 %v3736, %v3748
    %v3752 = vmax.f32 %v3741, %v3747
    %v3753 = vld [vmem:[#allocation9] sm:$0xf]
    %v3755 = vsel %vm1649, %v3753, 0
    %v3758 = vsel %vm586, %v3752, 0
    %3760 = vmatprep.subr.mxu0 0.0
    %3761 = vmatpush1.msra.mxu0 %v3751
    %3762 = vmatprep.subr.mxu0 0.0
    %3763 = vmatpush1.msra.mxu0 %v3758
    %3764 = vmatprep.subr.mxu0 0.0
    %3765 = vmatpush1.msra.mxu0 0.0
    %3766 = vmatprep.subr.mxu0 0.0
    %3767 = vmatpush1.msra.mxu0 0.0
    %3768 = vmatprep.subr.mxu0 0.0
    %3769 = vmatpush1.msra.mxu0 0.0
    %3770 = vmatprep.subr.mxu0 0.0
    %3771 = vmatpush1.msra.mxu0 0.0
    %3772 = vmatprep.subr.mxu0 0.0
    %3773 = vmatpush1.msra.mxu0 0.0
    %3774 = vmatprep.subr.mxu0 0.0
    %3775 = vmatpush1.msra.mxu0 0.0
    %3776 = vmatprep.subr.mxu0 0.0
    %3777 = vmatpush1.msra.mxu0 0.0
    %3778 = vmatprep.subr.mxu0 0.0
    %3779 = vmatpush1.msra.mxu0 0.0
    %3780 = vmatprep.subr.mxu0 0.0
    %3781 = vmatpush1.msra.mxu0 0.0
    %3782 = vmatprep.subr.mxu0 0.0
    %3783 = vmatpush1.msra.mxu0 0.0
    %3784 = vmatprep.subr.mxu0 0.0
    %3785 = vmatpush1.msra.mxu0 0.0
    %3786 = vmatprep.subr.mxu0 0.0
    %3787 = vmatpush1.msra.mxu0 0.0
    %3788 = vmatprep.subr.mxu0 0.0
    %3789 = vmatpush1.msra.mxu0 0.0
    %3790 = vmatprep.subr.mxu0 0.0
    %3791 = vmatpush1.msra.mxu0 0.0
    %3792 = vmatprep.subr.mxu0 0.0
    %3793 = vmatpush1.msra.mxu0 0.0
    %3794 = vmatprep.subr.mxu0 0.0
    %3795 = vmatpush1.msra.mxu0 0.0
    %3796 = vmatprep.subr.mxu0 0.0
    %3797 = vmatpush1.msra.mxu0 0.0
    %3798 = vmatprep.subr.mxu0 0.0
    %3799 = vmatpush1.msra.mxu0 0.0
    %3800 = vmatprep.subr.mxu0 0.0
    %3801 = vmatpush1.msra.mxu0 0.0
    %3802 = vmatprep.subr.mxu0 0.0
    %3803 = vmatpush1.msra.mxu0 0.0
    %3804 = vmatprep.subr.mxu0 0.0
    %3805 = vmatpush1.msra.mxu0 0.0
    %3806 = vmatprep.subr.mxu0 0.0
    %3807 = vmatpush1.msra.mxu0 0.0
    %3808 = vmatprep.subr.mxu0 0.0
    %3809 = vmatpush1.msra.mxu0 0.0
    %3810 = vmatprep.subr.mxu0 0.0
    %3811 = vmatpush1.msra.mxu0 0.0
    %3812 = vmatprep.subr.mxu0 0.0
    %3813 = vmatpush1.msra.mxu0 0.0
    %3814 = vmatprep.subr.mxu0 0.0
    %3815 = vmatpush1.msra.mxu0 0.0
    %3816 = vmatprep.subr.mxu0 0.0
    %3817 = vmatpush1.msra.mxu0 0.0
    %3818 = vmatprep.subr.mxu0 0.0
    %3819 = vmatpush1.msra.mxu0 0.0
    %3820 = vmatprep.subr.mxu0 0.0
    %3821 = vmatpush1.msra.mxu0 0.0
    %3822 = vmatprep.subr.mxu0 0.0
    %3823 = vmatpush1.msra.mxu0 0.0
    %3824 = vmatprep.mubr.f32.mxu0 0.0
    %3825 = vmatmul.mubr.f32.gmra.mrb[0].mxu0 %v3755
    %v3826 = vpop.f32.mrb[0].mxu0
    %v3827 = vadd.f32 0.0, %v3826
    %v3828 = vpop.f32.mrb[0].mxu0
    %3829 = vdwg.mxu0
    %3830 = vst.msk [vmem:[#allocation3 + $0xcf] sm:$0x1] %vm1726, %v3827
    %v3832 = vrot.slane %v3827, 2
    %3834 = vst.msk [vmem:[#allocation3 + $0xd0] sm:$0xc0] %vm1954, %v3832
    %v3835 = vrot.slane %v3827, 3
    %3837 = vst.msk [vmem:[#allocation3 + $0xd8] sm:$0xe0] %vm1958, %v3835
    %v3838 = vrot.slane %v3827, 4
    %3840 = vst.msk [vmem:[#allocation3 + $0xe0] sm:$0xf0] %vm1962, %v3838
    %v3841 = vrot.slane %v3827, 5
    %3843 = vst.msk [vmem:[#allocation3 + $0xe8] sm:$0x70] %vm1966, %v3841
    %v3844 = vrot.slane %v3827, 6
    %3846 = vst.msk [vmem:[#allocation3 + $0xf0] sm:$0x30] %vm1970, %v3844
    %3847 = vst.msk [vmem:[#allocation3 + $0xfc] sm:$0x1] %vm1726, %v3835
    %v3848 = vld [vmem:[#allocation3] sm:$0xff]
    %v3849 = vld [vmem:[#allocation3 + $0x8] sm:$0xff]
    %v3850 = vld [vmem:[#allocation3 + $0x10] sm:$0xff]
    %v3851 = vld [vmem:[#allocation3 + $0x18] sm:$0xff]
    %v3852 = vld [vmem:[#allocation3 + $0x20] sm:$0xff]
    %v3853 = vld [vmem:[#allocation3 + $0x28] sm:$0xff]
    %v3854 = vld [vmem:[#allocation3 + $0x30] sm:$0xff]
    %v3855 = vld [vmem:[#allocation3 + $0x38] sm:$0xff]
    %v3856 = vld [vmem:[#allocation3 + $0x40] sm:$0xff]
    %v3857 = vld [vmem:[#allocation3 + $0x48] sm:$0xff]
    %v3858 = vld [vmem:[#allocation3 + $0x50] sm:$0xff]
    %v3859 = vld [vmem:[#allocation3 + $0x58] sm:$0xff]
    %v3860 = vld [vmem:[#allocation3 + $0x60] sm:$0xff]
    %v3861 = vld [vmem:[#allocation3 + $0x68] sm:$0xff]
    %v3862 = vld [vmem:[#allocation3 + $0x70] sm:$0xff]
    %v3863 = vld [vmem:[#allocation3 + $0x78] sm:$0xff]
    %v3864 = vld [vmem:[#allocation3 + $0x80] sm:$0xff]
    %v3865 = vld [vmem:[#allocation3 + $0x88] sm:$0xff]
    %v3866 = vld [vmem:[#allocation3 + $0x90] sm:$0xff]
    %v3867 = vld [vmem:[#allocation3 + $0x98] sm:$0xff]
    %v3868 = vld [vmem:[#allocation3 + $0xa0] sm:$0xff]
    %v3869 = vld [vmem:[#allocation3 + $0xa8] sm:$0xff]
    %v3870 = vld [vmem:[#allocation3 + $0xb0] sm:$0xff]
    %v3871 = vld [vmem:[#allocation3 + $0xb8] sm:$0xff]
    %v3872 = vld [vmem:[#allocation3 + $0xc0] sm:$0xff]
    %v3873 = vld [vmem:[#allocation3 + $0xc8] sm:$0xff]
    %v3874 = vld [vmem:[#allocation3 + $0xd0] sm:$0xff]
    %v3875 = vld [vmem:[#allocation3 + $0xd8] sm:$0xff]
    %v3876 = vld [vmem:[#allocation3 + $0xe0] sm:$0xff]
    %v3877 = vld [vmem:[#allocation3 + $0xe8] sm:$0xff]
    %v3878 = vld [vmem:[#allocation3 + $0xf0] sm:$0xff]
    %v3879 = vld [vmem:[#allocation3 + $0xf8] sm:$0xff]
    %v3880 = vld [vmem:[#allocation10] sm:$0xff]
    %v3881 = vld [vmem:[#allocation10 + $0x8] sm:$0xff]
    %v3882 = vld [vmem:[#allocation10 + $0x10] sm:$0xff]
    %v3883 = vld [vmem:[#allocation10 + $0x18] sm:$0xff]
    %v3884 = vld [vmem:[#allocation10 + $0x20] sm:$0xff]
    %v3885 = vld [vmem:[#allocation10 + $0x28] sm:$0xff]
    %v3886 = vld [vmem:[#allocation10 + $0x30] sm:$0xff]
    %v3887 = vld [vmem:[#allocation10 + $0x38] sm:$0xff]
    %v3888 = vld [vmem:[#allocation10 + $0x40] sm:$0xff]
    %v3889 = vld [vmem:[#allocation10 + $0x48] sm:$0xff]
    %v3890 = vld [vmem:[#allocation10 + $0x50] sm:$0xff]
    %v3891 = vld [vmem:[#allocation10 + $0x58] sm:$0xff]
    %v3892 = vld [vmem:[#allocation10 + $0x60] sm:$0xff]
    %v3893 = vld [vmem:[#allocation10 + $0x68] sm:$0xff]
    %v3894 = vld [vmem:[#allocation10 + $0x70] sm:$0xff]
    %v3895 = vld [vmem:[#allocation10 + $0x78] sm:$0xff]
    %v3896 = vld [vmem:[#allocation10 + $0x80] sm:$0xff]
    %v3897 = vld [vmem:[#allocation10 + $0x88] sm:$0xff]
    %v3898 = vld [vmem:[#allocation10 + $0x90] sm:$0xff]
    %v3899 = vld [vmem:[#allocation10 + $0x98] sm:$0xff]
    %v3900 = vld [vmem:[#allocation10 + $0xa0] sm:$0xff]
    %v3901 = vld [vmem:[#allocation10 + $0xa8] sm:$0xff]
    %v3902 = vld [vmem:[#allocation10 + $0xb0] sm:$0xff]
    %v3903 = vld [vmem:[#allocation10 + $0xb8] sm:$0xff]
    %v3904 = vld [vmem:[#allocation10 + $0xc0] sm:$0xff]
    %v3905 = vld [vmem:[#allocation10 + $0xc8] sm:$0xff]
    %v3906 = vld [vmem:[#allocation10 + $0xd0] sm:$0xff]
    %v3907 = vld [vmem:[#allocation10 + $0xd8] sm:$0xff]
    %v3908 = vld [vmem:[#allocation10 + $0xe0] sm:$0xff]
    %v3909 = vld [vmem:[#allocation10 + $0xe8] sm:$0xff]
    %v3910 = vld [vmem:[#allocation10 + $0xf0] sm:$0xff]
    %v3911 = vld [vmem:[#allocation10 + $0xf8] sm:$0xff]
    %v3912 = vld [vmem:[#allocation10 + $0x100] sm:$0xff]
    %v3913 = vld [vmem:[#allocation10 + $0x108] sm:$0xff]
    %v3914 = vld [vmem:[#allocation10 + $0x110] sm:$0xff]
    %v3915 = vld [vmem:[#allocation10 + $0x118] sm:$0xff]
    %v3916 = vld [vmem:[#allocation10 + $0x120] sm:$0xff]
    %v3917 = vld [vmem:[#allocation10 + $0x128] sm:$0xff]
    %v3918 = vld [vmem:[#allocation10 + $0x130] sm:$0xff]
    %v3919 = vld [vmem:[#allocation10 + $0x138] sm:$0xff]
    %v3920 = vld [vmem:[#allocation10 + $0x140] sm:$0xff]
    %v3921 = vld [vmem:[#allocation10 + $0x148] sm:$0xff]
    %v3922 = vld [vmem:[#allocation10 + $0x150] sm:$0xff]
    %v3923 = vld [vmem:[#allocation10 + $0x158] sm:$0xff]
    %v3924 = vld [vmem:[#allocation10 + $0x160] sm:$0xff]
    %v3925 = vld [vmem:[#allocation10 + $0x168] sm:$0xff]
    %v3926 = vld [vmem:[#allocation10 + $0x170] sm:$0xff]
    %v3927 = vld [vmem:[#allocation10 + $0x178] sm:$0xff]
    %v3928 = vld [vmem:[#allocation10 + $0x180] sm:$0xff]
    %v3929 = vld [vmem:[#allocation10 + $0x188] sm:$0xff]
    %v3930 = vld [vmem:[#allocation10 + $0x190] sm:$0xff]
    %v3931 = vld [vmem:[#allocation10 + $0x198] sm:$0xff]
    %v3932 = vld [vmem:[#allocation10 + $0x1a0] sm:$0xff]
    %v3933 = vld [vmem:[#allocation10 + $0x1a8] sm:$0xff]
    %v3934 = vld [vmem:[#allocation10 + $0x1b0] sm:$0xff]
    %v3935 = vld [vmem:[#allocation10 + $0x1b8] sm:$0xff]
    %v3936 = vld [vmem:[#allocation10 + $0x1c0] sm:$0xff]
    %v3937 = vld [vmem:[#allocation10 + $0x1c8] sm:$0xff]
    %v3938 = vld [vmem:[#allocation10 + $0x1d0] sm:$0xff]
    %v3939 = vld [vmem:[#allocation10 + $0x1d8] sm:$0xff]
    %v3940 = vld [vmem:[#allocation10 + $0x1e0] sm:$0xff]
    %v3941 = vld [vmem:[#allocation10 + $0x1e8] sm:$0xff]
    %v3942 = vld [vmem:[#allocation10 + $0x1f0] sm:$0xff]
    %v3943 = vld [vmem:[#allocation10 + $0x1f8] sm:$0xff]
    %v3944 = vld [vmem:[#allocation10 + $0x200] sm:$0xff]
    %v3945 = vld [vmem:[#allocation10 + $0x208] sm:$0xff]
    %v3946 = vld [vmem:[#allocation10 + $0x210] sm:$0xff]
    %v3947 = vld [vmem:[#allocation10 + $0x218] sm:$0xff]
    %v3948 = vld [vmem:[#allocation10 + $0x220] sm:$0xff]
    %v3949 = vld [vmem:[#allocation10 + $0x228] sm:$0xff]
    %v3950 = vld [vmem:[#allocation10 + $0x230] sm:$0xff]
    %v3951 = vld [vmem:[#allocation10 + $0x238] sm:$0xff]
    %v3952 = vld [vmem:[#allocation10 + $0x240] sm:$0xff]
    %v3953 = vld [vmem:[#allocation10 + $0x248] sm:$0xff]
    %v3954 = vld [vmem:[#allocation10 + $0x250] sm:$0xff]
    %v3955 = vld [vmem:[#allocation10 + $0x258] sm:$0xff]
    %v3956 = vld [vmem:[#allocation10 + $0x260] sm:$0xff]
    %v3957 = vld [vmem:[#allocation10 + $0x268] sm:$0xff]
    %v3958 = vld [vmem:[#allocation10 + $0x270] sm:$0xff]
    %v3959 = vld [vmem:[#allocation10 + $0x278] sm:$0xff]
    %v3960 = vld [vmem:[#allocation10 + $0x280] sm:$0xff]
    %v3961 = vld [vmem:[#allocation10 + $0x288] sm:$0xff]
    %v3962 = vld [vmem:[#allocation10 + $0x290] sm:$0xff]
    %v3963 = vld [vmem:[#allocation10 + $0x298] sm:$0xff]
    %v3964 = vld [vmem:[#allocation10 + $0x2a0] sm:$0xff]
    %v3965 = vld [vmem:[#allocation10 + $0x2a8] sm:$0xff]
    %v3966 = vld [vmem:[#allocation10 + $0x2b0] sm:$0xff]
    %v3967 = vld [vmem:[#allocation10 + $0x2b8] sm:$0xff]
    %v3968 = vld [vmem:[#allocation10 + $0x2c0] sm:$0xff]
    %v3969 = vld [vmem:[#allocation10 + $0x2c8] sm:$0xff]
    %v3970 = vld [vmem:[#allocation10 + $0x2d0] sm:$0xff]
    %v3971 = vld [vmem:[#allocation10 + $0x2d8] sm:$0xff]
    %v3972 = vld [vmem:[#allocation10 + $0x2e0] sm:$0xff]
    %v3973 = vld [vmem:[#allocation10 + $0x2e8] sm:$0xff]
    %v3974 = vld [vmem:[#allocation10 + $0x2f0] sm:$0xff]
    %v3975 = vld [vmem:[#allocation10 + $0x2f8] sm:$0xff]
    %v3976 = vld [vmem:[#allocation10 + $0x300] sm:$0xff]
    %v3977 = vld [vmem:[#allocation10 + $0x308] sm:$0xff]
    %v3978 = vld [vmem:[#allocation10 + $0x310] sm:$0xff]
    %v3979 = vld [vmem:[#allocation10 + $0x318] sm:$0xff]
    %v3980 = vld [vmem:[#allocation10 + $0x320] sm:$0xff]
    %v3981 = vld [vmem:[#allocation10 + $0x328] sm:$0xff]
    %v3982 = vld [vmem:[#allocation10 + $0x330] sm:$0xff]
    %v3983 = vld [vmem:[#allocation10 + $0x338] sm:$0xff]
    %v3984 = vld [vmem:[#allocation10 + $0x340] sm:$0xff]
    %v3985 = vld [vmem:[#allocation10 + $0x348] sm:$0xff]
    %v3986 = vld [vmem:[#allocation10 + $0x350] sm:$0xff]
    %v3987 = vld [vmem:[#allocation10 + $0x358] sm:$0xff]
    %v3988 = vld [vmem:[#allocation10 + $0x360] sm:$0xff]
    %v3989 = vld [vmem:[#allocation10 + $0x368] sm:$0xff]
    %v3990 = vld [vmem:[#allocation10 + $0x370] sm:$0xff]
    %v3991 = vld [vmem:[#allocation10 + $0x378] sm:$0xff]
    %v3992 = vld [vmem:[#allocation10 + $0x380] sm:$0xff]
    %v3993 = vld [vmem:[#allocation10 + $0x388] sm:$0xff]
    %v3994 = vld [vmem:[#allocation10 + $0x390] sm:$0xff]
    %v3995 = vld [vmem:[#allocation10 + $0x398] sm:$0xff]
    %v3996 = vld [vmem:[#allocation10 + $0x3a0] sm:$0xff]
    %v3997 = vld [vmem:[#allocation10 + $0x3a8] sm:$0xff]
    %v3998 = vld [vmem:[#allocation10 + $0x3b0] sm:$0xff]
    %v3999 = vld [vmem:[#allocation10 + $0x3b8] sm:$0xff]
    %v4000 = vld [vmem:[#allocation10 + $0x3c0] sm:$0xff]
    %v4001 = vld [vmem:[#allocation10 + $0x3c8] sm:$0xff]
    %v4002 = vld [vmem:[#allocation10 + $0x3d0] sm:$0xff]
    %v4003 = vld [vmem:[#allocation10 + $0x3d8] sm:$0xff]
    %v4004 = vld [vmem:[#allocation10 + $0x3e0] sm:$0xff]
    %v4005 = vld [vmem:[#allocation10 + $0x3e8] sm:$0xff]
    %v4006 = vld [vmem:[#allocation10 + $0x3f0] sm:$0xff]
    %v4007 = vld [vmem:[#allocation10 + $0x3f8] sm:$0xff]
    %v4008 = vld [vmem:[#allocation10 + $0x400] sm:$0xff]
    %v4009 = vld [vmem:[#allocation10 + $0x408] sm:$0xff]
    %v4010 = vld [vmem:[#allocation10 + $0x410] sm:$0xff]
    %v4011 = vld [vmem:[#allocation10 + $0x418] sm:$0xff]
    %v4012 = vld [vmem:[#allocation10 + $0x420] sm:$0xff]
    %v4013 = vld [vmem:[#allocation10 + $0x428] sm:$0xff]
    %v4014 = vld [vmem:[#allocation10 + $0x430] sm:$0xff]
    %v4015 = vld [vmem:[#allocation10 + $0x438] sm:$0xff]
    %v4016 = vld [vmem:[#allocation10 + $0x440] sm:$0xff]
    %v4017 = vld [vmem:[#allocation10 + $0x448] sm:$0xff]
    %v4018 = vld [vmem:[#allocation10 + $0x450] sm:$0xff]
    %v4019 = vld [vmem:[#allocation10 + $0x458] sm:$0xff]
    %v4020 = vld [vmem:[#allocation10 + $0x460] sm:$0xff]
    %v4021 = vld [vmem:[#allocation10 + $0x468] sm:$0xff]
    %v4022 = vld [vmem:[#allocation10 + $0x470] sm:$0xff]
    %v4023 = vld [vmem:[#allocation10 + $0x478] sm:$0xff]
    %v4024 = vld [vmem:[#allocation10 + $0x480] sm:$0xff]
    %v4025 = vld [vmem:[#allocation10 + $0x488] sm:$0xff]
    %v4026 = vld [vmem:[#allocation10 + $0x490] sm:$0xff]
    %v4027 = vld [vmem:[#allocation10 + $0x498] sm:$0xff]
    %v4028 = vld [vmem:[#allocation10 + $0x4a0] sm:$0xff]
    %v4029 = vld [vmem:[#allocation10 + $0x4a8] sm:$0xff]
    %v4030 = vld [vmem:[#allocation10 + $0x4b0] sm:$0xff]
    %v4031 = vld [vmem:[#allocation10 + $0x4b8] sm:$0xff]
    %v4032 = vld [vmem:[#allocation10 + $0x4c0] sm:$0xff]
    %v4033 = vld [vmem:[#allocation10 + $0x4c8] sm:$0xff]
    %v4034 = vld [vmem:[#allocation10 + $0x4d0] sm:$0xff]
    %v4035 = vld [vmem:[#allocation10 + $0x4d8] sm:$0xff]
    %v4036 = vld [vmem:[#allocation10 + $0x4e0] sm:$0xff]
    %v4037 = vld [vmem:[#allocation10 + $0x4e8] sm:$0xff]
    %v4038 = vld [vmem:[#allocation10 + $0x4f0] sm:$0xff]
    %v4039 = vld [vmem:[#allocation10 + $0x4f8] sm:$0xff]
    %v4040 = vld [vmem:[#allocation10 + $0x500] sm:$0xff]
    %v4041 = vld [vmem:[#allocation10 + $0x508] sm:$0xff]
    %v4042 = vld [vmem:[#allocation10 + $0x510] sm:$0xff]
    %v4043 = vld [vmem:[#allocation10 + $0x518] sm:$0xff]
    %v4044 = vld [vmem:[#allocation10 + $0x520] sm:$0xff]
    %v4045 = vld [vmem:[#allocation10 + $0x528] sm:$0xff]
    %v4046 = vld [vmem:[#allocation10 + $0x530] sm:$0xff]
    %v4047 = vld [vmem:[#allocation10 + $0x538] sm:$0xff]
    %v4048 = vld [vmem:[#allocation10 + $0x540] sm:$0xff]
    %v4049 = vld [vmem:[#allocation10 + $0x548] sm:$0xff]
    %v4050 = vld [vmem:[#allocation10 + $0x550] sm:$0xff]
    %v4051 = vld [vmem:[#allocation10 + $0x558] sm:$0xff]
    %v4052 = vld [vmem:[#allocation10 + $0x560] sm:$0xff]
    %v4053 = vld [vmem:[#allocation10 + $0x568] sm:$0xff]
    %v4054 = vld [vmem:[#allocation10 + $0x570] sm:$0xff]
    %v4055 = vld [vmem:[#allocation10 + $0x578] sm:$0xff]
    %v4056 = vld [vmem:[#allocation10 + $0x580] sm:$0xff]
    %v4057 = vld [vmem:[#allocation10 + $0x588] sm:$0xff]
    %v4058 = vld [vmem:[#allocation10 + $0x590] sm:$0xff]
    %v4059 = vld [vmem:[#allocation10 + $0x598] sm:$0xff]
    %v4060 = vld [vmem:[#allocation10 + $0x5a0] sm:$0xff]
    %v4061 = vld [vmem:[#allocation10 + $0x5a8] sm:$0xff]
    %v4062 = vld [vmem:[#allocation10 + $0x5b0] sm:$0xff]
    %v4063 = vld [vmem:[#allocation10 + $0x5b8] sm:$0xff]
    %v4064 = vld [vmem:[#allocation10 + $0x5c0] sm:$0xff]
    %v4065 = vld [vmem:[#allocation10 + $0x5c8] sm:$0xff]
    %v4066 = vld [vmem:[#allocation10 + $0x5d0] sm:$0xff]
    %v4067 = vld [vmem:[#allocation10 + $0x5d8] sm:$0xff]
    %v4068 = vld [vmem:[#allocation10 + $0x5e0] sm:$0xff]
    %v4069 = vld [vmem:[#allocation10 + $0x5e8] sm:$0xff]
    %v4070 = vld [vmem:[#allocation10 + $0x5f0] sm:$0xff]
    %v4071 = vld [vmem:[#allocation10 + $0x5f8] sm:$0xff]
    %v4072 = vld [vmem:[#allocation10 + $0x600] sm:$0xff]
    %v4073 = vld [vmem:[#allocation10 + $0x608] sm:$0xff]
    %v4074 = vld [vmem:[#allocation10 + $0x610] sm:$0xff]
    %v4075 = vld [vmem:[#allocation10 + $0x618] sm:$0xff]
    %v4076 = vld [vmem:[#allocation10 + $0x620] sm:$0xff]
    %v4077 = vld [vmem:[#allocation10 + $0x628] sm:$0xff]
    %v4078 = vld [vmem:[#allocation10 + $0x630] sm:$0xff]
    %v4079 = vld [vmem:[#allocation10 + $0x638] sm:$0xff]
    %v4080 = vld [vmem:[#allocation10 + $0x640] sm:$0xff]
    %v4081 = vld [vmem:[#allocation10 + $0x648] sm:$0xff]
    %v4082 = vld [vmem:[#allocation10 + $0x650] sm:$0xff]
    %v4083 = vld [vmem:[#allocation10 + $0x658] sm:$0xff]
    %v4084 = vld [vmem:[#allocation10 + $0x660] sm:$0xff]
    %v4085 = vld [vmem:[#allocation10 + $0x668] sm:$0xff]
    %v4086 = vld [vmem:[#allocation10 + $0x670] sm:$0xff]
    %v4087 = vld [vmem:[#allocation10 + $0x678] sm:$0xff]
    %v4088 = vld [vmem:[#allocation10 + $0x680] sm:$0xff]
    %v4089 = vld [vmem:[#allocation10 + $0x688] sm:$0xff]
    %v4090 = vld [vmem:[#allocation10 + $0x690] sm:$0xff]
    %v4091 = vld [vmem:[#allocation10 + $0x698] sm:$0xff]
    %v4092 = vld [vmem:[#allocation10 + $0x6a0] sm:$0xff]
    %v4093 = vld [vmem:[#allocation10 + $0x6a8] sm:$0xff]
    %v4094 = vld [vmem:[#allocation10 + $0x6b0] sm:$0xff]
    %v4095 = vld [vmem:[#allocation10 + $0x6b8] sm:$0xff]
    %v4096 = vld [vmem:[#allocation10 + $0x6c0] sm:$0xff]
    %v4097 = vld [vmem:[#allocation10 + $0x6c8] sm:$0xff]
    %v4098 = vld [vmem:[#allocation10 + $0x6d0] sm:$0xff]
    %v4099 = vld [vmem:[#allocation10 + $0x6d8] sm:$0xff]
    %v4100 = vld [vmem:[#allocation10 + $0x6e0] sm:$0xff]
    %v4101 = vld [vmem:[#allocation10 + $0x6e8] sm:$0xff]
    %v4102 = vld [vmem:[#allocation10 + $0x6f0] sm:$0xff]
    %v4103 = vld [vmem:[#allocation10 + $0x6f8] sm:$0xff]
    %v4104 = vld [vmem:[#allocation10 + $0x700] sm:$0xff]
    %v4105 = vld [vmem:[#allocation10 + $0x708] sm:$0xff]
    %v4106 = vld [vmem:[#allocation10 + $0x710] sm:$0xff]
    %v4107 = vld [vmem:[#allocation10 + $0x718] sm:$0xff]
    %v4108 = vld [vmem:[#allocation10 + $0x720] sm:$0xff]
    %v4109 = vld [vmem:[#allocation10 + $0x728] sm:$0xff]
    %v4110 = vld [vmem:[#allocation10 + $0x730] sm:$0xff]
    %v4111 = vld [vmem:[#allocation10 + $0x738] sm:$0xff]
    %v4112 = vld [vmem:[#allocation10 + $0x740] sm:$0xff]
    %v4113 = vld [vmem:[#allocation10 + $0x748] sm:$0xff]
    %v4114 = vld [vmem:[#allocation10 + $0x750] sm:$0xff]
    %v4115 = vld [vmem:[#allocation10 + $0x758] sm:$0xff]
    %v4116 = vld [vmem:[#allocation10 + $0x760] sm:$0xff]
    %v4117 = vld [vmem:[#allocation10 + $0x768] sm:$0xff]
    %v4118 = vld [vmem:[#allocation10 + $0x770] sm:$0xff]
    %v4119 = vld [vmem:[#allocation10 + $0x778] sm:$0xff]
    %v4120 = vld [vmem:[#allocation10 + $0x780] sm:$0xff]
    %v4121 = vld [vmem:[#allocation10 + $0x788] sm:$0xff]
    %v4122 = vld [vmem:[#allocation10 + $0x790] sm:$0xff]
    %v4123 = vld [vmem:[#allocation10 + $0x798] sm:$0xff]
    %v4124 = vld [vmem:[#allocation10 + $0x7a0] sm:$0xff]
    %v4125 = vld [vmem:[#allocation10 + $0x7a8] sm:$0xff]
    %v4126 = vld [vmem:[#allocation10 + $0x7b0] sm:$0xff]
    %v4127 = vld [vmem:[#allocation10 + $0x7b8] sm:$0xff]
    %v4128 = vld [vmem:[#allocation10 + $0x7c0] sm:$0xff]
    %v4129 = vld [vmem:[#allocation10 + $0x7c8] sm:$0xff]
    %v4130 = vld [vmem:[#allocation10 + $0x7d0] sm:$0xff]
    %v4131 = vld [vmem:[#allocation10 + $0x7d8] sm:$0xff]
    %v4132 = vld [vmem:[#allocation10 + $0x7e0] sm:$0xff]
    %v4133 = vld [vmem:[#allocation10 + $0x7e8] sm:$0xff]
    %v4134 = vld [vmem:[#allocation10 + $0x7f0] sm:$0xff]
    %v4135 = vld [vmem:[#allocation10 + $0x7f8] sm:$0xff]
    %v4136 = vld [vmem:[#allocation10 + $0x800] sm:$0xff]
    %v4137 = vld [vmem:[#allocation10 + $0x808] sm:$0xff]
    %v4138 = vld [vmem:[#allocation10 + $0x810] sm:$0xff]
    %v4139 = vld [vmem:[#allocation10 + $0x818] sm:$0xff]
    %v4140 = vld [vmem:[#allocation10 + $0x820] sm:$0xff]
    %v4141 = vld [vmem:[#allocation10 + $0x828] sm:$0xff]
    %v4142 = vld [vmem:[#allocation10 + $0x830] sm:$0xff]
    %v4143 = vld [vmem:[#allocation10 + $0x838] sm:$0xff]
    %v4144 = vld [vmem:[#allocation10 + $0x840] sm:$0xff]
    %v4145 = vld [vmem:[#allocation10 + $0x848] sm:$0xff]
    %v4146 = vld [vmem:[#allocation10 + $0x850] sm:$0xff]
    %v4147 = vld [vmem:[#allocation10 + $0x858] sm:$0xff]
    %v4148 = vld [vmem:[#allocation10 + $0x860] sm:$0xff]
    %v4149 = vld [vmem:[#allocation10 + $0x868] sm:$0xff]
    %v4150 = vld [vmem:[#allocation10 + $0x870] sm:$0xff]
    %v4151 = vld [vmem:[#allocation10 + $0x878] sm:$0xff]
    %v4152 = vld [vmem:[#allocation10 + $0x880] sm:$0xff]
    %v4153 = vld [vmem:[#allocation10 + $0x888] sm:$0xff]
    %v4154 = vld [vmem:[#allocation10 + $0x890] sm:$0xff]
    %v4155 = vld [vmem:[#allocation10 + $0x898] sm:$0xff]
    %v4156 = vld [vmem:[#allocation10 + $0x8a0] sm:$0xff]
    %v4157 = vld [vmem:[#allocation10 + $0x8a8] sm:$0xff]
    %v4158 = vld [vmem:[#allocation10 + $0x8b0] sm:$0xff]
    %v4159 = vld [vmem:[#allocation10 + $0x8b8] sm:$0xff]
    %v4160 = vld [vmem:[#allocation10 + $0x8c0] sm:$0xff]
    %v4161 = vld [vmem:[#allocation10 + $0x8c8] sm:$0xff]
    %v4162 = vld [vmem:[#allocation10 + $0x8d0] sm:$0xff]
    %v4163 = vld [vmem:[#allocation10 + $0x8d8] sm:$0xff]
    %v4164 = vld [vmem:[#allocation10 + $0x8e0] sm:$0xff]
    %v4165 = vld [vmem:[#allocation10 + $0x8e8] sm:$0xff]
    %v4166 = vld [vmem:[#allocation10 + $0x8f0] sm:$0xff]
    %v4167 = vld [vmem:[#allocation10 + $0x8f8] sm:$0xff]
    %v4168 = vld [vmem:[#allocation10 + $0x900] sm:$0xff]
    %v4169 = vld [vmem:[#allocation10 + $0x908] sm:$0xff]
    %v4170 = vld [vmem:[#allocation10 + $0x910] sm:$0xff]
    %v4171 = vld [vmem:[#allocation10 + $0x918] sm:$0xff]
    %v4172 = vld [vmem:[#allocation10 + $0x920] sm:$0xff]
    %v4173 = vld [vmem:[#allocation10 + $0x928] sm:$0xff]
    %v4174 = vld [vmem:[#allocation10 + $0x930] sm:$0xff]
    %v4175 = vld [vmem:[#allocation10 + $0x938] sm:$0xff]
    %v4176 = vld [vmem:[#allocation10 + $0x940] sm:$0xff]
    %v4177 = vld [vmem:[#allocation10 + $0x948] sm:$0xff]
    %v4178 = vld [vmem:[#allocation10 + $0x950] sm:$0xff]
    %v4179 = vld [vmem:[#allocation10 + $0x958] sm:$0xff]
    %v4180 = vld [vmem:[#allocation10 + $0x960] sm:$0xff]
    %v4181 = vld [vmem:[#allocation10 + $0x968] sm:$0xff]
    %v4182 = vld [vmem:[#allocation10 + $0x970] sm:$0xff]
    %v4183 = vld [vmem:[#allocation10 + $0x978] sm:$0xff]
    %v4184 = vld [vmem:[#allocation10 + $0x980] sm:$0xff]
    %v4185 = vld [vmem:[#allocation10 + $0x988] sm:$0xff]
    %v4186 = vld [vmem:[#allocation10 + $0x990] sm:$0xff]
    %v4187 = vld [vmem:[#allocation10 + $0x998] sm:$0xff]
    %v4188 = vld [vmem:[#allocation10 + $0x9a0] sm:$0xff]
    %v4189 = vld [vmem:[#allocation10 + $0x9a8] sm:$0xff]
    %v4190 = vld [vmem:[#allocation10 + $0x9b0] sm:$0xff]
    %v4191 = vld [vmem:[#allocation10 + $0x9b8] sm:$0xff]
    %v4192 = vld [vmem:[#allocation10 + $0x9c0] sm:$0xff]
    %v4193 = vld [vmem:[#allocation10 + $0x9c8] sm:$0xff]
    %v4194 = vld [vmem:[#allocation10 + $0x9d0] sm:$0xff]
    %v4195 = vld [vmem:[#allocation10 + $0x9d8] sm:$0xff]
    %v4196 = vld [vmem:[#allocation10 + $0x9e0] sm:$0xff]
    %v4197 = vld [vmem:[#allocation10 + $0x9e8] sm:$0xff]
    %v4198 = vld [vmem:[#allocation10 + $0x9f0] sm:$0xff]
    %v4199 = vld [vmem:[#allocation10 + $0x9f8] sm:$0xff]
    %v4200 = vld [vmem:[#allocation10 + $0xa00] sm:$0xff]
    %v4201 = vld [vmem:[#allocation10 + $0xa08] sm:$0xff]
    %v4202 = vld [vmem:[#allocation10 + $0xa10] sm:$0xff]
    %v4203 = vld [vmem:[#allocation10 + $0xa18] sm:$0xff]
    %v4204 = vld [vmem:[#allocation10 + $0xa20] sm:$0xff]
    %v4205 = vld [vmem:[#allocation10 + $0xa28] sm:$0xff]
    %v4206 = vld [vmem:[#allocation10 + $0xa30] sm:$0xff]
    %v4207 = vld [vmem:[#allocation10 + $0xa38] sm:$0xff]
    %v4208 = vld [vmem:[#allocation10 + $0xa40] sm:$0xff]
    %v4209 = vld [vmem:[#allocation10 + $0xa48] sm:$0xff]
    %v4210 = vld [vmem:[#allocation10 + $0xa50] sm:$0xff]
    %v4211 = vld [vmem:[#allocation10 + $0xa58] sm:$0xff]
    %v4212 = vld [vmem:[#allocation10 + $0xa60] sm:$0xff]
    %v4213 = vld [vmem:[#allocation10 + $0xa68] sm:$0xff]
    %v4214 = vld [vmem:[#allocation10 + $0xa70] sm:$0xff]
    %v4215 = vld [vmem:[#allocation10 + $0xa78] sm:$0xff]
    %v4216 = vld [vmem:[#allocation10 + $0xa80] sm:$0xff]
    %v4217 = vld [vmem:[#allocation10 + $0xa88] sm:$0xff]
    %v4218 = vld [vmem:[#allocation10 + $0xa90] sm:$0xff]
    %v4219 = vld [vmem:[#allocation10 + $0xa98] sm:$0xff]
    %v4220 = vld [vmem:[#allocation10 + $0xaa0] sm:$0xff]
    %v4221 = vld [vmem:[#allocation10 + $0xaa8] sm:$0xff]
    %v4222 = vld [vmem:[#allocation10 + $0xab0] sm:$0xff]
    %v4223 = vld [vmem:[#allocation10 + $0xab8] sm:$0xff]
    %v4224 = vld [vmem:[#allocation10 + $0xac0] sm:$0xff]
    %v4225 = vld [vmem:[#allocation10 + $0xac8] sm:$0xff]
    %v4226 = vld [vmem:[#allocation10 + $0xad0] sm:$0xff]
    %v4227 = vld [vmem:[#allocation10 + $0xad8] sm:$0xff]
    %v4228 = vld [vmem:[#allocation10 + $0xae0] sm:$0xff]
    %v4229 = vld [vmem:[#allocation10 + $0xae8] sm:$0xff]
    %v4230 = vld [vmem:[#allocation10 + $0xaf0] sm:$0xff]
    %v4231 = vld [vmem:[#allocation10 + $0xaf8] sm:$0xff]
    %v4232 = vld [vmem:[#allocation10 + $0xb00] sm:$0xff]
    %v4233 = vld [vmem:[#allocation10 + $0xb08] sm:$0xff]
    %v4234 = vld [vmem:[#allocation10 + $0xb10] sm:$0xff]
    %v4235 = vld [vmem:[#allocation10 + $0xb18] sm:$0xff]
    %v4236 = vld [vmem:[#allocation10 + $0xb20] sm:$0xff]
    %v4237 = vld [vmem:[#allocation10 + $0xb28] sm:$0xff]
    %v4238 = vld [vmem:[#allocation10 + $0xb30] sm:$0xff]
    %v4239 = vld [vmem:[#allocation10 + $0xb38] sm:$0xff]
    %v4240 = vld [vmem:[#allocation10 + $0xb40] sm:$0xff]
    %v4241 = vld [vmem:[#allocation10 + $0xb48] sm:$0xff]
    %v4242 = vld [vmem:[#allocation10 + $0xb50] sm:$0xff]
    %v4243 = vld [vmem:[#allocation10 + $0xb58] sm:$0xff]
    %v4244 = vld [vmem:[#allocation10 + $0xb60] sm:$0xff]
    %v4245 = vld [vmem:[#allocation10 + $0xb68] sm:$0xff]
    %v4246 = vld [vmem:[#allocation10 + $0xb70] sm:$0xff]
    %v4247 = vld [vmem:[#allocation10 + $0xb78] sm:$0xff]
    %v4248 = vld [vmem:[#allocation10 + $0xb80] sm:$0xff]
    %v4249 = vld [vmem:[#allocation10 + $0xb88] sm:$0xff]
    %v4250 = vld [vmem:[#allocation10 + $0xb90] sm:$0xff]
    %v4251 = vld [vmem:[#allocation10 + $0xb98] sm:$0xff]
    %v4252 = vld [vmem:[#allocation10 + $0xba0] sm:$0xff]
    %v4253 = vld [vmem:[#allocation10 + $0xba8] sm:$0xff]
    %v4254 = vld [vmem:[#allocation10 + $0xbb0] sm:$0xff]
    %v4255 = vld [vmem:[#allocation10 + $0xbb8] sm:$0xff]
    %v4256 = vld [vmem:[#allocation10 + $0xbc0] sm:$0xff]
    %v4257 = vld [vmem:[#allocation10 + $0xbc8] sm:$0xff]
    %v4258 = vld [vmem:[#allocation10 + $0xbd0] sm:$0xff]
    %v4259 = vld [vmem:[#allocation10 + $0xbd8] sm:$0xff]
    %v4260 = vld [vmem:[#allocation10 + $0xbe0] sm:$0xff]
    %v4261 = vld [vmem:[#allocation10 + $0xbe8] sm:$0xff]
    %v4262 = vld [vmem:[#allocation10 + $0xbf0] sm:$0xff]
    %v4263 = vld [vmem:[#allocation10 + $0xbf8] sm:$0xff]
    %v4264 = vld [vmem:[#allocation10 + $0xc00] sm:$0xff]
    %v4265 = vld [vmem:[#allocation10 + $0xc08] sm:$0xff]
    %v4266 = vld [vmem:[#allocation10 + $0xc10] sm:$0xff]
    %v4267 = vld [vmem:[#allocation10 + $0xc18] sm:$0xff]
    %v4268 = vld [vmem:[#allocation10 + $0xc20] sm:$0xff]
    %v4269 = vld [vmem:[#allocation10 + $0xc28] sm:$0xff]
    %v4270 = vld [vmem:[#allocation10 + $0xc30] sm:$0xff]
    %v4271 = vld [vmem:[#allocation10 + $0xc38] sm:$0xff]
    %v4272 = vld [vmem:[#allocation10 + $0xc40] sm:$0xff]
    %v4273 = vld [vmem:[#allocation10 + $0xc48] sm:$0xff]
    %v4274 = vld [vmem:[#allocation10 + $0xc50] sm:$0xff]
    %v4275 = vld [vmem:[#allocation10 + $0xc58] sm:$0xff]
    %v4276 = vld [vmem:[#allocation10 + $0xc60] sm:$0xff]
    %v4277 = vld [vmem:[#allocation10 + $0xc68] sm:$0xff]
    %v4278 = vld [vmem:[#allocation10 + $0xc70] sm:$0xff]
    %v4279 = vld [vmem:[#allocation10 + $0xc78] sm:$0xff]
    %v4280 = vld [vmem:[#allocation10 + $0xc80] sm:$0xff]
    %v4281 = vld [vmem:[#allocation10 + $0xc88] sm:$0xff]
    %v4282 = vld [vmem:[#allocation10 + $0xc90] sm:$0xff]
    %v4283 = vld [vmem:[#allocation10 + $0xc98] sm:$0xff]
    %v4284 = vld [vmem:[#allocation10 + $0xca0] sm:$0xff]
    %v4285 = vld [vmem:[#allocation10 + $0xca8] sm:$0xff]
    %v4286 = vld [vmem:[#allocation10 + $0xcb0] sm:$0xff]
    %v4287 = vld [vmem:[#allocation10 + $0xcb8] sm:$0xff]
    %v4288 = vld [vmem:[#allocation10 + $0xcc0] sm:$0xff]
    %v4289 = vld [vmem:[#allocation10 + $0xcc8] sm:$0xff]
    %v4290 = vld [vmem:[#allocation10 + $0xcd0] sm:$0xff]
    %v4291 = vld [vmem:[#allocation10 + $0xcd8] sm:$0xff]
    %v4292 = vld [vmem:[#allocation10 + $0xce0] sm:$0xff]
    %v4293 = vld [vmem:[#allocation10 + $0xce8] sm:$0xff]
    %v4294 = vld [vmem:[#allocation10 + $0xcf0] sm:$0xff]
    %v4295 = vld [vmem:[#allocation10 + $0xcf8] sm:$0xff]
    %v4296 = vld [vmem:[#allocation10 + $0xd00] sm:$0xff]
    %v4297 = vld [vmem:[#allocation10 + $0xd08] sm:$0xff]
    %v4298 = vld [vmem:[#allocation10 + $0xd10] sm:$0xff]
    %v4299 = vld [vmem:[#allocation10 + $0xd18] sm:$0xff]
    %v4300 = vld [vmem:[#allocation10 + $0xd20] sm:$0xff]
    %v4301 = vld [vmem:[#allocation10 + $0xd28] sm:$0xff]
    %v4302 = vld [vmem:[#allocation10 + $0xd30] sm:$0xff]
    %v4303 = vld [vmem:[#allocation10 + $0xd38] sm:$0xff]
    %v4304 = vld [vmem:[#allocation10 + $0xd40] sm:$0xff]
    %v4305 = vld [vmem:[#allocation10 + $0xd48] sm:$0xff]
    %v4306 = vld [vmem:[#allocation10 + $0xd50] sm:$0xff]
    %v4307 = vld [vmem:[#allocation10 + $0xd58] sm:$0xff]
    %v4308 = vld [vmem:[#allocation10 + $0xd60] sm:$0xff]
    %v4309 = vld [vmem:[#allocation10 + $0xd68] sm:$0xff]
    %v4310 = vld [vmem:[#allocation10 + $0xd70] sm:$0xff]
    %v4311 = vld [vmem:[#allocation10 + $0xd78] sm:$0xff]
    %v4312 = vld [vmem:[#allocation10 + $0xd80] sm:$0xff]
    %v4313 = vld [vmem:[#allocation10 + $0xd88] sm:$0xff]
    %v4314 = vld [vmem:[#allocation10 + $0xd90] sm:$0xff]
    %v4315 = vld [vmem:[#allocation10 + $0xd98] sm:$0xff]
    %v4316 = vld [vmem:[#allocation10 + $0xda0] sm:$0xff]
    %v4317 = vld [vmem:[#allocation10 + $0xda8] sm:$0xff]
    %v4318 = vld [vmem:[#allocation10 + $0xdb0] sm:$0xff]
    %v4319 = vld [vmem:[#allocation10 + $0xdb8] sm:$0xff]
    %v4320 = vld [vmem:[#allocation10 + $0xdc0] sm:$0xff]
    %v4321 = vld [vmem:[#allocation10 + $0xdc8] sm:$0xff]
    %v4322 = vld [vmem:[#allocation10 + $0xdd0] sm:$0xff]
    %v4323 = vld [vmem:[#allocation10 + $0xdd8] sm:$0xff]
    %v4324 = vld [vmem:[#allocation10 + $0xde0] sm:$0xff]
    %v4325 = vld [vmem:[#allocation10 + $0xde8] sm:$0xff]
    %v4326 = vld [vmem:[#allocation10 + $0xdf0] sm:$0xff]
    %v4327 = vld [vmem:[#allocation10 + $0xdf8] sm:$0xff]
    %v4328 = vld [vmem:[#allocation10 + $0xe00] sm:$0xff]
    %v4329 = vld [vmem:[#allocation10 + $0xe08] sm:$0xff]
    %v4330 = vld [vmem:[#allocation10 + $0xe10] sm:$0xff]
    %v4331 = vld [vmem:[#allocation10 + $0xe18] sm:$0xff]
    %v4332 = vld [vmem:[#allocation10 + $0xe20] sm:$0xff]
    %v4333 = vld [vmem:[#allocation10 + $0xe28] sm:$0xff]
    %v4334 = vld [vmem:[#allocation10 + $0xe30] sm:$0xff]
    %v4335 = vld [vmem:[#allocation10 + $0xe38] sm:$0xff]
    %v4336 = vld [vmem:[#allocation10 + $0xe40] sm:$0xff]
    %v4337 = vld [vmem:[#allocation10 + $0xe48] sm:$0xff]
    %v4338 = vld [vmem:[#allocation10 + $0xe50] sm:$0xff]
    %v4339 = vld [vmem:[#allocation10 + $0xe58] sm:$0xff]
    %v4340 = vld [vmem:[#allocation10 + $0xe60] sm:$0xff]
    %v4341 = vld [vmem:[#allocation10 + $0xe68] sm:$0xff]
    %v4342 = vld [vmem:[#allocation10 + $0xe70] sm:$0xff]
    %v4343 = vld [vmem:[#allocation10 + $0xe78] sm:$0xff]
    %v4344 = vld [vmem:[#allocation10 + $0xe80] sm:$0xff]
    %v4345 = vld [vmem:[#allocation10 + $0xe88] sm:$0xff]
    %v4346 = vld [vmem:[#allocation10 + $0xe90] sm:$0xff]
    %v4347 = vld [vmem:[#allocation10 + $0xe98] sm:$0xff]
    %v4348 = vld [vmem:[#allocation10 + $0xea0] sm:$0xff]
    %v4349 = vld [vmem:[#allocation10 + $0xea8] sm:$0xff]
    %v4350 = vld [vmem:[#allocation10 + $0xeb0] sm:$0xff]
    %v4351 = vld [vmem:[#allocation10 + $0xeb8] sm:$0xff]
    %v4352 = vld [vmem:[#allocation10 + $0xec0] sm:$0xff]
    %v4353 = vld [vmem:[#allocation10 + $0xec8] sm:$0xff]
    %v4354 = vld [vmem:[#allocation10 + $0xed0] sm:$0xff]
    %v4355 = vld [vmem:[#allocation10 + $0xed8] sm:$0xff]
    %v4356 = vld [vmem:[#allocation10 + $0xee0] sm:$0xff]
    %v4357 = vld [vmem:[#allocation10 + $0xee8] sm:$0xff]
    %v4358 = vld [vmem:[#allocation10 + $0xef0] sm:$0xff]
    %v4359 = vld [vmem:[#allocation10 + $0xef8] sm:$0xff]
    %v4360 = vld [vmem:[#allocation10 + $0xf00] sm:$0xff]
    %v4361 = vld [vmem:[#allocation10 + $0xf08] sm:$0xff]
    %v4362 = vld [vmem:[#allocation10 + $0xf10] sm:$0xff]
    %v4363 = vld [vmem:[#allocation10 + $0xf18] sm:$0xff]
    %v4364 = vld [vmem:[#allocation10 + $0xf20] sm:$0xff]
    %v4365 = vld [vmem:[#allocation10 + $0xf28] sm:$0xff]
    %v4366 = vld [vmem:[#allocation10 + $0xf30] sm:$0xff]
    %v4367 = vld [vmem:[#allocation10 + $0xf38] sm:$0xff]
    %v4368 = vld [vmem:[#allocation10 + $0xf40] sm:$0xff]
    %v4369 = vld [vmem:[#allocation10 + $0xf48] sm:$0xff]
    %v4370 = vld [vmem:[#allocation10 + $0xf50] sm:$0xff]
    %v4371 = vld [vmem:[#allocation10 + $0xf58] sm:$0xff]
    %v4372 = vld [vmem:[#allocation10 + $0xf60] sm:$0xff]
    %v4373 = vld [vmem:[#allocation10 + $0xf68] sm:$0xff]
    %v4374 = vld [vmem:[#allocation10 + $0xf70] sm:$0xff]
    %v4375 = vld [vmem:[#allocation10 + $0xf78] sm:$0xff]
    %v4376 = vld [vmem:[#allocation10 + $0xf80] sm:$0xff]
    %v4377 = vld [vmem:[#allocation10 + $0xf88] sm:$0xff]
    %v4378 = vld [vmem:[#allocation10 + $0xf90] sm:$0xff]
    %v4379 = vld [vmem:[#allocation10 + $0xf98] sm:$0xff]
    %v4380 = vld [vmem:[#allocation10 + $0xfa0] sm:$0xff]
    %v4381 = vld [vmem:[#allocation10 + $0xfa8] sm:$0xff]
    %v4382 = vld [vmem:[#allocation10 + $0xfb0] sm:$0xff]
    %v4383 = vld [vmem:[#allocation10 + $0xfb8] sm:$0xff]
    %v4384 = vld [vmem:[#allocation10 + $0xfc0] sm:$0xff]
    %v4385 = vld [vmem:[#allocation10 + $0xfc8] sm:$0xff]
    %v4386 = vld [vmem:[#allocation10 + $0xfd0] sm:$0xff]
    %v4387 = vld [vmem:[#allocation10 + $0xfd8] sm:$0xff]
    %v4388 = vld [vmem:[#allocation10 + $0xfe0] sm:$0xff]
    %v4389 = vld [vmem:[#allocation10 + $0xfe8] sm:$0xff]
    %v4390 = vld [vmem:[#allocation10 + $0xff0] sm:$0xff]
    %v4391 = vld [vmem:[#allocation10 + $0xff8] sm:$0xff]
    %v4392 = vld [vmem:[#allocation12] sm:$0x1]
    %v4394 = vlaneseq
    %v4395 = vshrl.u32 %v4394, 7
    %v4396 = vsub.s32 0, %v4395
    %v4397 = vrot.slane %v4392, %v4396
    %4399 = vmatprep.subr.mxu0 0.0
    %4400 = vmatpush1.msra.mxu0 %v3880
    %4401 = vmatprep.subr.mxu0 0.0
    %4402 = vmatpush1.msra.mxu0 %v3881
    %4403 = vmatprep.subr.mxu0 0.0
    %4404 = vmatpush1.msra.mxu0 %v3882
    %4405 = vmatprep.subr.mxu0 0.0
    %4406 = vmatpush1.msra.mxu0 %v3883
    %4407 = vmatprep.subr.mxu0 0.0
    %4408 = vmatpush1.msra.mxu0 %v3884
    %4409 = vmatprep.subr.mxu0 0.0
    %4410 = vmatpush1.msra.mxu0 %v3885
    %4411 = vmatprep.subr.mxu0 0.0
    %4412 = vmatpush1.msra.mxu0 %v3886
    %4413 = vmatprep.subr.mxu0 0.0
    %4414 = vmatpush1.msra.mxu0 %v3887
    %4415 = vmatprep.subr.mxu0 0.0
    %4416 = vmatpush1.msra.mxu0 %v3888
    %4417 = vmatprep.subr.mxu0 0.0
    %4418 = vmatpush1.msra.mxu0 %v3889
    %4419 = vmatprep.subr.mxu0 0.0
    %4420 = vmatpush1.msra.mxu0 %v3890
    %4421 = vmatprep.subr.mxu0 0.0
    %4422 = vmatpush1.msra.mxu0 %v3891
    %4423 = vmatprep.subr.mxu0 0.0
    %4424 = vmatpush1.msra.mxu0 %v3892
    %4425 = vmatprep.subr.mxu0 0.0
    %4426 = vmatpush1.msra.mxu0 %v3893
    %4427 = vmatprep.subr.mxu0 0.0
    %4428 = vmatpush1.msra.mxu0 %v3894
    %4429 = vmatprep.subr.mxu0 0.0
    %4430 = vmatpush1.msra.mxu0 %v3895
    %4431 = vmatprep.subr.mxu0 0.0
    %4432 = vmatpush1.msra.mxu0 %v3896
    %4433 = vmatprep.subr.mxu0 0.0
    %4434 = vmatpush1.msra.mxu0 %v3897
    %4435 = vmatprep.subr.mxu0 0.0
    %4436 = vmatpush1.msra.mxu0 %v3898
    %4437 = vmatprep.subr.mxu0 0.0
    %4438 = vmatpush1.msra.mxu0 %v3899
    %4439 = vmatprep.subr.mxu0 0.0
    %4440 = vmatpush1.msra.mxu0 %v3900
    %4441 = vmatprep.subr.mxu0 0.0
    %4442 = vmatpush1.msra.mxu0 %v3901
    %4443 = vmatprep.subr.mxu0 0.0
    %4444 = vmatpush1.msra.mxu0 %v3902
    %4445 = vmatprep.subr.mxu0 0.0
    %4446 = vmatpush1.msra.mxu0 %v3903
    %4447 = vmatprep.subr.mxu0 0.0
    %4448 = vmatpush1.msra.mxu0 %v3904
    %4449 = vmatprep.subr.mxu0 0.0
    %4450 = vmatpush1.msra.mxu0 %v3905
    %4451 = vmatprep.subr.mxu0 0.0
    %4452 = vmatpush1.msra.mxu0 %v3906
    %4453 = vmatprep.subr.mxu0 0.0
    %4454 = vmatpush1.msra.mxu0 %v3907
    %4455 = vmatprep.subr.mxu0 0.0
    %4456 = vmatpush1.msra.mxu0 %v3908
    %4457 = vmatprep.subr.mxu0 0.0
    %4458 = vmatpush1.msra.mxu0 %v3909
    %4459 = vmatprep.subr.mxu0 0.0
    %4460 = vmatpush1.msra.mxu0 %v3910
    %4461 = vmatprep.subr.mxu0 0.0
    %4462 = vmatpush1.msra.mxu0 %v3911
    %4463 = vmatprep.mubr.f32.mxu0 %v3849
    %4464 = vmatmul.mubr.f32.gmra.mrb[0].mxu0 %v3848
    %v4465 = vpop.f32.mrb[0].mxu0
    %v4466 = vadd.f32 %v4397, %v4465
    %v4467 = vpop.f32.mrb[0].mxu0
    %4468 = vdwg.mxu0
    %4469 = vmatprep.subr.mxu0 0.0
    %4470 = vmatpush1.msra.mxu0 %v3912
    %4471 = vmatprep.subr.mxu0 0.0
    %4472 = vmatpush1.msra.mxu0 %v3913
    %4473 = vmatprep.subr.mxu0 0.0
    %4474 = vmatpush1.msra.mxu0 %v3914
    %4475 = vmatprep.subr.mxu0 0.0
    %4476 = vmatpush1.msra.mxu0 %v3915
    %4477 = vmatprep.subr.mxu0 0.0
    %4478 = vmatpush1.msra.mxu0 %v3916
    %4479 = vmatprep.subr.mxu0 0.0
    %4480 = vmatpush1.msra.mxu0 %v3917
    %4481 = vmatprep.subr.mxu0 0.0
    %4482 = vmatpush1.msra.mxu0 %v3918
    %4483 = vmatprep.subr.mxu0 0.0
    %4484 = vmatpush1.msra.mxu0 %v3919
    %4485 = vmatprep.subr.mxu0 0.0
    %4486 = vmatpush1.msra.mxu0 %v3920
    %4487 = vmatprep.subr.mxu0 0.0
    %4488 = vmatpush1.msra.mxu0 %v3921
    %4489 = vmatprep.subr.mxu0 0.0
    %4490 = vmatpush1.msra.mxu0 %v3922
    %4491 = vmatprep.subr.mxu0 0.0
    %4492 = vmatpush1.msra.mxu0 %v3923
    %4493 = vmatprep.subr.mxu0 0.0
    %4494 = vmatpush1.msra.mxu0 %v3924
    %4495 = vmatprep.subr.mxu0 0.0
    %4496 = vmatpush1.msra.mxu0 %v3925
    %4497 = vmatprep.subr.mxu0 0.0
    %4498 = vmatpush1.msra.mxu0 %v3926
    %4499 = vmatprep.subr.mxu0 0.0
    %4500 = vmatpush1.msra.mxu0 %v3927
    %4501 = vmatprep.subr.mxu0 0.0
    %4502 = vmatpush1.msra.mxu0 %v3928
    %4503 = vmatprep.subr.mxu0 0.0
    %4504 = vmatpush1.msra.mxu0 %v3929
    %4505 = vmatprep.subr.mxu0 0.0
    %4506 = vmatpush1.msra.mxu0 %v3930
    %4507 = vmatprep.subr.mxu0 0.0
    %4508 = vmatpush1.msra.mxu0 %v3931
    %4509 = vmatprep.subr.mxu0 0.0
    %4510 = vmatpush1.msra.mxu0 %v3932
    %4511 = vmatprep.subr.mxu0 0.0
    %4512 = vmatpush1.msra.mxu0 %v3933
    %4513 = vmatprep.subr.mxu0 0.0
    %4514 = vmatpush1.msra.mxu0 %v3934
    %4515 = vmatprep.subr.mxu0 0.0
    %4516 = vmatpush1.msra.mxu0 %v3935
    %4517 = vmatprep.subr.mxu0 0.0
    %4518 = vmatpush1.msra.mxu0 %v3936
    %4519 = vmatprep.subr.mxu0 0.0
    %4520 = vmatpush1.msra.mxu0 %v3937
    %4521 = vmatprep.subr.mxu0 0.0
    %4522 = vmatpush1.msra.mxu0 %v3938
    %4523 = vmatprep.subr.mxu0 0.0
    %4524 = vmatpush1.msra.mxu0 %v3939
    %4525 = vmatprep.subr.mxu0 0.0
    %4526 = vmatpush1.msra.mxu0 %v3940
    %4527 = vmatprep.subr.mxu0 0.0
    %4528 = vmatpush1.msra.mxu0 %v3941
    %4529 = vmatprep.subr.mxu0 0.0
    %4530 = vmatpush1.msra.mxu0 %v3942
    %4531 = vmatprep.subr.mxu0 0.0
    %4532 = vmatpush1.msra.mxu0 %v3943
    %4533 = vmatprep.mubr.f32.mxu0 %v3851
    %4534 = vmatmul.mubr.f32.gmra.mrb[0].mxu0 %v3850
    %v4535 = vpop.f32.mrb[0].mxu0
    %v4536 = vadd.f32 %v4466, %v4535
    %v4537 = vpop.f32.mrb[0].mxu0
    %4538 = vdwg.mxu0
    %4539 = vmatprep.subr.mxu0 0.0
    %4540 = vmatpush1.msra.mxu0 %v3944
    %4541 = vmatprep.subr.mxu0 0.0
    %4542 = vmatpush1.msra.mxu0 %v3945
    %4543 = vmatprep.subr.mxu0 0.0
    %4544 = vmatpush1.msra.mxu0 %v3946
    %4545 = vmatprep.subr.mxu0 0.0
    %4546 = vmatpush1.msra.mxu0 %v3947
    %4547 = vmatprep.subr.mxu0 0.0
    %4548 = vmatpush1.msra.mxu0 %v3948
    %4549 = vmatprep.subr.mxu0 0.0
    %4550 = vmatpush1.msra.mxu0 %v3949
    %4551 = vmatprep.subr.mxu0 0.0
    %4552 = vmatpush1.msra.mxu0 %v3950
    %4553 = vmatprep.subr.mxu0 0.0
    %4554 = vmatpush1.msra.mxu0 %v3951
    %4555 = vmatprep.subr.mxu0 0.0
    %4556 = vmatpush1.msra.mxu0 %v3952
    %4557 = vmatprep.subr.mxu0 0.0
    %4558 = vmatpush1.msra.mxu0 %v3953
    %4559 = vmatprep.subr.mxu0 0.0
    %4560 = vmatpush1.msra.mxu0 %v3954
    %4561 = vmatprep.subr.mxu0 0.0
    %4562 = vmatpush1.msra.mxu0 %v3955
    %4563 = vmatprep.subr.mxu0 0.0
    %4564 = vmatpush1.msra.mxu0 %v3956
    %4565 = vmatprep.subr.mxu0 0.0
    %4566 = vmatpush1.msra.mxu0 %v3957
    %4567 = vmatprep.subr.mxu0 0.0
    %4568 = vmatpush1.msra.mxu0 %v3958
    %4569 = vmatprep.subr.mxu0 0.0
    %4570 = vmatpush1.msra.mxu0 %v3959
    %4571 = vmatprep.subr.mxu0 0.0
    %4572 = vmatpush1.msra.mxu0 %v3960
    %4573 = vmatprep.subr.mxu0 0.0
    %4574 = vmatpush1.msra.mxu0 %v3961
    %4575 = vmatprep.subr.mxu0 0.0
    %4576 = vmatpush1.msra.mxu0 %v3962
    %4577 = vmatprep.subr.mxu0 0.0
    %4578 = vmatpush1.msra.mxu0 %v3963
    %4579 = vmatprep.subr.mxu0 0.0
    %4580 = vmatpush1.msra.mxu0 %v3964
    %4581 = vmatprep.subr.mxu0 0.0
    %4582 = vmatpush1.msra.mxu0 %v3965
    %4583 = vmatprep.subr.mxu0 0.0
    %4584 = vmatpush1.msra.mxu0 %v3966
    %4585 = vmatprep.subr.mxu0 0.0
    %4586 = vmatpush1.msra.mxu0 %v3967
    %4587 = vmatprep.subr.mxu0 0.0
    %4588 = vmatpush1.msra.mxu0 %v3968
    %4589 = vmatprep.subr.mxu0 0.0
    %4590 = vmatpush1.msra.mxu0 %v3969
    %4591 = vmatprep.subr.mxu0 0.0
    %4592 = vmatpush1.msra.mxu0 %v3970
    %4593 = vmatprep.subr.mxu0 0.0
    %4594 = vmatpush1.msra.mxu0 %v3971
    %4595 = vmatprep.subr.mxu0 0.0
    %4596 = vmatpush1.msra.mxu0 %v3972
    %4597 = vmatprep.subr.mxu0 0.0
    %4598 = vmatpush1.msra.mxu0 %v3973
    %4599 = vmatprep.subr.mxu0 0.0
    %4600 = vmatpush1.msra.mxu0 %v3974
    %4601 = vmatprep.subr.mxu0 0.0
    %4602 = vmatpush1.msra.mxu0 %v3975
    %4603 = vmatprep.mubr.f32.mxu0 %v3853
    %4604 = vmatmul.mubr.f32.gmra.mrb[0].mxu0 %v3852
    %v4605 = vpop.f32.mrb[0].mxu0
    %v4606 = vadd.f32 %v4536, %v4605
    %v4607 = vpop.f32.mrb[0].mxu0
    %4608 = vdwg.mxu0
    %4609 = vmatprep.subr.mxu0 0.0
    %4610 = vmatpush1.msra.mxu0 %v3976
    %4611 = vmatprep.subr.mxu0 0.0
    %4612 = vmatpush1.msra.mxu0 %v3977
    %4613 = vmatprep.subr.mxu0 0.0
    %4614 = vmatpush1.msra.mxu0 %v3978
    %4615 = vmatprep.subr.mxu0 0.0
    %4616 = vmatpush1.msra.mxu0 %v3979
    %4617 = vmatprep.subr.mxu0 0.0
    %4618 = vmatpush1.msra.mxu0 %v3980
    %4619 = vmatprep.subr.mxu0 0.0
    %4620 = vmatpush1.msra.mxu0 %v3981
    %4621 = vmatprep.subr.mxu0 0.0
    %4622 = vmatpush1.msra.mxu0 %v3982
    %4623 = vmatprep.subr.mxu0 0.0
    %4624 = vmatpush1.msra.mxu0 %v3983
    %4625 = vmatprep.subr.mxu0 0.0
    %4626 = vmatpush1.msra.mxu0 %v3984
    %4627 = vmatprep.subr.mxu0 0.0
    %4628 = vmatpush1.msra.mxu0 %v3985
    %4629 = vmatprep.subr.mxu0 0.0
    %4630 = vmatpush1.msra.mxu0 %v3986
    %4631 = vmatprep.subr.mxu0 0.0
    %4632 = vmatpush1.msra.mxu0 %v3987
    %4633 = vmatprep.subr.mxu0 0.0
    %4634 = vmatpush1.msra.mxu0 %v3988
    %4635 = vmatprep.subr.mxu0 0.0
    %4636 = vmatpush1.msra.mxu0 %v3989
    %4637 = vmatprep.subr.mxu0 0.0
    %4638 = vmatpush1.msra.mxu0 %v3990
    %4639 = vmatprep.subr.mxu0 0.0
    %4640 = vmatpush1.msra.mxu0 %v3991
    %4641 = vmatprep.subr.mxu0 0.0
    %4642 = vmatpush1.msra.mxu0 %v3992
    %4643 = vmatprep.subr.mxu0 0.0
    %4644 = vmatpush1.msra.mxu0 %v3993
    %4645 = vmatprep.subr.mxu0 0.0
    %4646 = vmatpush1.msra.mxu0 %v3994
    %4647 = vmatprep.subr.mxu0 0.0
    %4648 = vmatpush1.msra.mxu0 %v3995
    %4649 = vmatprep.subr.mxu0 0.0
    %4650 = vmatpush1.msra.mxu0 %v3996
    %4651 = vmatprep.subr.mxu0 0.0
    %4652 = vmatpush1.msra.mxu0 %v3997
    %4653 = vmatprep.subr.mxu0 0.0
    %4654 = vmatpush1.msra.mxu0 %v3998
    %4655 = vmatprep.subr.mxu0 0.0
    %4656 = vmatpush1.msra.mxu0 %v3999
    %4657 = vmatprep.subr.mxu0 0.0
    %4658 = vmatpush1.msra.mxu0 %v4000
    %4659 = vmatprep.subr.mxu0 0.0
    %4660 = vmatpush1.msra.mxu0 %v4001
    %4661 = vmatprep.subr.mxu0 0.0
    %4662 = vmatpush1.msra.mxu0 %v4002
    %4663 = vmatprep.subr.mxu0 0.0
    %4664 = vmatpush1.msra.mxu0 %v4003
    %4665 = vmatprep.subr.mxu0 0.0
    %4666 = vmatpush1.msra.mxu0 %v4004
    %4667 = vmatprep.subr.mxu0 0.0
    %4668 = vmatpush1.msra.mxu0 %v4005
    %4669 = vmatprep.subr.mxu0 0.0
    %4670 = vmatpush1.msra.mxu0 %v4006
    %4671 = vmatprep.subr.mxu0 0.0
    %4672 = vmatpush1.msra.mxu0 %v4007
    %4673 = vmatprep.mubr.f32.mxu0 %v3855
    %4674 = vmatmul.mubr.f32.gmra.mrb[0].mxu0 %v3854
    %v4675 = vpop.f32.mrb[0].mxu0
    %v4676 = vadd.f32 %v4606, %v4675
    %v4677 = vpop.f32.mrb[0].mxu0
    %4678 = vdwg.mxu0
    %4679 = vmatprep.subr.mxu0 0.0
    %4680 = vmatpush1.msra.mxu0 %v4008
    %4681 = vmatprep.subr.mxu0 0.0
    %4682 = vmatpush1.msra.mxu0 %v4009
    %4683 = vmatprep.subr.mxu0 0.0
    %4684 = vmatpush1.msra.mxu0 %v4010
    %4685 = vmatprep.subr.mxu0 0.0
    %4686 = vmatpush1.msra.mxu0 %v4011
    %4687 = vmatprep.subr.mxu0 0.0
    %4688 = vmatpush1.msra.mxu0 %v4012
    %4689 = vmatprep.subr.mxu0 0.0
    %4690 = vmatpush1.msra.mxu0 %v4013
    %4691 = vmatprep.subr.mxu0 0.0
    %4692 = vmatpush1.msra.mxu0 %v4014
    %4693 = vmatprep.subr.mxu0 0.0
    %4694 = vmatpush1.msra.mxu0 %v4015
    %4695 = vmatprep.subr.mxu0 0.0
    %4696 = vmatpush1.msra.mxu0 %v4016
    %4697 = vmatprep.subr.mxu0 0.0
    %4698 = vmatpush1.msra.mxu0 %v4017
    %4699 = vmatprep.subr.mxu0 0.0
    %4700 = vmatpush1.msra.mxu0 %v4018
    %4701 = vmatprep.subr.mxu0 0.0
    %4702 = vmatpush1.msra.mxu0 %v4019
    %4703 = vmatprep.subr.mxu0 0.0
    %4704 = vmatpush1.msra.mxu0 %v4020
    %4705 = vmatprep.subr.mxu0 0.0
    %4706 = vmatpush1.msra.mxu0 %v4021
    %4707 = vmatprep.subr.mxu0 0.0
    %4708 = vmatpush1.msra.mxu0 %v4022
    %4709 = vmatprep.subr.mxu0 0.0
    %4710 = vmatpush1.msra.mxu0 %v4023
    %4711 = vmatprep.subr.mxu0 0.0
    %4712 = vmatpush1.msra.mxu0 %v4024
    %4713 = vmatprep.subr.mxu0 0.0
    %4714 = vmatpush1.msra.mxu0 %v4025
    %4715 = vmatprep.subr.mxu0 0.0
    %4716 = vmatpush1.msra.mxu0 %v4026
    %4717 = vmatprep.subr.mxu0 0.0
    %4718 = vmatpush1.msra.mxu0 %v4027
    %4719 = vmatprep.subr.mxu0 0.0
    %4720 = vmatpush1.msra.mxu0 %v4028
    %4721 = vmatprep.subr.mxu0 0.0
    %4722 = vmatpush1.msra.mxu0 %v4029
    %4723 = vmatprep.subr.mxu0 0.0
    %4724 = vmatpush1.msra.mxu0 %v4030
    %4725 = vmatprep.subr.mxu0 0.0
    %4726 = vmatpush1.msra.mxu0 %v4031
    %4727 = vmatprep.subr.mxu0 0.0
    %4728 = vmatpush1.msra.mxu0 %v4032
    %4729 = vmatprep.subr.mxu0 0.0
    %4730 = vmatpush1.msra.mxu0 %v4033
    %4731 = vmatprep.subr.mxu0 0.0
    %4732 = vmatpush1.msra.mxu0 %v4034
    %4733 = vmatprep.subr.mxu0 0.0
    %4734 = vmatpush1.msra.mxu0 %v4035
    %4735 = vmatprep.subr.mxu0 0.0
    %4736 = vmatpush1.msra.mxu0 %v4036
    %4737 = vmatprep.subr.mxu0 0.0
    %4738 = vmatpush1.msra.mxu0 %v4037
    %4739 = vmatprep.subr.mxu0 0.0
    %4740 = vmatpush1.msra.mxu0 %v4038
    %4741 = vmatprep.subr.mxu0 0.0
    %4742 = vmatpush1.msra.mxu0 %v4039
    %4743 = vmatprep.mubr.f32.mxu0 %v3857
    %4744 = vmatmul.mubr.f32.gmra.mrb[0].mxu0 %v3856
    %v4745 = vpop.f32.mrb[0].mxu0
    %v4746 = vadd.f32 %v4676, %v4745
    %v4747 = vpop.f32.mrb[0].mxu0
    %4748 = vdwg.mxu0
    %4749 = vmatprep.subr.mxu0 0.0
    %4750 = vmatpush1.msra.mxu0 %v4040
    %4751 = vmatprep.subr.mxu0 0.0
    %4752 = vmatpush1.msra.mxu0 %v4041
    %4753 = vmatprep.subr.mxu0 0.0
    %4754 = vmatpush1.msra.mxu0 %v4042
    %4755 = vmatprep.subr.mxu0 0.0
    %4756 = vmatpush1.msra.mxu0 %v4043
    %4757 = vmatprep.subr.mxu0 0.0
    %4758 = vmatpush1.msra.mxu0 %v4044
    %4759 = vmatprep.subr.mxu0 0.0
    %4760 = vmatpush1.msra.mxu0 %v4045
    %4761 = vmatprep.subr.mxu0 0.0
    %4762 = vmatpush1.msra.mxu0 %v4046
    %4763 = vmatprep.subr.mxu0 0.0
    %4764 = vmatpush1.msra.mxu0 %v4047
    %4765 = vmatprep.subr.mxu0 0.0
    %4766 = vmatpush1.msra.mxu0 %v4048
    %4767 = vmatprep.subr.mxu0 0.0
    %4768 = vmatpush1.msra.mxu0 %v4049
    %4769 = vmatprep.subr.mxu0 0.0
    %4770 = vmatpush1.msra.mxu0 %v4050
    %4771 = vmatprep.subr.mxu0 0.0
    %4772 = vmatpush1.msra.mxu0 %v4051
    %4773 = vmatprep.subr.mxu0 0.0
    %4774 = vmatpush1.msra.mxu0 %v4052
    %4775 = vmatprep.subr.mxu0 0.0
    %4776 = vmatpush1.msra.mxu0 %v4053
    %4777 = vmatprep.subr.mxu0 0.0
    %4778 = vmatpush1.msra.mxu0 %v4054
    %4779 = vmatprep.subr.mxu0 0.0
    %4780 = vmatpush1.msra.mxu0 %v4055
    %4781 = vmatprep.subr.mxu0 0.0
    %4782 = vmatpush1.msra.mxu0 %v4056
    %4783 = vmatprep.subr.mxu0 0.0
    %4784 = vmatpush1.msra.mxu0 %v4057
    %4785 = vmatprep.subr.mxu0 0.0
    %4786 = vmatpush1.msra.mxu0 %v4058
    %4787 = vmatprep.subr.mxu0 0.0
    %4788 = vmatpush1.msra.mxu0 %v4059
    %4789 = vmatprep.subr.mxu0 0.0
    %4790 = vmatpush1.msra.mxu0 %v4060
    %4791 = vmatprep.subr.mxu0 0.0
    %4792 = vmatpush1.msra.mxu0 %v4061
    %4793 = vmatprep.subr.mxu0 0.0
    %4794 = vmatpush1.msra.mxu0 %v4062
    %4795 = vmatprep.subr.mxu0 0.0
    %4796 = vmatpush1.msra.mxu0 %v4063
    %4797 = vmatprep.subr.mxu0 0.0
    %4798 = vmatpush1.msra.mxu0 %v4064
    %4799 = vmatprep.subr.mxu0 0.0
    %4800 = vmatpush1.msra.mxu0 %v4065
    %4801 = vmatprep.subr.mxu0 0.0
    %4802 = vmatpush1.msra.mxu0 %v4066
    %4803 = vmatprep.subr.mxu0 0.0
    %4804 = vmatpush1.msra.mxu0 %v4067
    %4805 = vmatprep.subr.mxu0 0.0
    %4806 = vmatpush1.msra.mxu0 %v4068
    %4807 = vmatprep.subr.mxu0 0.0
    %4808 = vmatpush1.msra.mxu0 %v4069
    %4809 = vmatprep.subr.mxu0 0.0
    %4810 = vmatpush1.msra.mxu0 %v4070
    %4811 = vmatprep.subr.mxu0 0.0
    %4812 = vmatpush1.msra.mxu0 %v4071
    %4813 = vmatprep.mubr.f32.mxu0 %v3859
    %4814 = vmatmul.mubr.f32.gmra.mrb[0].mxu0 %v3858
    %v4815 = vpop.f32.mrb[0].mxu0
    %v4816 = vadd.f32 %v4746, %v4815
    %v4817 = vpop.f32.mrb[0].mxu0
    %4818 = vdwg.mxu0
    %4819 = vmatprep.subr.mxu0 0.0
    %4820 = vmatpush1.msra.mxu0 %v4072
    %4821 = vmatprep.subr.mxu0 0.0
    %4822 = vmatpush1.msra.mxu0 %v4073
    %4823 = vmatprep.subr.mxu0 0.0
    %4824 = vmatpush1.msra.mxu0 %v4074
    %4825 = vmatprep.subr.mxu0 0.0
    %4826 = vmatpush1.msra.mxu0 %v4075
    %4827 = vmatprep.subr.mxu0 0.0
    %4828 = vmatpush1.msra.mxu0 %v4076
    %4829 = vmatprep.subr.mxu0 0.0
    %4830 = vmatpush1.msra.mxu0 %v4077
    %4831 = vmatprep.subr.mxu0 0.0
    %4832 = vmatpush1.msra.mxu0 %v4078
    %4833 = vmatprep.subr.mxu0 0.0
    %4834 = vmatpush1.msra.mxu0 %v4079
    %4835 = vmatprep.subr.mxu0 0.0
    %4836 = vmatpush1.msra.mxu0 %v4080
    %4837 = vmatprep.subr.mxu0 0.0
    %4838 = vmatpush1.msra.mxu0 %v4081
    %4839 = vmatprep.subr.mxu0 0.0
    %4840 = vmatpush1.msra.mxu0 %v4082
    %4841 = vmatprep.subr.mxu0 0.0
    %4842 = vmatpush1.msra.mxu0 %v4083
    %4843 = vmatprep.subr.mxu0 0.0
    %4844 = vmatpush1.msra.mxu0 %v4084
    %4845 = vmatprep.subr.mxu0 0.0
    %4846 = vmatpush1.msra.mxu0 %v4085
    %4847 = vmatprep.subr.mxu0 0.0
    %4848 = vmatpush1.msra.mxu0 %v4086
    %4849 = vmatprep.subr.mxu0 0.0
    %4850 = vmatpush1.msra.mxu0 %v4087
    %4851 = vmatprep.subr.mxu0 0.0
    %4852 = vmatpush1.msra.mxu0 %v4088
    %4853 = vmatprep.subr.mxu0 0.0
    %4854 = vmatpush1.msra.mxu0 %v4089
    %4855 = vmatprep.subr.mxu0 0.0
    %4856 = vmatpush1.msra.mxu0 %v4090
    %4857 = vmatprep.subr.mxu0 0.0
    %4858 = vmatpush1.msra.mxu0 %v4091
    %4859 = vmatprep.subr.mxu0 0.0
    %4860 = vmatpush1.msra.mxu0 %v4092
    %4861 = vmatprep.subr.mxu0 0.0
    %4862 = vmatpush1.msra.mxu0 %v4093
    %4863 = vmatprep.subr.mxu0 0.0
    %4864 = vmatpush1.msra.mxu0 %v4094
    %4865 = vmatprep.subr.mxu0 0.0
    %4866 = vmatpush1.msra.mxu0 %v4095
    %4867 = vmatprep.subr.mxu0 0.0
    %4868 = vmatpush1.msra.mxu0 %v4096
    %4869 = vmatprep.subr.mxu0 0.0
    %4870 = vmatpush1.msra.mxu0 %v4097
    %4871 = vmatprep.subr.mxu0 0.0
    %4872 = vmatpush1.msra.mxu0 %v4098
    %4873 = vmatprep.subr.mxu0 0.0
    %4874 = vmatpush1.msra.mxu0 %v4099
    %4875 = vmatprep.subr.mxu0 0.0
    %4876 = vmatpush1.msra.mxu0 %v4100
    %4877 = vmatprep.subr.mxu0 0.0
    %4878 = vmatpush1.msra.mxu0 %v4101
    %4879 = vmatprep.subr.mxu0 0.0
    %4880 = vmatpush1.msra.mxu0 %v4102
    %4881 = vmatprep.subr.mxu0 0.0
    %4882 = vmatpush1.msra.mxu0 %v4103
    %4883 = vmatprep.mubr.f32.mxu0 %v3861
    %4884 = vmatmul.mubr.f32.gmra.mrb[0].mxu0 %v3860
    %v4885 = vpop.f32.mrb[0].mxu0
    %v4886 = vadd.f32 %v4816, %v4885
    %v4887 = vpop.f32.mrb[0].mxu0
    %4888 = vdwg.mxu0
    %4889 = vmatprep.subr.mxu0 0.0
    %4890 = vmatpush1.msra.mxu0 %v4104
    %4891 = vmatprep.subr.mxu0 0.0
    %4892 = vmatpush1.msra.mxu0 %v4105
    %4893 = vmatprep.subr.mxu0 0.0
    %4894 = vmatpush1.msra.mxu0 %v4106
    %4895 = vmatprep.subr.mxu0 0.0
    %4896 = vmatpush1.msra.mxu0 %v4107
    %4897 = vmatprep.subr.mxu0 0.0
    %4898 = vmatpush1.msra.mxu0 %v4108
    %4899 = vmatprep.subr.mxu0 0.0
    %4900 = vmatpush1.msra.mxu0 %v4109
    %4901 = vmatprep.subr.mxu0 0.0
    %4902 = vmatpush1.msra.mxu0 %v4110
    %4903 = vmatprep.subr.mxu0 0.0
    %4904 = vmatpush1.msra.mxu0 %v4111
    %4905 = vmatprep.subr.mxu0 0.0
    %4906 = vmatpush1.msra.mxu0 %v4112
    %4907 = vmatprep.subr.mxu0 0.0
    %4908 = vmatpush1.msra.mxu0 %v4113
    %4909 = vmatprep.subr.mxu0 0.0
    %4910 = vmatpush1.msra.mxu0 %v4114
    %4911 = vmatprep.subr.mxu0 0.0
    %4912 = vmatpush1.msra.mxu0 %v4115
    %4913 = vmatprep.subr.mxu0 0.0
    %4914 = vmatpush1.msra.mxu0 %v4116
    %4915 = vmatprep.subr.mxu0 0.0
    %4916 = vmatpush1.msra.mxu0 %v4117
    %4917 = vmatprep.subr.mxu0 0.0
    %4918 = vmatpush1.msra.mxu0 %v4118
    %4919 = vmatprep.subr.mxu0 0.0
    %4920 = vmatpush1.msra.mxu0 %v4119
    %4921 = vmatprep.subr.mxu0 0.0
    %4922 = vmatpush1.msra.mxu0 %v4120
    %4923 = vmatprep.subr.mxu0 0.0
    %4924 = vmatpush1.msra.mxu0 %v4121
    %4925 = vmatprep.subr.mxu0 0.0
    %4926 = vmatpush1.msra.mxu0 %v4122
    %4927 = vmatprep.subr.mxu0 0.0
    %4928 = vmatpush1.msra.mxu0 %v4123
    %4929 = vmatprep.subr.mxu0 0.0
    %4930 = vmatpush1.msra.mxu0 %v4124
    %4931 = vmatprep.subr.mxu0 0.0
    %4932 = vmatpush1.msra.mxu0 %v4125
    %4933 = vmatprep.subr.mxu0 0.0
    %4934 = vmatpush1.msra.mxu0 %v4126
    %4935 = vmatprep.subr.mxu0 0.0
    %4936 = vmatpush1.msra.mxu0 %v4127
    %4937 = vmatprep.subr.mxu0 0.0
    %4938 = vmatpush1.msra.mxu0 %v4128
    %4939 = vmatprep.subr.mxu0 0.0
    %4940 = vmatpush1.msra.mxu0 %v4129
    %4941 = vmatprep.subr.mxu0 0.0
    %4942 = vmatpush1.msra.mxu0 %v4130
    %4943 = vmatprep.subr.mxu0 0.0
    %4944 = vmatpush1.msra.mxu0 %v4131
    %4945 = vmatprep.subr.mxu0 0.0
    %4946 = vmatpush1.msra.mxu0 %v4132
    %4947 = vmatprep.subr.mxu0 0.0
    %4948 = vmatpush1.msra.mxu0 %v4133
    %4949 = vmatprep.subr.mxu0 0.0
    %4950 = vmatpush1.msra.mxu0 %v4134
    %4951 = vmatprep.subr.mxu0 0.0
    %4952 = vmatpush1.msra.mxu0 %v4135
    %4953 = vmatprep.mubr.f32.mxu0 %v3863
    %4954 = vmatmul.mubr.f32.gmra.mrb[0].mxu0 %v3862
    %v4955 = vpop.f32.mrb[0].mxu0
    %v4956 = vadd.f32 %v4886, %v4955
    %v4957 = vpop.f32.mrb[0].mxu0
    %4958 = vdwg.mxu0
    %4959 = vmatprep.subr.mxu0 0.0
    %4960 = vmatpush1.msra.mxu0 %v4136
    %4961 = vmatprep.subr.mxu0 0.0
    %4962 = vmatpush1.msra.mxu0 %v4137
    %4963 = vmatprep.subr.mxu0 0.0
    %4964 = vmatpush1.msra.mxu0 %v4138
    %4965 = vmatprep.subr.mxu0 0.0
    %4966 = vmatpush1.msra.mxu0 %v4139
    %4967 = vmatprep.subr.mxu0 0.0
    %4968 = vmatpush1.msra.mxu0 %v4140
    %4969 = vmatprep.subr.mxu0 0.0
    %4970 = vmatpush1.msra.mxu0 %v4141
    %4971 = vmatprep.subr.mxu0 0.0
    %4972 = vmatpush1.msra.mxu0 %v4142
    %4973 = vmatprep.subr.mxu0 0.0
    %4974 = vmatpush1.msra.mxu0 %v4143
    %4975 = vmatprep.subr.mxu0 0.0
    %4976 = vmatpush1.msra.mxu0 %v4144
    %4977 = vmatprep.subr.mxu0 0.0
    %4978 = vmatpush1.msra.mxu0 %v4145
    %4979 = vmatprep.subr.mxu0 0.0
    %4980 = vmatpush1.msra.mxu0 %v4146
    %4981 = vmatprep.subr.mxu0 0.0
    %4982 = vmatpush1.msra.mxu0 %v4147
    %4983 = vmatprep.subr.mxu0 0.0
    %4984 = vmatpush1.msra.mxu0 %v4148
    %4985 = vmatprep.subr.mxu0 0.0
    %4986 = vmatpush1.msra.mxu0 %v4149
    %4987 = vmatprep.subr.mxu0 0.0
    %4988 = vmatpush1.msra.mxu0 %v4150
    %4989 = vmatprep.subr.mxu0 0.0
    %4990 = vmatpush1.msra.mxu0 %v4151
    %4991 = vmatprep.subr.mxu0 0.0
    %4992 = vmatpush1.msra.mxu0 %v4152
    %4993 = vmatprep.subr.mxu0 0.0
    %4994 = vmatpush1.msra.mxu0 %v4153
    %4995 = vmatprep.subr.mxu0 0.0
    %4996 = vmatpush1.msra.mxu0 %v4154
    %4997 = vmatprep.subr.mxu0 0.0
    %4998 = vmatpush1.msra.mxu0 %v4155
    %4999 = vmatprep.subr.mxu0 0.0
    %5000 = vmatpush1.msra.mxu0 %v4156
    %5001 = vmatprep.subr.mxu0 0.0
    %5002 = vmatpush1.msra.mxu0 %v4157
    %5003 = vmatprep.subr.mxu0 0.0
    %5004 = vmatpush1.msra.mxu0 %v4158
    %5005 = vmatprep.subr.mxu0 0.0
    %5006 = vmatpush1.msra.mxu0 %v4159
    %5007 = vmatprep.subr.mxu0 0.0
    %5008 = vmatpush1.msra.mxu0 %v4160
    %5009 = vmatprep.subr.mxu0 0.0
    %5010 = vmatpush1.msra.mxu0 %v4161
    %5011 = vmatprep.subr.mxu0 0.0
    %5012 = vmatpush1.msra.mxu0 %v4162
    %5013 = vmatprep.subr.mxu0 0.0
    %5014 = vmatpush1.msra.mxu0 %v4163
    %5015 = vmatprep.subr.mxu0 0.0
    %5016 = vmatpush1.msra.mxu0 %v4164
    %5017 = vmatprep.subr.mxu0 0.0
    %5018 = vmatpush1.msra.mxu0 %v4165
    %5019 = vmatprep.subr.mxu0 0.0
    %5020 = vmatpush1.msra.mxu0 %v4166
    %5021 = vmatprep.subr.mxu0 0.0
    %5022 = vmatpush1.msra.mxu0 %v4167
    %5023 = vmatprep.mubr.f32.mxu0 %v3865
    %5024 = vmatmul.mubr.f32.gmra.mrb[0].mxu0 %v3864
    %v5025 = vpop.f32.mrb[0].mxu0
    %v5026 = vadd.f32 %v4956, %v5025
    %v5027 = vpop.f32.mrb[0].mxu0
    %5028 = vdwg.mxu0
    %5029 = vmatprep.subr.mxu0 0.0
    %5030 = vmatpush1.msra.mxu0 %v4168
    %5031 = vmatprep.subr.mxu0 0.0
    %5032 = vmatpush1.msra.mxu0 %v4169
    %5033 = vmatprep.subr.mxu0 0.0
    %5034 = vmatpush1.msra.mxu0 %v4170
    %5035 = vmatprep.subr.mxu0 0.0
    %5036 = vmatpush1.msra.mxu0 %v4171
    %5037 = vmatprep.subr.mxu0 0.0
    %5038 = vmatpush1.msra.mxu0 %v4172
    %5039 = vmatprep.subr.mxu0 0.0
    %5040 = vmatpush1.msra.mxu0 %v4173
    %5041 = vmatprep.subr.mxu0 0.0
    %5042 = vmatpush1.msra.mxu0 %v4174
    %5043 = vmatprep.subr.mxu0 0.0
    %5044 = vmatpush1.msra.mxu0 %v4175
    %5045 = vmatprep.subr.mxu0 0.0
    %5046 = vmatpush1.msra.mxu0 %v4176
    %5047 = vmatprep.subr.mxu0 0.0
    %5048 = vmatpush1.msra.mxu0 %v4177
    %5049 = vmatprep.subr.mxu0 0.0
    %5050 = vmatpush1.msra.mxu0 %v4178
    %5051 = vmatprep.subr.mxu0 0.0
    %5052 = vmatpush1.msra.mxu0 %v4179
    %5053 = vmatprep.subr.mxu0 0.0
    %5054 = vmatpush1.msra.mxu0 %v4180
    %5055 = vmatprep.subr.mxu0 0.0
    %5056 = vmatpush1.msra.mxu0 %v4181
    %5057 = vmatprep.subr.mxu0 0.0
    %5058 = vmatpush1.msra.mxu0 %v4182
    %5059 = vmatprep.subr.mxu0 0.0
    %5060 = vmatpush1.msra.mxu0 %v4183
    %5061 = vmatprep.subr.mxu0 0.0
    %5062 = vmatpush1.msra.mxu0 %v4184
    %5063 = vmatprep.subr.mxu0 0.0
    %5064 = vmatpush1.msra.mxu0 %v4185
    %5065 = vmatprep.subr.mxu0 0.0
    %5066 = vmatpush1.msra.mxu0 %v4186
    %5067 = vmatprep.subr.mxu0 0.0
    %5068 = vmatpush1.msra.mxu0 %v4187
    %5069 = vmatprep.subr.mxu0 0.0
    %5070 = vmatpush1.msra.mxu0 %v4188
    %5071 = vmatprep.subr.mxu0 0.0
    %5072 = vmatpush1.msra.mxu0 %v4189
    %5073 = vmatprep.subr.mxu0 0.0
    %5074 = vmatpush1.msra.mxu0 %v4190
    %5075 = vmatprep.subr.mxu0 0.0
    %5076 = vmatpush1.msra.mxu0 %v4191
    %5077 = vmatprep.subr.mxu0 0.0
    %5078 = vmatpush1.msra.mxu0 %v4192
    %5079 = vmatprep.subr.mxu0 0.0
    %5080 = vmatpush1.msra.mxu0 %v4193
    %5081 = vmatprep.subr.mxu0 0.0
    %5082 = vmatpush1.msra.mxu0 %v4194
    %5083 = vmatprep.subr.mxu0 0.0
    %5084 = vmatpush1.msra.mxu0 %v4195
    %5085 = vmatprep.subr.mxu0 0.0
    %5086 = vmatpush1.msra.mxu0 %v4196
    %5087 = vmatprep.subr.mxu0 0.0
    %5088 = vmatpush1.msra.mxu0 %v4197
    %5089 = vmatprep.subr.mxu0 0.0
    %5090 = vmatpush1.msra.mxu0 %v4198
    %5091 = vmatprep.subr.mxu0 0.0
    %5092 = vmatpush1.msra.mxu0 %v4199
    %5093 = vmatprep.mubr.f32.mxu0 %v3867
    %5094 = vmatmul.mubr.f32.gmra.mrb[0].mxu0 %v3866
    %v5095 = vpop.f32.mrb[0].mxu0
    %v5096 = vadd.f32 %v5026, %v5095
    %v5097 = vpop.f32.mrb[0].mxu0
    %5098 = vdwg.mxu0
    %5099 = vmatprep.subr.mxu0 0.0
    %5100 = vmatpush1.msra.mxu0 %v4200
    %5101 = vmatprep.subr.mxu0 0.0
    %5102 = vmatpush1.msra.mxu0 %v4201
    %5103 = vmatprep.subr.mxu0 0.0
    %5104 = vmatpush1.msra.mxu0 %v4202
    %5105 = vmatprep.subr.mxu0 0.0
    %5106 = vmatpush1.msra.mxu0 %v4203
    %5107 = vmatprep.subr.mxu0 0.0
    %5108 = vmatpush1.msra.mxu0 %v4204
    %5109 = vmatprep.subr.mxu0 0.0
    %5110 = vmatpush1.msra.mxu0 %v4205
    %5111 = vmatprep.subr.mxu0 0.0
    %5112 = vmatpush1.msra.mxu0 %v4206
    %5113 = vmatprep.subr.mxu0 0.0
    %5114 = vmatpush1.msra.mxu0 %v4207
    %5115 = vmatprep.subr.mxu0 0.0
    %5116 = vmatpush1.msra.mxu0 %v4208
    %5117 = vmatprep.subr.mxu0 0.0
    %5118 = vmatpush1.msra.mxu0 %v4209
    %5119 = vmatprep.subr.mxu0 0.0
    %5120 = vmatpush1.msra.mxu0 %v4210
    %5121 = vmatprep.subr.mxu0 0.0
    %5122 = vmatpush1.msra.mxu0 %v4211
    %5123 = vmatprep.subr.mxu0 0.0
    %5124 = vmatpush1.msra.mxu0 %v4212
    %5125 = vmatprep.subr.mxu0 0.0
    %5126 = vmatpush1.msra.mxu0 %v4213
    %5127 = vmatprep.subr.mxu0 0.0
    %5128 = vmatpush1.msra.mxu0 %v4214
    %5129 = vmatprep.subr.mxu0 0.0
    %5130 = vmatpush1.msra.mxu0 %v4215
    %5131 = vmatprep.subr.mxu0 0.0
    %5132 = vmatpush1.msra.mxu0 %v4216
    %5133 = vmatprep.subr.mxu0 0.0
    %5134 = vmatpush1.msra.mxu0 %v4217
    %5135 = vmatprep.subr.mxu0 0.0
    %5136 = vmatpush1.msra.mxu0 %v4218
    %5137 = vmatprep.subr.mxu0 0.0
    %5138 = vmatpush1.msra.mxu0 %v4219
    %5139 = vmatprep.subr.mxu0 0.0
    %5140 = vmatpush1.msra.mxu0 %v4220
    %5141 = vmatprep.subr.mxu0 0.0
    %5142 = vmatpush1.msra.mxu0 %v4221
    %5143 = vmatprep.subr.mxu0 0.0
    %5144 = vmatpush1.msra.mxu0 %v4222
    %5145 = vmatprep.subr.mxu0 0.0
    %5146 = vmatpush1.msra.mxu0 %v4223
    %5147 = vmatprep.subr.mxu0 0.0
    %5148 = vmatpush1.msra.mxu0 %v4224
    %5149 = vmatprep.subr.mxu0 0.0
    %5150 = vmatpush1.msra.mxu0 %v4225
    %5151 = vmatprep.subr.mxu0 0.0
    %5152 = vmatpush1.msra.mxu0 %v4226
    %5153 = vmatprep.subr.mxu0 0.0
    %5154 = vmatpush1.msra.mxu0 %v4227
    %5155 = vmatprep.subr.mxu0 0.0
    %5156 = vmatpush1.msra.mxu0 %v4228
    %5157 = vmatprep.subr.mxu0 0.0
    %5158 = vmatpush1.msra.mxu0 %v4229
    %5159 = vmatprep.subr.mxu0 0.0
    %5160 = vmatpush1.msra.mxu0 %v4230
    %5161 = vmatprep.subr.mxu0 0.0
    %5162 = vmatpush1.msra.mxu0 %v4231
    %5163 = vmatprep.mubr.f32.mxu0 %v3869
    %5164 = vmatmul.mubr.f32.gmra.mrb[0].mxu0 %v3868
    %v5165 = vpop.f32.mrb[0].mxu0
    %v5166 = vadd.f32 %v5096, %v5165
    %v5167 = vpop.f32.mrb[0].mxu0
    %5168 = vdwg.mxu0
    %5169 = vmatprep.subr.mxu0 0.0
    %5170 = vmatpush1.msra.mxu0 %v4232
    %5171 = vmatprep.subr.mxu0 0.0
    %5172 = vmatpush1.msra.mxu0 %v4233
    %5173 = vmatprep.subr.mxu0 0.0
    %5174 = vmatpush1.msra.mxu0 %v4234
    %5175 = vmatprep.subr.mxu0 0.0
    %5176 = vmatpush1.msra.mxu0 %v4235
    %5177 = vmatprep.subr.mxu0 0.0
    %5178 = vmatpush1.msra.mxu0 %v4236
    %5179 = vmatprep.subr.mxu0 0.0
    %5180 = vmatpush1.msra.mxu0 %v4237
    %5181 = vmatprep.subr.mxu0 0.0
    %5182 = vmatpush1.msra.mxu0 %v4238
    %5183 = vmatprep.subr.mxu0 0.0
    %5184 = vmatpush1.msra.mxu0 %v4239
    %5185 = vmatprep.subr.mxu0 0.0
    %5186 = vmatpush1.msra.mxu0 %v4240
    %5187 = vmatprep.subr.mxu0 0.0
    %5188 = vmatpush1.msra.mxu0 %v4241
    %5189 = vmatprep.subr.mxu0 0.0
    %5190 = vmatpush1.msra.mxu0 %v4242
    %5191 = vmatprep.subr.mxu0 0.0
    %5192 = vmatpush1.msra.mxu0 %v4243
    %5193 = vmatprep.subr.mxu0 0.0
    %5194 = vmatpush1.msra.mxu0 %v4244
    %5195 = vmatprep.subr.mxu0 0.0
    %5196 = vmatpush1.msra.mxu0 %v4245
    %5197 = vmatprep.subr.mxu0 0.0
    %5198 = vmatpush1.msra.mxu0 %v4246
    %5199 = vmatprep.subr.mxu0 0.0
    %5200 = vmatpush1.msra.mxu0 %v4247
    %5201 = vmatprep.subr.mxu0 0.0
    %5202 = vmatpush1.msra.mxu0 %v4248
    %5203 = vmatprep.subr.mxu0 0.0
    %5204 = vmatpush1.msra.mxu0 %v4249
    %5205 = vmatprep.subr.mxu0 0.0
    %5206 = vmatpush1.msra.mxu0 %v4250
    %5207 = vmatprep.subr.mxu0 0.0
    %5208 = vmatpush1.msra.mxu0 %v4251
    %5209 = vmatprep.subr.mxu0 0.0
    %5210 = vmatpush1.msra.mxu0 %v4252
    %5211 = vmatprep.subr.mxu0 0.0
    %5212 = vmatpush1.msra.mxu0 %v4253
    %5213 = vmatprep.subr.mxu0 0.0
    %5214 = vmatpush1.msra.mxu0 %v4254
    %5215 = vmatprep.subr.mxu0 0.0
    %5216 = vmatpush1.msra.mxu0 %v4255
    %5217 = vmatprep.subr.mxu0 0.0
    %5218 = vmatpush1.msra.mxu0 %v4256
    %5219 = vmatprep.subr.mxu0 0.0
    %5220 = vmatpush1.msra.mxu0 %v4257
    %5221 = vmatprep.subr.mxu0 0.0
    %5222 = vmatpush1.msra.mxu0 %v4258
    %5223 = vmatprep.subr.mxu0 0.0
    %5224 = vmatpush1.msra.mxu0 %v4259
    %5225 = vmatprep.subr.mxu0 0.0
    %5226 = vmatpush1.msra.mxu0 %v4260
    %5227 = vmatprep.subr.mxu0 0.0
    %5228 = vmatpush1.msra.mxu0 %v4261
    %5229 = vmatprep.subr.mxu0 0.0
    %5230 = vmatpush1.msra.mxu0 %v4262
    %5231 = vmatprep.subr.mxu0 0.0
    %5232 = vmatpush1.msra.mxu0 %v4263
    %5233 = vmatprep.mubr.f32.mxu0 %v3871
    %5234 = vmatmul.mubr.f32.gmra.mrb[0].mxu0 %v3870
    %v5235 = vpop.f32.mrb[0].mxu0
    %v5236 = vadd.f32 %v5166, %v5235
    %v5237 = vpop.f32.mrb[0].mxu0
    %5238 = vdwg.mxu0
    %5239 = vmatprep.subr.mxu0 0.0
    %5240 = vmatpush1.msra.mxu0 %v4264
    %5241 = vmatprep.subr.mxu0 0.0
    %5242 = vmatpush1.msra.mxu0 %v4265
    %5243 = vmatprep.subr.mxu0 0.0
    %5244 = vmatpush1.msra.mxu0 %v4266
    %5245 = vmatprep.subr.mxu0 0.0
    %5246 = vmatpush1.msra.mxu0 %v4267
    %5247 = vmatprep.subr.mxu0 0.0
    %5248 = vmatpush1.msra.mxu0 %v4268
    %5249 = vmatprep.subr.mxu0 0.0
    %5250 = vmatpush1.msra.mxu0 %v4269
    %5251 = vmatprep.subr.mxu0 0.0
    %5252 = vmatpush1.msra.mxu0 %v4270
    %5253 = vmatprep.subr.mxu0 0.0
    %5254 = vmatpush1.msra.mxu0 %v4271
    %5255 = vmatprep.subr.mxu0 0.0
    %5256 = vmatpush1.msra.mxu0 %v4272
    %5257 = vmatprep.subr.mxu0 0.0
    %5258 = vmatpush1.msra.mxu0 %v4273
    %5259 = vmatprep.subr.mxu0 0.0
    %5260 = vmatpush1.msra.mxu0 %v4274
    %5261 = vmatprep.subr.mxu0 0.0
    %5262 = vmatpush1.msra.mxu0 %v4275
    %5263 = vmatprep.subr.mxu0 0.0
    %5264 = vmatpush1.msra.mxu0 %v4276
    %5265 = vmatprep.subr.mxu0 0.0
    %5266 = vmatpush1.msra.mxu0 %v4277
    %5267 = vmatprep.subr.mxu0 0.0
    %5268 = vmatpush1.msra.mxu0 %v4278
    %5269 = vmatprep.subr.mxu0 0.0
    %5270 = vmatpush1.msra.mxu0 %v4279
    %5271 = vmatprep.subr.mxu0 0.0
    %5272 = vmatpush1.msra.mxu0 %v4280
    %5273 = vmatprep.subr.mxu0 0.0
    %5274 = vmatpush1.msra.mxu0 %v4281
    %5275 = vmatprep.subr.mxu0 0.0
    %5276 = vmatpush1.msra.mxu0 %v4282
    %5277 = vmatprep.subr.mxu0 0.0
    %5278 = vmatpush1.msra.mxu0 %v4283
    %5279 = vmatprep.subr.mxu0 0.0
    %5280 = vmatpush1.msra.mxu0 %v4284
    %5281 = vmatprep.subr.mxu0 0.0
    %5282 = vmatpush1.msra.mxu0 %v4285
    %5283 = vmatprep.subr.mxu0 0.0
    %5284 = vmatpush1.msra.mxu0 %v4286
    %5285 = vmatprep.subr.mxu0 0.0
    %5286 = vmatpush1.msra.mxu0 %v4287
    %5287 = vmatprep.subr.mxu0 0.0
    %5288 = vmatpush1.msra.mxu0 %v4288
    %5289 = vmatprep.subr.mxu0 0.0
    %5290 = vmatpush1.msra.mxu0 %v4289
    %5291 = vmatprep.subr.mxu0 0.0
    %5292 = vmatpush1.msra.mxu0 %v4290
    %5293 = vmatprep.subr.mxu0 0.0
    %5294 = vmatpush1.msra.mxu0 %v4291
    %5295 = vmatprep.subr.mxu0 0.0
    %5296 = vmatpush1.msra.mxu0 %v4292
    %5297 = vmatprep.subr.mxu0 0.0
    %5298 = vmatpush1.msra.mxu0 %v4293
    %5299 = vmatprep.subr.mxu0 0.0
    %5300 = vmatpush1.msra.mxu0 %v4294
    %5301 = vmatprep.subr.mxu0 0.0
    %5302 = vmatpush1.msra.mxu0 %v4295
    %5303 = vmatprep.mubr.f32.mxu0 %v3873
    %5304 = vmatmul.mubr.f32.gmra.mrb[0].mxu0 %v3872
    %v5305 = vpop.f32.mrb[0].mxu0
    %v5306 = vadd.f32 %v5236, %v5305
    %v5307 = vpop.f32.mrb[0].mxu0
    %5308 = vdwg.mxu0
    %5309 = vmatprep.subr.mxu0 0.0
    %5310 = vmatpush1.msra.mxu0 %v4296
    %5311 = vmatprep.subr.mxu0 0.0
    %5312 = vmatpush1.msra.mxu0 %v4297
    %5313 = vmatprep.subr.mxu0 0.0
    %5314 = vmatpush1.msra.mxu0 %v4298
    %5315 = vmatprep.subr.mxu0 0.0
    %5316 = vmatpush1.msra.mxu0 %v4299
    %5317 = vmatprep.subr.mxu0 0.0
    %5318 = vmatpush1.msra.mxu0 %v4300
    %5319 = vmatprep.subr.mxu0 0.0
    %5320 = vmatpush1.msra.mxu0 %v4301
    %5321 = vmatprep.subr.mxu0 0.0
    %5322 = vmatpush1.msra.mxu0 %v4302
    %5323 = vmatprep.subr.mxu0 0.0
    %5324 = vmatpush1.msra.mxu0 %v4303
    %5325 = vmatprep.subr.mxu0 0.0
    %5326 = vmatpush1.msra.mxu0 %v4304
    %5327 = vmatprep.subr.mxu0 0.0
    %5328 = vmatpush1.msra.mxu0 %v4305
    %5329 = vmatprep.subr.mxu0 0.0
    %5330 = vmatpush1.msra.mxu0 %v4306
    %5331 = vmatprep.subr.mxu0 0.0
    %5332 = vmatpush1.msra.mxu0 %v4307
    %5333 = vmatprep.subr.mxu0 0.0
    %5334 = vmatpush1.msra.mxu0 %v4308
    %5335 = vmatprep.subr.mxu0 0.0
    %5336 = vmatpush1.msra.mxu0 %v4309
    %5337 = vmatprep.subr.mxu0 0.0
    %5338 = vmatpush1.msra.mxu0 %v4310
    %5339 = vmatprep.subr.mxu0 0.0
    %5340 = vmatpush1.msra.mxu0 %v4311
    %5341 = vmatprep.subr.mxu0 0.0
    %5342 = vmatpush1.msra.mxu0 %v4312
    %5343 = vmatprep.subr.mxu0 0.0
    %5344 = vmatpush1.msra.mxu0 %v4313
    %5345 = vmatprep.subr.mxu0 0.0
    %5346 = vmatpush1.msra.mxu0 %v4314
    %5347 = vmatprep.subr.mxu0 0.0
    %5348 = vmatpush1.msra.mxu0 %v4315
    %5349 = vmatprep.subr.mxu0 0.0
    %5350 = vmatpush1.msra.mxu0 %v4316
    %5351 = vmatprep.subr.mxu0 0.0
    %5352 = vmatpush1.msra.mxu0 %v4317
    %5353 = vmatprep.subr.mxu0 0.0
    %5354 = vmatpush1.msra.mxu0 %v4318
    %5355 = vmatprep.subr.mxu0 0.0
    %5356 = vmatpush1.msra.mxu0 %v4319
    %5357 = vmatprep.subr.mxu0 0.0
    %5358 = vmatpush1.msra.mxu0 %v4320
    %5359 = vmatprep.subr.mxu0 0.0
    %5360 = vmatpush1.msra.mxu0 %v4321
    %5361 = vmatprep.subr.mxu0 0.0
    %5362 = vmatpush1.msra.mxu0 %v4322
    %5363 = vmatprep.subr.mxu0 0.0
    %5364 = vmatpush1.msra.mxu0 %v4323
    %5365 = vmatprep.subr.mxu0 0.0
    %5366 = vmatpush1.msra.mxu0 %v4324
    %5367 = vmatprep.subr.mxu0 0.0
    %5368 = vmatpush1.msra.mxu0 %v4325
    %5369 = vmatprep.subr.mxu0 0.0
    %5370 = vmatpush1.msra.mxu0 %v4326
    %5371 = vmatprep.subr.mxu0 0.0
    %5372 = vmatpush1.msra.mxu0 %v4327
    %5373 = vmatprep.mubr.f32.mxu0 %v3875
    %5374 = vmatmul.mubr.f32.gmra.mrb[0].mxu0 %v3874
    %v5375 = vpop.f32.mrb[0].mxu0
    %v5376 = vadd.f32 %v5306, %v5375
    %v5377 = vpop.f32.mrb[0].mxu0
    %5378 = vdwg.mxu0
    %5379 = vmatprep.subr.mxu0 0.0
    %5380 = vmatpush1.msra.mxu0 %v4328
    %5381 = vmatprep.subr.mxu0 0.0
    %5382 = vmatpush1.msra.mxu0 %v4329
    %5383 = vmatprep.subr.mxu0 0.0
    %5384 = vmatpush1.msra.mxu0 %v4330
    %5385 = vmatprep.subr.mxu0 0.0
    %5386 = vmatpush1.msra.mxu0 %v4331
    %5387 = vmatprep.subr.mxu0 0.0
    %5388 = vmatpush1.msra.mxu0 %v4332
    %5389 = vmatprep.subr.mxu0 0.0
    %5390 = vmatpush1.msra.mxu0 %v4333
    %5391 = vmatprep.subr.mxu0 0.0
    %5392 = vmatpush1.msra.mxu0 %v4334
    %5393 = vmatprep.subr.mxu0 0.0
    %5394 = vmatpush1.msra.mxu0 %v4335
    %5395 = vmatprep.subr.mxu0 0.0
    %5396 = vmatpush1.msra.mxu0 %v4336
    %5397 = vmatprep.subr.mxu0 0.0
    %5398 = vmatpush1.msra.mxu0 %v4337
    %5399 = vmatprep.subr.mxu0 0.0
    %5400 = vmatpush1.msra.mxu0 %v4338
    %5401 = vmatprep.subr.mxu0 0.0
    %5402 = vmatpush1.msra.mxu0 %v4339
    %5403 = vmatprep.subr.mxu0 0.0
    %5404 = vmatpush1.msra.mxu0 %v4340
    %5405 = vmatprep.subr.mxu0 0.0
    %5406 = vmatpush1.msra.mxu0 %v4341
    %5407 = vmatprep.subr.mxu0 0.0
    %5408 = vmatpush1.msra.mxu0 %v4342
    %5409 = vmatprep.subr.mxu0 0.0
    %5410 = vmatpush1.msra.mxu0 %v4343
    %5411 = vmatprep.subr.mxu0 0.0
    %5412 = vmatpush1.msra.mxu0 %v4344
    %5413 = vmatprep.subr.mxu0 0.0
    %5414 = vmatpush1.msra.mxu0 %v4345
    %5415 = vmatprep.subr.mxu0 0.0
    %5416 = vmatpush1.msra.mxu0 %v4346
    %5417 = vmatprep.subr.mxu0 0.0
    %5418 = vmatpush1.msra.mxu0 %v4347
    %5419 = vmatprep.subr.mxu0 0.0
    %5420 = vmatpush1.msra.mxu0 %v4348
    %5421 = vmatprep.subr.mxu0 0.0
    %5422 = vmatpush1.msra.mxu0 %v4349
    %5423 = vmatprep.subr.mxu0 0.0
    %5424 = vmatpush1.msra.mxu0 %v4350
    %5425 = vmatprep.subr.mxu0 0.0
    %5426 = vmatpush1.msra.mxu0 %v4351
    %5427 = vmatprep.subr.mxu0 0.0
    %5428 = vmatpush1.msra.mxu0 %v4352
    %5429 = vmatprep.subr.mxu0 0.0
    %5430 = vmatpush1.msra.mxu0 %v4353
    %5431 = vmatprep.subr.mxu0 0.0
    %5432 = vmatpush1.msra.mxu0 %v4354
    %5433 = vmatprep.subr.mxu0 0.0
    %5434 = vmatpush1.msra.mxu0 %v4355
    %5435 = vmatprep.subr.mxu0 0.0
    %5436 = vmatpush1.msra.mxu0 %v4356
    %5437 = vmatprep.subr.mxu0 0.0
    %5438 = vmatpush1.msra.mxu0 %v4357
    %5439 = vmatprep.subr.mxu0 0.0
    %5440 = vmatpush1.msra.mxu0 %v4358
    %5441 = vmatprep.subr.mxu0 0.0
    %5442 = vmatpush1.msra.mxu0 %v4359
    %5443 = vmatprep.mubr.f32.mxu0 %v3877
    %5444 = vmatmul.mubr.f32.gmra.mrb[0].mxu0 %v3876
    %v5445 = vpop.f32.mrb[0].mxu0
    %v5446 = vadd.f32 %v5376, %v5445
    %v5447 = vpop.f32.mrb[0].mxu0
    %5448 = vdwg.mxu0
    %5449 = vmatprep.subr.mxu0 0.0
    %5450 = vmatpush1.msra.mxu0 %v4360
    %5451 = vmatprep.subr.mxu0 0.0
    %5452 = vmatpush1.msra.mxu0 %v4361
    %5453 = vmatprep.subr.mxu0 0.0
    %5454 = vmatpush1.msra.mxu0 %v4362
    %5455 = vmatprep.subr.mxu0 0.0
    %5456 = vmatpush1.msra.mxu0 %v4363
    %5457 = vmatprep.subr.mxu0 0.0
    %5458 = vmatpush1.msra.mxu0 %v4364
    %5459 = vmatprep.subr.mxu0 0.0
    %5460 = vmatpush1.msra.mxu0 %v4365
    %5461 = vmatprep.subr.mxu0 0.0
    %5462 = vmatpush1.msra.mxu0 %v4366
    %5463 = vmatprep.subr.mxu0 0.0
    %5464 = vmatpush1.msra.mxu0 %v4367
    %5465 = vmatprep.subr.mxu0 0.0
    %5466 = vmatpush1.msra.mxu0 %v4368
    %5467 = vmatprep.subr.mxu0 0.0
    %5468 = vmatpush1.msra.mxu0 %v4369
    %5469 = vmatprep.subr.mxu0 0.0
    %5470 = vmatpush1.msra.mxu0 %v4370
    %5471 = vmatprep.subr.mxu0 0.0
    %5472 = vmatpush1.msra.mxu0 %v4371
    %5473 = vmatprep.subr.mxu0 0.0
    %5474 = vmatpush1.msra.mxu0 %v4372
    %5475 = vmatprep.subr.mxu0 0.0
    %5476 = vmatpush1.msra.mxu0 %v4373
    %5477 = vmatprep.subr.mxu0 0.0
    %5478 = vmatpush1.msra.mxu0 %v4374
    %5479 = vmatprep.subr.mxu0 0.0
    %5480 = vmatpush1.msra.mxu0 %v4375
    %5481 = vmatprep.subr.mxu0 0.0
    %5482 = vmatpush1.msra.mxu0 %v4376
    %5483 = vmatprep.subr.mxu0 0.0
    %5484 = vmatpush1.msra.mxu0 %v4377
    %5485 = vmatprep.subr.mxu0 0.0
    %5486 = vmatpush1.msra.mxu0 %v4378
    %5487 = vmatprep.subr.mxu0 0.0
    %5488 = vmatpush1.msra.mxu0 %v4379
    %5489 = vmatprep.subr.mxu0 0.0
    %5490 = vmatpush1.msra.mxu0 %v4380
    %5491 = vmatprep.subr.mxu0 0.0
    %5492 = vmatpush1.msra.mxu0 %v4381
    %5493 = vmatprep.subr.mxu0 0.0
    %5494 = vmatpush1.msra.mxu0 %v4382
    %5495 = vmatprep.subr.mxu0 0.0
    %5496 = vmatpush1.msra.mxu0 %v4383
    %5497 = vmatprep.subr.mxu0 0.0
    %5498 = vmatpush1.msra.mxu0 %v4384
    %5499 = vmatprep.subr.mxu0 0.0
    %5500 = vmatpush1.msra.mxu0 %v4385
    %5501 = vmatprep.subr.mxu0 0.0
    %5502 = vmatpush1.msra.mxu0 %v4386
    %5503 = vmatprep.subr.mxu0 0.0
    %5504 = vmatpush1.msra.mxu0 %v4387
    %5505 = vmatprep.subr.mxu0 0.0
    %5506 = vmatpush1.msra.mxu0 %v4388
    %5507 = vmatprep.subr.mxu0 0.0
    %5508 = vmatpush1.msra.mxu0 %v4389
    %5509 = vmatprep.subr.mxu0 0.0
    %5510 = vmatpush1.msra.mxu0 %v4390
    %5511 = vmatprep.subr.mxu0 0.0
    %5512 = vmatpush1.msra.mxu0 %v4391
    %5513 = vmatprep.mubr.f32.mxu0 %v3879
    %5514 = vmatmul.mubr.f32.gmra.mrb[0].mxu0 %v3878
    %v5515 = vpop.f32.mrb[0].mxu0
    %v5516 = vadd.f32 %v5446, %v5515
    %v5517 = vpop.f32.mrb[0].mxu0
    %5518 = vdwg.mxu0
    %vm5519 = vcmp.gt.f32.partialorder %v5516, 0.0
    %v5520 = vmin.f32 %v5516, 0.0
    %v5521 = vmul.f32 %v5520, 1.442695
    %v5522 = vpow.pop %v5521
    %v5523 = vsub.f32 %v5522, 1.0
    %v5524 = vsel %vm5519, %v5516, %v5523
    %vm5525 = vcmask 252928
    %v5526 = vsel %vm5525, %v5524, 0.0
    %5527 = vadd.xlane.f32.xlu0 %v5526
    %v5528 = vpop.xlane.xlu0 %5527
    %v5529 = vrot.slane %v5528, 4
    %v5530 = vadd.f32 %v5528, %v5529
    %v5531 = vrot.slane %v5530, 2
    %v5532 = vadd.f32 %v5530, %v5531
    %v5533 = vrot.slane %v5532, 1
    %v5534 = vadd.f32 %v5532, %v5533
    %v5535 = vmul.f32 %v5524, %v5524
    %v5536 = vsel %vm5525, %v5535, 0.0
    %5537 = vadd.xlane.f32.xlu0 %v5536
    %v5538 = vpop.xlane.xlu0 %5537
    %v5539 = vrot.slane %v5538, 4
    %v5540 = vadd.f32 %v5538, %v5539
    %v5541 = vrot.slane %v5540, 2
    %v5542 = vadd.f32 %v5540, %v5541
    %v5543 = vrot.slane %v5542, 1
    %v5544 = vadd.f32 %v5542, %v5543
    %v5545 = vmul.f32 %v5534, 0.004032258
    %v5546 = vmul.f32 %v5544, 0.004032258
    %v5547 = vmul.f32 %v5545, %v5545
    %v5548 = vsub.f32 %v5546, %v5547
    %v5549 = vmax.f32 %v5548, 0.0
    %v5550 = vrsqrt.pop %v5549
    %s5551 = sld [smem:[#allocation16 + $0x8]]
    %v5552 = vstv %s5551
    %v5553 = vmul.f32 %v5550, %v5552
    %s5554 = sld [smem:[#allocation16 + $0xc]]
    %v5555 = vmul.f32 %v5545, %v5553
    %v5556 = vstv %s5554
    %v5557 = vsub.f32 %v5556, %v5555
    %v5558 = vmul.f32 %v5524, %v5553
    %v5559 = vadd.f32 %v5558, %v5557
    %5561 = vrot.lane.b32.xlu0 %v5559, 127
    %v5562 = vpop.permute.xlu0 %5561
    %v5564 = vmax.f32 %v5559, %v5562
    %5566 = vrot.lane.b32.xlu0 %v5564, 126
    %v5567 = vpop.permute.xlu0 %5566
    %v5569 = vmax.f32 %v5564, %v5567
    %v5570 = vld [vmem:[%s11] sm:$0xff]
    %v5571 = vld [vmem:[%s11 + $0x8] sm:$0xff]
    %v5572 = vld [vmem:[%s11 + $0x10] sm:$0xff]
    %v5573 = vld [vmem:[%s11 + $0x18] sm:$0xf]
    %vm5574 = vcmask 228352
    %v5576 = vsel %vm5574, %v5569, 0
    %vm5578 = vcmask 1043456
    %v5580 = vsel %vm5578, %v5573, 0
    %5582 = vmatprep.subr.mxu0 0.0
    %5583 = vmatpush1.msra.mxu0 %v5570
    %5584 = vmatprep.subr.mxu0 0.0
    %5585 = vmatpush1.msra.mxu0 %v5571
    %5586 = vmatprep.subr.mxu0 0.0
    %5587 = vmatpush1.msra.mxu0 %v5572
    %5588 = vmatprep.subr.mxu0 0.0
    %5589 = vmatpush1.msra.mxu0 %v5580
    %5590 = vmatprep.subr.mxu0 0.0
    %5591 = vmatpush1.msra.mxu0 0.0
    %5592 = vmatprep.subr.mxu0 0.0
    %5593 = vmatpush1.msra.mxu0 0.0
    %5594 = vmatprep.subr.mxu0 0.0
    %5595 = vmatpush1.msra.mxu0 0.0
    %5596 = vmatprep.subr.mxu0 0.0
    %5597 = vmatpush1.msra.mxu0 0.0
    %5598 = vmatprep.subr.mxu0 0.0
    %5599 = vmatpush1.msra.mxu0 0.0
    %5600 = vmatprep.subr.mxu0 0.0
    %5601 = vmatpush1.msra.mxu0 0.0
    %5602 = vmatprep.subr.mxu0 0.0
    %5603 = vmatpush1.msra.mxu0 0.0
    %5604 = vmatprep.subr.mxu0 0.0
    %5605 = vmatpush1.msra.mxu0 0.0
    %5606 = vmatprep.subr.mxu0 0.0
    %5607 = vmatpush1.msra.mxu0 0.0
    %5608 = vmatprep.subr.mxu0 0.0
    %5609 = vmatpush1.msra.mxu0 0.0
    %5610 = vmatprep.subr.mxu0 0.0
    %5611 = vmatpush1.msra.mxu0 0.0
    %5612 = vmatprep.subr.mxu0 0.0
    %5613 = vmatpush1.msra.mxu0 0.0
    %5614 = vmatprep.subr.mxu0 0.0
    %5615 = vmatpush1.msra.mxu0 0.0
    %5616 = vmatprep.subr.mxu0 0.0
    %5617 = vmatpush1.msra.mxu0 0.0
    %5618 = vmatprep.subr.mxu0 0.0
    %5619 = vmatpush1.msra.mxu0 0.0
    %5620 = vmatprep.subr.mxu0 0.0
    %5621 = vmatpush1.msra.mxu0 0.0
    %5622 = vmatprep.subr.mxu0 0.0
    %5623 = vmatpush1.msra.mxu0 0.0
    %5624 = vmatprep.subr.mxu0 0.0
    %5625 = vmatpush1.msra.mxu0 0.0
    %5626 = vmatprep.subr.mxu0 0.0
    %5627 = vmatpush1.msra.mxu0 0.0
    %5628 = vmatprep.subr.mxu0 0.0
    %5629 = vmatpush1.msra.mxu0 0.0
    %5630 = vmatprep.subr.mxu0 0.0
    %5631 = vmatpush1.msra.mxu0 0.0
    %5632 = vmatprep.subr.mxu0 0.0
    %5633 = vmatpush1.msra.mxu0 0.0
    %5634 = vmatprep.subr.mxu0 0.0
    %5635 = vmatpush1.msra.mxu0 0.0
    %5636 = vmatprep.subr.mxu0 0.0
    %5637 = vmatpush1.msra.mxu0 0.0
    %5638 = vmatprep.subr.mxu0 0.0
    %5639 = vmatpush1.msra.mxu0 0.0
    %5640 = vmatprep.subr.mxu0 0.0
    %5641 = vmatpush1.msra.mxu0 0.0
    %5642 = vmatprep.subr.mxu0 0.0
    %5643 = vmatpush1.msra.mxu0 0.0
    %5644 = vmatprep.subr.mxu0 0.0
    %5645 = vmatpush1.msra.mxu0 0.0
    %5646 = vmatprep.mubr.f32.mxu0 0.0
    %5647 = vmatmul.mubr.f32.gmra.mrb[0].mxu0 %v5576
    %v5648 = vpop.f32.mrb[0].mxu0
    %v5649 = vadd.f32 0.0, %v5648
    %v5650 = vpop.f32.mrb[0].mxu0
    %5651 = vdwg.mxu0
    %v5653 = vrot.slane %v5649, 1
    %v5655 = vmax.f32 %v5649, %v5653
    %v5656 = vld [vmem:[#allocation13] sm:$0xf]
    %vm5657 = vcmask 56320
    %v5659 = vsel %vm5657, %v5656, 0
    %v5662 = vsel %vm586, %v5655, 0
    %5664 = vmatprep.subr.mxu0 0.0
    %5665 = vmatpush1.msra.mxu0 %v5662
    %5666 = vmatprep.subr.mxu0 0.0
    %5667 = vmatpush1.msra.mxu0 0.0
    %5668 = vmatprep.subr.mxu0 0.0
    %5669 = vmatpush1.msra.mxu0 0.0
    %5670 = vmatprep.subr.mxu0 0.0
    %5671 = vmatpush1.msra.mxu0 0.0
    %5672 = vmatprep.subr.mxu0 0.0
    %5673 = vmatpush1.msra.mxu0 0.0
    %5674 = vmatprep.subr.mxu0 0.0
    %5675 = vmatpush1.msra.mxu0 0.0
    %5676 = vmatprep.subr.mxu0 0.0
    %5677 = vmatpush1.msra.mxu0 0.0
    %5678 = vmatprep.subr.mxu0 0.0
    %5679 = vmatpush1.msra.mxu0 0.0
    %5680 = vmatprep.subr.mxu0 0.0
    %5681 = vmatpush1.msra.mxu0 0.0
    %5682 = vmatprep.subr.mxu0 0.0
    %5683 = vmatpush1.msra.mxu0 0.0
    %5684 = vmatprep.subr.mxu0 0.0
    %5685 = vmatpush1.msra.mxu0 0.0
    %5686 = vmatprep.subr.mxu0 0.0
    %5687 = vmatpush1.msra.mxu0 0.0
    %5688 = vmatprep.subr.mxu0 0.0
    %5689 = vmatpush1.msra.mxu0 0.0
    %5690 = vmatprep.subr.mxu0 0.0
    %5691 = vmatpush1.msra.mxu0 0.0
    %5692 = vmatprep.subr.mxu0 0.0
    %5693 = vmatpush1.msra.mxu0 0.0
    %5694 = vmatprep.subr.mxu0 0.0
    %5695 = vmatpush1.msra.mxu0 0.0
    %5696 = vmatprep.subr.mxu0 0.0
    %5697 = vmatpush1.msra.mxu0 0.0
    %5698 = vmatprep.subr.mxu0 0.0
    %5699 = vmatpush1.msra.mxu0 0.0
    %5700 = vmatprep.subr.mxu0 0.0
    %5701 = vmatpush1.msra.mxu0 0.0
    %5702 = vmatprep.subr.mxu0 0.0
    %5703 = vmatpush1.msra.mxu0 0.0
    %5704 = vmatprep.subr.mxu0 0.0
    %5705 = vmatpush1.msra.mxu0 0.0
    %5706 = vmatprep.subr.mxu0 0.0
    %5707 = vmatpush1.msra.mxu0 0.0
    %5708 = vmatprep.subr.mxu0 0.0
    %5709 = vmatpush1.msra.mxu0 0.0
    %5710 = vmatprep.subr.mxu0 0.0
    %5711 = vmatpush1.msra.mxu0 0.0
    %5712 = vmatprep.subr.mxu0 0.0
    %5713 = vmatpush1.msra.mxu0 0.0
    %5714 = vmatprep.subr.mxu0 0.0
    %5715 = vmatpush1.msra.mxu0 0.0
    %5716 = vmatprep.subr.mxu0 0.0
    %5717 = vmatpush1.msra.mxu0 0.0
    %5718 = vmatprep.subr.mxu0 0.0
    %5719 = vmatpush1.msra.mxu0 0.0
    %5720 = vmatprep.subr.mxu0 0.0
    %5721 = vmatpush1.msra.mxu0 0.0
    %5722 = vmatprep.subr.mxu0 0.0
    %5723 = vmatpush1.msra.mxu0 0.0
    %5724 = vmatprep.subr.mxu0 0.0
    %5725 = vmatpush1.msra.mxu0 0.0
    %5726 = vmatprep.subr.mxu0 0.0
    %5727 = vmatpush1.msra.mxu0 0.0
    %5728 = vmatprep.mubr.f32.mxu0 0.0
    %5729 = vmatmul.mubr.f32.gmra.mrb[0].mxu0 %v5659
    %v5730 = vpop.f32.mrb[0].mxu0
    %v5731 = vadd.f32 0.0, %v5730
    %v5732 = vpop.f32.mrb[0].mxu0
    %5733 = vdwg.mxu0
    %v5734 = vld [vmem:[%s13] sm:$0xf]
    %v5735 = vmul.f32 %v5731, %v5734
    %vm5736 = vcmask 52224
    %v5737 = vsel %vm5736, %v5735, 0.0
    %5738 = vadd.xlane.f32.xlu0 %v5737
    %v5739 = vpop.xlane.xlu0 %5738
    %v5740 = vadd.f32 %v5739, 0.0
    %5742 = vrot.lane.b32.xlu0 %v5524, 97
    %v5743 = vpop.permute.xlu0 %5742
    %v5745 = vsel %vm5525, %v5743, 0.0
    %5746 = vadd.xlane.f32.xlu0 %v5745
    %v5747 = vpop.xlane.xlu0 %5746
    %v5748 = vrot.slane %v5747, 4
    %v5749 = vadd.f32 %v5747, %v5748
    %v5750 = vrot.slane %v5749, 2
    %v5751 = vadd.f32 %v5749, %v5750
    %v5752 = vrot.slane %v5751, 1
    %v5753 = vadd.f32 %v5751, %v5752
    %5755 = vrot.lane.b32.xlu0 %v5535, 97
    %v5756 = vpop.permute.xlu0 %5755
    %v5758 = vsel %vm5525, %v5756, 0.0
    %5759 = vadd.xlane.f32.xlu0 %v5758
    %v5760 = vpop.xlane.xlu0 %5759
    %v5761 = vrot.slane %v5760, 4
    %v5762 = vadd.f32 %v5760, %v5761
    %v5763 = vrot.slane %v5762, 2
    %v5764 = vadd.f32 %v5762, %v5763
    %v5765 = vrot.slane %v5764, 1
    %v5766 = vadd.f32 %v5764, %v5765
    %v5767 = vmul.f32 %v5753, 0.004032258
    %v5768 = vmul.f32 %v5766, 0.004032258
    %v5769 = vmul.f32 %v5767, %v5767
    %v5770 = vsub.f32 %v5768, %v5769
    %v5771 = vmax.f32 %v5770, 0.0
    %v5772 = vrsqrt.pop %v5771
    %s5773 = sld [smem:[#allocation16 + $0x9]]
    %v5774 = vstv %s5773
    %v5775 = vmul.f32 %v5772, %v5774
    %s5776 = sld [smem:[#allocation16 + $0xd]]
    %v5777 = vmul.f32 %v5767, %v5775
    %v5778 = vstv %s5776
    %v5779 = vsub.f32 %v5778, %v5777
    %v5780 = vmul.f32 %v5524, %v5775
    %v5781 = vadd.f32 %v5780, %v5779
    %5783 = vrot.lane.b32.xlu0 %v5781, 127
    %v5784 = vpop.permute.xlu0 %5783
    %v5786 = vmax.f32 %v5781, %v5784
    %5788 = vrot.lane.b32.xlu0 %v5786, 126
    %v5789 = vpop.permute.xlu0 %5788
    %v5791 = vmax.f32 %v5786, %v5789
    %5793 = vrot.lane.b32.xlu0 %v5791, 97
    %v5794 = vpop.permute.xlu0 %5793
    %v5795 = vsel %vm5574, %v5794, 0
    %5797 = vmatprep.subr.mxu0 0.0
    %5798 = vmatpush1.msra.mxu0 %v5570
    %5799 = vmatprep.subr.mxu0 0.0
    %5800 = vmatpush1.msra.mxu0 %v5571
    %5801 = vmatprep.subr.mxu0 0.0
    %5802 = vmatpush1.msra.mxu0 %v5572
    %5803 = vmatprep.subr.mxu0 0.0
    %5804 = vmatpush1.msra.mxu0 %v5580
    %5805 = vmatprep.subr.mxu0 0.0
    %5806 = vmatpush1.msra.mxu0 0.0
    %5807 = vmatprep.subr.mxu0 0.0
    %5808 = vmatpush1.msra.mxu0 0.0
    %5809 = vmatprep.subr.mxu0 0.0
    %5810 = vmatpush1.msra.mxu0 0.0
    %5811 = vmatprep.subr.mxu0 0.0
    %5812 = vmatpush1.msra.mxu0 0.0
    %5813 = vmatprep.subr.mxu0 0.0
    %5814 = vmatpush1.msra.mxu0 0.0
    %5815 = vmatprep.subr.mxu0 0.0
    %5816 = vmatpush1.msra.mxu0 0.0
    %5817 = vmatprep.subr.mxu0 0.0
    %5818 = vmatpush1.msra.mxu0 0.0
    %5819 = vmatprep.subr.mxu0 0.0
    %5820 = vmatpush1.msra.mxu0 0.0
    %5821 = vmatprep.subr.mxu0 0.0
    %5822 = vmatpush1.msra.mxu0 0.0
    %5823 = vmatprep.subr.mxu0 0.0
    %5824 = vmatpush1.msra.mxu0 0.0
    %5825 = vmatprep.subr.mxu0 0.0
    %5826 = vmatpush1.msra.mxu0 0.0
    %5827 = vmatprep.subr.mxu0 0.0
    %5828 = vmatpush1.msra.mxu0 0.0
    %5829 = vmatprep.subr.mxu0 0.0
    %5830 = vmatpush1.msra.mxu0 0.0
    %5831 = vmatprep.subr.mxu0 0.0
    %5832 = vmatpush1.msra.mxu0 0.0
    %5833 = vmatprep.subr.mxu0 0.0
    %5834 = vmatpush1.msra.mxu0 0.0
    %5835 = vmatprep.subr.mxu0 0.0
    %5836 = vmatpush1.msra.mxu0 0.0
    %5837 = vmatprep.subr.mxu0 0.0
    %5838 = vmatpush1.msra.mxu0 0.0
    %5839 = vmatprep.subr.mxu0 0.0
    %5840 = vmatpush1.msra.mxu0 0.0
    %5841 = vmatprep.subr.mxu0 0.0
    %5842 = vmatpush1.msra.mxu0 0.0
    %5843 = vmatprep.subr.mxu0 0.0
    %5844 = vmatpush1.msra.mxu0 0.0
    %5845 = vmatprep.subr.mxu0 0.0
    %5846 = vmatpush1.msra.mxu0 0.0
    %5847 = vmatprep.subr.mxu0 0.0
    %5848 = vmatpush1.msra.mxu0 0.0
    %5849 = vmatprep.subr.mxu0 0.0
    %5850 = vmatpush1.msra.mxu0 0.0
    %5851 = vmatprep.subr.mxu0 0.0
    %5852 = vmatpush1.msra.mxu0 0.0
    %5853 = vmatprep.subr.mxu0 0.0
    %5854 = vmatpush1.msra.mxu0 0.0
    %5855 = vmatprep.subr.mxu0 0.0
    %5856 = vmatpush1.msra.mxu0 0.0
    %5857 = vmatprep.subr.mxu0 0.0
    %5858 = vmatpush1.msra.mxu0 0.0
    %5859 = vmatprep.subr.mxu0 0.0
    %5860 = vmatpush1.msra.mxu0 0.0
    %5861 = vmatprep.mubr.f32.mxu0 0.0
    %5862 = vmatmul.mubr.f32.gmra.mrb[0].mxu0 %v5795
    %v5863 = vpop.f32.mrb[0].mxu0
    %v5864 = vadd.f32 0.0, %v5863
    %v5865 = vpop.f32.mrb[0].mxu0
    %5866 = vdwg.mxu0
    %v5868 = vrot.slane %v5864, 1
    %v5870 = vmax.f32 %v5864, %v5868
    %v5872 = vsel %vm586, %v5870, 0
    %5874 = vmatprep.subr.mxu0 0.0
    %5875 = vmatpush1.msra.mxu0 %v5872
    %5876 = vmatprep.subr.mxu0 0.0
    %5877 = vmatpush1.msra.mxu0 0.0
    %5878 = vmatprep.subr.mxu0 0.0
    %5879 = vmatpush1.msra.mxu0 0.0
    %5880 = vmatprep.subr.mxu0 0.0
    %5881 = vmatpush1.msra.mxu0 0.0
    %5882 = vmatprep.subr.mxu0 0.0
    %5883 = vmatpush1.msra.mxu0 0.0
    %5884 = vmatprep.subr.mxu0 0.0
    %5885 = vmatpush1.msra.mxu0 0.0
    %5886 = vmatprep.subr.mxu0 0.0
    %5887 = vmatpush1.msra.mxu0 0.0
    %5888 = vmatprep.subr.mxu0 0.0
    %5889 = vmatpush1.msra.mxu0 0.0
    %5890 = vmatprep.subr.mxu0 0.0
    %5891 = vmatpush1.msra.mxu0 0.0
    %5892 = vmatprep.subr.mxu0 0.0
    %5893 = vmatpush1.msra.mxu0 0.0
    %5894 = vmatprep.subr.mxu0 0.0
    %5895 = vmatpush1.msra.mxu0 0.0
    %5896 = vmatprep.subr.mxu0 0.0
    %5897 = vmatpush1.msra.mxu0 0.0
    %5898 = vmatprep.subr.mxu0 0.0
    %5899 = vmatpush1.msra.mxu0 0.0
    %5900 = vmatprep.subr.mxu0 0.0
    %5901 = vmatpush1.msra.mxu0 0.0
    %5902 = vmatprep.subr.mxu0 0.0
    %5903 = vmatpush1.msra.mxu0 0.0
    %5904 = vmatprep.subr.mxu0 0.0
    %5905 = vmatpush1.msra.mxu0 0.0
    %5906 = vmatprep.subr.mxu0 0.0
    %5907 = vmatpush1.msra.mxu0 0.0
    %5908 = vmatprep.subr.mxu0 0.0
    %5909 = vmatpush1.msra.mxu0 0.0
    %5910 = vmatprep.subr.mxu0 0.0
    %5911 = vmatpush1.msra.mxu0 0.0
    %5912 = vmatprep.subr.mxu0 0.0
    %5913 = vmatpush1.msra.mxu0 0.0
    %5914 = vmatprep.subr.mxu0 0.0
    %5915 = vmatpush1.msra.mxu0 0.0
    %5916 = vmatprep.subr.mxu0 0.0
    %5917 = vmatpush1.msra.mxu0 0.0
    %5918 = vmatprep.subr.mxu0 0.0
    %5919 = vmatpush1.msra.mxu0 0.0
    %5920 = vmatprep.subr.mxu0 0.0
    %5921 = vmatpush1.msra.mxu0 0.0
    %5922 = vmatprep.subr.mxu0 0.0
    %5923 = vmatpush1.msra.mxu0 0.0
    %5924 = vmatprep.subr.mxu0 0.0
    %5925 = vmatpush1.msra.mxu0 0.0
    %5926 = vmatprep.subr.mxu0 0.0
    %5927 = vmatpush1.msra.mxu0 0.0
    %5928 = vmatprep.subr.mxu0 0.0
    %5929 = vmatpush1.msra.mxu0 0.0
    %5930 = vmatprep.subr.mxu0 0.0
    %5931 = vmatpush1.msra.mxu0 0.0
    %5932 = vmatprep.subr.mxu0 0.0
    %5933 = vmatpush1.msra.mxu0 0.0
    %5934 = vmatprep.subr.mxu0 0.0
    %5935 = vmatpush1.msra.mxu0 0.0
    %5936 = vmatprep.subr.mxu0 0.0
    %5937 = vmatpush1.msra.mxu0 0.0
    %5938 = vmatprep.mubr.f32.mxu0 0.0
    %5939 = vmatmul.mubr.f32.gmra.mrb[0].mxu0 %v5659
    %v5940 = vpop.f32.mrb[0].mxu0
    %v5941 = vadd.f32 0.0, %v5940
    %v5942 = vpop.f32.mrb[0].mxu0
    %5943 = vdwg.mxu0
    %v5944 = vld [vmem:[%s13 + $0x4] sm:$0xf]
    %v5945 = vmul.f32 %v5941, %v5944
    %v5946 = vsel %vm5736, %v5945, 0.0
    %5947 = vadd.xlane.f32.xlu0 %v5946
    %v5948 = vpop.xlane.xlu0 %5947
    %v5949 = vadd.f32 %v5740, %v5948
    %5950 = vrot.lane.b32.xlu0 %v5524, 66
    %v5951 = vpop.permute.xlu0 %5950
    %v5953 = vsel %vm5525, %v5951, 0.0
    %5954 = vadd.xlane.f32.xlu0 %v5953
    %v5955 = vpop.xlane.xlu0 %5954
    %v5956 = vrot.slane %v5955, 4
    %v5957 = vadd.f32 %v5955, %v5956
    %v5958 = vrot.slane %v5957, 2
    %v5959 = vadd.f32 %v5957, %v5958
    %v5960 = vrot.slane %v5959, 1
    %v5961 = vadd.f32 %v5959, %v5960
    %5962 = vrot.lane.b32.xlu0 %v5535, 66
    %v5963 = vpop.permute.xlu0 %5962
    %v5965 = vsel %vm5525, %v5963, 0.0
    %5966 = vadd.xlane.f32.xlu0 %v5965
    %v5967 = vpop.xlane.xlu0 %5966
    %v5968 = vrot.slane %v5967, 4
    %v5969 = vadd.f32 %v5967, %v5968
    %v5970 = vrot.slane %v5969, 2
    %v5971 = vadd.f32 %v5969, %v5970
    %v5972 = vrot.slane %v5971, 1
    %v5973 = vadd.f32 %v5971, %v5972
    %v5974 = vmul.f32 %v5961, 0.004032258
    %v5975 = vmul.f32 %v5973, 0.004032258
    %v5976 = vmul.f32 %v5974, %v5974
    %v5977 = vsub.f32 %v5975, %v5976
    %v5978 = vmax.f32 %v5977, 0.0
    %v5979 = vrsqrt.pop %v5978
    %s5980 = sld [smem:[#allocation16 + $0xa]]
    %v5981 = vstv %s5980
    %v5982 = vmul.f32 %v5979, %v5981
    %s5983 = sld [smem:[#allocation16 + $0xe]]
    %v5984 = vmul.f32 %v5974, %v5982
    %v5985 = vstv %s5983
    %v5986 = vsub.f32 %v5985, %v5984
    %v5987 = vmul.f32 %v5524, %v5982
    %v5988 = vadd.f32 %v5987, %v5986
    %5990 = vrot.lane.b32.xlu0 %v5988, 127
    %v5991 = vpop.permute.xlu0 %5990
    %v5993 = vmax.f32 %v5988, %v5991
    %5995 = vrot.lane.b32.xlu0 %v5993, 126
    %v5996 = vpop.permute.xlu0 %5995
    %v5998 = vmax.f32 %v5993, %v5996
    %6000 = vrot.lane.b32.xlu0 %v5998, 66
    %v6001 = vpop.permute.xlu0 %6000
    %v6002 = vsel %vm5574, %v6001, 0
    %6004 = vmatprep.subr.mxu0 0.0
    %6005 = vmatpush1.msra.mxu0 %v5570
    %6006 = vmatprep.subr.mxu0 0.0
    %6007 = vmatpush1.msra.mxu0 %v5571
    %6008 = vmatprep.subr.mxu0 0.0
    %6009 = vmatpush1.msra.mxu0 %v5572
    %6010 = vmatprep.subr.mxu0 0.0
    %6011 = vmatpush1.msra.mxu0 %v5580
    %6012 = vmatprep.subr.mxu0 0.0
    %6013 = vmatpush1.msra.mxu0 0.0
    %6014 = vmatprep.subr.mxu0 0.0
    %6015 = vmatpush1.msra.mxu0 0.0
    %6016 = vmatprep.subr.mxu0 0.0
    %6017 = vmatpush1.msra.mxu0 0.0
    %6018 = vmatprep.subr.mxu0 0.0
    %6019 = vmatpush1.msra.mxu0 0.0
    %6020 = vmatprep.subr.mxu0 0.0
    %6021 = vmatpush1.msra.mxu0 0.0
    %6022 = vmatprep.subr.mxu0 0.0
    %6023 = vmatpush1.msra.mxu0 0.0
    %6024 = vmatprep.subr.mxu0 0.0
    %6025 = vmatpush1.msra.mxu0 0.0
    %6026 = vmatprep.subr.mxu0 0.0
    %6027 = vmatpush1.msra.mxu0 0.0
    %6028 = vmatprep.subr.mxu0 0.0
    %6029 = vmatpush1.msra.mxu0 0.0
    %6030 = vmatprep.subr.mxu0 0.0
    %6031 = vmatpush1.msra.mxu0 0.0
    %6032 = vmatprep.subr.mxu0 0.0
    %6033 = vmatpush1.msra.mxu0 0.0
    %6034 = vmatprep.subr.mxu0 0.0
    %6035 = vmatpush1.msra.mxu0 0.0
    %6036 = vmatprep.subr.mxu0 0.0
    %6037 = vmatpush1.msra.mxu0 0.0
    %6038 = vmatprep.subr.mxu0 0.0
    %6039 = vmatpush1.msra.mxu0 0.0
    %6040 = vmatprep.subr.mxu0 0.0
    %6041 = vmatpush1.msra.mxu0 0.0
    %6042 = vmatprep.subr.mxu0 0.0
    %6043 = vmatpush1.msra.mxu0 0.0
    %6044 = vmatprep.subr.mxu0 0.0
    %6045 = vmatpush1.msra.mxu0 0.0
    %6046 = vmatprep.subr.mxu0 0.0
    %6047 = vmatpush1.msra.mxu0 0.0
    %6048 = vmatprep.subr.mxu0 0.0
    %6049 = vmatpush1.msra.mxu0 0.0
    %6050 = vmatprep.subr.mxu0 0.0
    %6051 = vmatpush1.msra.mxu0 0.0
    %6052 = vmatprep.subr.mxu0 0.0
    %6053 = vmatpush1.msra.mxu0 0.0
    %6054 = vmatprep.subr.mxu0 0.0
    %6055 = vmatpush1.msra.mxu0 0.0
    %6056 = vmatprep.subr.mxu0 0.0
    %6057 = vmatpush1.msra.mxu0 0.0
    %6058 = vmatprep.subr.mxu0 0.0
    %6059 = vmatpush1.msra.mxu0 0.0
    %6060 = vmatprep.subr.mxu0 0.0
    %6061 = vmatpush1.msra.mxu0 0.0
    %6062 = vmatprep.subr.mxu0 0.0
    %6063 = vmatpush1.msra.mxu0 0.0
    %6064 = vmatprep.subr.mxu0 0.0
    %6065 = vmatpush1.msra.mxu0 0.0
    %6066 = vmatprep.subr.mxu0 0.0
    %6067 = vmatpush1.msra.mxu0 0.0
    %6068 = vmatprep.mubr.f32.mxu0 0.0
    %6069 = vmatmul.mubr.f32.gmra.mrb[0].mxu0 %v6002
    %v6070 = vpop.f32.mrb[0].mxu0
    %v6071 = vadd.f32 0.0, %v6070
    %v6072 = vpop.f32.mrb[0].mxu0
    %6073 = vdwg.mxu0
    %v6075 = vrot.slane %v6071, 1
    %v6077 = vmax.f32 %v6071, %v6075
    %v6079 = vsel %vm586, %v6077, 0
    %6081 = vmatprep.subr.mxu0 0.0
    %6082 = vmatpush1.msra.mxu0 %v6079
    %6083 = vmatprep.subr.mxu0 0.0
    %6084 = vmatpush1.msra.mxu0 0.0
    %6085 = vmatprep.subr.mxu0 0.0
    %6086 = vmatpush1.msra.mxu0 0.0
    %6087 = vmatprep.subr.mxu0 0.0
    %6088 = vmatpush1.msra.mxu0 0.0
    %6089 = vmatprep.subr.mxu0 0.0
    %6090 = vmatpush1.msra.mxu0 0.0
    %6091 = vmatprep.subr.mxu0 0.0
    %6092 = vmatpush1.msra.mxu0 0.0
    %6093 = vmatprep.subr.mxu0 0.0
    %6094 = vmatpush1.msra.mxu0 0.0
    %6095 = vmatprep.subr.mxu0 0.0
    %6096 = vmatpush1.msra.mxu0 0.0
    %6097 = vmatprep.subr.mxu0 0.0
    %6098 = vmatpush1.msra.mxu0 0.0
    %6099 = vmatprep.subr.mxu0 0.0
    %6100 = vmatpush1.msra.mxu0 0.0
    %6101 = vmatprep.subr.mxu0 0.0
    %6102 = vmatpush1.msra.mxu0 0.0
    %6103 = vmatprep.subr.mxu0 0.0
    %6104 = vmatpush1.msra.mxu0 0.0
    %6105 = vmatprep.subr.mxu0 0.0
    %6106 = vmatpush1.msra.mxu0 0.0
    %6107 = vmatprep.subr.mxu0 0.0
    %6108 = vmatpush1.msra.mxu0 0.0
    %6109 = vmatprep.subr.mxu0 0.0
    %6110 = vmatpush1.msra.mxu0 0.0
    %6111 = vmatprep.subr.mxu0 0.0
    %6112 = vmatpush1.msra.mxu0 0.0
    %6113 = vmatprep.subr.mxu0 0.0
    %6114 = vmatpush1.msra.mxu0 0.0
    %6115 = vmatprep.subr.mxu0 0.0
    %6116 = vmatpush1.msra.mxu0 0.0
    %6117 = vmatprep.subr.mxu0 0.0
    %6118 = vmatpush1.msra.mxu0 0.0
    %6119 = vmatprep.subr.mxu0 0.0
    %6120 = vmatpush1.msra.mxu0 0.0
    %6121 = vmatprep.subr.mxu0 0.0
    %6122 = vmatpush1.msra.mxu0 0.0
    %6123 = vmatprep.subr.mxu0 0.0
    %6124 = vmatpush1.msra.mxu0 0.0
    %6125 = vmatprep.subr.mxu0 0.0
    %6126 = vmatpush1.msra.mxu0 0.0
    %6127 = vmatprep.subr.mxu0 0.0
    %6128 = vmatpush1.msra.mxu0 0.0
    %6129 = vmatprep.subr.mxu0 0.0
    %6130 = vmatpush1.msra.mxu0 0.0
    %6131 = vmatprep.subr.mxu0 0.0
    %6132 = vmatpush1.msra.mxu0 0.0
    %6133 = vmatprep.subr.mxu0 0.0
    %6134 = vmatpush1.msra.mxu0 0.0
    %6135 = vmatprep.subr.mxu0 0.0
    %6136 = vmatpush1.msra.mxu0 0.0
    %6137 = vmatprep.subr.mxu0 0.0
    %6138 = vmatpush1.msra.mxu0 0.0
    %6139 = vmatprep.subr.mxu0 0.0
    %6140 = vmatpush1.msra.mxu0 0.0
    %6141 = vmatprep.subr.mxu0 0.0
    %6142 = vmatpush1.msra.mxu0 0.0
    %6143 = vmatprep.subr.mxu0 0.0
    %6144 = vmatpush1.msra.mxu0 0.0
    %6145 = vmatprep.mubr.f32.mxu0 0.0
    %6146 = vmatmul.mubr.f32.gmra.mrb[0].mxu0 %v5659
    %v6147 = vpop.f32.mrb[0].mxu0
    %v6148 = vadd.f32 0.0, %v6147
    %v6149 = vpop.f32.mrb[0].mxu0
    %6150 = vdwg.mxu0
    %v6151 = vld [vmem:[%s13 + $0x8] sm:$0xf]
    %v6152 = vmul.f32 %v6148, %v6151
    %v6153 = vsel %vm5736, %v6152, 0.0
    %6154 = vadd.xlane.f32.xlu0 %v6153
    %v6155 = vpop.xlane.xlu0 %6154
    %v6156 = vadd.f32 %v5949, %v6155
    %6157 = vrot.lane.b32.xlu0 %v5524, 35
    %v6158 = vpop.permute.xlu0 %6157
    %v6160 = vsel %vm5525, %v6158, 0.0
    %6161 = vadd.xlane.f32.xlu0 %v6160
    %v6162 = vpop.xlane.xlu0 %6161
    %v6163 = vrot.slane %v6162, 4
    %v6164 = vadd.f32 %v6162, %v6163
    %v6165 = vrot.slane %v6164, 2
    %v6166 = vadd.f32 %v6164, %v6165
    %v6167 = vrot.slane %v6166, 1
    %v6168 = vadd.f32 %v6166, %v6167
    %6169 = vrot.lane.b32.xlu0 %v5535, 35
    %v6170 = vpop.permute.xlu0 %6169
    %v6172 = vsel %vm5525, %v6170, 0.0
    %6173 = vadd.xlane.f32.xlu0 %v6172
    %v6174 = vpop.xlane.xlu0 %6173
    %v6175 = vrot.slane %v6174, 4
    %v6176 = vadd.f32 %v6174, %v6175
    %v6177 = vrot.slane %v6176, 2
    %v6178 = vadd.f32 %v6176, %v6177
    %v6179 = vrot.slane %v6178, 1
    %v6180 = vadd.f32 %v6178, %v6179
    %v6181 = vmul.f32 %v6168, 0.004032258
    %v6182 = vmul.f32 %v6180, 0.004032258
    %v6183 = vmul.f32 %v6181, %v6181
    %v6184 = vsub.f32 %v6182, %v6183
    %v6185 = vmax.f32 %v6184, 0.0
    %v6186 = vrsqrt.pop %v6185
    %s6187 = sld [smem:[#allocation16 + $0xb]]
    %v6188 = vstv %s6187
    %v6189 = vmul.f32 %v6186, %v6188
    %s6190 = sld [smem:[#allocation16 + $0xf]]
    %v6191 = vmul.f32 %v6181, %v6189
    %v6192 = vstv %s6190
    %v6193 = vsub.f32 %v6192, %v6191
    %v6194 = vmul.f32 %v5524, %v6189
    %v6195 = vadd.f32 %v6194, %v6193
    %6197 = vrot.lane.b32.xlu0 %v6195, 127
    %v6198 = vpop.permute.xlu0 %6197
    %v6200 = vmax.f32 %v6195, %v6198
    %6202 = vrot.lane.b32.xlu0 %v6200, 126
    %v6203 = vpop.permute.xlu0 %6202
    %v6205 = vmax.f32 %v6200, %v6203
    %6207 = vrot.lane.b32.xlu0 %v6205, 35
    %v6208 = vpop.permute.xlu0 %6207
    %v6209 = vsel %vm5574, %v6208, 0
    %6211 = vmatprep.subr.mxu0 0.0
    %6212 = vmatpush1.msra.mxu0 %v5570
    %6213 = vmatprep.subr.mxu0 0.0
    %6214 = vmatpush1.msra.mxu0 %v5571
    %6215 = vmatprep.subr.mxu0 0.0
    %6216 = vmatpush1.msra.mxu0 %v5572
    %6217 = vmatprep.subr.mxu0 0.0
    %6218 = vmatpush1.msra.mxu0 %v5580
    %6219 = vmatprep.subr.mxu0 0.0
    %6220 = vmatpush1.msra.mxu0 0.0
    %6221 = vmatprep.subr.mxu0 0.0
    %6222 = vmatpush1.msra.mxu0 0.0
    %6223 = vmatprep.subr.mxu0 0.0
    %6224 = vmatpush1.msra.mxu0 0.0
    %6225 = vmatprep.subr.mxu0 0.0
    %6226 = vmatpush1.msra.mxu0 0.0
    %6227 = vmatprep.subr.mxu0 0.0
    %6228 = vmatpush1.msra.mxu0 0.0
    %6229 = vmatprep.subr.mxu0 0.0
    %6230 = vmatpush1.msra.mxu0 0.0
    %6231 = vmatprep.subr.mxu0 0.0
    %6232 = vmatpush1.msra.mxu0 0.0
    %6233 = vmatprep.subr.mxu0 0.0
    %6234 = vmatpush1.msra.mxu0 0.0
    %6235 = vmatprep.subr.mxu0 0.0
    %6236 = vmatpush1.msra.mxu0 0.0
    %6237 = vmatprep.subr.mxu0 0.0
    %6238 = vmatpush1.msra.mxu0 0.0
    %6239 = vmatprep.subr.mxu0 0.0
    %6240 = vmatpush1.msra.mxu0 0.0
    %6241 = vmatprep.subr.mxu0 0.0
    %6242 = vmatpush1.msra.mxu0 0.0
    %6243 = vmatprep.subr.mxu0 0.0
    %6244 = vmatpush1.msra.mxu0 0.0
    %6245 = vmatprep.subr.mxu0 0.0
    %6246 = vmatpush1.msra.mxu0 0.0
    %6247 = vmatprep.subr.mxu0 0.0
    %6248 = vmatpush1.msra.mxu0 0.0
    %6249 = vmatprep.subr.mxu0 0.0
    %6250 = vmatpush1.msra.mxu0 0.0
    %6251 = vmatprep.subr.mxu0 0.0
    %6252 = vmatpush1.msra.mxu0 0.0
    %6253 = vmatprep.subr.mxu0 0.0
    %6254 = vmatpush1.msra.mxu0 0.0
    %6255 = vmatprep.subr.mxu0 0.0
    %6256 = vmatpush1.msra.mxu0 0.0
    %6257 = vmatprep.subr.mxu0 0.0
    %6258 = vmatpush1.msra.mxu0 0.0
    %6259 = vmatprep.subr.mxu0 0.0
    %6260 = vmatpush1.msra.mxu0 0.0
    %6261 = vmatprep.subr.mxu0 0.0
    %6262 = vmatpush1.msra.mxu0 0.0
    %6263 = vmatprep.subr.mxu0 0.0
    %6264 = vmatpush1.msra.mxu0 0.0
    %6265 = vmatprep.subr.mxu0 0.0
    %6266 = vmatpush1.msra.mxu0 0.0
    %6267 = vmatprep.subr.mxu0 0.0
    %6268 = vmatpush1.msra.mxu0 0.0
    %6269 = vmatprep.subr.mxu0 0.0
    %6270 = vmatpush1.msra.mxu0 0.0
    %6271 = vmatprep.subr.mxu0 0.0
    %6272 = vmatpush1.msra.mxu0 0.0
    %6273 = vmatprep.subr.mxu0 0.0
    %6274 = vmatpush1.msra.mxu0 0.0
    %6275 = vmatprep.mubr.f32.mxu0 0.0
    %6276 = vmatmul.mubr.f32.gmra.mrb[0].mxu0 %v6209
    %v6277 = vpop.f32.mrb[0].mxu0
    %v6278 = vadd.f32 0.0, %v6277
    %v6279 = vpop.f32.mrb[0].mxu0
    %6280 = vdwg.mxu0
    %v6282 = vrot.slane %v6278, 1
    %v6284 = vmax.f32 %v6278, %v6282
    %v6286 = vsel %vm586, %v6284, 0
    %6288 = vmatprep.subr.mxu0 0.0
    %6289 = vmatpush1.msra.mxu0 %v6286
    %6290 = vmatprep.subr.mxu0 0.0
    %6291 = vmatpush1.msra.mxu0 0.0
    %6292 = vmatprep.subr.mxu0 0.0
    %6293 = vmatpush1.msra.mxu0 0.0
    %6294 = vmatprep.subr.mxu0 0.0
    %6295 = vmatpush1.msra.mxu0 0.0
    %6296 = vmatprep.subr.mxu0 0.0
    %6297 = vmatpush1.msra.mxu0 0.0
    %6298 = vmatprep.subr.mxu0 0.0
    %6299 = vmatpush1.msra.mxu0 0.0
    %6300 = vmatprep.subr.mxu0 0.0
    %6301 = vmatpush1.msra.mxu0 0.0
    %6302 = vmatprep.subr.mxu0 0.0
    %6303 = vmatpush1.msra.mxu0 0.0
    %6304 = vmatprep.subr.mxu0 0.0
    %6305 = vmatpush1.msra.mxu0 0.0
    %6306 = vmatprep.subr.mxu0 0.0
    %6307 = vmatpush1.msra.mxu0 0.0
    %6308 = vmatprep.subr.mxu0 0.0
    %6309 = vmatpush1.msra.mxu0 0.0
    %6310 = vmatprep.subr.mxu0 0.0
    %6311 = vmatpush1.msra.mxu0 0.0
    %6312 = vmatprep.subr.mxu0 0.0
    %6313 = vmatpush1.msra.mxu0 0.0
    %6314 = vmatprep.subr.mxu0 0.0
    %6315 = vmatpush1.msra.mxu0 0.0
    %6316 = vmatprep.subr.mxu0 0.0
    %6317 = vmatpush1.msra.mxu0 0.0
    %6318 = vmatprep.subr.mxu0 0.0
    %6319 = vmatpush1.msra.mxu0 0.0
    %6320 = vmatprep.subr.mxu0 0.0
    %6321 = vmatpush1.msra.mxu0 0.0
    %6322 = vmatprep.subr.mxu0 0.0
    %6323 = vmatpush1.msra.mxu0 0.0
    %6324 = vmatprep.subr.mxu0 0.0
    %6325 = vmatpush1.msra.mxu0 0.0
    %6326 = vmatprep.subr.mxu0 0.0
    %6327 = vmatpush1.msra.mxu0 0.0
    %6328 = vmatprep.subr.mxu0 0.0
    %6329 = vmatpush1.msra.mxu0 0.0
    %6330 = vmatprep.subr.mxu0 0.0
    %6331 = vmatpush1.msra.mxu0 0.0
    %6332 = vmatprep.subr.mxu0 0.0
    %6333 = vmatpush1.msra.mxu0 0.0
    %6334 = vmatprep.subr.mxu0 0.0
    %6335 = vmatpush1.msra.mxu0 0.0
    %6336 = vmatprep.subr.mxu0 0.0
    %6337 = vmatpush1.msra.mxu0 0.0
    %6338 = vmatprep.subr.mxu0 0.0
    %6339 = vmatpush1.msra.mxu0 0.0
    %6340 = vmatprep.subr.mxu0 0.0
    %6341 = vmatpush1.msra.mxu0 0.0
    %6342 = vmatprep.subr.mxu0 0.0
    %6343 = vmatpush1.msra.mxu0 0.0
    %6344 = vmatprep.subr.mxu0 0.0
    %6345 = vmatpush1.msra.mxu0 0.0
    %6346 = vmatprep.subr.mxu0 0.0
    %6347 = vmatpush1.msra.mxu0 0.0
    %6348 = vmatprep.subr.mxu0 0.0
    %6349 = vmatpush1.msra.mxu0 0.0
    %6350 = vmatprep.subr.mxu0 0.0
    %6351 = vmatpush1.msra.mxu0 0.0
    %6352 = vmatprep.mubr.f32.mxu0 0.0
    %6353 = vmatmul.mubr.f32.gmra.mrb[0].mxu0 %v5659
    %v6354 = vpop.f32.mrb[0].mxu0
    %v6355 = vadd.f32 0.0, %v6354
    %v6356 = vpop.f32.mrb[0].mxu0
    %6357 = vdwg.mxu0
    %v6358 = vld [vmem:[%s13 + $0xc] sm:$0xf]
    %v6359 = vmul.f32 %v6355, %v6358
    %v6360 = vsel %vm5736, %v6359, 0.0
    %6361 = vadd.xlane.f32.xlu0 %v6360
    %v6362 = vpop.xlane.xlu0 %6361
    %v6363 = vadd.f32 %v6156, %v6362
    %v6364 = vld [vmem:[#allocation15] sm:$0x3]
    %s6365 = sld [smem:[#allocation16 + $0x10]]
    %v6366 = vstv %s6365
    %vm6367 = vcmask 31744
    %v6369 = vsel %vm6367, %v6364, 0
    %v6372 = vsel %vm5578, %v6363, 0
    %6374 = vmatprep.subr.mxu0 0.0
    %6375 = vmatpush1.msra.mxu0 %v6372
    %6376 = vmatprep.subr.mxu0 0.0
    %6377 = vmatpush1.msra.mxu0 0.0
    %6378 = vmatprep.subr.mxu0 0.0
    %6379 = vmatpush1.msra.mxu0 0.0
    %6380 = vmatprep.subr.mxu0 0.0
    %6381 = vmatpush1.msra.mxu0 0.0
    %6382 = vmatprep.subr.mxu0 0.0
    %6383 = vmatpush1.msra.mxu0 0.0
    %6384 = vmatprep.subr.mxu0 0.0
    %6385 = vmatpush1.msra.mxu0 0.0
    %6386 = vmatprep.subr.mxu0 0.0
    %6387 = vmatpush1.msra.mxu0 0.0
    %6388 = vmatprep.subr.mxu0 0.0
    %6389 = vmatpush1.msra.mxu0 0.0
    %6390 = vmatprep.subr.mxu0 0.0
    %6391 = vmatpush1.msra.mxu0 0.0
    %6392 = vmatprep.subr.mxu0 0.0
    %6393 = vmatpush1.msra.mxu0 0.0
    %6394 = vmatprep.subr.mxu0 0.0
    %6395 = vmatpush1.msra.mxu0 0.0
    %6396 = vmatprep.subr.mxu0 0.0
    %6397 = vmatpush1.msra.mxu0 0.0
    %6398 = vmatprep.subr.mxu0 0.0
    %6399 = vmatpush1.msra.mxu0 0.0
    %6400 = vmatprep.subr.mxu0 0.0
    %6401 = vmatpush1.msra.mxu0 0.0
    %6402 = vmatprep.subr.mxu0 0.0
    %6403 = vmatpush1.msra.mxu0 0.0
    %6404 = vmatprep.subr.mxu0 0.0
    %6405 = vmatpush1.msra.mxu0 0.0
    %6406 = vmatprep.subr.mxu0 0.0
    %6407 = vmatpush1.msra.mxu0 0.0
    %6408 = vmatprep.subr.mxu0 0.0
    %6409 = vmatpush1.msra.mxu0 0.0
    %6410 = vmatprep.subr.mxu0 0.0
    %6411 = vmatpush1.msra.mxu0 0.0
    %6412 = vmatprep.subr.mxu0 0.0
    %6413 = vmatpush1.msra.mxu0 0.0
    %6414 = vmatprep.subr.mxu0 0.0
    %6415 = vmatpush1.msra.mxu0 0.0
    %6416 = vmatprep.subr.mxu0 0.0
    %6417 = vmatpush1.msra.mxu0 0.0
    %6418 = vmatprep.subr.mxu0 0.0
    %6419 = vmatpush1.msra.mxu0 0.0
    %6420 = vmatprep.subr.mxu0 0.0
    %6421 = vmatpush1.msra.mxu0 0.0
    %6422 = vmatprep.subr.mxu0 0.0
    %6423 = vmatpush1.msra.mxu0 0.0
    %6424 = vmatprep.subr.mxu0 0.0
    %6425 = vmatpush1.msra.mxu0 0.0
    %6426 = vmatprep.subr.mxu0 0.0
    %6427 = vmatpush1.msra.mxu0 0.0
    %6428 = vmatprep.subr.mxu0 0.0
    %6429 = vmatpush1.msra.mxu0 0.0
    %6430 = vmatprep.subr.mxu0 0.0
    %6431 = vmatpush1.msra.mxu0 0.0
    %6432 = vmatprep.subr.mxu0 0.0
    %6433 = vmatpush1.msra.mxu0 0.0
    %6434 = vmatprep.subr.mxu0 0.0
    %6435 = vmatpush1.msra.mxu0 0.0
    %6436 = vmatprep.subr.mxu0 0.0
    %6437 = vmatpush1.msra.mxu0 0.0
    %6438 = vmatprep.mubr.f32.mxu0 0.0
    %6439 = vmatmul.mubr.f32.gmra.mrb[0].mxu0 %v6369
    %v6440 = vpop.f32.mrb[0].mxu0
    %v6441 = vadd.f32 %v6366, %v6440
    %v6442 = vpop.f32.mrb[0].mxu0
    %6443 = vdwg.mxu0
    %v6444 = vsub.f32 0.0, %v6441
    %v6445 = vmul.f32 %v6444, 1.442695
    %v6446 = vpow.pop %v6445
    %v6447 = vadd.f32 %v6446, 1.0
    %v6448 = vrcp.pop %v6447
    %v6449 = vmul.f32 1.0, %v6448
    %vm6450 = vcmask 1024
    %6451 = vst.msk [vmem:[%s16] sm:$0x3] %vm6450, %v6449
    // Predicated region
    $region98: #{eegnet_forward.1} parent=1 // pred_check
      _
    $region99: #{eegnet_forward.1} parent=1 // pred_check_branch
      %6453 = sbr.rel (0) target = $region101
    $region100: #{eegnet_forward.1} parent=1 // pred_region
      _
    $region101: #{eegnet_forward.1} parent=1 // pred_fallthru
      _
    // Predicated region
    $region102: #{eegnet_forward.1} parent=1 // pred_check
      _
    $region103: #{eegnet_forward.1} parent=1 // pred_check_branch
      %6455 = sbr.rel (0) target = $region105
    $region104: #{eegnet_forward.1} parent=1 // pred_region
      _
    $region105: #{eegnet_forward.1} parent=1 // pred_fallthru
      _
    %6456 = vsyncpa [#allocation5], 1
    %6457 = vsyncpa [#allocation8], 1
    %6458 = vsyncpa [#allocation11], 1
    %6459 = vsyncpa [#allocation14], 1
    %6460 = vsyncpa [#allocation6], 1

</llo_original>
